<compile_context>
chip_gen: v5e
topology: v5e:2x2
jax: 0.10.0
libtpu: 0.0.40
codegen_flags: <defaults>
</compile_context>

<pallas_src>
import functools

import jax
import jax.numpy as jnp
from jax import lax
from jax.experimental import pallas as pl
from jax.experimental.pallas import tpu as pltpu

_EPS = 1e-5  # PyTorch GroupNorm default eps


# ----------------------------- in-kernel helpers -----------------------------

def _gelu_exact(x):
    # nn.GELU() default is the exact erf-based GELU.  erf via the
    # Abramowitz & Stegun 7.1.26 polynomial (|err| <= 1.5e-7).  The divide is
    # kept exact (pl.reciprocal(approx=True) would move it to the EUP but its
    # approximation error risks the 1e-3 end-to-end check).
    z = x * 0.7071067811865476
    a = jnp.abs(z)
    t = 1.0 / (1.0 + 0.3275911 * a)
    poly = t * (0.254829592 + t * (-0.284496736 + t * (1.421413741
               + t * (-1.453152027 + t * 1.061405429))))
    erf_abs = 1.0 - poly * jnp.exp(-a * a)
    erf = jnp.where(z >= 0.0, erf_abs, -erf_abs)
    return 0.5 * x * (1.0 + erf)


def _group_norm(x, gamma, beta, inv_cnt):
    # GroupNorm(num_groups=1) on one sample: normalize over all of (S, C),
    # then per-channel affine.  x: (S, C); gamma/beta: (1, C).
    s1 = jnp.sum(x, axis=1, keepdims=True)                 # (S, 1)
    mu = jnp.sum(s1, axis=0, keepdims=True) * inv_cnt      # (1, 1)
    d = x - mu
    s2 = jnp.sum(d * d, axis=1, keepdims=True)
    var = jnp.sum(s2, axis=0, keepdims=True) * inv_cnt     # biased, as PyTorch
    return d * lax.rsqrt(var + _EPS) * gamma + beta


# --------------------------------- kernel ------------------------------------

def _layer_kernel(mask_ref, x_ref,
                  w1_ref, b1_ref, g1_ref, be1_ref,
                  w2_ref, b2_ref, g2_ref, be2_ref,
                  w3_ref, b3_ref, g3_ref, be3_ref,
                  *rest, depth, S, C, Bc, shifts, has_proj):
    if has_proj:
        pw_ref, pb_ref, o_ref, im_scr = rest
    else:
        o_ref, im_scr = rest
        pw_ref = pb_ref = None

    mask = mask_ref[...]                         # (S, 27*Bc) boundary mask
    h = x_ref[...]                               # (S, C) one sample
    inv_bn = 1.0 / float(S * Bc)
    inv_cn = 1.0 / float(S * C)

    for d in range(depth):                       # depth fused in one kernel
        residual = h

        # conv1 (1x1x1) + gn1
        t = jnp.dot(h, w1_ref[d], preferred_element_type=jnp.float32) + b1_ref[d]
        t = _group_norm(t, g1_ref[d], be1_ref[d], inv_bn)

        # conv2 (3x3x3, stride 1, pad 1): assemble lane-dense im2col operand
        # (27 rolled copies of t side by side), mask once, one matmul.
        for k in range(27):
            s = shifts[k]
            piece = t if s == 0 else pltpu.roll(t, shift=s, axis=0)
            im_scr[:, k * Bc:(k + 1) * Bc] = piece
        im = im_scr[...] * mask                  # (S, 27*Bc)
        t = jnp.dot(im, w2_ref[d], preferred_element_type=jnp.float32) + b2_ref[d]
        t = _group_norm(t, g2_ref[d], be2_ref[d], inv_bn)
        t = _gelu_exact(t)

        # conv3 (1x1x1) + gn3
        t = jnp.dot(t, w3_ref[d], preferred_element_type=jnp.float32) + b3_ref[d]
        t = _group_norm(t, g3_ref[d], be3_ref[d], inv_cn)

        # residual add + final activation (block projection is None: in == out)
        h = _gelu_exact(t + residual)

    if has_proj:                                 # layer-level 1x1x1 projection
        h = jnp.dot(h, pw_ref[...], preferred_element_type=jnp.float32) + pb_ref[...]

    o_ref[...] = h


# --------------------------------- wrapper -----------------------------------

def residual_layer(x_ncdhw, params, *, N, D, H, W, C_in, C_out):
    S = D * H * W
    bp = params["blocks"]
    depth = bp["w1"].shape[0]
    Bc = bp["w1"].shape[2]
    has_proj = params["proj"] is not None
    C_last = C_out if has_proj else C_in

    # NCDHW -> (N, S, C) channels-last
    x3 = jnp.transpose(x_ncdhw, (0, 2, 3, 4, 1)).reshape(N, S, C_in)

    # Static tap offsets / roll shifts (k = kd*9 + kh*3 + kw, cross-correlation)
    taps = [(kd - 1, kh - 1, kw - 1)
            for kd in range(3) for kh in range(3) for kw in range(3)]
    shifts = tuple((-(dd * H * W + dh * W + dw)) % S for dd, dh, dw in taps)

    # Boundary-validity mask, hoisted out of the kernel: (S, 27*Bc) f32,
    # column block k = 1.0 where neighbor (d+dd, h+dh, w+dw) is in range.
    p = jnp.arange(S, dtype=jnp.int32)
    wi = p % W
    hi = (p // W) % H
    di = p // (W * H)
    valid_cols = []
    for dd, dh, dw in taps:
        valid_cols.append((di + dd >= 0) & (di + dd < D)
                          & (hi + dh >= 0) & (hi + dh < H)
                          & (wi + dw >= 0) & (wi + dw < W))
    valid = jnp.stack(valid_cols, axis=1).astype(jnp.float32)     # (S, 27)
    mask = jnp.repeat(valid, Bc, axis=1)                          # (S, 27*Bc)

    # Stack the 27 conv2 taps into one (27*Bc, Bc) contraction weight per block.
    w2cat = bp["w2"].reshape(depth, 27 * Bc, Bc)

    kernel = functools.partial(_layer_kernel, depth=depth, S=S, C=C_in, Bc=Bc,
                               shifts=shifts, has_proj=has_proj)

    def full(arr):  # whole array resident in VMEM, constant across the grid
        return pl.BlockSpec(arr.shape, lambda n, _nd=arr.ndim: (0,) * _nd)

    inputs = [mask, x3,
              bp["w1"], bp["b1"], bp["g1"], bp["be1"],
              w2cat, bp["b2"], bp["g2"], bp["be2"],
              bp["w3"], bp["b3"], bp["g3"], bp["be3"]]
    in_specs = [full(mask),
                pl.BlockSpec((None, S, C_in), lambda n: (n, 0, 0))]
    in_specs += [full(a) for a in inputs[2:]]
    if has_proj:
        inputs += [params["proj"]["w"], params["proj"]["b"]]
        in_specs += [full(params["proj"]["w"]), full(params["proj"]["b"])]

    out = pl.pallas_call(
        kernel,
        out_shape=jax.ShapeDtypeStruct((N, S, C_last), jnp.float32),
        grid_spec=pltpu.PrefetchScalarGridSpec(
            num_scalar_prefetch=0,
            grid=(N,),
            in_specs=in_specs,
            out_specs=pl.BlockSpec((None, S, C_last), lambda n: (n, 0, 0)),
            scratch_shapes=[pltpu.VMEM((S, 27 * Bc), jnp.float32)]),
        compiler_params=pltpu.CompilerParams(
            dimension_semantics=("parallel",)),
    )(*inputs)

    return jnp.transpose(out.reshape(N, D, H, W, C_last), (0, 4, 1, 2, 3))


# ------------------------------ parameter init --------------------------------

def init_params(key, C_in, C_out, depth, reduction=4):
    Bc = C_in // reduction

    def nrm(k, shape, s):
        return s * jax.random.normal(k, shape, jnp.float32)

    ks = jax.random.split(key, 13)
    blocks = {
        "w1": nrm(ks[0], (depth, C_in, Bc), 0.2),
        "b1": nrm(ks[1], (depth, 1, Bc), 0.05),
        "g1": 1.0 + nrm(ks[2], (depth, 1, Bc), 0.1),
        "be1": nrm(ks[3], (depth, 1, Bc), 0.05),
        # w2[d, k, cin, cout] with k = kd*9 + kh*3 + kw (cross-correlation taps)
        "w2": nrm(ks[4], (depth, 27, Bc, Bc), 0.1),
        "b2": nrm(ks[5], (depth, 1, Bc), 0.05),
        "g2": 1.0 + nrm(ks[6], (depth, 1, Bc), 0.1),
        "be2": nrm(ks[7], (depth, 1, Bc), 0.05),
        "w3": nrm(ks[8], (depth, Bc, C_in), 0.2),
        "b3": nrm(ks[9], (depth, 1, C_in), 0.05),
        "g3": 1.0 + nrm(ks[10], (depth, 1, C_in), 0.1),
        "be3": nrm(ks[11], (depth, 1, C_in), 0.05),
    }
    proj = None
    if C_in != C_out:
        kw_, kb_ = jax.random.split(ks[12])
        proj = {"w": nrm(kw_, (C_in, C_out), 0.2),
                "b": nrm(kb_, (1, C_out), 0.05)}
    return {"blocks": blocks, "proj": proj}


# ------------------------- pure-JAX reference (check) -------------------------

def _ref_group_norm(x5, gamma, beta):
    mu = jnp.mean(x5, axis=(1, 2, 3, 4), keepdims=True)
    var = jnp.mean((x5 - mu) ** 2, axis=(1, 2, 3, 4), keepdims=True)
    return ((x5 - mu) * lax.rsqrt(var + _EPS)
            * gamma.reshape(1, 1, 1, 1, -1) + beta.reshape(1, 1, 1, 1, -1))


def _ref_block(x5, p):
    res = x5
    h = jnp.einsum('ndhwc,cb->ndhwb', x5, p["w1"]) + p["b1"].reshape(1, 1, 1, 1, -1)
    h = _ref_group_norm(h, p["g1"], p["be1"])
    Bc = p["w2"].shape[-1]
    w2 = p["w2"].reshape(3, 3, 3, Bc, Bc)
    h = lax.conv_general_dilated(h, w2, window_strides=(1, 1, 1), padding='SAME',
                                 dimension_numbers=('NDHWC', 'DHWIO', 'NDHWC'))
    h = h + p["b2"].reshape(1, 1, 1, 1, -1)
    h = _ref_group_norm(h, p["g2"], p["be2"])
    h = jax.nn.gelu(h, approximate=False)
    h = jnp.einsum('ndhwb,bc->ndhwc', h, p["w3"]) + p["b3"].reshape(1, 1, 1, 1, -1)
    h = _ref_group_norm(h, p["g3"], p["be3"])
    return jax.nn.gelu(h + res, approximate=False)


def _ref_layer(x_ncdhw, params):
    x5 = jnp.transpose(x_ncdhw, (0, 2, 3, 4, 1))
    bp = params["blocks"]
    depth = bp["w1"].shape[0]
    for d in range(depth):
        x5 = _ref_block(x5, {k: v[d] for k, v in bp.items()})
    if params["proj"] is not None:
        x5 = (jnp.einsum('ndhwc,co->ndhwo', x5, params["proj"]["w"])
              + params["proj"]["b"].reshape(1, 1, 1, 1, -1))
    return jnp.transpose(x5, (0, 4, 1, 2, 3))


# ----------------------------------- main -------------------------------------

if __name__ == "__main__":
    N, C_in, C_out, depth = 2, 32, 16, 2
    D = H = W = 4

    key = jax.random.PRNGKey(0)
    kx, kp = jax.random.split(key)
    x = jax.random.normal(kx, (N, C_in, D, H, W), jnp.float32)
    params = init_params(kp, C_in, C_out, depth, reduction=4)

    layer_fn = jax.jit(functools.partial(
        residual_layer, N=N, D=D, H=H, W=W, C_in=C_in, C_out=C_out))
    out = jax.block_until_ready(layer_fn(x, params))

    assert out.shape == (N, C_out, D, H, W), out.shape

    ref = _ref_layer(x, params)
    max_err = float(jnp.max(jnp.abs(out - ref)))
    assert max_err < 1e-3, f"mismatch vs reference: {max_err}"

    print("KERNEL_OK")
</pallas_src>

<mosaic_0001>
module attributes {stable_mosaic.version = 11 : i64} {
  func.func @_layer_kernel(%arg0: i32, %arg1: memref<64x216xf32, #tpu.memory_space<vmem>>, %arg2: memref<1x64x32xf32, #tpu.memory_space<vmem>>, %arg3: memref<2x32x8xf32, #tpu.memory_space<vmem>>, %arg4: memref<2x1x8xf32, #tpu.memory_space<vmem>>, %arg5: memref<2x1x8xf32, #tpu.memory_space<vmem>>, %arg6: memref<2x1x8xf32, #tpu.memory_space<vmem>>, %arg7: memref<2x216x8xf32, #tpu.memory_space<vmem>>, %arg8: memref<2x1x8xf32, #tpu.memory_space<vmem>>, %arg9: memref<2x1x8xf32, #tpu.memory_space<vmem>>, %arg10: memref<2x1x8xf32, #tpu.memory_space<vmem>>, %arg11: memref<2x8x32xf32, #tpu.memory_space<vmem>>, %arg12: memref<2x1x32xf32, #tpu.memory_space<vmem>>, %arg13: memref<2x1x32xf32, #tpu.memory_space<vmem>>, %arg14: memref<2x1x32xf32, #tpu.memory_space<vmem>>, %arg15: memref<32x16xf32, #tpu.memory_space<vmem>>, %arg16: memref<1x16xf32, #tpu.memory_space<vmem>>, %arg17: memref<1x64x16xf32, #tpu.memory_space<vmem>>, %arg18: memref<64x216xf32, #tpu.memory_space<vmem>>) attributes {dimension_semantics = [#tpu.dimension_semantics<parallel>], iteration_bounds = array<i64: 2>, scalar_prefetch = 0 : i64, scratch_operands = 1 : i64, tpu.core_type = #tpu.core_type<tc>, window_params = [{pipeline_mode = #tpu.pipeline_mode<synchronous>, transform_indices = @transform_0, window_bounds = array<i64: 64, 216>}, {transform_indices = @transform_1, window_bounds = array<i64: 1, 64, 32>}, {pipeline_mode = #tpu.pipeline_mode<synchronous>, transform_indices = @transform_2, window_bounds = array<i64: 2, 32, 8>}, {pipeline_mode = #tpu.pipeline_mode<synchronous>, transform_indices = @transform_3, window_bounds = array<i64: 2, 1, 8>}, {pipeline_mode = #tpu.pipeline_mode<synchronous>, transform_indices = @transform_4, window_bounds = array<i64: 2, 1, 8>}, {pipeline_mode = #tpu.pipeline_mode<synchronous>, transform_indices = @transform_5, window_bounds = array<i64: 2, 1, 8>}, {pipeline_mode = #tpu.pipeline_mode<synchronous>, transform_indices = @transform_6, window_bounds = array<i64: 2, 216, 8>}, {pipeline_mode = #tpu.pipeline_mode<synchronous>, transform_indices = @transform_7, window_bounds = array<i64: 2, 1, 8>}, {pipeline_mode = #tpu.pipeline_mode<synchronous>, transform_indices = @transform_8, window_bounds = array<i64: 2, 1, 8>}, {pipeline_mode = #tpu.pipeline_mode<synchronous>, transform_indices = @transform_9, window_bounds = array<i64: 2, 1, 8>}, {pipeline_mode = #tpu.pipeline_mode<synchronous>, transform_indices = @transform_10, window_bounds = array<i64: 2, 8, 32>}, {pipeline_mode = #tpu.pipeline_mode<synchronous>, transform_indices = @transform_11, window_bounds = array<i64: 2, 1, 32>}, {pipeline_mode = #tpu.pipeline_mode<synchronous>, transform_indices = @transform_12, window_bounds = array<i64: 2, 1, 32>}, {pipeline_mode = #tpu.pipeline_mode<synchronous>, transform_indices = @transform_13, window_bounds = array<i64: 2, 1, 32>}, {pipeline_mode = #tpu.pipeline_mode<synchronous>, transform_indices = @transform_14, window_bounds = array<i64: 32, 16>}, {pipeline_mode = #tpu.pipeline_mode<synchronous>, transform_indices = @transform_15, window_bounds = array<i64: 1, 16>}, {transform_indices = @transform_16, window_bounds = array<i64: 1, 64, 16>}]} {
    %c0 = arith.constant 0 : index
    %c0_0 = arith.constant 0 : index
    %0 = vector.load %arg1[%c0, %c0_0] : memref<64x216xf32, #tpu.memory_space<vmem>>, vector<64x216xf32>
    %c0_1 = arith.constant 0 : index
    %c0_2 = arith.constant 0 : index
    %c0_3 = arith.constant 0 : index
    %1 = vector.load %arg2[%c0_1, %c0_2, %c0_3] : memref<1x64x32xf32, #tpu.memory_space<vmem>>, vector<1x64x32xf32>
    %2 = vector.shape_cast %1 : vector<1x64x32xf32> to vector<64x32xf32>
    %c0_4 = arith.constant 0 : index
    %c0_5 = arith.constant 0 : index
    %c0_6 = arith.constant 0 : index
    %3 = vector.load %arg3[%c0_4, %c0_5, %c0_6] : memref<2x32x8xf32, #tpu.memory_space<vmem>>, vector<1x32x8xf32>
    %4 = vector.shape_cast %3 : vector<1x32x8xf32> to vector<32x8xf32>
    %cst = arith.constant dense<0.000000e+00> : vector<64x8xf32>
    %5 = tpu.matmul %2, %4, %cst {dimension_numbers = #tpu.dot_dimension_numbers<[1], [0], [0], [1], [0, 0, 1, 1], [], []>} : vector<64x32xf32>, vector<32x8xf32>, vector<64x8xf32> -> vector<64x8xf32>
    %c0_7 = arith.constant 0 : index
    %c0_8 = arith.constant 0 : index
    %c0_9 = arith.constant 0 : index
    %6 = vector.load %arg4[%c0_7, %c0_8, %c0_9] : memref<2x1x8xf32, #tpu.memory_space<vmem>>, vector<1x1x8xf32>
    %7 = vector.shape_cast %6 : vector<1x1x8xf32> to vector<1x8xf32>
    %8 = vector.broadcast %7 : vector<1x8xf32> to vector<64x8xf32>
    %9 = arith.addf %5, %8 : vector<64x8xf32>
    %c0_10 = arith.constant 0 : index
    %c0_11 = arith.constant 0 : index
    %c0_12 = arith.constant 0 : index
    %10 = vector.load %arg5[%c0_10, %c0_11, %c0_12] : memref<2x1x8xf32, #tpu.memory_space<vmem>>, vector<1x1x8xf32>
    %11 = vector.shape_cast %10 : vector<1x1x8xf32> to vector<1x8xf32>
    %c0_13 = arith.constant 0 : index
    %c0_14 = arith.constant 0 : index
    %c0_15 = arith.constant 0 : index
    %12 = vector.load %arg6[%c0_13, %c0_14, %c0_15] : memref<2x1x8xf32, #tpu.memory_space<vmem>>, vector<1x1x8xf32>
    %13 = vector.shape_cast %12 : vector<1x1x8xf32> to vector<1x8xf32>
    %cst_16 = arith.constant dense<0.000000e+00> : vector<64xf32>
    %14 = vector.multi_reduction <add>, %9, %cst_16 [1] : vector<64x8xf32> to vector<64xf32>
    %15 = vector.shape_cast %14 : vector<64xf32> to vector<64x1xf32>
    %cst_17 = arith.constant dense<0.000000e+00> : vector<1xf32>
    %16 = vector.multi_reduction <add>, %15, %cst_17 [0] : vector<64x1xf32> to vector<1xf32>
    %17 = vector.shape_cast %16 : vector<1xf32> to vector<1x1xf32>
    %cst_18 = arith.constant 0.001953125 : f32
    %18 = vector.broadcast %cst_18 : f32 to vector<1x1xf32>
    %19 = arith.mulf %17, %18 : vector<1x1xf32>
    %20 = vector.broadcast %19 : vector<1x1xf32> to vector<64x8xf32>
    %21 = arith.subf %9, %20 : vector<64x8xf32>
    %22 = arith.mulf %21, %21 : vector<64x8xf32>
    %cst_19 = arith.constant dense<0.000000e+00> : vector<64xf32>
    %23 = vector.multi_reduction <add>, %22, %cst_19 [1] : vector<64x8xf32> to vector<64xf32>
    %24 = vector.shape_cast %23 : vector<64xf32> to vector<64x1xf32>
    %cst_20 = arith.constant dense<0.000000e+00> : vector<1xf32>
    %25 = vector.multi_reduction <add>, %24, %cst_20 [0] : vector<64x1xf32> to vector<1xf32>
    %26 = vector.shape_cast %25 : vector<1xf32> to vector<1x1xf32>
    %cst_21 = arith.constant 0.001953125 : f32
    %27 = vector.broadcast %cst_21 : f32 to vector<1x1xf32>
    %28 = arith.mulf %26, %27 : vector<1x1xf32>
    %cst_22 = arith.constant 9.99999974E-6 : f32
    %29 = vector.broadcast %cst_22 : f32 to vector<1x1xf32>
    %30 = arith.addf %28, %29 : vector<1x1xf32>
    %31 = math.rsqrt %30 : vector<1x1xf32>
    %32 = vector.broadcast %31 : vector<1x1xf32> to vector<64x8xf32>
    %33 = arith.mulf %21, %32 : vector<64x8xf32>
    %34 = vector.broadcast %11 : vector<1x8xf32> to vector<64x8xf32>
    %35 = arith.mulf %33, %34 : vector<64x8xf32>
    %36 = vector.broadcast %13 : vector<1x8xf32> to vector<64x8xf32>
    %37 = arith.addf %35, %36 : vector<64x8xf32>
    %c21_i32 = arith.constant 21 : i32
    %38 = tpu.dynamic_rotate %37 by %c21_i32 dim 0 : vector<64x8xf32>, i32 -> vector<64x8xf32>
    %c0_23 = arith.constant 0 : index
    %c0_24 = arith.constant 0 : index
    %39 = vector.load %arg18[%c0_23, %c0_24] : memref<64x216xf32, #tpu.memory_space<vmem>>, vector<64x8xf32>
    tpu.vector_store %arg18[%c0_23, %c0_24], %38 {strides = array<i32>} : memref<64x216xf32, #tpu.memory_space<vmem>>, vector<64x8xf32>,
    %c20_i32 = arith.constant 20 : i32
    %40 = tpu.dynamic_rotate %37 by %c20_i32 dim 0 : vector<64x8xf32>, i32 -> vector<64x8xf32>
    %c0_25 = arith.constant 0 : index
    %c8 = arith.constant 8 : index
    %41 = vector.load %arg18[%c0_25, %c8] : memref<64x216xf32, #tpu.memory_space<vmem>>, vector<64x8xf32>
    tpu.vector_store %arg18[%c0_25, %c8], %40 {strides = array<i32>} : memref<64x216xf32, #tpu.memory_space<vmem>>, vector<64x8xf32>,
    %c19_i32 = arith.constant 19 : i32
    %42 = tpu.dynamic_rotate %37 by %c19_i32 dim 0 : vector<64x8xf32>, i32 -> vector<64x8xf32>
    %c0_26 = arith.constant 0 : index
    %c16 = arith.constant 16 : index
    %43 = vector.load %arg18[%c0_26, %c16] : memref<64x216xf32, #tpu.memory_space<vmem>>, vector<64x8xf32>
    tpu.vector_store %arg18[%c0_26, %c16], %42 {strides = array<i32>} : memref<64x216xf32, #tpu.memory_space<vmem>>, vector<64x8xf32>,
    %c17_i32 = arith.constant 17 : i32
    %44 = tpu.dynamic_rotate %37 by %c17_i32 dim 0 : vector<64x8xf32>, i32 -> vector<64x8xf32>
    %c0_27 = arith.constant 0 : index
    %c24 = arith.constant 24 : index
    %45 = vector.load %arg18[%c0_27, %c24] : memref<64x216xf32, #tpu.memory_space<vmem>>, vector<64x8xf32>
    tpu.vector_store %arg18[%c0_27, %c24], %44 {strides = array<i32>} : memref<64x216xf32, #tpu.memory_space<vmem>>, vector<64x8xf32>,
    %c16_i32 = arith.constant 16 : i32
    %46 = tpu.dynamic_rotate %37 by %c16_i32 dim 0 : vector<64x8xf32>, i32 -> vector<64x8xf32>
    %c0_28 = arith.constant 0 : index
    %c32 = arith.constant 32 : index
    %47 = vector.load %arg18[%c0_28, %c32] : memref<64x216xf32, #tpu.memory_space<vmem>>, vector<64x8xf32>
    tpu.vector_store %arg18[%c0_28, %c32], %46 {strides = array<i32>} : memref<64x216xf32, #tpu.memory_space<vmem>>, vector<64x8xf32>,
    %c15_i32 = arith.constant 15 : i32
    %48 = tpu.dynamic_rotate %37 by %c15_i32 dim 0 : vector<64x8xf32>, i32 -> vector<64x8xf32>
    %c0_29 = arith.constant 0 : index
    %c40 = arith.constant 40 : index
    %49 = vector.load %arg18[%c0_29, %c40] : memref<64x216xf32, #tpu.memory_space<vmem>>, vector<64x8xf32>
    tpu.vector_store %arg18[%c0_29, %c40], %48 {strides = array<i32>} : memref<64x216xf32, #tpu.memory_space<vmem>>, vector<64x8xf32>,
    %c13_i32 = arith.constant 13 : i32
    %50 = tpu.dynamic_rotate %37 by %c13_i32 dim 0 : vector<64x8xf32>, i32 -> vector<64x8xf32>
    %c0_30 = arith.constant 0 : index
    %c48 = arith.constant 48 : index
    %51 = vector.load %arg18[%c0_30, %c48] : memref<64x216xf32, #tpu.memory_space<vmem>>, vector<64x8xf32>
    tpu.vector_store %arg18[%c0_30, %c48], %50 {strides = array<i32>} : memref<64x216xf32, #tpu.memory_space<vmem>>, vector<64x8xf32>,
    %c12_i32 = arith.constant 12 : i32
    %52 = tpu.dynamic_rotate %37 by %c12_i32 dim 0 : vector<64x8xf32>, i32 -> vector<64x8xf32>
    %c0_31 = arith.constant 0 : index
    %c56 = arith.constant 56 : index
    %53 = vector.load %arg18[%c0_31, %c56] : memref<64x216xf32, #tpu.memory_space<vmem>>, vector<64x8xf32>
    tpu.vector_store %arg18[%c0_31, %c56], %52 {strides = array<i32>} : memref<64x216xf32, #tpu.memory_space<vmem>>, vector<64x8xf32>,
    %c11_i32 = arith.constant 11 : i32
    %54 = tpu.dynamic_rotate %37 by %c11_i32 dim 0 : vector<64x8xf32>, i32 -> vector<64x8xf32>
    %c0_32 = arith.constant 0 : index
    %c64 = arith.constant 64 : index
    %55 = vector.load %arg18[%c0_32, %c64] : memref<64x216xf32, #tpu.memory_space<vmem>>, vector<64x8xf32>
    tpu.vector_store %arg18[%c0_32, %c64], %54 {strides = array<i32>} : memref<64x216xf32, #tpu.memory_space<vmem>>, vector<64x8xf32>,
    %c5_i32 = arith.constant 5 : i32
    %56 = tpu.dynamic_rotate %37 by %c5_i32 dim 0 : vector<64x8xf32>, i32 -> vector<64x8xf32>
    %c0_33 = arith.constant 0 : index
    %c72 = arith.constant 72 : index
    %57 = vector.load %arg18[%c0_33, %c72] : memref<64x216xf32, #tpu.memory_space<vmem>>, vector<64x8xf32>
    tpu.vector_store %arg18[%c0_33, %c72], %56 {strides = array<i32>} : memref<64x216xf32, #tpu.memory_space<vmem>>, vector<64x8xf32>,
    %c4_i32 = arith.constant 4 : i32
    %58 = tpu.dynamic_rotate %37 by %c4_i32 dim 0 : vector<64x8xf32>, i32 -> vector<64x8xf32>
    %c0_34 = arith.constant 0 : index
    %c80 = arith.constant 80 : index
    %59 = vector.load %arg18[%c0_34, %c80] : memref<64x216xf32, #tpu.memory_space<vmem>>, vector<64x8xf32>
    tpu.vector_store %arg18[%c0_34, %c80], %58 {strides = array<i32>} : memref<64x216xf32, #tpu.memory_space<vmem>>, vector<64x8xf32>,
    %c3_i32 = arith.constant 3 : i32
    %60 = tpu.dynamic_rotate %37 by %c3_i32 dim 0 : vector<64x8xf32>, i32 -> vector<64x8xf32>
    %c0_35 = arith.constant 0 : index
    %c88 = arith.constant 88 : index
    %61 = vector.load %arg18[%c0_35, %c88] : memref<64x216xf32, #tpu.memory_space<vmem>>, vector<64x8xf32>
    tpu.vector_store %arg18[%c0_35, %c88], %60 {strides = array<i32>} : memref<64x216xf32, #tpu.memory_space<vmem>>, vector<64x8xf32>,
    %c1_i32 = arith.constant 1 : i32
    %62 = tpu.dynamic_rotate %37 by %c1_i32 dim 0 : vector<64x8xf32>, i32 -> vector<64x8xf32>
    %c0_36 = arith.constant 0 : index
    %c96 = arith.constant 96 : index
    %63 = vector.load %arg18[%c0_36, %c96] : memref<64x216xf32, #tpu.memory_space<vmem>>, vector<64x8xf32>
    tpu.vector_store %arg18[%c0_36, %c96], %62 {strides = array<i32>} : memref<64x216xf32, #tpu.memory_space<vmem>>, vector<64x8xf32>,
    %c0_37 = arith.constant 0 : index
    %c104 = arith.constant 104 : index
    %64 = vector.load %arg18[%c0_37, %c104] : memref<64x216xf32, #tpu.memory_space<vmem>>, vector<64x8xf32>
    tpu.vector_store %arg18[%c0_37, %c104], %37 {strides = array<i32>} : memref<64x216xf32, #tpu.memory_space<vmem>>, vector<64x8xf32>,
    %c63_i32 = arith.constant 63 : i32
    %65 = tpu.dynamic_rotate %37 by %c63_i32 dim 0 : vector<64x8xf32>, i32 -> vector<64x8xf32>
    %c0_38 = arith.constant 0 : index
    %c112 = arith.constant 112 : index
    %66 = vector.load %arg18[%c0_38, %c112] : memref<64x216xf32, #tpu.memory_space<vmem>>, vector<64x8xf32>
    tpu.vector_store %arg18[%c0_38, %c112], %65 {strides = array<i32>} : memref<64x216xf32, #tpu.memory_space<vmem>>, vector<64x8xf32>,
    %c61_i32 = arith.constant 61 : i32
    %67 = tpu.dynamic_rotate %37 by %c61_i32 dim 0 : vector<64x8xf32>, i32 -> vector<64x8xf32>
    %c0_39 = arith.constant 0 : index
    %c120 = arith.constant 120 : index
    %68 = vector.load %arg18[%c0_39, %c120] : memref<64x216xf32, #tpu.memory_space<vmem>>, vector<64x8xf32>
    tpu.vector_store %arg18[%c0_39, %c120], %67 {strides = array<i32>} : memref<64x216xf32, #tpu.memory_space<vmem>>, vector<64x8xf32>,
    %c60_i32 = arith.constant 60 : i32
    %69 = tpu.dynamic_rotate %37 by %c60_i32 dim 0 : vector<64x8xf32>, i32 -> vector<64x8xf32>
    %c0_40 = arith.constant 0 : index
    %c128 = arith.constant 128 : index
    %70 = vector.load %arg18[%c0_40, %c128] : memref<64x216xf32, #tpu.memory_space<vmem>>, vector<64x8xf32>
    tpu.vector_store %arg18[%c0_40, %c128], %69 {strides = array<i32>} : memref<64x216xf32, #tpu.memory_space<vmem>>, vector<64x8xf32>,
    %c59_i32 = arith.constant 59 : i32
    %71 = tpu.dynamic_rotate %37 by %c59_i32 dim 0 : vector<64x8xf32>, i32 -> vector<64x8xf32>
    %c0_41 = arith.constant 0 : index
    %c136 = arith.constant 136 : index
    %72 = vector.load %arg18[%c0_41, %c136] : memref<64x216xf32, #tpu.memory_space<vmem>>, vector<64x8xf32>
    tpu.vector_store %arg18[%c0_41, %c136], %71 {strides = array<i32>} : memref<64x216xf32, #tpu.memory_space<vmem>>, vector<64x8xf32>,
    %c53_i32 = arith.constant 53 : i32
    %73 = tpu.dynamic_rotate %37 by %c53_i32 dim 0 : vector<64x8xf32>, i32 -> vector<64x8xf32>
    %c0_42 = arith.constant 0 : index
    %c144 = arith.constant 144 : index
    %74 = vector.load %arg18[%c0_42, %c144] : memref<64x216xf32, #tpu.memory_space<vmem>>, vector<64x8xf32>
    tpu.vector_store %arg18[%c0_42, %c144], %73 {strides = array<i32>} : memref<64x216xf32, #tpu.memory_space<vmem>>, vector<64x8xf32>,
    %c52_i32 = arith.constant 52 : i32
    %75 = tpu.dynamic_rotate %37 by %c52_i32 dim 0 : vector<64x8xf32>, i32 -> vector<64x8xf32>
    %c0_43 = arith.constant 0 : index
    %c152 = arith.constant 152 : index
    %76 = vector.load %arg18[%c0_43, %c152] : memref<64x216xf32, #tpu.memory_space<vmem>>, vector<64x8xf32>
    tpu.vector_store %arg18[%c0_43, %c152], %75 {strides = array<i32>} : memref<64x216xf32, #tpu.memory_space<vmem>>, vector<64x8xf32>,
    %c51_i32 = arith.constant 51 : i32
    %77 = tpu.dynamic_rotate %37 by %c51_i32 dim 0 : vector<64x8xf32>, i32 -> vector<64x8xf32>
    %c0_44 = arith.constant 0 : index
    %c160 = arith.constant 160 : index
    %78 = vector.load %arg18[%c0_44, %c160] : memref<64x216xf32, #tpu.memory_space<vmem>>, vector<64x8xf32>
    tpu.vector_store %arg18[%c0_44, %c160], %77 {strides = array<i32>} : memref<64x216xf32, #tpu.memory_space<vmem>>, vector<64x8xf32>,
    %c49_i32 = arith.constant 49 : i32
    %79 = tpu.dynamic_rotate %37 by %c49_i32 dim 0 : vector<64x8xf32>, i32 -> vector<64x8xf32>
    %c0_45 = arith.constant 0 : index
    %c168 = arith.constant 168 : index
    %80 = vector.load %arg18[%c0_45, %c168] : memref<64x216xf32, #tpu.memory_space<vmem>>, vector<64x8xf32>
    tpu.vector_store %arg18[%c0_45, %c168], %79 {strides = array<i32>} : memref<64x216xf32, #tpu.memory_space<vmem>>, vector<64x8xf32>,
    %c48_i32 = arith.constant 48 : i32
    %81 = tpu.dynamic_rotate %37 by %c48_i32 dim 0 : vector<64x8xf32>, i32 -> vector<64x8xf32>
    %c0_46 = arith.constant 0 : index
    %c176 = arith.constant 176 : index
    %82 = vector.load %arg18[%c0_46, %c176] : memref<64x216xf32, #tpu.memory_space<vmem>>, vector<64x8xf32>
    tpu.vector_store %arg18[%c0_46, %c176], %81 {strides = array<i32>} : memref<64x216xf32, #tpu.memory_space<vmem>>, vector<64x8xf32>,
    %c47_i32 = arith.constant 47 : i32
    %83 = tpu.dynamic_rotate %37 by %c47_i32 dim 0 : vector<64x8xf32>, i32 -> vector<64x8xf32>
    %c0_47 = arith.constant 0 : index
    %c184 = arith.constant 184 : index
    %84 = vector.load %arg18[%c0_47, %c184] : memref<64x216xf32, #tpu.memory_space<vmem>>, vector<64x8xf32>
    tpu.vector_store %arg18[%c0_47, %c184], %83 {strides = array<i32>} : memref<64x216xf32, #tpu.memory_space<vmem>>, vector<64x8xf32>,
    %c45_i32 = arith.constant 45 : i32
    %85 = tpu.dynamic_rotate %37 by %c45_i32 dim 0 : vector<64x8xf32>, i32 -> vector<64x8xf32>
    %c0_48 = arith.constant 0 : index
    %c192 = arith.constant 192 : index
    %86 = vector.load %arg18[%c0_48, %c192] : memref<64x216xf32, #tpu.memory_space<vmem>>, vector<64x8xf32>
    tpu.vector_store %arg18[%c0_48, %c192], %85 {strides = array<i32>} : memref<64x216xf32, #tpu.memory_space<vmem>>, vector<64x8xf32>,
    %c44_i32 = arith.constant 44 : i32
    %87 = tpu.dynamic_rotate %37 by %c44_i32 dim 0 : vector<64x8xf32>, i32 -> vector<64x8xf32>
    %c0_49 = arith.constant 0 : index
    %c200 = arith.constant 200 : index
    %88 = vector.load %arg18[%c0_49, %c200] : memref<64x216xf32, #tpu.memory_space<vmem>>, vector<64x8xf32>
    tpu.vector_store %arg18[%c0_49, %c200], %87 {strides = array<i32>} : memref<64x216xf32, #tpu.memory_space<vmem>>, vector<64x8xf32>,
    %c43_i32 = arith.constant 43 : i32
    %89 = tpu.dynamic_rotate %37 by %c43_i32 dim 0 : vector<64x8xf32>, i32 -> vector<64x8xf32>
    %c0_50 = arith.constant 0 : index
    %c208 = arith.constant 208 : index
    %90 = vector.load %arg18[%c0_50, %c208] : memref<64x216xf32, #tpu.memory_space<vmem>>, vector<64x8xf32>
    tpu.vector_store %arg18[%c0_50, %c208], %89 {strides = array<i32>} : memref<64x216xf32, #tpu.memory_space<vmem>>, vector<64x8xf32>,
    %c0_51 = arith.constant 0 : index
    %c0_52 = arith.constant 0 : index
    %91 = vector.load %arg18[%c0_51, %c0_52] : memref<64x216xf32, #tpu.memory_space<vmem>>, vector<64x216xf32>
    %92 = arith.mulf %91, %0 : vector<64x216xf32>
    %c0_53 = arith.constant 0 : index
    %c0_54 = arith.constant 0 : index
    %c0_55 = arith.constant 0 : index
    %93 = vector.load %arg7[%c0_53, %c0_54, %c0_55] : memref<2x216x8xf32, #tpu.memory_space<vmem>>, vector<1x216x8xf32>
    %94 = vector.shape_cast %93 : vector<1x216x8xf32> to vector<216x8xf32>
    %cst_56 = arith.constant dense<0.000000e+00> : vector<64x8xf32>
    %95 = tpu.matmul %92, %94, %cst_56 {dimension_numbers = #tpu.dot_dimension_numbers<[1], [0], [0], [1], [0, 0, 1, 1], [], []>} : vector<64x216xf32>, vector<216x8xf32>, vector<64x8xf32> -> vector<64x8xf32>
    %c0_57 = arith.constant 0 : index
    %c0_58 = arith.constant 0 : index
    %c0_59 = arith.constant 0 : index
    %96 = vector.load %arg8[%c0_57, %c0_58, %c0_59] : memref<2x1x8xf32, #tpu.memory_space<vmem>>, vector<1x1x8xf32>
    %97 = vector.shape_cast %96 : vector<1x1x8xf32> to vector<1x8xf32>
    %98 = vector.broadcast %97 : vector<1x8xf32> to vector<64x8xf32>
    %99 = arith.addf %95, %98 : vector<64x8xf32>
    %c0_60 = arith.constant 0 : index
    %c0_61 = arith.constant 0 : index
    %c0_62 = arith.constant 0 : index
    %100 = vector.load %arg9[%c0_60, %c0_61, %c0_62] : memref<2x1x8xf32, #tpu.memory_space<vmem>>, vector<1x1x8xf32>
    %101 = vector.shape_cast %100 : vector<1x1x8xf32> to vector<1x8xf32>
    %c0_63 = arith.constant 0 : index
    %c0_64 = arith.constant 0 : index
    %c0_65 = arith.constant 0 : index
    %102 = vector.load %arg10[%c0_63, %c0_64, %c0_65] : memref<2x1x8xf32, #tpu.memory_space<vmem>>, vector<1x1x8xf32>
    %103 = vector.shape_cast %102 : vector<1x1x8xf32> to vector<1x8xf32>
    %cst_66 = arith.constant dense<0.000000e+00> : vector<64xf32>
    %104 = vector.multi_reduction <add>, %99, %cst_66 [1] : vector<64x8xf32> to vector<64xf32>
    %105 = vector.shape_cast %104 : vector<64xf32> to vector<64x1xf32>
    %cst_67 = arith.constant dense<0.000000e+00> : vector<1xf32>
    %106 = vector.multi_reduction <add>, %105, %cst_67 [0] : vector<64x1xf32> to vector<1xf32>
    %107 = vector.shape_cast %106 : vector<1xf32> to vector<1x1xf32>
    %cst_68 = arith.constant 0.001953125 : f32
    %108 = vector.broadcast %cst_68 : f32 to vector<1x1xf32>
    %109 = arith.mulf %107, %108 : vector<1x1xf32>
    %110 = vector.broadcast %109 : vector<1x1xf32> to vector<64x8xf32>
    %111 = arith.subf %99, %110 : vector<64x8xf32>
    %112 = arith.mulf %111, %111 : vector<64x8xf32>
    %cst_69 = arith.constant dense<0.000000e+00> : vector<64xf32>
    %113 = vector.multi_reduction <add>, %112, %cst_69 [1] : vector<64x8xf32> to vector<64xf32>
    %114 = vector.shape_cast %113 : vector<64xf32> to vector<64x1xf32>
    %cst_70 = arith.constant dense<0.000000e+00> : vector<1xf32>
    %115 = vector.multi_reduction <add>, %114, %cst_70 [0] : vector<64x1xf32> to vector<1xf32>
    %116 = vector.shape_cast %115 : vector<1xf32> to vector<1x1xf32>
    %cst_71 = arith.constant 0.001953125 : f32
    %117 = vector.broadcast %cst_71 : f32 to vector<1x1xf32>
    %118 = arith.mulf %116, %117 : vector<1x1xf32>
    %cst_72 = arith.constant 9.99999974E-6 : f32
    %119 = vector.broadcast %cst_72 : f32 to vector<1x1xf32>
    %120 = arith.addf %118, %119 : vector<1x1xf32>
    %121 = math.rsqrt %120 : vector<1x1xf32>
    %122 = vector.broadcast %121 : vector<1x1xf32> to vector<64x8xf32>
    %123 = arith.mulf %111, %122 : vector<64x8xf32>
    %124 = vector.broadcast %101 : vector<1x8xf32> to vector<64x8xf32>
    %125 = arith.mulf %123, %124 : vector<64x8xf32>
    %126 = vector.broadcast %103 : vector<1x8xf32> to vector<64x8xf32>
    %127 = arith.addf %125, %126 : vector<64x8xf32>
    %cst_73 = arith.constant 0.707106769 : f32
    %128 = vector.broadcast %cst_73 : f32 to vector<64x8xf32>
    %129 = arith.mulf %127, %128 : vector<64x8xf32>
    %130 = math.absf %129 : vector<64x8xf32>
    %cst_74 = arith.constant 0.327591091 : f32
    %131 = vector.broadcast %cst_74 : f32 to vector<64x8xf32>
    %132 = arith.mulf %131, %130 : vector<64x8xf32>
    %cst_75 = arith.constant 1.000000e+00 : f32
    %133 = vector.broadcast %cst_75 : f32 to vector<64x8xf32>
    %134 = arith.addf %133, %132 : vector<64x8xf32>
    %cst_76 = arith.constant 1.000000e+00 : f32
    %135 = vector.broadcast %cst_76 : f32 to vector<64x8xf32>
    %136 = arith.divf %135, %134 : vector<64x8xf32>
    %cst_77 = arith.constant 1.06140542 : f32
    %137 = vector.broadcast %cst_77 : f32 to vector<64x8xf32>
    %138 = arith.mulf %136, %137 : vector<64x8xf32>
    %cst_78 = arith.constant -1.45315206 : f32
    %139 = vector.broadcast %cst_78 : f32 to vector<64x8xf32>
    %140 = arith.addf %139, %138 : vector<64x8xf32>
    %141 = arith.mulf %136, %140 : vector<64x8xf32>
    %cst_79 = arith.constant 1.42141378 : f32
    %142 = vector.broadcast %cst_79 : f32 to vector<64x8xf32>
    %143 = arith.addf %142, %141 : vector<64x8xf32>
    %144 = arith.mulf %136, %143 : vector<64x8xf32>
    %cst_80 = arith.constant -0.284496725 : f32
    %145 = vector.broadcast %cst_80 : f32 to vector<64x8xf32>
    %146 = arith.addf %145, %144 : vector<64x8xf32>
    %147 = arith.mulf %136, %146 : vector<64x8xf32>
    %cst_81 = arith.constant 0.254829586 : f32
    %148 = vector.broadcast %cst_81 : f32 to vector<64x8xf32>
    %149 = arith.addf %148, %147 : vector<64x8xf32>
    %150 = arith.mulf %136, %149 : vector<64x8xf32>
    %cst_82 = arith.constant 0.000000e+00 : f32
    %151 = vector.broadcast %cst_82 : f32 to vector<64x8xf32>
    %152 = arith.subf %151, %130 : vector<64x8xf32>
    %153 = arith.mulf %152, %130 : vector<64x8xf32>
    %154 = math.exp %153 : vector<64x8xf32>
    %155 = arith.mulf %150, %154 : vector<64x8xf32>
    %cst_83 = arith.constant 1.000000e+00 : f32
    %156 = vector.broadcast %cst_83 : f32 to vector<64x8xf32>
    %157 = arith.subf %156, %155 : vector<64x8xf32>
    %cst_84 = arith.constant 0.000000e+00 : f32
    %158 = vector.broadcast %cst_84 : f32 to vector<64x8xf32>
    %159 = arith.cmpf oge, %129, %158 : vector<64x8xf32>
    %cst_85 = arith.constant 0.000000e+00 : f32
    %160 = vector.broadcast %cst_85 : f32 to vector<64x8xf32>
    %161 = arith.subf %160, %157 : vector<64x8xf32>
    %162 = arith.select %159, %157, %161 : vector<64x8xi1>, vector<64x8xf32>
    %cst_86 = arith.constant 5.000000e-01 : f32
    %163 = vector.broadcast %cst_86 : f32 to vector<64x8xf32>
    %164 = arith.mulf %163, %127 : vector<64x8xf32>
    %cst_87 = arith.constant 1.000000e+00 : f32
    %165 = vector.broadcast %cst_87 : f32 to vector<64x8xf32>
    %166 = arith.addf %165, %162 : vector<64x8xf32>
    %167 = arith.mulf %164, %166 : vector<64x8xf32>
    %c0_88 = arith.constant 0 : index
    %c0_89 = arith.constant 0 : index
    %c0_90 = arith.constant 0 : index
    %168 = vector.load %arg11[%c0_88, %c0_89, %c0_90] : memref<2x8x32xf32, #tpu.memory_space<vmem>>, vector<1x8x32xf32>
    %169 = vector.shape_cast %168 : vector<1x8x32xf32> to vector<8x32xf32>
    %cst_91 = arith.constant dense<0.000000e+00> : vector<64x32xf32>
    %170 = tpu.matmul %167, %169, %cst_91 {dimension_numbers = #tpu.dot_dimension_numbers<[1], [0], [0], [1], [0, 0, 1, 1], [], []>} : vector<64x8xf32>, vector<8x32xf32>, vector<64x32xf32> -> vector<64x32xf32>
    %c0_92 = arith.constant 0 : index
    %c0_93 = arith.constant 0 : index
    %c0_94 = arith.constant 0 : index
    %171 = vector.load %arg12[%c0_92, %c0_93, %c0_94] : memref<2x1x32xf32, #tpu.memory_space<vmem>>, vector<1x1x32xf32>
    %172 = vector.shape_cast %171 : vector<1x1x32xf32> to vector<1x32xf32>
    %173 = vector.broadcast %172 : vector<1x32xf32> to vector<64x32xf32>
    %174 = arith.addf %170, %173 : vector<64x32xf32>
    %c0_95 = arith.constant 0 : index
    %c0_96 = arith.constant 0 : index
    %c0_97 = arith.constant 0 : index
    %175 = vector.load %arg13[%c0_95, %c0_96, %c0_97] : memref<2x1x32xf32, #tpu.memory_space<vmem>>, vector<1x1x32xf32>
    %176 = vector.shape_cast %175 : vector<1x1x32xf32> to vector<1x32xf32>
    %c0_98 = arith.constant 0 : index
    %c0_99 = arith.constant 0 : index
    %c0_100 = arith.constant 0 : index
    %177 = vector.load %arg14[%c0_98, %c0_99, %c0_100] : memref<2x1x32xf32, #tpu.memory_space<vmem>>, vector<1x1x32xf32>
    %178 = vector.shape_cast %177 : vector<1x1x32xf32> to vector<1x32xf32>
    %cst_101 = arith.constant dense<0.000000e+00> : vector<64xf32>
    %179 = vector.multi_reduction <add>, %174, %cst_101 [1] : vector<64x32xf32> to vector<64xf32>
    %180 = vector.shape_cast %179 : vector<64xf32> to vector<64x1xf32>
    %cst_102 = arith.constant dense<0.000000e+00> : vector<1xf32>
    %181 = vector.multi_reduction <add>, %180, %cst_102 [0] : vector<64x1xf32> to vector<1xf32>
    %182 = vector.shape_cast %181 : vector<1xf32> to vector<1x1xf32>
    %cst_103 = arith.constant 4.8828125E-4 : f32
    %183 = vector.broadcast %cst_103 : f32 to vector<1x1xf32>
    %184 = arith.mulf %182, %183 : vector<1x1xf32>
    %185 = vector.broadcast %184 : vector<1x1xf32> to vector<64x32xf32>
    %186 = arith.subf %174, %185 : vector<64x32xf32>
    %187 = arith.mulf %186, %186 : vector<64x32xf32>
    %cst_104 = arith.constant dense<0.000000e+00> : vector<64xf32>
    %188 = vector.multi_reduction <add>, %187, %cst_104 [1] : vector<64x32xf32> to vector<64xf32>
    %189 = vector.shape_cast %188 : vector<64xf32> to vector<64x1xf32>
    %cst_105 = arith.constant dense<0.000000e+00> : vector<1xf32>
    %190 = vector.multi_reduction <add>, %189, %cst_105 [0] : vector<64x1xf32> to vector<1xf32>
    %191 = vector.shape_cast %190 : vector<1xf32> to vector<1x1xf32>
    %cst_106 = arith.constant 4.8828125E-4 : f32
    %192 = vector.broadcast %cst_106 : f32 to vector<1x1xf32>
    %193 = arith.mulf %191, %192 : vector<1x1xf32>
    %cst_107 = arith.constant 9.99999974E-6 : f32
    %194 = vector.broadcast %cst_107 : f32 to vector<1x1xf32>
    %195 = arith.addf %193, %194 : vector<1x1xf32>
    %196 = math.rsqrt %195 : vector<1x1xf32>
    %197 = vector.broadcast %196 : vector<1x1xf32> to vector<64x32xf32>
    %198 = arith.mulf %186, %197 : vector<64x32xf32>
    %199 = vector.broadcast %176 : vector<1x32xf32> to vector<64x32xf32>
    %200 = arith.mulf %198, %199 : vector<64x32xf32>
    %201 = vector.broadcast %178 : vector<1x32xf32> to vector<64x32xf32>
    %202 = arith.addf %200, %201 : vector<64x32xf32>
    %203 = arith.addf %202, %2 : vector<64x32xf32>
    %cst_108 = arith.constant 0.707106769 : f32
    %204 = vector.broadcast %cst_108 : f32 to vector<64x32xf32>
    %205 = arith.mulf %203, %204 : vector<64x32xf32>
    %206 = math.absf %205 : vector<64x32xf32>
    %cst_109 = arith.constant 0.327591091 : f32
    %207 = vector.broadcast %cst_109 : f32 to vector<64x32xf32>
    %208 = arith.mulf %207, %206 : vector<64x32xf32>
    %cst_110 = arith.constant 1.000000e+00 : f32
    %209 = vector.broadcast %cst_110 : f32 to vector<64x32xf32>
    %210 = arith.addf %209, %208 : vector<64x32xf32>
    %cst_111 = arith.constant 1.000000e+00 : f32
    %211 = vector.broadcast %cst_111 : f32 to vector<64x32xf32>
    %212 = arith.divf %211, %210 : vector<64x32xf32>
    %cst_112 = arith.constant 1.06140542 : f32
    %213 = vector.broadcast %cst_112 : f32 to vector<64x32xf32>
    %214 = arith.mulf %212, %213 : vector<64x32xf32>
    %cst_113 = arith.constant -1.45315206 : f32
    %215 = vector.broadcast %cst_113 : f32 to vector<64x32xf32>
    %216 = arith.addf %215, %214 : vector<64x32xf32>
    %217 = arith.mulf %212, %216 : vector<64x32xf32>
    %cst_114 = arith.constant 1.42141378 : f32
    %218 = vector.broadcast %cst_114 : f32 to vector<64x32xf32>
    %219 = arith.addf %218, %217 : vector<64x32xf32>
    %220 = arith.mulf %212, %219 : vector<64x32xf32>
    %cst_115 = arith.constant -0.284496725 : f32
    %221 = vector.broadcast %cst_115 : f32 to vector<64x32xf32>
    %222 = arith.addf %221, %220 : vector<64x32xf32>
    %223 = arith.mulf %212, %222 : vector<64x32xf32>
    %cst_116 = arith.constant 0.254829586 : f32
    %224 = vector.broadcast %cst_116 : f32 to vector<64x32xf32>
    %225 = arith.addf %224, %223 : vector<64x32xf32>
    %226 = arith.mulf %212, %225 : vector<64x32xf32>
    %cst_117 = arith.constant 0.000000e+00 : f32
    %227 = vector.broadcast %cst_117 : f32 to vector<64x32xf32>
    %228 = arith.subf %227, %206 : vector<64x32xf32>
    %229 = arith.mulf %228, %206 : vector<64x32xf32>
    %230 = math.exp %229 : vector<64x32xf32>
    %231 = arith.mulf %226, %230 : vector<64x32xf32>
    %cst_118 = arith.constant 1.000000e+00 : f32
    %232 = vector.broadcast %cst_118 : f32 to vector<64x32xf32>
    %233 = arith.subf %232, %231 : vector<64x32xf32>
    %cst_119 = arith.constant 0.000000e+00 : f32
    %234 = vector.broadcast %cst_119 : f32 to vector<64x32xf32>
    %235 = arith.cmpf oge, %205, %234 : vector<64x32xf32>
    %cst_120 = arith.constant 0.000000e+00 : f32
    %236 = vector.broadcast %cst_120 : f32 to vector<64x32xf32>
    %237 = arith.subf %236, %233 : vector<64x32xf32>
    %238 = arith.select %235, %233, %237 : vector<64x32xi1>, vector<64x32xf32>
    %cst_121 = arith.constant 5.000000e-01 : f32
    %239 = vector.broadcast %cst_121 : f32 to vector<64x32xf32>
    %240 = arith.mulf %239, %203 : vector<64x32xf32>
    %cst_122 = arith.constant 1.000000e+00 : f32
    %241 = vector.broadcast %cst_122 : f32 to vector<64x32xf32>
    %242 = arith.addf %241, %238 : vector<64x32xf32>
    %243 = arith.mulf %240, %242 : vector<64x32xf32>
    %c1 = arith.constant 1 : index
    %c0_123 = arith.constant 0 : index
    %c0_124 = arith.constant 0 : index
    %244 = vector.load %arg3[%c1, %c0_123, %c0_124] : memref<2x32x8xf32, #tpu.memory_space<vmem>>, vector<1x32x8xf32>
    %245 = vector.shape_cast %244 : vector<1x32x8xf32> to vector<32x8xf32>
    %cst_125 = arith.constant dense<0.000000e+00> : vector<64x8xf32>
    %246 = tpu.matmul %243, %245, %cst_125 {dimension_numbers = #tpu.dot_dimension_numbers<[1], [0], [0], [1], [0, 0, 1, 1], [], []>} : vector<64x32xf32>, vector<32x8xf32>, vector<64x8xf32> -> vector<64x8xf32>
    %c1_126 = arith.constant 1 : index
    %c0_127 = arith.constant 0 : index
    %c0_128 = arith.constant 0 : index
    %247 = vector.load %arg4[%c1_126, %c0_127, %c0_128] : memref<2x1x8xf32, #tpu.memory_space<vmem>>, vector<1x1x8xf32>
    %248 = vector.shape_cast %247 : vector<1x1x8xf32> to vector<1x8xf32>
    %249 = vector.broadcast %248 : vector<1x8xf32> to vector<64x8xf32>
    %250 = arith.addf %246, %249 : vector<64x8xf32>
    %c1_129 = arith.constant 1 : index
    %c0_130 = arith.constant 0 : index
    %c0_131 = arith.constant 0 : index
    %251 = vector.load %arg5[%c1_129, %c0_130, %c0_131] : memref<2x1x8xf32, #tpu.memory_space<vmem>>, vector<1x1x8xf32>
    %252 = vector.shape_cast %251 : vector<1x1x8xf32> to vector<1x8xf32>
    %c1_132 = arith.constant 1 : index
    %c0_133 = arith.constant 0 : index
    %c0_134 = arith.constant 0 : index
    %253 = vector.load %arg6[%c1_132, %c0_133, %c0_134] : memref<2x1x8xf32, #tpu.memory_space<vmem>>, vector<1x1x8xf32>
    %254 = vector.shape_cast %253 : vector<1x1x8xf32> to vector<1x8xf32>
    %cst_135 = arith.constant dense<0.000000e+00> : vector<64xf32>
    %255 = vector.multi_reduction <add>, %250, %cst_135 [1] : vector<64x8xf32> to vector<64xf32>
    %256 = vector.shape_cast %255 : vector<64xf32> to vector<64x1xf32>
    %cst_136 = arith.constant dense<0.000000e+00> : vector<1xf32>
    %257 = vector.multi_reduction <add>, %256, %cst_136 [0] : vector<64x1xf32> to vector<1xf32>
    %258 = vector.shape_cast %257 : vector<1xf32> to vector<1x1xf32>
    %cst_137 = arith.constant 0.001953125 : f32
    %259 = vector.broadcast %cst_137 : f32 to vector<1x1xf32>
    %260 = arith.mulf %258, %259 : vector<1x1xf32>
    %261 = vector.broadcast %260 : vector<1x1xf32> to vector<64x8xf32>
    %262 = arith.subf %250, %261 : vector<64x8xf32>
    %263 = arith.mulf %262, %262 : vector<64x8xf32>
    %cst_138 = arith.constant dense<0.000000e+00> : vector<64xf32>
    %264 = vector.multi_reduction <add>, %263, %cst_138 [1] : vector<64x8xf32> to vector<64xf32>
    %265 = vector.shape_cast %264 : vector<64xf32> to vector<64x1xf32>
    %cst_139 = arith.constant dense<0.000000e+00> : vector<1xf32>
    %266 = vector.multi_reduction <add>, %265, %cst_139 [0] : vector<64x1xf32> to vector<1xf32>
    %267 = vector.shape_cast %266 : vector<1xf32> to vector<1x1xf32>
    %cst_140 = arith.constant 0.001953125 : f32
    %268 = vector.broadcast %cst_140 : f32 to vector<1x1xf32>
    %269 = arith.mulf %267, %268 : vector<1x1xf32>
    %cst_141 = arith.constant 9.99999974E-6 : f32
    %270 = vector.broadcast %cst_141 : f32 to vector<1x1xf32>
    %271 = arith.addf %269, %270 : vector<1x1xf32>
    %272 = math.rsqrt %271 : vector<1x1xf32>
    %273 = vector.broadcast %272 : vector<1x1xf32> to vector<64x8xf32>
    %274 = arith.mulf %262, %273 : vector<64x8xf32>
    %275 = vector.broadcast %252 : vector<1x8xf32> to vector<64x8xf32>
    %276 = arith.mulf %274, %275 : vector<64x8xf32>
    %277 = vector.broadcast %254 : vector<1x8xf32> to vector<64x8xf32>
    %278 = arith.addf %276, %277 : vector<64x8xf32>
    %c21_i32_142 = arith.constant 21 : i32
    %279 = tpu.dynamic_rotate %278 by %c21_i32_142 dim 0 : vector<64x8xf32>, i32 -> vector<64x8xf32>
    %c0_143 = arith.constant 0 : index
    %c0_144 = arith.constant 0 : index
    %280 = vector.load %arg18[%c0_143, %c0_144] : memref<64x216xf32, #tpu.memory_space<vmem>>, vector<64x8xf32>
    tpu.vector_store %arg18[%c0_143, %c0_144], %279 {strides = array<i32>} : memref<64x216xf32, #tpu.memory_space<vmem>>, vector<64x8xf32>,
    %c20_i32_145 = arith.constant 20 : i32
    %281 = tpu.dynamic_rotate %278 by %c20_i32_145 dim 0 : vector<64x8xf32>, i32 -> vector<64x8xf32>
    %c0_146 = arith.constant 0 : index
    %c8_147 = arith.constant 8 : index
    %282 = vector.load %arg18[%c0_146, %c8_147] : memref<64x216xf32, #tpu.memory_space<vmem>>, vector<64x8xf32>
    tpu.vector_store %arg18[%c0_146, %c8_147], %281 {strides = array<i32>} : memref<64x216xf32, #tpu.memory_space<vmem>>, vector<64x8xf32>,
    %c19_i32_148 = arith.constant 19 : i32
    %283 = tpu.dynamic_rotate %278 by %c19_i32_148 dim 0 : vector<64x8xf32>, i32 -> vector<64x8xf32>
    %c0_149 = arith.constant 0 : index
    %c16_150 = arith.constant 16 : index
    %284 = vector.load %arg18[%c0_149, %c16_150] : memref<64x216xf32, #tpu.memory_space<vmem>>, vector<64x8xf32>
    tpu.vector_store %arg18[%c0_149, %c16_150], %283 {strides = array<i32>} : memref<64x216xf32, #tpu.memory_space<vmem>>, vector<64x8xf32>,
    %c17_i32_151 = arith.constant 17 : i32
    %285 = tpu.dynamic_rotate %278 by %c17_i32_151 dim 0 : vector<64x8xf32>, i32 -> vector<64x8xf32>
    %c0_152 = arith.constant 0 : index
    %c24_153 = arith.constant 24 : index
    %286 = vector.load %arg18[%c0_152, %c24_153] : memref<64x216xf32, #tpu.memory_space<vmem>>, vector<64x8xf32>
    tpu.vector_store %arg18[%c0_152, %c24_153], %285 {strides = array<i32>} : memref<64x216xf32, #tpu.memory_space<vmem>>, vector<64x8xf32>,
    %c16_i32_154 = arith.constant 16 : i32
    %287 = tpu.dynamic_rotate %278 by %c16_i32_154 dim 0 : vector<64x8xf32>, i32 -> vector<64x8xf32>
    %c0_155 = arith.constant 0 : index
    %c32_156 = arith.constant 32 : index
    %288 = vector.load %arg18[%c0_155, %c32_156] : memref<64x216xf32, #tpu.memory_space<vmem>>, vector<64x8xf32>
    tpu.vector_store %arg18[%c0_155, %c32_156], %287 {strides = array<i32>} : memref<64x216xf32, #tpu.memory_space<vmem>>, vector<64x8xf32>,
    %c15_i32_157 = arith.constant 15 : i32
    %289 = tpu.dynamic_rotate %278 by %c15_i32_157 dim 0 : vector<64x8xf32>, i32 -> vector<64x8xf32>
    %c0_158 = arith.constant 0 : index
    %c40_159 = arith.constant 40 : index
    %290 = vector.load %arg18[%c0_158, %c40_159] : memref<64x216xf32, #tpu.memory_space<vmem>>, vector<64x8xf32>
    tpu.vector_store %arg18[%c0_158, %c40_159], %289 {strides = array<i32>} : memref<64x216xf32, #tpu.memory_space<vmem>>, vector<64x8xf32>,
    %c13_i32_160 = arith.constant 13 : i32
    %291 = tpu.dynamic_rotate %278 by %c13_i32_160 dim 0 : vector<64x8xf32>, i32 -> vector<64x8xf32>
    %c0_161 = arith.constant 0 : index
    %c48_162 = arith.constant 48 : index
    %292 = vector.load %arg18[%c0_161, %c48_162] : memref<64x216xf32, #tpu.memory_space<vmem>>, vector<64x8xf32>
    tpu.vector_store %arg18[%c0_161, %c48_162], %291 {strides = array<i32>} : memref<64x216xf32, #tpu.memory_space<vmem>>, vector<64x8xf32>,
    %c12_i32_163 = arith.constant 12 : i32
    %293 = tpu.dynamic_rotate %278 by %c12_i32_163 dim 0 : vector<64x8xf32>, i32 -> vector<64x8xf32>
    %c0_164 = arith.constant 0 : index
    %c56_165 = arith.constant 56 : index
    %294 = vector.load %arg18[%c0_164, %c56_165] : memref<64x216xf32, #tpu.memory_space<vmem>>, vector<64x8xf32>
    tpu.vector_store %arg18[%c0_164, %c56_165], %293 {strides = array<i32>} : memref<64x216xf32, #tpu.memory_space<vmem>>, vector<64x8xf32>,
    %c11_i32_166 = arith.constant 11 : i32
    %295 = tpu.dynamic_rotate %278 by %c11_i32_166 dim 0 : vector<64x8xf32>, i32 -> vector<64x8xf32>
    %c0_167 = arith.constant 0 : index
    %c64_168 = arith.constant 64 : index
    %296 = vector.load %arg18[%c0_167, %c64_168] : memref<64x216xf32, #tpu.memory_space<vmem>>, vector<64x8xf32>
    tpu.vector_store %arg18[%c0_167, %c64_168], %295 {strides = array<i32>} : memref<64x216xf32, #tpu.memory_space<vmem>>, vector<64x8xf32>,
    %c5_i32_169 = arith.constant 5 : i32
    %297 = tpu.dynamic_rotate %278 by %c5_i32_169 dim 0 : vector<64x8xf32>, i32 -> vector<64x8xf32>
    %c0_170 = arith.constant 0 : index
    %c72_171 = arith.constant 72 : index
    %298 = vector.load %arg18[%c0_170, %c72_171] : memref<64x216xf32, #tpu.memory_space<vmem>>, vector<64x8xf32>
    tpu.vector_store %arg18[%c0_170, %c72_171], %297 {strides = array<i32>} : memref<64x216xf32, #tpu.memory_space<vmem>>, vector<64x8xf32>,
    %c4_i32_172 = arith.constant 4 : i32
    %299 = tpu.dynamic_rotate %278 by %c4_i32_172 dim 0 : vector<64x8xf32>, i32 -> vector<64x8xf32>
    %c0_173 = arith.constant 0 : index
    %c80_174 = arith.constant 80 : index
    %300 = vector.load %arg18[%c0_173, %c80_174] : memref<64x216xf32, #tpu.memory_space<vmem>>, vector<64x8xf32>
    tpu.vector_store %arg18[%c0_173, %c80_174], %299 {strides = array<i32>} : memref<64x216xf32, #tpu.memory_space<vmem>>, vector<64x8xf32>,
    %c3_i32_175 = arith.constant 3 : i32
    %301 = tpu.dynamic_rotate %278 by %c3_i32_175 dim 0 : vector<64x8xf32>, i32 -> vector<64x8xf32>
    %c0_176 = arith.constant 0 : index
    %c88_177 = arith.constant 88 : index
    %302 = vector.load %arg18[%c0_176, %c88_177] : memref<64x216xf32, #tpu.memory_space<vmem>>, vector<64x8xf32>
    tpu.vector_store %arg18[%c0_176, %c88_177], %301 {strides = array<i32>} : memref<64x216xf32, #tpu.memory_space<vmem>>, vector<64x8xf32>,
    %c1_i32_178 = arith.constant 1 : i32
    %303 = tpu.dynamic_rotate %278 by %c1_i32_178 dim 0 : vector<64x8xf32>, i32 -> vector<64x8xf32>
    %c0_179 = arith.constant 0 : index
    %c96_180 = arith.constant 96 : index
    %304 = vector.load %arg18[%c0_179, %c96_180] : memref<64x216xf32, #tpu.memory_space<vmem>>, vector<64x8xf32>
    tpu.vector_store %arg18[%c0_179, %c96_180], %303 {strides = array<i32>} : memref<64x216xf32, #tpu.memory_space<vmem>>, vector<64x8xf32>,
    %c0_181 = arith.constant 0 : index
    %c104_182 = arith.constant 104 : index
    %305 = vector.load %arg18[%c0_181, %c104_182] : memref<64x216xf32, #tpu.memory_space<vmem>>, vector<64x8xf32>
    tpu.vector_store %arg18[%c0_181, %c104_182], %278 {strides = array<i32>} : memref<64x216xf32, #tpu.memory_space<vmem>>, vector<64x8xf32>,
    %c63_i32_183 = arith.constant 63 : i32
    %306 = tpu.dynamic_rotate %278 by %c63_i32_183 dim 0 : vector<64x8xf32>, i32 -> vector<64x8xf32>
    %c0_184 = arith.constant 0 : index
    %c112_185 = arith.constant 112 : index
    %307 = vector.load %arg18[%c0_184, %c112_185] : memref<64x216xf32, #tpu.memory_space<vmem>>, vector<64x8xf32>
    tpu.vector_store %arg18[%c0_184, %c112_185], %306 {strides = array<i32>} : memref<64x216xf32, #tpu.memory_space<vmem>>, vector<64x8xf32>,
    %c61_i32_186 = arith.constant 61 : i32
    %308 = tpu.dynamic_rotate %278 by %c61_i32_186 dim 0 : vector<64x8xf32>, i32 -> vector<64x8xf32>
    %c0_187 = arith.constant 0 : index
    %c120_188 = arith.constant 120 : index
    %309 = vector.load %arg18[%c0_187, %c120_188] : memref<64x216xf32, #tpu.memory_space<vmem>>, vector<64x8xf32>
    tpu.vector_store %arg18[%c0_187, %c120_188], %308 {strides = array<i32>} : memref<64x216xf32, #tpu.memory_space<vmem>>, vector<64x8xf32>,
    %c60_i32_189 = arith.constant 60 : i32
    %310 = tpu.dynamic_rotate %278 by %c60_i32_189 dim 0 : vector<64x8xf32>, i32 -> vector<64x8xf32>
    %c0_190 = arith.constant 0 : index
    %c128_191 = arith.constant 128 : index
    %311 = vector.load %arg18[%c0_190, %c128_191] : memref<64x216xf32, #tpu.memory_space<vmem>>, vector<64x8xf32>
    tpu.vector_store %arg18[%c0_190, %c128_191], %310 {strides = array<i32>} : memref<64x216xf32, #tpu.memory_space<vmem>>, vector<64x8xf32>,
    %c59_i32_192 = arith.constant 59 : i32
    %312 = tpu.dynamic_rotate %278 by %c59_i32_192 dim 0 : vector<64x8xf32>, i32 -> vector<64x8xf32>
    %c0_193 = arith.constant 0 : index
    %c136_194 = arith.constant 136 : index
    %313 = vector.load %arg18[%c0_193, %c136_194] : memref<64x216xf32, #tpu.memory_space<vmem>>, vector<64x8xf32>
    tpu.vector_store %arg18[%c0_193, %c136_194], %312 {strides = array<i32>} : memref<64x216xf32, #tpu.memory_space<vmem>>, vector<64x8xf32>,
    %c53_i32_195 = arith.constant 53 : i32
    %314 = tpu.dynamic_rotate %278 by %c53_i32_195 dim 0 : vector<64x8xf32>, i32 -> vector<64x8xf32>
    %c0_196 = arith.constant 0 : index
    %c144_197 = arith.constant 144 : index
    %315 = vector.load %arg18[%c0_196, %c144_197] : memref<64x216xf32, #tpu.memory_space<vmem>>, vector<64x8xf32>
    tpu.vector_store %arg18[%c0_196, %c144_197], %314 {strides = array<i32>} : memref<64x216xf32, #tpu.memory_space<vmem>>, vector<64x8xf32>,
    %c52_i32_198 = arith.constant 52 : i32
    %316 = tpu.dynamic_rotate %278 by %c52_i32_198 dim 0 : vector<64x8xf32>, i32 -> vector<64x8xf32>
    %c0_199 = arith.constant 0 : index
    %c152_200 = arith.constant 152 : index
    %317 = vector.load %arg18[%c0_199, %c152_200] : memref<64x216xf32, #tpu.memory_space<vmem>>, vector<64x8xf32>
    tpu.vector_store %arg18[%c0_199, %c152_200], %316 {strides = array<i32>} : memref<64x216xf32, #tpu.memory_space<vmem>>, vector<64x8xf32>,
    %c51_i32_201 = arith.constant 51 : i32
    %318 = tpu.dynamic_rotate %278 by %c51_i32_201 dim 0 : vector<64x8xf32>, i32 -> vector<64x8xf32>
    %c0_202 = arith.constant 0 : index
    %c160_203 = arith.constant 160 : index
    %319 = vector.load %arg18[%c0_202, %c160_203] : memref<64x216xf32, #tpu.memory_space<vmem>>, vector<64x8xf32>
    tpu.vector_store %arg18[%c0_202, %c160_203], %318 {strides = array<i32>} : memref<64x216xf32, #tpu.memory_space<vmem>>, vector<64x8xf32>,
    %c49_i32_204 = arith.constant 49 : i32
    %320 = tpu.dynamic_rotate %278 by %c49_i32_204 dim 0 : vector<64x8xf32>, i32 -> vector<64x8xf32>
    %c0_205 = arith.constant 0 : index
    %c168_206 = arith.constant 168 : index
    %321 = vector.load %arg18[%c0_205, %c168_206] : memref<64x216xf32, #tpu.memory_space<vmem>>, vector<64x8xf32>
    tpu.vector_store %arg18[%c0_205, %c168_206], %320 {strides = array<i32>} : memref<64x216xf32, #tpu.memory_space<vmem>>, vector<64x8xf32>,
    %c48_i32_207 = arith.constant 48 : i32
    %322 = tpu.dynamic_rotate %278 by %c48_i32_207 dim 0 : vector<64x8xf32>, i32 -> vector<64x8xf32>
    %c0_208 = arith.constant 0 : index
    %c176_209 = arith.constant 176 : index
    %323 = vector.load %arg18[%c0_208, %c176_209] : memref<64x216xf32, #tpu.memory_space<vmem>>, vector<64x8xf32>
    tpu.vector_store %arg18[%c0_208, %c176_209], %322 {strides = array<i32>} : memref<64x216xf32, #tpu.memory_space<vmem>>, vector<64x8xf32>,
    %c47_i32_210 = arith.constant 47 : i32
    %324 = tpu.dynamic_rotate %278 by %c47_i32_210 dim 0 : vector<64x8xf32>, i32 -> vector<64x8xf32>
    %c0_211 = arith.constant 0 : index
    %c184_212 = arith.constant 184 : index
    %325 = vector.load %arg18[%c0_211, %c184_212] : memref<64x216xf32, #tpu.memory_space<vmem>>, vector<64x8xf32>
    tpu.vector_store %arg18[%c0_211, %c184_212], %324 {strides = array<i32>} : memref<64x216xf32, #tpu.memory_space<vmem>>, vector<64x8xf32>,
    %c45_i32_213 = arith.constant 45 : i32
    %326 = tpu.dynamic_rotate %278 by %c45_i32_213 dim 0 : vector<64x8xf32>, i32 -> vector<64x8xf32>
    %c0_214 = arith.constant 0 : index
    %c192_215 = arith.constant 192 : index
    %327 = vector.load %arg18[%c0_214, %c192_215] : memref<64x216xf32, #tpu.memory_space<vmem>>, vector<64x8xf32>
    tpu.vector_store %arg18[%c0_214, %c192_215], %326 {strides = array<i32>} : memref<64x216xf32, #tpu.memory_space<vmem>>, vector<64x8xf32>,
    %c44_i32_216 = arith.constant 44 : i32
    %328 = tpu.dynamic_rotate %278 by %c44_i32_216 dim 0 : vector<64x8xf32>, i32 -> vector<64x8xf32>
    %c0_217 = arith.constant 0 : index
    %c200_218 = arith.constant 200 : index
    %329 = vector.load %arg18[%c0_217, %c200_218] : memref<64x216xf32, #tpu.memory_space<vmem>>, vector<64x8xf32>
    tpu.vector_store %arg18[%c0_217, %c200_218], %328 {strides = array<i32>} : memref<64x216xf32, #tpu.memory_space<vmem>>, vector<64x8xf32>,
    %c43_i32_219 = arith.constant 43 : i32
    %330 = tpu.dynamic_rotate %278 by %c43_i32_219 dim 0 : vector<64x8xf32>, i32 -> vector<64x8xf32>
    %c0_220 = arith.constant 0 : index
    %c208_221 = arith.constant 208 : index
    %331 = vector.load %arg18[%c0_220, %c208_221] : memref<64x216xf32, #tpu.memory_space<vmem>>, vector<64x8xf32>
    tpu.vector_store %arg18[%c0_220, %c208_221], %330 {strides = array<i32>} : memref<64x216xf32, #tpu.memory_space<vmem>>, vector<64x8xf32>,
    %c0_222 = arith.constant 0 : index
    %c0_223 = arith.constant 0 : index
    %332 = vector.load %arg18[%c0_222, %c0_223] : memref<64x216xf32, #tpu.memory_space<vmem>>, vector<64x216xf32>
    %333 = arith.mulf %332, %0 : vector<64x216xf32>
    %c1_224 = arith.constant 1 : index
    %c0_225 = arith.constant 0 : index
    %c0_226 = arith.constant 0 : index
    %334 = vector.load %arg7[%c1_224, %c0_225, %c0_226] : memref<2x216x8xf32, #tpu.memory_space<vmem>>, vector<1x216x8xf32>
    %335 = vector.shape_cast %334 : vector<1x216x8xf32> to vector<216x8xf32>
    %cst_227 = arith.constant dense<0.000000e+00> : vector<64x8xf32>
    %336 = tpu.matmul %333, %335, %cst_227 {dimension_numbers = #tpu.dot_dimension_numbers<[1], [0], [0], [1], [0, 0, 1, 1], [], []>} : vector<64x216xf32>, vector<216x8xf32>, vector<64x8xf32> -> vector<64x8xf32>
    %c1_228 = arith.constant 1 : index
    %c0_229 = arith.constant 0 : index
    %c0_230 = arith.constant 0 : index
    %337 = vector.load %arg8[%c1_228, %c0_229, %c0_230] : memref<2x1x8xf32, #tpu.memory_space<vmem>>, vector<1x1x8xf32>
    %338 = vector.shape_cast %337 : vector<1x1x8xf32> to vector<1x8xf32>
    %339 = vector.broadcast %338 : vector<1x8xf32> to vector<64x8xf32>
    %340 = arith.addf %336, %339 : vector<64x8xf32>
    %c1_231 = arith.constant 1 : index
    %c0_232 = arith.constant 0 : index
    %c0_233 = arith.constant 0 : index
    %341 = vector.load %arg9[%c1_231, %c0_232, %c0_233] : memref<2x1x8xf32, #tpu.memory_space<vmem>>, vector<1x1x8xf32>
    %342 = vector.shape_cast %341 : vector<1x1x8xf32> to vector<1x8xf32>
    %c1_234 = arith.constant 1 : index
    %c0_235 = arith.constant 0 : index
    %c0_236 = arith.constant 0 : index
    %343 = vector.load %arg10[%c1_234, %c0_235, %c0_236] : memref<2x1x8xf32, #tpu.memory_space<vmem>>, vector<1x1x8xf32>
    %344 = vector.shape_cast %343 : vector<1x1x8xf32> to vector<1x8xf32>
    %cst_237 = arith.constant dense<0.000000e+00> : vector<64xf32>
    %345 = vector.multi_reduction <add>, %340, %cst_237 [1] : vector<64x8xf32> to vector<64xf32>
    %346 = vector.shape_cast %345 : vector<64xf32> to vector<64x1xf32>
    %cst_238 = arith.constant dense<0.000000e+00> : vector<1xf32>
    %347 = vector.multi_reduction <add>, %346, %cst_238 [0] : vector<64x1xf32> to vector<1xf32>
    %348 = vector.shape_cast %347 : vector<1xf32> to vector<1x1xf32>
    %cst_239 = arith.constant 0.001953125 : f32
    %349 = vector.broadcast %cst_239 : f32 to vector<1x1xf32>
    %350 = arith.mulf %348, %349 : vector<1x1xf32>
    %351 = vector.broadcast %350 : vector<1x1xf32> to vector<64x8xf32>
    %352 = arith.subf %340, %351 : vector<64x8xf32>
    %353 = arith.mulf %352, %352 : vector<64x8xf32>
    %cst_240 = arith.constant dense<0.000000e+00> : vector<64xf32>
    %354 = vector.multi_reduction <add>, %353, %cst_240 [1] : vector<64x8xf32> to vector<64xf32>
    %355 = vector.shape_cast %354 : vector<64xf32> to vector<64x1xf32>
    %cst_241 = arith.constant dense<0.000000e+00> : vector<1xf32>
    %356 = vector.multi_reduction <add>, %355, %cst_241 [0] : vector<64x1xf32> to vector<1xf32>
    %357 = vector.shape_cast %356 : vector<1xf32> to vector<1x1xf32>
    %cst_242 = arith.constant 0.001953125 : f32
    %358 = vector.broadcast %cst_242 : f32 to vector<1x1xf32>
    %359 = arith.mulf %357, %358 : vector<1x1xf32>
    %cst_243 = arith.constant 9.99999974E-6 : f32
    %360 = vector.broadcast %cst_243 : f32 to vector<1x1xf32>
    %361 = arith.addf %359, %360 : vector<1x1xf32>
    %362 = math.rsqrt %361 : vector<1x1xf32>
    %363 = vector.broadcast %362 : vector<1x1xf32> to vector<64x8xf32>
    %364 = arith.mulf %352, %363 : vector<64x8xf32>
    %365 = vector.broadcast %342 : vector<1x8xf32> to vector<64x8xf32>
    %366 = arith.mulf %364, %365 : vector<64x8xf32>
    %367 = vector.broadcast %344 : vector<1x8xf32> to vector<64x8xf32>
    %368 = arith.addf %366, %367 : vector<64x8xf32>
    %cst_244 = arith.constant 0.707106769 : f32
    %369 = vector.broadcast %cst_244 : f32 to vector<64x8xf32>
    %370 = arith.mulf %368, %369 : vector<64x8xf32>
    %371 = math.absf %370 : vector<64x8xf32>
    %cst_245 = arith.constant 0.327591091 : f32
    %372 = vector.broadcast %cst_245 : f32 to vector<64x8xf32>
    %373 = arith.mulf %372, %371 : vector<64x8xf32>
    %cst_246 = arith.constant 1.000000e+00 : f32
    %374 = vector.broadcast %cst_246 : f32 to vector<64x8xf32>
    %375 = arith.addf %374, %373 : vector<64x8xf32>
    %cst_247 = arith.constant 1.000000e+00 : f32
    %376 = vector.broadcast %cst_247 : f32 to vector<64x8xf32>
    %377 = arith.divf %376, %375 : vector<64x8xf32>
    %cst_248 = arith.constant 1.06140542 : f32
    %378 = vector.broadcast %cst_248 : f32 to vector<64x8xf32>
    %379 = arith.mulf %377, %378 : vector<64x8xf32>
    %cst_249 = arith.constant -1.45315206 : f32
    %380 = vector.broadcast %cst_249 : f32 to vector<64x8xf32>
    %381 = arith.addf %380, %379 : vector<64x8xf32>
    %382 = arith.mulf %377, %381 : vector<64x8xf32>
    %cst_250 = arith.constant 1.42141378 : f32
    %383 = vector.broadcast %cst_250 : f32 to vector<64x8xf32>
    %384 = arith.addf %383, %382 : vector<64x8xf32>
    %385 = arith.mulf %377, %384 : vector<64x8xf32>
    %cst_251 = arith.constant -0.284496725 : f32
    %386 = vector.broadcast %cst_251 : f32 to vector<64x8xf32>
    %387 = arith.addf %386, %385 : vector<64x8xf32>
    %388 = arith.mulf %377, %387 : vector<64x8xf32>
    %cst_252 = arith.constant 0.254829586 : f32
    %389 = vector.broadcast %cst_252 : f32 to vector<64x8xf32>
    %390 = arith.addf %389, %388 : vector<64x8xf32>
    %391 = arith.mulf %377, %390 : vector<64x8xf32>
    %cst_253 = arith.constant 0.000000e+00 : f32
    %392 = vector.broadcast %cst_253 : f32 to vector<64x8xf32>
    %393 = arith.subf %392, %371 : vector<64x8xf32>
    %394 = arith.mulf %393, %371 : vector<64x8xf32>
    %395 = math.exp %394 : vector<64x8xf32>
    %396 = arith.mulf %391, %395 : vector<64x8xf32>
    %cst_254 = arith.constant 1.000000e+00 : f32
    %397 = vector.broadcast %cst_254 : f32 to vector<64x8xf32>
    %398 = arith.subf %397, %396 : vector<64x8xf32>
    %cst_255 = arith.constant 0.000000e+00 : f32
    %399 = vector.broadcast %cst_255 : f32 to vector<64x8xf32>
    %400 = arith.cmpf oge, %370, %399 : vector<64x8xf32>
    %cst_256 = arith.constant 0.000000e+00 : f32
    %401 = vector.broadcast %cst_256 : f32 to vector<64x8xf32>
    %402 = arith.subf %401, %398 : vector<64x8xf32>
    %403 = arith.select %400, %398, %402 : vector<64x8xi1>, vector<64x8xf32>
    %cst_257 = arith.constant 5.000000e-01 : f32
    %404 = vector.broadcast %cst_257 : f32 to vector<64x8xf32>
    %405 = arith.mulf %404, %368 : vector<64x8xf32>
    %cst_258 = arith.constant 1.000000e+00 : f32
    %406 = vector.broadcast %cst_258 : f32 to vector<64x8xf32>
    %407 = arith.addf %406, %403 : vector<64x8xf32>
    %408 = arith.mulf %405, %407 : vector<64x8xf32>
    %c1_259 = arith.constant 1 : index
    %c0_260 = arith.constant 0 : index
    %c0_261 = arith.constant 0 : index
    %409 = vector.load %arg11[%c1_259, %c0_260, %c0_261] : memref<2x8x32xf32, #tpu.memory_space<vmem>>, vector<1x8x32xf32>
    %410 = vector.shape_cast %409 : vector<1x8x32xf32> to vector<8x32xf32>
    %cst_262 = arith.constant dense<0.000000e+00> : vector<64x32xf32>
    %411 = tpu.matmul %408, %410, %cst_262 {dimension_numbers = #tpu.dot_dimension_numbers<[1], [0], [0], [1], [0, 0, 1, 1], [], []>} : vector<64x8xf32>, vector<8x32xf32>, vector<64x32xf32> -> vector<64x32xf32>
    %c1_263 = arith.constant 1 : index
    %c0_264 = arith.constant 0 : index
    %c0_265 = arith.constant 0 : index
    %412 = vector.load %arg12[%c1_263, %c0_264, %c0_265] : memref<2x1x32xf32, #tpu.memory_space<vmem>>, vector<1x1x32xf32>
    %413 = vector.shape_cast %412 : vector<1x1x32xf32> to vector<1x32xf32>
    %414 = vector.broadcast %413 : vector<1x32xf32> to vector<64x32xf32>
    %415 = arith.addf %411, %414 : vector<64x32xf32>
    %c1_266 = arith.constant 1 : index
    %c0_267 = arith.constant 0 : index
    %c0_268 = arith.constant 0 : index
    %416 = vector.load %arg13[%c1_266, %c0_267, %c0_268] : memref<2x1x32xf32, #tpu.memory_space<vmem>>, vector<1x1x32xf32>
    %417 = vector.shape_cast %416 : vector<1x1x32xf32> to vector<1x32xf32>
    %c1_269 = arith.constant 1 : index
    %c0_270 = arith.constant 0 : index
    %c0_271 = arith.constant 0 : index
    %418 = vector.load %arg14[%c1_269, %c0_270, %c0_271] : memref<2x1x32xf32, #tpu.memory_space<vmem>>, vector<1x1x32xf32>
    %419 = vector.shape_cast %418 : vector<1x1x32xf32> to vector<1x32xf32>
    %cst_272 = arith.constant dense<0.000000e+00> : vector<64xf32>
    %420 = vector.multi_reduction <add>, %415, %cst_272 [1] : vector<64x32xf32> to vector<64xf32>
    %421 = vector.shape_cast %420 : vector<64xf32> to vector<64x1xf32>
    %cst_273 = arith.constant dense<0.000000e+00> : vector<1xf32>
    %422 = vector.multi_reduction <add>, %421, %cst_273 [0] : vector<64x1xf32> to vector<1xf32>
    %423 = vector.shape_cast %422 : vector<1xf32> to vector<1x1xf32>
    %cst_274 = arith.constant 4.8828125E-4 : f32
    %424 = vector.broadcast %cst_274 : f32 to vector<1x1xf32>
    %425 = arith.mulf %423, %424 : vector<1x1xf32>
    %426 = vector.broadcast %425 : vector<1x1xf32> to vector<64x32xf32>
    %427 = arith.subf %415, %426 : vector<64x32xf32>
    %428 = arith.mulf %427, %427 : vector<64x32xf32>
    %cst_275 = arith.constant dense<0.000000e+00> : vector<64xf32>
    %429 = vector.multi_reduction <add>, %428, %cst_275 [1] : vector<64x32xf32> to vector<64xf32>
    %430 = vector.shape_cast %429 : vector<64xf32> to vector<64x1xf32>
    %cst_276 = arith.constant dense<0.000000e+00> : vector<1xf32>
    %431 = vector.multi_reduction <add>, %430, %cst_276 [0] : vector<64x1xf32> to vector<1xf32>
    %432 = vector.shape_cast %431 : vector<1xf32> to vector<1x1xf32>
    %cst_277 = arith.constant 4.8828125E-4 : f32
    %433 = vector.broadcast %cst_277 : f32 to vector<1x1xf32>
    %434 = arith.mulf %432, %433 : vector<1x1xf32>
    %cst_278 = arith.constant 9.99999974E-6 : f32
    %435 = vector.broadcast %cst_278 : f32 to vector<1x1xf32>
    %436 = arith.addf %434, %435 : vector<1x1xf32>
    %437 = math.rsqrt %436 : vector<1x1xf32>
    %438 = vector.broadcast %437 : vector<1x1xf32> to vector<64x32xf32>
    %439 = arith.mulf %427, %438 : vector<64x32xf32>
    %440 = vector.broadcast %417 : vector<1x32xf32> to vector<64x32xf32>
    %441 = arith.mulf %439, %440 : vector<64x32xf32>
    %442 = vector.broadcast %419 : vector<1x32xf32> to vector<64x32xf32>
    %443 = arith.addf %441, %442 : vector<64x32xf32>
    %444 = arith.addf %443, %243 : vector<64x32xf32>
    %cst_279 = arith.constant 0.707106769 : f32
    %445 = vector.broadcast %cst_279 : f32 to vector<64x32xf32>
    %446 = arith.mulf %444, %445 : vector<64x32xf32>
    %447 = math.absf %446 : vector<64x32xf32>
    %cst_280 = arith.constant 0.327591091 : f32
    %448 = vector.broadcast %cst_280 : f32 to vector<64x32xf32>
    %449 = arith.mulf %448, %447 : vector<64x32xf32>
    %cst_281 = arith.constant 1.000000e+00 : f32
    %450 = vector.broadcast %cst_281 : f32 to vector<64x32xf32>
    %451 = arith.addf %450, %449 : vector<64x32xf32>
    %cst_282 = arith.constant 1.000000e+00 : f32
    %452 = vector.broadcast %cst_282 : f32 to vector<64x32xf32>
    %453 = arith.divf %452, %451 : vector<64x32xf32>
    %cst_283 = arith.constant 1.06140542 : f32
    %454 = vector.broadcast %cst_283 : f32 to vector<64x32xf32>
    %455 = arith.mulf %453, %454 : vector<64x32xf32>
    %cst_284 = arith.constant -1.45315206 : f32
    %456 = vector.broadcast %cst_284 : f32 to vector<64x32xf32>
    %457 = arith.addf %456, %455 : vector<64x32xf32>
    %458 = arith.mulf %453, %457 : vector<64x32xf32>
    %cst_285 = arith.constant 1.42141378 : f32
    %459 = vector.broadcast %cst_285 : f32 to vector<64x32xf32>
    %460 = arith.addf %459, %458 : vector<64x32xf32>
    %461 = arith.mulf %453, %460 : vector<64x32xf32>
    %cst_286 = arith.constant -0.284496725 : f32
    %462 = vector.broadcast %cst_286 : f32 to vector<64x32xf32>
    %463 = arith.addf %462, %461 : vector<64x32xf32>
    %464 = arith.mulf %453, %463 : vector<64x32xf32>
    %cst_287 = arith.constant 0.254829586 : f32
    %465 = vector.broadcast %cst_287 : f32 to vector<64x32xf32>
    %466 = arith.addf %465, %464 : vector<64x32xf32>
    %467 = arith.mulf %453, %466 : vector<64x32xf32>
    %cst_288 = arith.constant 0.000000e+00 : f32
    %468 = vector.broadcast %cst_288 : f32 to vector<64x32xf32>
    %469 = arith.subf %468, %447 : vector<64x32xf32>
    %470 = arith.mulf %469, %447 : vector<64x32xf32>
    %471 = math.exp %470 : vector<64x32xf32>
    %472 = arith.mulf %467, %471 : vector<64x32xf32>
    %cst_289 = arith.constant 1.000000e+00 : f32
    %473 = vector.broadcast %cst_289 : f32 to vector<64x32xf32>
    %474 = arith.subf %473, %472 : vector<64x32xf32>
    %cst_290 = arith.constant 0.000000e+00 : f32
    %475 = vector.broadcast %cst_290 : f32 to vector<64x32xf32>
    %476 = arith.cmpf oge, %446, %475 : vector<64x32xf32>
    %cst_291 = arith.constant 0.000000e+00 : f32
    %477 = vector.broadcast %cst_291 : f32 to vector<64x32xf32>
    %478 = arith.subf %477, %474 : vector<64x32xf32>
    %479 = arith.select %476, %474, %478 : vector<64x32xi1>, vector<64x32xf32>
    %cst_292 = arith.constant 5.000000e-01 : f32
    %480 = vector.broadcast %cst_292 : f32 to vector<64x32xf32>
    %481 = arith.mulf %480, %444 : vector<64x32xf32>
    %cst_293 = arith.constant 1.000000e+00 : f32
    %482 = vector.broadcast %cst_293 : f32 to vector<64x32xf32>
    %483 = arith.addf %482, %479 : vector<64x32xf32>
    %484 = arith.mulf %481, %483 : vector<64x32xf32>
    %c0_294 = arith.constant 0 : index
    %c0_295 = arith.constant 0 : index
    %485 = vector.load %arg15[%c0_294, %c0_295] : memref<32x16xf32, #tpu.memory_space<vmem>>, vector<32x16xf32>
    %cst_296 = arith.constant dense<0.000000e+00> : vector<64x16xf32>
    %486 = tpu.matmul %484, %485, %cst_296 {dimension_numbers = #tpu.dot_dimension_numbers<[1], [0], [0], [1], [0, 0, 1, 1], [], []>} : vector<64x32xf32>, vector<32x16xf32>, vector<64x16xf32> -> vector<64x16xf32>
    %c0_297 = arith.constant 0 : index
    %c0_298 = arith.constant 0 : index
    %487 = vector.load %arg16[%c0_297, %c0_298] : memref<1x16xf32, #tpu.memory_space<vmem>>, vector<1x16xf32>
    %488 = vector.broadcast %487 : vector<1x16xf32> to vector<64x16xf32>
    %489 = arith.addf %486, %488 : vector<64x16xf32>
    %c0_299 = arith.constant 0 : index
    %c0_300 = arith.constant 0 : index
    %c0_301 = arith.constant 0 : index
    %490 = vector.load %arg17[%c0_299, %c0_300, %c0_301] : memref<1x64x16xf32, #tpu.memory_space<vmem>>, vector<1x64x16xf32>
    %491 = vector.shape_cast %490 : vector<1x64x16xf32> to vector<64x16xf32>
    %492 = vector.shape_cast %489 : vector<64x16xf32> to vector<1x64x16xf32>
    tpu.vector_store %arg17[%c0_299, %c0_300, %c0_301], %492 {strides = array<i32>} : memref<1x64x16xf32, #tpu.memory_space<vmem>>, vector<1x64x16xf32>,
    return
  }
  func.func @transform_0(%arg0: i32) -> (i32, i32) {
    %c0_i32 = arith.constant 0 : i32
    %c0_i32_0 = arith.constant 0 : i32
    %c0_i32_1 = arith.constant 0 : i32
    return %c0_i32, %c0_i32_0 : i32, i32
  }
  func.func @transform_1(%arg0: i32) -> (i32, i32, i32) {
    %c0_i32 = arith.constant 0 : i32
    %c0_i32_0 = arith.constant 0 : i32
    %c0_i32_1 = arith.constant 0 : i32
    return %arg0, %c0_i32, %c0_i32_0 : i32, i32, i32
  }
  func.func @transform_2(%arg0: i32) -> (i32, i32, i32) {
    %c0_i32 = arith.constant 0 : i32
    %c0_i32_0 = arith.constant 0 : i32
    %c0_i32_1 = arith.constant 0 : i32
    %c0_i32_2 = arith.constant 0 : i32
    return %c0_i32, %c0_i32_0, %c0_i32_1 : i32, i32, i32
  }
  func.func @transform_3(%arg0: i32) -> (i32, i32, i32) {
    %c0_i32 = arith.constant 0 : i32
    %c0_i32_0 = arith.constant 0 : i32
    %c0_i32_1 = arith.constant 0 : i32
    %c0_i32_2 = arith.constant 0 : i32
    return %c0_i32, %c0_i32_0, %c0_i32_1 : i32, i32, i32
  }
  func.func @transform_4(%arg0: i32) -> (i32, i32, i32) {
    %c0_i32 = arith.constant 0 : i32
    %c0_i32_0 = arith.constant 0 : i32
    %c0_i32_1 = arith.constant 0 : i32
    %c0_i32_2 = arith.constant 0 : i32
    return %c0_i32, %c0_i32_0, %c0_i32_1 : i32, i32, i32
  }
  func.func @transform_5(%arg0: i32) -> (i32, i32, i32) {
    %c0_i32 = arith.constant 0 : i32
    %c0_i32_0 = arith.constant 0 : i32
    %c0_i32_1 = arith.constant 0 : i32
    %c0_i32_2 = arith.constant 0 : i32
    return %c0_i32, %c0_i32_0, %c0_i32_1 : i32, i32, i32
  }
  func.func @transform_6(%arg0: i32) -> (i32, i32, i32) {
    %c0_i32 = arith.constant 0 : i32
    %c0_i32_0 = arith.constant 0 : i32
    %c0_i32_1 = arith.constant 0 : i32
    %c0_i32_2 = arith.constant 0 : i32
    return %c0_i32, %c0_i32_0, %c0_i32_1 : i32, i32, i32
  }
  func.func @transform_7(%arg0: i32) -> (i32, i32, i32) {
    %c0_i32 = arith.constant 0 : i32
    %c0_i32_0 = arith.constant 0 : i32
    %c0_i32_1 = arith.constant 0 : i32
    %c0_i32_2 = arith.constant 0 : i32
    return %c0_i32, %c0_i32_0, %c0_i32_1 : i32, i32, i32
  }
  func.func @transform_8(%arg0: i32) -> (i32, i32, i32) {
    %c0_i32 = arith.constant 0 : i32
    %c0_i32_0 = arith.constant 0 : i32
    %c0_i32_1 = arith.constant 0 : i32
    %c0_i32_2 = arith.constant 0 : i32
    return %c0_i32, %c0_i32_0, %c0_i32_1 : i32, i32, i32
  }
  func.func @transform_9(%arg0: i32) -> (i32, i32, i32) {
    %c0_i32 = arith.constant 0 : i32
    %c0_i32_0 = arith.constant 0 : i32
    %c0_i32_1 = arith.constant 0 : i32
    %c0_i32_2 = arith.constant 0 : i32
    return %c0_i32, %c0_i32_0, %c0_i32_1 : i32, i32, i32
  }
  func.func @transform_10(%arg0: i32) -> (i32, i32, i32) {
    %c0_i32 = arith.constant 0 : i32
    %c0_i32_0 = arith.constant 0 : i32
    %c0_i32_1 = arith.constant 0 : i32
    %c0_i32_2 = arith.constant 0 : i32
    return %c0_i32, %c0_i32_0, %c0_i32_1 : i32, i32, i32
  }
  func.func @transform_11(%arg0: i32) -> (i32, i32, i32) {
    %c0_i32 = arith.constant 0 : i32
    %c0_i32_0 = arith.constant 0 : i32
    %c0_i32_1 = arith.constant 0 : i32
    %c0_i32_2 = arith.constant 0 : i32
    return %c0_i32, %c0_i32_0, %c0_i32_1 : i32, i32, i32
  }
  func.func @transform_12(%arg0: i32) -> (i32, i32, i32) {
    %c0_i32 = arith.constant 0 : i32
    %c0_i32_0 = arith.constant 0 : i32
    %c0_i32_1 = arith.constant 0 : i32
    %c0_i32_2 = arith.constant 0 : i32
    return %c0_i32, %c0_i32_0, %c0_i32_1 : i32, i32, i32
  }
  func.func @transform_13(%arg0: i32) -> (i32, i32, i32) {
    %c0_i32 = arith.constant 0 : i32
    %c0_i32_0 = arith.constant 0 : i32
    %c0_i32_1 = arith.constant 0 : i32
    %c0_i32_2 = arith.constant 0 : i32
    return %c0_i32, %c0_i32_0, %c0_i32_1 : i32, i32, i32
  }
  func.func @transform_14(%arg0: i32) -> (i32, i32) {
    %c0_i32 = arith.constant 0 : i32
    %c0_i32_0 = arith.constant 0 : i32
    %c0_i32_1 = arith.constant 0 : i32
    return %c0_i32, %c0_i32_0 : i32, i32
  }
  func.func @transform_15(%arg0: i32) -> (i32, i32) {
    %c0_i32 = arith.constant 0 : i32
    %c0_i32_0 = arith.constant 0 : i32
    %c0_i32_1 = arith.constant 0 : i32
    return %c0_i32, %c0_i32_0 : i32, i32
  }
  func.func @transform_16(%arg0: i32) -> (i32, i32, i32) {
    %c0_i32 = arith.constant 0 : i32
    %c0_i32_0 = arith.constant 0 : i32
    %c0_i32_1 = arith.constant 0 : i32
    return %arg0, %c0_i32, %c0_i32_0 : i32, i32, i32
  }
}

</mosaic_0001>

<llo_original>
// kernel: residual_layer.1
$region0: #{residual_layer.1}
  #allocation0 [shape = 'u32[]', space=smem, size = 0x4, offset = 0x4, fixed_abs, tag = 'smem constant byte address 0x4 - core index']
  #allocation1 [shape = 'u32[72,128]{1,0:T(1,128)}', space=vmem, size = 0x9000, scoped, tag = 'internal scratch']
  #allocation2 [shape = 'f32[64,216]{1,0:T(8,128)}', space=vmem, size = 0x10000, scoped, tag = 'scratch operand']
  %s0 = inlined_call_operand.vmem [shape: f32[64,216], index: 0, kind: input, shape index: {}]
  %s1 = inlined_call_operand.vmem [shape: f32[2,64,32], index: 1, kind: input, shape index: {}]
  %s2 = inlined_call_operand.vmem [shape: f32[2,32,8], index: 2, kind: input, shape index: {}]
  %s3 = inlined_call_operand.vmem [shape: f32[2,1,8], index: 3, kind: input, shape index: {}]
  %s4 = inlined_call_operand.vmem [shape: f32[2,1,8], index: 4, kind: input, shape index: {}]
  %s5 = inlined_call_operand.vmem [shape: f32[2,1,8], index: 5, kind: input, shape index: {}]
  %s6 = inlined_call_operand.vmem [shape: f32[2,216,8], index: 6, kind: input, shape index: {}]
  %s7 = inlined_call_operand.vmem [shape: f32[2,1,8], index: 7, kind: input, shape index: {}]
  %s8 = inlined_call_operand.vmem [shape: f32[2,1,8], index: 8, kind: input, shape index: {}]
  %s9 = inlined_call_operand.vmem [shape: f32[2,1,8], index: 9, kind: input, shape index: {}]
  %s10 = inlined_call_operand.vmem [shape: f32[2,8,32], index: 10, kind: input, shape index: {}]
  %s11 = inlined_call_operand.vmem [shape: f32[2,1,32], index: 11, kind: input, shape index: {}]
  %s12 = inlined_call_operand.vmem [shape: f32[2,1,32], index: 12, kind: input, shape index: {}]
  %s13 = inlined_call_operand.vmem [shape: f32[2,1,32], index: 13, kind: input, shape index: {}]
  %s14 = inlined_call_operand.vmem [shape: f32[32,16], index: 14, kind: input, shape index: {}]
  %s15 = inlined_call_operand.vmem [shape: f32[1,16], index: 15, kind: input, shape index: {}]
  %s16 = inlined_call_operand.hbm [shape: f32[2,64,16], index: 16, kind: output, shape index: {}]
  %s17 = sld [smem:[#allocation0]]
  $region97: #{residual_layer.1} parent=0
    _
  %s19 = ssub.s32 1, %s17
  %s20 = scalar_select 0, %s19, %s17
  $region1: #{residual_layer.1} parent=0
    #allocation3 [shape = 'u8[65536]{0}', space=vmem, size = 0x10000, scoped, tag = 'output window, operand 0']
    #allocation4 [shape = 's32[2]{0}', space=sflag, size = 0x8, scoped, tag = 'scoped memory for residual_layer.1']
    %21 = vsyncpa [#allocation4], 0
    %s22 = scalar_lea.sflag [#allocation4], 1
    %23 = vsyncpa %s22, 0
    loop: start=0, step=1, limit=4
    $region2: #{residual_layer.1} parent=1 // loop_pre_header
      _
    $region3: #{residual_layer.1} parent=1 // loop_header
      %s25 = sphi 0, %s29
      %p26 = scmp.ge.s32.totalorder %s25, 4
      %s33 = sphi 0, %s33
      %s35 = sphi 0, %s33
      %s36 = sphi 0, %s35
      %s50 = sphi 0, %s36
      %s56 = sphi 0, %s58
      %s59 = sphi 0, %s56
      %s60 = sphi 0, %s59
      %s76 = sphi 0, %s60
      %s80 = sphi 0, %s80
      %s82 = sphi 0, %s80
      %s83 = sphi 0, %s82
      %s97 = sphi 0, %s83
      %s101 = sphi 0, %s101
      %s103 = sphi 0, %s101
      %s104 = sphi 0, %s103
      %s118 = sphi 0, %s104
      %s122 = sphi 0, %s122
      %s124 = sphi 0, %s122
      %s125 = sphi 0, %s124
      %s139 = sphi 0, %s125
      %s143 = sphi 0, %s143
      %s145 = sphi 0, %s143
      %s146 = sphi 0, %s145
      %s160 = sphi 0, %s146
      %s164 = sphi 0, %s164
      %s166 = sphi 0, %s164
      %s167 = sphi 0, %s166
      %s181 = sphi 0, %s167
      %s185 = sphi 0, %s185
      %s187 = sphi 0, %s185
      %s188 = sphi 0, %s187
      %s202 = sphi 0, %s188
      %s206 = sphi 0, %s206
      %s208 = sphi 0, %s206
      %s209 = sphi 0, %s208
      %s223 = sphi 0, %s209
      %s227 = sphi 0, %s227
      %s229 = sphi 0, %s227
      %s230 = sphi 0, %s229
      %s244 = sphi 0, %s230
      %s248 = sphi 0, %s248
      %s250 = sphi 0, %s248
      %s251 = sphi 0, %s250
      %s265 = sphi 0, %s251
      %s269 = sphi 0, %s269
      %s271 = sphi 0, %s269
      %s272 = sphi 0, %s271
      %s286 = sphi 0, %s272
      %s290 = sphi 0, %s290
      %s292 = sphi 0, %s290
      %s293 = sphi 0, %s292
      %s307 = sphi 0, %s293
      %s311 = sphi 0, %s311
      %s313 = sphi 0, %s311
      %s314 = sphi 0, %s313
      %s328 = sphi 0, %s314
      %s332 = sphi 0, %s332
      %s334 = sphi 0, %s332
      %s335 = sphi 0, %s334
      %s349 = sphi 0, %s335
      %s353 = sphi 0, %s353
      %s355 = sphi 0, %s353
      %s356 = sphi 0, %s355
      %s370 = sphi 0, %s356
      %s376 = sphi 0, %s378
      %s379 = sphi 0, %s376
      %s380 = sphi 0, %s379
      %s396 = sphi 0, %s380
    $region4: #{residual_layer.1} parent=1 // loop_header_branch
      %28 = sbr.rel (%p26) target = $region8
    $region5: #{residual_layer.1} parent=1 // loop_body
      %s30 = ssub.s32 %s25, 1
      %s31 = ssub.s32 %s25, 2
      %s32 = sadd.s32 %s25, 1
      %s34 = sadd.s32 %s33, 1
      %p37 = scmp.eq.s32.totalorder %s25, 1
      %p38 = scmp.ne.s32.totalorder %s33, %s35
      %p39 = scmp.eq.s32.totalorder %s25, 0
      %p40 = por %p38, %p39
      %p41 = scmp.ne.s32.totalorder %s33, %s35
      %p42 = scmp.eq.s32.totalorder %s30, 1
      %p43 = por %p41, %p42
      %p44 = scmp.ne.s32.totalorder %s35, %s36
      %p45 = scmp.eq.s32.totalorder %s30, 0
      %p46 = por %p44, %p45
      %p47 = scmp.ne.s32.totalorder %s35, %s36
      %p48 = scmp.eq.s32.totalorder %s31, 1
      %p49 = por %p47, %p48
      %p51 = scmp.ne.s32.totalorder %s36, %s50
      %p52 = scmp.eq.s32.totalorder %s31, 0
      %p53 = por %p51, %p52
      %s54 = ssub.s32 %s25, %s32
      %p55 = scmp.eq.s32.totalorder %s54, 0
      %s57 = sadd.s32 %s56, 1
      %s58 = scalar_select %p55, %s56, %s57
      %p61 = pneg %p55
      %p62 = scmp.eq.s32.totalorder %s25, 1
      %p63 = por %p61, %p62
      %p64 = scmp.ne.s32.totalorder %s56, %s59
      %p65 = scmp.eq.s32.totalorder %s25, 0
      %p66 = por %p64, %p65
      %p67 = scmp.ne.s32.totalorder %s56, %s59
      %p68 = scmp.eq.s32.totalorder %s30, 1
      %p69 = por %p67, %p68
      %p70 = scmp.ne.s32.totalorder %s59, %s60
      %p71 = scmp.eq.s32.totalorder %s30, 0
      %p72 = por %p70, %p71
      %p73 = scmp.ne.s32.totalorder %s59, %s60
      %p74 = scmp.eq.s32.totalorder %s31, 1
      %p75 = por %p73, %p74
      %p77 = scmp.ne.s32.totalorder %s60, %s76
      %p78 = scmp.eq.s32.totalorder %s31, 0
      %p79 = por %p77, %p78
      %s81 = sadd.s32 %s80, 1
      %p84 = scmp.eq.s32.totalorder %s25, 1
      %p85 = scmp.ne.s32.totalorder %s80, %s82
      %p86 = scmp.eq.s32.totalorder %s25, 0
      %p87 = por %p85, %p86
      %p88 = scmp.ne.s32.totalorder %s80, %s82
      %p89 = scmp.eq.s32.totalorder %s30, 1
      %p90 = por %p88, %p89
      %p91 = scmp.ne.s32.totalorder %s82, %s83
      %p92 = scmp.eq.s32.totalorder %s30, 0
      %p93 = por %p91, %p92
      %p94 = scmp.ne.s32.totalorder %s82, %s83
      %p95 = scmp.eq.s32.totalorder %s31, 1
      %p96 = por %p94, %p95
      %p98 = scmp.ne.s32.totalorder %s83, %s97
      %p99 = scmp.eq.s32.totalorder %s31, 0
      %p100 = por %p98, %p99
      %s102 = sadd.s32 %s101, 1
      %p105 = scmp.eq.s32.totalorder %s25, 1
      %p106 = scmp.ne.s32.totalorder %s101, %s103
      %p107 = scmp.eq.s32.totalorder %s25, 0
      %p108 = por %p106, %p107
      %p109 = scmp.ne.s32.totalorder %s101, %s103
      %p110 = scmp.eq.s32.totalorder %s30, 1
      %p111 = por %p109, %p110
      %p112 = scmp.ne.s32.totalorder %s103, %s104
      %p113 = scmp.eq.s32.totalorder %s30, 0
      %p114 = por %p112, %p113
      %p115 = scmp.ne.s32.totalorder %s103, %s104
      %p116 = scmp.eq.s32.totalorder %s31, 1
      %p117 = por %p115, %p116
      %p119 = scmp.ne.s32.totalorder %s104, %s118
      %p120 = scmp.eq.s32.totalorder %s31, 0
      %p121 = por %p119, %p120
      %s123 = sadd.s32 %s122, 1
      %p126 = scmp.eq.s32.totalorder %s25, 1
      %p127 = scmp.ne.s32.totalorder %s122, %s124
      %p128 = scmp.eq.s32.totalorder %s25, 0
      %p129 = por %p127, %p128
      %p130 = scmp.ne.s32.totalorder %s122, %s124
      %p131 = scmp.eq.s32.totalorder %s30, 1
      %p132 = por %p130, %p131
      %p133 = scmp.ne.s32.totalorder %s124, %s125
      %p134 = scmp.eq.s32.totalorder %s30, 0
      %p135 = por %p133, %p134
      %p136 = scmp.ne.s32.totalorder %s124, %s125
      %p137 = scmp.eq.s32.totalorder %s31, 1
      %p138 = por %p136, %p137
      %p140 = scmp.ne.s32.totalorder %s125, %s139
      %p141 = scmp.eq.s32.totalorder %s31, 0
      %p142 = por %p140, %p141
      %s144 = sadd.s32 %s143, 1
      %p147 = scmp.eq.s32.totalorder %s25, 1
      %p148 = scmp.ne.s32.totalorder %s143, %s145
      %p149 = scmp.eq.s32.totalorder %s25, 0
      %p150 = por %p148, %p149
      %p151 = scmp.ne.s32.totalorder %s143, %s145
      %p152 = scmp.eq.s32.totalorder %s30, 1
      %p153 = por %p151, %p152
      %p154 = scmp.ne.s32.totalorder %s145, %s146
      %p155 = scmp.eq.s32.totalorder %s30, 0
      %p156 = por %p154, %p155
      %p157 = scmp.ne.s32.totalorder %s145, %s146
      %p158 = scmp.eq.s32.totalorder %s31, 1
      %p159 = por %p157, %p158
      %p161 = scmp.ne.s32.totalorder %s146, %s160
      %p162 = scmp.eq.s32.totalorder %s31, 0
      %p163 = por %p161, %p162
      %s165 = sadd.s32 %s164, 1
      %p168 = scmp.eq.s32.totalorder %s25, 1
      %p169 = scmp.ne.s32.totalorder %s164, %s166
      %p170 = scmp.eq.s32.totalorder %s25, 0
      %p171 = por %p169, %p170
      %p172 = scmp.ne.s32.totalorder %s164, %s166
      %p173 = scmp.eq.s32.totalorder %s30, 1
      %p174 = por %p172, %p173
      %p175 = scmp.ne.s32.totalorder %s166, %s167
      %p176 = scmp.eq.s32.totalorder %s30, 0
      %p177 = por %p175, %p176
      %p178 = scmp.ne.s32.totalorder %s166, %s167
      %p179 = scmp.eq.s32.totalorder %s31, 1
      %p180 = por %p178, %p179
      %p182 = scmp.ne.s32.totalorder %s167, %s181
      %p183 = scmp.eq.s32.totalorder %s31, 0
      %p184 = por %p182, %p183
      %s186 = sadd.s32 %s185, 1
      %p189 = scmp.eq.s32.totalorder %s25, 1
      %p190 = scmp.ne.s32.totalorder %s185, %s187
      %p191 = scmp.eq.s32.totalorder %s25, 0
      %p192 = por %p190, %p191
      %p193 = scmp.ne.s32.totalorder %s185, %s187
      %p194 = scmp.eq.s32.totalorder %s30, 1
      %p195 = por %p193, %p194
      %p196 = scmp.ne.s32.totalorder %s187, %s188
      %p197 = scmp.eq.s32.totalorder %s30, 0
      %p198 = por %p196, %p197
      %p199 = scmp.ne.s32.totalorder %s187, %s188
      %p200 = scmp.eq.s32.totalorder %s31, 1
      %p201 = por %p199, %p200
      %p203 = scmp.ne.s32.totalorder %s188, %s202
      %p204 = scmp.eq.s32.totalorder %s31, 0
      %p205 = por %p203, %p204
      %s207 = sadd.s32 %s206, 1
      %p210 = scmp.eq.s32.totalorder %s25, 1
      %p211 = scmp.ne.s32.totalorder %s206, %s208
      %p212 = scmp.eq.s32.totalorder %s25, 0
      %p213 = por %p211, %p212
      %p214 = scmp.ne.s32.totalorder %s206, %s208
      %p215 = scmp.eq.s32.totalorder %s30, 1
      %p216 = por %p214, %p215
      %p217 = scmp.ne.s32.totalorder %s208, %s209
      %p218 = scmp.eq.s32.totalorder %s30, 0
      %p219 = por %p217, %p218
      %p220 = scmp.ne.s32.totalorder %s208, %s209
      %p221 = scmp.eq.s32.totalorder %s31, 1
      %p222 = por %p220, %p221
      %p224 = scmp.ne.s32.totalorder %s209, %s223
      %p225 = scmp.eq.s32.totalorder %s31, 0
      %p226 = por %p224, %p225
      %s228 = sadd.s32 %s227, 1
      %p231 = scmp.eq.s32.totalorder %s25, 1
      %p232 = scmp.ne.s32.totalorder %s227, %s229
      %p233 = scmp.eq.s32.totalorder %s25, 0
      %p234 = por %p232, %p233
      %p235 = scmp.ne.s32.totalorder %s227, %s229
      %p236 = scmp.eq.s32.totalorder %s30, 1
      %p237 = por %p235, %p236
      %p238 = scmp.ne.s32.totalorder %s229, %s230
      %p239 = scmp.eq.s32.totalorder %s30, 0
      %p240 = por %p238, %p239
      %p241 = scmp.ne.s32.totalorder %s229, %s230
      %p242 = scmp.eq.s32.totalorder %s31, 1
      %p243 = por %p241, %p242
      %p245 = scmp.ne.s32.totalorder %s230, %s244
      %p246 = scmp.eq.s32.totalorder %s31, 0
      %p247 = por %p245, %p246
      %s249 = sadd.s32 %s248, 1
      %p252 = scmp.eq.s32.totalorder %s25, 1
      %p253 = scmp.ne.s32.totalorder %s248, %s250
      %p254 = scmp.eq.s32.totalorder %s25, 0
      %p255 = por %p253, %p254
      %p256 = scmp.ne.s32.totalorder %s248, %s250
      %p257 = scmp.eq.s32.totalorder %s30, 1
      %p258 = por %p256, %p257
      %p259 = scmp.ne.s32.totalorder %s250, %s251
      %p260 = scmp.eq.s32.totalorder %s30, 0
      %p261 = por %p259, %p260
      %p262 = scmp.ne.s32.totalorder %s250, %s251
      %p263 = scmp.eq.s32.totalorder %s31, 1
      %p264 = por %p262, %p263
      %p266 = scmp.ne.s32.totalorder %s251, %s265
      %p267 = scmp.eq.s32.totalorder %s31, 0
      %p268 = por %p266, %p267
      %s270 = sadd.s32 %s269, 1
      %p273 = scmp.eq.s32.totalorder %s25, 1
      %p274 = scmp.ne.s32.totalorder %s269, %s271
      %p275 = scmp.eq.s32.totalorder %s25, 0
      %p276 = por %p274, %p275
      %p277 = scmp.ne.s32.totalorder %s269, %s271
      %p278 = scmp.eq.s32.totalorder %s30, 1
      %p279 = por %p277, %p278
      %p280 = scmp.ne.s32.totalorder %s271, %s272
      %p281 = scmp.eq.s32.totalorder %s30, 0
      %p282 = por %p280, %p281
      %p283 = scmp.ne.s32.totalorder %s271, %s272
      %p284 = scmp.eq.s32.totalorder %s31, 1
      %p285 = por %p283, %p284
      %p287 = scmp.ne.s32.totalorder %s272, %s286
      %p288 = scmp.eq.s32.totalorder %s31, 0
      %p289 = por %p287, %p288
      %s291 = sadd.s32 %s290, 1
      %p294 = scmp.eq.s32.totalorder %s25, 1
      %p295 = scmp.ne.s32.totalorder %s290, %s292
      %p296 = scmp.eq.s32.totalorder %s25, 0
      %p297 = por %p295, %p296
      %p298 = scmp.ne.s32.totalorder %s290, %s292
      %p299 = scmp.eq.s32.totalorder %s30, 1
      %p300 = por %p298, %p299
      %p301 = scmp.ne.s32.totalorder %s292, %s293
      %p302 = scmp.eq.s32.totalorder %s30, 0
      %p303 = por %p301, %p302
      %p304 = scmp.ne.s32.totalorder %s292, %s293
      %p305 = scmp.eq.s32.totalorder %s31, 1
      %p306 = por %p304, %p305
      %p308 = scmp.ne.s32.totalorder %s293, %s307
      %p309 = scmp.eq.s32.totalorder %s31, 0
      %p310 = por %p308, %p309
      %s312 = sadd.s32 %s311, 1
      %p315 = scmp.eq.s32.totalorder %s25, 1
      %p316 = scmp.ne.s32.totalorder %s311, %s313
      %p317 = scmp.eq.s32.totalorder %s25, 0
      %p318 = por %p316, %p317
      %p319 = scmp.ne.s32.totalorder %s311, %s313
      %p320 = scmp.eq.s32.totalorder %s30, 1
      %p321 = por %p319, %p320
      %p322 = scmp.ne.s32.totalorder %s313, %s314
      %p323 = scmp.eq.s32.totalorder %s30, 0
      %p324 = por %p322, %p323
      %p325 = scmp.ne.s32.totalorder %s313, %s314
      %p326 = scmp.eq.s32.totalorder %s31, 1
      %p327 = por %p325, %p326
      %p329 = scmp.ne.s32.totalorder %s314, %s328
      %p330 = scmp.eq.s32.totalorder %s31, 0
      %p331 = por %p329, %p330
      %s333 = sadd.s32 %s332, 1
      %p336 = scmp.eq.s32.totalorder %s25, 1
      %p337 = scmp.ne.s32.totalorder %s332, %s334
      %p338 = scmp.eq.s32.totalorder %s25, 0
      %p339 = por %p337, %p338
      %p340 = scmp.ne.s32.totalorder %s332, %s334
      %p341 = scmp.eq.s32.totalorder %s30, 1
      %p342 = por %p340, %p341
      %p343 = scmp.ne.s32.totalorder %s334, %s335
      %p344 = scmp.eq.s32.totalorder %s30, 0
      %p345 = por %p343, %p344
      %p346 = scmp.ne.s32.totalorder %s334, %s335
      %p347 = scmp.eq.s32.totalorder %s31, 1
      %p348 = por %p346, %p347
      %p350 = scmp.ne.s32.totalorder %s335, %s349
      %p351 = scmp.eq.s32.totalorder %s31, 0
      %p352 = por %p350, %p351
      %s354 = sadd.s32 %s353, 1
      %p357 = scmp.eq.s32.totalorder %s25, 1
      %p358 = scmp.ne.s32.totalorder %s353, %s355
      %p359 = scmp.eq.s32.totalorder %s25, 0
      %p360 = por %p358, %p359
      %p361 = scmp.ne.s32.totalorder %s353, %s355
      %p362 = scmp.eq.s32.totalorder %s30, 1
      %p363 = por %p361, %p362
      %p364 = scmp.ne.s32.totalorder %s355, %s356
      %p365 = scmp.eq.s32.totalorder %s30, 0
      %p366 = por %p364, %p365
      %p367 = scmp.ne.s32.totalorder %s355, %s356
      %p368 = scmp.eq.s32.totalorder %s31, 1
      %p369 = por %p367, %p368
      %p371 = scmp.ne.s32.totalorder %s356, %s370
      %p372 = scmp.eq.s32.totalorder %s31, 0
      %p373 = por %p371, %p372
      %s374 = ssub.s32 %s25, %s32
      %p375 = scmp.eq.s32.totalorder %s374, 0
      %s377 = sadd.s32 %s376, 1
      %s378 = scalar_select %p375, %s376, %s377
      %p381 = pneg %p375
      %p382 = scmp.eq.s32.totalorder %s25, 1
      %p383 = por %p381, %p382
      %p384 = scmp.ne.s32.totalorder %s376, %s379
      %p385 = scmp.eq.s32.totalorder %s25, 0
      %p386 = por %p384, %p385
      %p387 = scmp.ne.s32.totalorder %s376, %s379
      %p388 = scmp.eq.s32.totalorder %s30, 1
      %p389 = por %p387, %p388
      %p390 = scmp.ne.s32.totalorder %s379, %s380
      %p391 = scmp.eq.s32.totalorder %s30, 0
      %p392 = por %p390, %p391
      %p393 = scmp.ne.s32.totalorder %s379, %s380
      %p394 = scmp.eq.s32.totalorder %s31, 1
      %p395 = por %p393, %p394
      %p397 = scmp.ne.s32.totalorder %s380, %s396
      %p398 = scmp.eq.s32.totalorder %s31, 0
      %p399 = por %p397, %p398
      %p400 = scmp.le.s32.totalorder 1, %s25
      %p401 = scmp.lt.s32.totalorder %s25, 3
      %p402 = pnand %p400, %p401
      %p403 = pneg %p402
      // Predicated region
      $region9: #{residual_layer.1} parent=5 // pred_check
        _
      $region10: #{residual_layer.1} parent=5 // pred_check_branch
        %405 = sbr.rel (%p402) target = $region12
      $region11: #{residual_layer.1} parent=5 // pred_region
        %s406 = ssub.s32 %s25, 1
        // Predicated region
        $region13: #{residual_layer.1} parent=11 // pred_check
          %p407 = pneg %p46
        $region14: #{residual_layer.1} parent=11 // pred_check_branch
          %409 = sbr.rel (%p407) target = $region16
        $region15: #{residual_layer.1} parent=11 // pred_region
          _
        $region16: #{residual_layer.1} parent=11 // pred_fallthru
          _
        // Predicated region
        $region17: #{residual_layer.1} parent=11 // pred_check
          %p410 = pneg %p93
        $region18: #{residual_layer.1} parent=11 // pred_check_branch
          %412 = sbr.rel (%p410) target = $region20
        $region19: #{residual_layer.1} parent=11 // pred_region
          _
        $region20: #{residual_layer.1} parent=11 // pred_fallthru
          _
        // Predicated region
        $region21: #{residual_layer.1} parent=11 // pred_check
          %p413 = pneg %p114
        $region22: #{residual_layer.1} parent=11 // pred_check_branch
          %415 = sbr.rel (%p413) target = $region24
        $region23: #{residual_layer.1} parent=11 // pred_region
          _
        $region24: #{residual_layer.1} parent=11 // pred_fallthru
          _
        // Predicated region
        $region25: #{residual_layer.1} parent=11 // pred_check
          %p416 = pneg %p135
        $region26: #{residual_layer.1} parent=11 // pred_check_branch
          %418 = sbr.rel (%p416) target = $region28
        $region27: #{residual_layer.1} parent=11 // pred_region
          _
        $region28: #{residual_layer.1} parent=11 // pred_fallthru
          _
        // Predicated region
        $region29: #{residual_layer.1} parent=11 // pred_check
          %p419 = pneg %p156
        $region30: #{residual_layer.1} parent=11 // pred_check_branch
          %421 = sbr.rel (%p419) target = $region32
        $region31: #{residual_layer.1} parent=11 // pred_region
          _
        $region32: #{residual_layer.1} parent=11 // pred_fallthru
          _
        // Predicated region
        $region33: #{residual_layer.1} parent=11 // pred_check
          %p422 = pneg %p177
        $region34: #{residual_layer.1} parent=11 // pred_check_branch
          %424 = sbr.rel (%p422) target = $region36
        $region35: #{residual_layer.1} parent=11 // pred_region
          _
        $region36: #{residual_layer.1} parent=11 // pred_fallthru
          _
        // Predicated region
        $region37: #{residual_layer.1} parent=11 // pred_check
          %p425 = pneg %p198
        $region38: #{residual_layer.1} parent=11 // pred_check_branch
          %427 = sbr.rel (%p425) target = $region40
        $region39: #{residual_layer.1} parent=11 // pred_region
          _
        $region40: #{residual_layer.1} parent=11 // pred_fallthru
          _
        // Predicated region
        $region41: #{residual_layer.1} parent=11 // pred_check
          %p428 = pneg %p219
        $region42: #{residual_layer.1} parent=11 // pred_check_branch
          %430 = sbr.rel (%p428) target = $region44
        $region43: #{residual_layer.1} parent=11 // pred_region
          _
        $region44: #{residual_layer.1} parent=11 // pred_fallthru
          _
        // Predicated region
        $region45: #{residual_layer.1} parent=11 // pred_check
          %p431 = pneg %p240
        $region46: #{residual_layer.1} parent=11 // pred_check_branch
          %433 = sbr.rel (%p431) target = $region48
        $region47: #{residual_layer.1} parent=11 // pred_region
          _
        $region48: #{residual_layer.1} parent=11 // pred_fallthru
          _
        // Predicated region
        $region49: #{residual_layer.1} parent=11 // pred_check
          %p434 = pneg %p261
        $region50: #{residual_layer.1} parent=11 // pred_check_branch
          %436 = sbr.rel (%p434) target = $region52
        $region51: #{residual_layer.1} parent=11 // pred_region
          _
        $region52: #{residual_layer.1} parent=11 // pred_fallthru
          _
        // Predicated region
        $region53: #{residual_layer.1} parent=11 // pred_check
          %p437 = pneg %p282
        $region54: #{residual_layer.1} parent=11 // pred_check_branch
          %439 = sbr.rel (%p437) target = $region56
        $region55: #{residual_layer.1} parent=11 // pred_region
          _
        $region56: #{residual_layer.1} parent=11 // pred_fallthru
          _
        // Predicated region
        $region57: #{residual_layer.1} parent=11 // pred_check
          %p440 = pneg %p303
        $region58: #{residual_layer.1} parent=11 // pred_check_branch
          %442 = sbr.rel (%p440) target = $region60
        $region59: #{residual_layer.1} parent=11 // pred_region
          _
        $region60: #{residual_layer.1} parent=11 // pred_fallthru
          _
        // Predicated region
        $region61: #{residual_layer.1} parent=11 // pred_check
          %p443 = pneg %p324
        $region62: #{residual_layer.1} parent=11 // pred_check_branch
          %445 = sbr.rel (%p443) target = $region64
        $region63: #{residual_layer.1} parent=11 // pred_region
          _
        $region64: #{residual_layer.1} parent=11 // pred_fallthru
          _
        // Predicated region
        $region65: #{residual_layer.1} parent=11 // pred_check
          %p446 = pneg %p345
        $region66: #{residual_layer.1} parent=11 // pred_check_branch
          %448 = sbr.rel (%p446) target = $region68
        $region67: #{residual_layer.1} parent=11 // pred_region
          _
        $region68: #{residual_layer.1} parent=11 // pred_fallthru
          _
        // Predicated region
        $region69: #{residual_layer.1} parent=11 // pred_check
          %p449 = pneg %p366
        $region70: #{residual_layer.1} parent=11 // pred_check_branch
          %451 = sbr.rel (%p449) target = $region72
        $region71: #{residual_layer.1} parent=11 // pred_region
          _
        $region72: #{residual_layer.1} parent=11 // pred_fallthru
          _
      $region12: #{residual_layer.1} parent=5 // pred_fallthru
        _
      %p452 = scmp.lt.s32.totalorder %s25, 2
      // Predicated region
      $region73: #{residual_layer.1} parent=5 // pred_check
        %p453 = pneg %p452
      $region74: #{residual_layer.1} parent=5 // pred_check_branch
        %455 = sbr.rel (%p453) target = $region76
      $region75: #{residual_layer.1} parent=5 // pred_region
        // Predicated region
        $region77: #{residual_layer.1} parent=75 // pred_check
          %p456 = pneg %p66
        $region78: #{residual_layer.1} parent=75 // pred_check_branch
          %458 = sbr.rel (%p456) target = $region80
        $region79: #{residual_layer.1} parent=75 // pred_region
          %p459 = scmp.lt.s32.totalorder %s25, 1
          %s460 = scalar_select %p459, %s25, 1
          %s461 = smul.addr %s460, 8
          %s462 = smul.addr %s461, 8
          %s463 = scalar_lea.vmem %s1, %s462
        $region80: #{residual_layer.1} parent=75 // pred_fallthru
          _
      $region76: #{residual_layer.1} parent=5 // pred_fallthru
        _
      %p464 = scmp.le.s32.totalorder 1, %s25
      %p465 = scmp.lt.s32.totalorder %s25, 3
      %p466 = pnand %p464, %p465
      %p467 = pneg %p466
      // Predicated region
      $region81: #{residual_layer.1} parent=5 // pred_check
        _
      $region82: #{residual_layer.1} parent=5 // pred_check_branch
        %469 = sbr.rel (%p466) target = $region84
      $region83: #{residual_layer.1} parent=5 // pred_region
        %s470 = ssub.s32 %s25, 1
        %p471 = pneg %p46
        %p472 = pneg %p43
        %p473 = scmp.lt.s32.totalorder %s30, 1
        %s474 = scalar_select %p473, %s30, 1
        %s475 = smul.addr %s474, 8
        %s476 = smul.addr %s475, 8
        %s477 = scalar_lea.vmem %s1, %s476
        %p478 = pneg %p72
        %p479 = pneg %p69
        %p480 = pneg %p93
        %p481 = pneg %p90
        %p482 = pneg %p114
        %p483 = pneg %p111
        %p484 = pneg %p135
        %p485 = pneg %p132
        %p486 = pneg %p156
        %p487 = pneg %p153
        %p488 = pneg %p177
        %p489 = pneg %p174
        %p490 = pneg %p198
        %p491 = pneg %p195
        %p492 = pneg %p219
        %p493 = pneg %p216
        %p494 = pneg %p240
        %p495 = pneg %p237
        %p496 = pneg %p261
        %p497 = pneg %p258
        %p498 = pneg %p282
        %p499 = pneg %p279
        %p500 = pneg %p303
        %p501 = pneg %p300
        %p502 = pneg %p324
        %p503 = pneg %p321
        %p504 = pneg %p345
        %p505 = pneg %p342
        %p506 = pneg %p366
        %p507 = pneg %p363
        %p508 = pneg %p392
        %p509 = pneg %p389
        %s510 = sand.u32 %s379, 1
        %s511 = scalar_lea.sflag [#allocation4], %s510
        %s512 = sand.u32 %s379, 1
        %s513 = smul.addr %s512, 64
        %s514 = scalar_lea.vmem [#allocation3], %s513
        %p515 = scmp.lt.s32.totalorder %s30, 1
        %s516 = scalar_select %p515, %s30, 1
        %s517 = smul.addr %s516, 8
        %s518 = smul.addr %s517, 8
        %s519 = scalar_lea.vmem %s1, %s518
        %v520 = vld [vmem:[%s0] sm:$0xff]
        %v521 = vld [vmem:[%s0 + $0x8] sm:$0xff]
        %v522 = vld [vmem:[%s0 + $0x10] sm:$0xff]
        %v523 = vld [vmem:[%s0 + $0x18] sm:$0xff]
        %v524 = vld [vmem:[%s0 + $0x20] sm:$0xff]
        %v525 = vld [vmem:[%s0 + $0x28] sm:$0xff]
        %v526 = vld [vmem:[%s0 + $0x30] sm:$0xff]
        %v527 = vld [vmem:[%s0 + $0x38] sm:$0xff]
        %v528 = vld [vmem:[%s0 + $0x40] sm:$0xff]
        %v529 = vld [vmem:[%s0 + $0x48] sm:$0xff]
        %v530 = vld [vmem:[%s0 + $0x50] sm:$0xff]
        %v531 = vld [vmem:[%s0 + $0x58] sm:$0xff]
        %v532 = vld [vmem:[%s0 + $0x60] sm:$0xff]
        %v533 = vld [vmem:[%s0 + $0x68] sm:$0xff]
        %v534 = vld [vmem:[%s0 + $0x70] sm:$0xff]
        %v535 = vld [vmem:[%s0 + $0x78] sm:$0xff]
        %v536 = vld [vmem:[%s519] sm:$0xff]
        %v537 = vld [vmem:[%s519 + $0x8] sm:$0xff]
        %v538 = vld [vmem:[%s519 + $0x10] sm:$0xff]
        %v539 = vld [vmem:[%s519 + $0x18] sm:$0xff]
        %v540 = vld [vmem:[%s519 + $0x20] sm:$0xff]
        %v541 = vld [vmem:[%s519 + $0x28] sm:$0xff]
        %v542 = vld [vmem:[%s519 + $0x30] sm:$0xff]
        %v543 = vld [vmem:[%s519 + $0x38] sm:$0xff]
        %v544 = vld [vmem:[%s2] sm:$0xff]
        %v545 = vld [vmem:[%s2 + $0x8] sm:$0xff]
        %v546 = vld [vmem:[%s2 + $0x10] sm:$0xff]
        %v547 = vld [vmem:[%s2 + $0x18] sm:$0xff]
        %v548 = vld [vmem:[%s3] sm:$0x1]
        %v550 = vperm.slane %v548, 0
        %vm552 = vcmask 261120
        %v554 = vsel %vm552, %v536, 0
        %v557 = vsel %vm552, %v537, 0
        %v560 = vsel %vm552, %v538, 0
        %v563 = vsel %vm552, %v539, 0
        %v566 = vsel %vm552, %v540, 0
        %v569 = vsel %vm552, %v541, 0
        %v572 = vsel %vm552, %v542, 0
        %v575 = vsel %vm552, %v543, 0
        %577 = vmatpush.msra.mxu0 0.0
        %578 = vmatpush.msra.mxu0 0.0
        %579 = vmatpush.msra.mxu0 0.0
        %580 = vmatpush.msra.mxu0 0.0
        %581 = vmatpush.msra.mxu0 0.0
        %582 = vmatpush.msra.mxu0 0.0
        %583 = vmatpush.msra.mxu0 0.0
        %584 = vmatpush.msra.mxu0 0.0
        %585 = vmatpush.msra.mxu0 0.0
        %586 = vmatpush.msra.mxu0 0.0
        %587 = vmatpush.msra.mxu0 0.0
        %588 = vmatpush.msra.mxu0 0.0
        %589 = vmatpush.msra.mxu0 %v547
        %590 = vmatpush.msra.mxu0 %v546
        %591 = vmatpush.msra.mxu0 %v545
        %592 = vmatpush.msra.mxu0 %v544
        %593 = vmatmul.f32.gmra.mxu0 %v554
        %v594 = vpop.f32.mrf.mxu0
        %v595 = vadd.f32 %v550, %v594
        %596 = vmatmul.f32.gmra.mxu0 %v557
        %v597 = vpop.f32.mrf.mxu0
        %v598 = vadd.f32 %v550, %v597
        %599 = vmatmul.f32.gmra.mxu0 %v560
        %v600 = vpop.f32.mrf.mxu0
        %v601 = vadd.f32 %v550, %v600
        %602 = vmatmul.f32.gmra.mxu0 %v563
        %v603 = vpop.f32.mrf.mxu0
        %v604 = vadd.f32 %v550, %v603
        %605 = vmatmul.f32.gmra.mxu0 %v566
        %v606 = vpop.f32.mrf.mxu0
        %v607 = vadd.f32 %v550, %v606
        %608 = vmatmul.f32.gmra.mxu0 %v569
        %v609 = vpop.f32.mrf.mxu0
        %v610 = vadd.f32 %v550, %v609
        %611 = vmatmul.f32.gmra.mxu0 %v572
        %v612 = vpop.f32.mrf.mxu0
        %v613 = vadd.f32 %v550, %v612
        %614 = vmatmul.f32.gmra.mxu0 %v575
        %v615 = vpop.f32.mrf.mxu0
        %v616 = vadd.f32 %v550, %v615
        %617 = vdwg.mxu0
        %v618 = vld [vmem:[%s4] sm:$0x1]
        %v619 = vld [vmem:[%s5] sm:$0x1]
        %vm620 = vcmask 64512
        %v621 = vsel %vm620, %v595, 0.0
        %622 = vadd.xlane.f32.xlu0 %v621
        %v623 = vpop.xlane.xlu0 %622
        %v624 = vsel %vm620, %v598, 0.0
        %625 = vadd.xlane.f32.xlu0 %v624
        %v626 = vpop.xlane.xlu0 %625
        %v627 = vsel %vm620, %v601, 0.0
        %628 = vadd.xlane.f32.xlu0 %v627
        %v629 = vpop.xlane.xlu0 %628
        %v630 = vsel %vm620, %v604, 0.0
        %631 = vadd.xlane.f32.xlu0 %v630
        %v632 = vpop.xlane.xlu0 %631
        %v633 = vsel %vm620, %v607, 0.0
        %634 = vadd.xlane.f32.xlu0 %v633
        %v635 = vpop.xlane.xlu0 %634
        %v636 = vsel %vm620, %v610, 0.0
        %637 = vadd.xlane.f32.xlu0 %v636
        %v638 = vpop.xlane.xlu0 %637
        %v639 = vsel %vm620, %v613, 0.0
        %640 = vadd.xlane.f32.xlu0 %v639
        %v641 = vpop.xlane.xlu0 %640
        %v642 = vsel %vm620, %v616, 0.0
        %643 = vadd.xlane.f32.xlu0 %v642
        %v644 = vpop.xlane.xlu0 %643
        %v645 = vadd.f32 %v623, %v626
        %v646 = vadd.f32 %v645, %v629
        %v647 = vadd.f32 %v646, %v632
        %v648 = vadd.f32 %v647, %v635
        %v649 = vadd.f32 %v648, %v638
        %v650 = vadd.f32 %v649, %v641
        %v651 = vadd.f32 %v650, %v644
        %v652 = vrot.slane %v651, 4
        %v653 = vadd.f32 %v651, %v652
        %v654 = vrot.slane %v653, 2
        %v655 = vadd.f32 %v653, %v654
        %v656 = vrot.slane %v655, 1
        %v657 = vadd.f32 %v655, %v656
        %v658 = vmul.f32 %v657, 0.001953125
        %v659 = vsub.f32 %v595, %v658
        %v660 = vsub.f32 %v598, %v658
        %v661 = vsub.f32 %v601, %v658
        %v662 = vsub.f32 %v604, %v658
        %v663 = vsub.f32 %v607, %v658
        %v664 = vsub.f32 %v610, %v658
        %v665 = vsub.f32 %v613, %v658
        %v666 = vsub.f32 %v616, %v658
        %v667 = vmul.f32 %v659, %v659
        %v668 = vmul.f32 %v660, %v660
        %v669 = vmul.f32 %v661, %v661
        %v670 = vmul.f32 %v662, %v662
        %v671 = vmul.f32 %v663, %v663
        %v672 = vmul.f32 %v664, %v664
        %v673 = vmul.f32 %v665, %v665
        %v674 = vmul.f32 %v666, %v666
        %v675 = vsel %vm620, %v667, 0.0
        %676 = vadd.xlane.f32.xlu0 %v675
        %v677 = vpop.xlane.xlu0 %676
        %v678 = vsel %vm620, %v668, 0.0
        %679 = vadd.xlane.f32.xlu0 %v678
        %v680 = vpop.xlane.xlu0 %679
        %v681 = vsel %vm620, %v669, 0.0
        %682 = vadd.xlane.f32.xlu0 %v681
        %v683 = vpop.xlane.xlu0 %682
        %v684 = vsel %vm620, %v670, 0.0
        %685 = vadd.xlane.f32.xlu0 %v684
        %v686 = vpop.xlane.xlu0 %685
        %v687 = vsel %vm620, %v671, 0.0
        %688 = vadd.xlane.f32.xlu0 %v687
        %v689 = vpop.xlane.xlu0 %688
        %v690 = vsel %vm620, %v672, 0.0
        %691 = vadd.xlane.f32.xlu0 %v690
        %v692 = vpop.xlane.xlu0 %691
        %v693 = vsel %vm620, %v673, 0.0
        %694 = vadd.xlane.f32.xlu0 %v693
        %v695 = vpop.xlane.xlu0 %694
        %v696 = vsel %vm620, %v674, 0.0
        %697 = vadd.xlane.f32.xlu0 %v696
        %v698 = vpop.xlane.xlu0 %697
        %v699 = vadd.f32 %v677, %v680
        %v700 = vadd.f32 %v699, %v683
        %v701 = vadd.f32 %v700, %v686
        %v702 = vadd.f32 %v701, %v689
        %v703 = vadd.f32 %v702, %v692
        %v704 = vadd.f32 %v703, %v695
        %v705 = vadd.f32 %v704, %v698
        %v706 = vrot.slane %v705, 4
        %v707 = vadd.f32 %v705, %v706
        %v708 = vrot.slane %v707, 2
        %v709 = vadd.f32 %v707, %v708
        %v710 = vrot.slane %v709, 1
        %v711 = vadd.f32 %v709, %v710
        %v712 = vmul.f32 %v711, 0.001953125
        %v713 = vadd.f32 %v712, 1e-05
        %v714 = vrsqrt.pop %v713
        %v715 = vmul.f32 %v714, %v713
        %v716 = vmul.f32 %v715, %v714
        %v717 = vmul.f32 0.5, %v716
        %v718 = vsub.f32 1.5, %v717
        %v719 = vmul.f32 %v714, %v718
        %vm720 = vweird.f32 %v713
        %vm721 = vweird.f32 %v714
        %vm722 = vmor %vm720, %vm721
        %v723 = vsel %vm722, %v714, %v719
        %v724 = vmul.f32 %v659, %v723
        %v725 = vmul.f32 %v660, %v723
        %v726 = vmul.f32 %v661, %v723
        %v727 = vmul.f32 %v662, %v723
        %v728 = vmul.f32 %v663, %v723
        %v729 = vmul.f32 %v664, %v723
        %v730 = vmul.f32 %v665, %v723
        %v731 = vmul.f32 %v666, %v723
        %v733 = vperm.slane %v618, 0
        %v735 = vmul.f32 %v724, %v733
        %v736 = vmul.f32 %v725, %v733
        %v737 = vmul.f32 %v726, %v733
        %v738 = vmul.f32 %v727, %v733
        %v739 = vmul.f32 %v728, %v733
        %v740 = vmul.f32 %v729, %v733
        %v741 = vmul.f32 %v730, %v733
        %v742 = vmul.f32 %v731, %v733
        %v744 = vperm.slane %v619, 0
        %v746 = vadd.f32 %v735, %v744
        %v747 = vadd.f32 %v736, %v744
        %v748 = vadd.f32 %v737, %v744
        %v749 = vadd.f32 %v738, %v744
        %v750 = vadd.f32 %v739, %v744
        %v751 = vadd.f32 %v740, %v744
        %v752 = vadd.f32 %v741, %v744
        %v753 = vadd.f32 %v742, %v744
        %v754 = vrot.slane %v746, 3
        %v755 = vrot.slane %v747, 3
        %v756 = vrot.slane %v748, 3
        %v757 = vrot.slane %v749, 3
        %v758 = vrot.slane %v750, 3
        %v759 = vrot.slane %v751, 3
        %v760 = vrot.slane %v752, 3
        %v761 = vrot.slane %v753, 3
        %v762 = vlaneseq
        %v763 = vshrl.u32 %v762, 7
        %vm764 = vcmp.lt.s32.totalorder %v763, 5
        %v765 = vsel %vm764, %v760, %v761
        %v766 = vsel %vm764, %v759, %v760
        %v767 = vsel %vm764, %v758, %v759
        %v768 = vsel %vm764, %v757, %v758
        %v769 = vsel %vm764, %v756, %v757
        %v770 = vsel %vm764, %v755, %v756
        %v771 = vsel %vm764, %v754, %v755
        %v772 = vsel %vm764, %v761, %v754
        %773 = vst.msk [vmem:[#allocation2] sm:$0xff] %vm620, %v766
        %774 = vst.msk [vmem:[#allocation2 + $0x10] sm:$0xff] %vm620, %v765
        %775 = vst.msk [vmem:[#allocation2 + $0x20] sm:$0xff] %vm620, %v772
        %776 = vst.msk [vmem:[#allocation2 + $0x30] sm:$0xff] %vm620, %v771
        %777 = vst.msk [vmem:[#allocation2 + $0x40] sm:$0xff] %vm620, %v770
        %778 = vst.msk [vmem:[#allocation2 + $0x50] sm:$0xff] %vm620, %v769
        %779 = vst.msk [vmem:[#allocation2 + $0x60] sm:$0xff] %vm620, %v768
        %780 = vst.msk [vmem:[#allocation2 + $0x70] sm:$0xff] %vm620, %v767
        %v781 = vrot.slane %v746, 4
        %v782 = vrot.slane %v747, 4
        %v783 = vrot.slane %v748, 4
        %v784 = vrot.slane %v749, 4
        %v785 = vrot.slane %v750, 4
        %v786 = vrot.slane %v751, 4
        %v787 = vrot.slane %v752, 4
        %v788 = vrot.slane %v753, 4
        %vm789 = vcmp.lt.s32.totalorder %v763, 4
        %v790 = vsel %vm789, %v787, %v788
        %v791 = vsel %vm789, %v786, %v787
        %v792 = vsel %vm789, %v785, %v786
        %v793 = vsel %vm789, %v784, %v785
        %v794 = vsel %vm789, %v783, %v784
        %v795 = vsel %vm789, %v782, %v783
        %v796 = vsel %vm789, %v781, %v782
        %v797 = vsel %vm789, %v788, %v781
        %806 = vrot.lane.b32.xlu0 %v791, 8
        %v807 = vpop.permute.xlu0 %806
        %808 = vrot.lane.b32.xlu0 %v790, 8
        %v809 = vpop.permute.xlu0 %808
        %810 = vrot.lane.b32.xlu0 %v797, 8
        %v811 = vpop.permute.xlu0 %810
        %812 = vrot.lane.b32.xlu0 %v796, 8
        %v813 = vpop.permute.xlu0 %812
        %814 = vrot.lane.b32.xlu0 %v795, 8
        %v815 = vpop.permute.xlu0 %814
        %816 = vrot.lane.b32.xlu0 %v794, 8
        %v817 = vpop.permute.xlu0 %816
        %818 = vrot.lane.b32.xlu0 %v793, 8
        %v819 = vpop.permute.xlu0 %818
        %820 = vrot.lane.b32.xlu0 %v792, 8
        %v821 = vpop.permute.xlu0 %820
        %vm830 = vcmask 130112
        %831 = vst.msk [vmem:[#allocation2] sm:$0xff] %vm830, %v807
        %832 = vst.msk [vmem:[#allocation2 + $0x10] sm:$0xff] %vm830, %v809
        %833 = vst.msk [vmem:[#allocation2 + $0x20] sm:$0xff] %vm830, %v811
        %834 = vst.msk [vmem:[#allocation2 + $0x30] sm:$0xff] %vm830, %v813
        %835 = vst.msk [vmem:[#allocation2 + $0x40] sm:$0xff] %vm830, %v815
        %836 = vst.msk [vmem:[#allocation2 + $0x50] sm:$0xff] %vm830, %v817
        %837 = vst.msk [vmem:[#allocation2 + $0x60] sm:$0xff] %vm830, %v819
        %838 = vst.msk [vmem:[#allocation2 + $0x70] sm:$0xff] %vm830, %v821
        %v839 = vrot.slane %v746, 5
        %v840 = vrot.slane %v747, 5
        %v841 = vrot.slane %v748, 5
        %v842 = vrot.slane %v749, 5
        %v843 = vrot.slane %v750, 5
        %v844 = vrot.slane %v751, 5
        %v845 = vrot.slane %v752, 5
        %v846 = vrot.slane %v753, 5
        %vm847 = vcmp.lt.s32.totalorder %v763, 3
        %v848 = vsel %vm847, %v845, %v846
        %v849 = vsel %vm847, %v844, %v845
        %v850 = vsel %vm847, %v843, %v844
        %v851 = vsel %vm847, %v842, %v843
        %v852 = vsel %vm847, %v841, %v842
        %v853 = vsel %vm847, %v840, %v841
        %v854 = vsel %vm847, %v839, %v840
        %v855 = vsel %vm847, %v846, %v839
        %864 = vrot.lane.b32.xlu0 %v849, 16
        %v865 = vpop.permute.xlu0 %864
        %866 = vrot.lane.b32.xlu0 %v848, 16
        %v867 = vpop.permute.xlu0 %866
        %868 = vrot.lane.b32.xlu0 %v855, 16
        %v869 = vpop.permute.xlu0 %868
        %870 = vrot.lane.b32.xlu0 %v854, 16
        %v871 = vpop.permute.xlu0 %870
        %872 = vrot.lane.b32.xlu0 %v853, 16
        %v873 = vpop.permute.xlu0 %872
        %874 = vrot.lane.b32.xlu0 %v852, 16
        %v875 = vpop.permute.xlu0 %874
        %876 = vrot.lane.b32.xlu0 %v851, 16
        %v877 = vpop.permute.xlu0 %876
        %878 = vrot.lane.b32.xlu0 %v850, 16
        %v879 = vpop.permute.xlu0 %878
        %vm888 = vcmask 195712
        %889 = vst.msk [vmem:[#allocation2] sm:$0xff] %vm888, %v865
        %890 = vst.msk [vmem:[#allocation2 + $0x10] sm:$0xff] %vm888, %v867
        %891 = vst.msk [vmem:[#allocation2 + $0x20] sm:$0xff] %vm888, %v869
        %892 = vst.msk [vmem:[#allocation2 + $0x30] sm:$0xff] %vm888, %v871
        %893 = vst.msk [vmem:[#allocation2 + $0x40] sm:$0xff] %vm888, %v873
        %894 = vst.msk [vmem:[#allocation2 + $0x50] sm:$0xff] %vm888, %v875
        %895 = vst.msk [vmem:[#allocation2 + $0x60] sm:$0xff] %vm888, %v877
        %896 = vst.msk [vmem:[#allocation2 + $0x70] sm:$0xff] %vm888, %v879
        %v897 = vrot.slane %v746, 7
        %v898 = vrot.slane %v747, 7
        %v899 = vrot.slane %v748, 7
        %v900 = vrot.slane %v749, 7
        %v901 = vrot.slane %v750, 7
        %v902 = vrot.slane %v751, 7
        %v903 = vrot.slane %v752, 7
        %v904 = vrot.slane %v753, 7
        %vm905 = vcmp.lt.s32.totalorder %v763, 1
        %v906 = vsel %vm905, %v903, %v904
        %v907 = vsel %vm905, %v902, %v903
        %v908 = vsel %vm905, %v901, %v902
        %v909 = vsel %vm905, %v900, %v901
        %v910 = vsel %vm905, %v899, %v900
        %v911 = vsel %vm905, %v898, %v899
        %v912 = vsel %vm905, %v897, %v898
        %v913 = vsel %vm905, %v904, %v897
        %922 = vrot.lane.b32.xlu0 %v907, 24
        %v923 = vpop.permute.xlu0 %922
        %924 = vrot.lane.b32.xlu0 %v906, 24
        %v925 = vpop.permute.xlu0 %924
        %926 = vrot.lane.b32.xlu0 %v913, 24
        %v927 = vpop.permute.xlu0 %926
        %928 = vrot.lane.b32.xlu0 %v912, 24
        %v929 = vpop.permute.xlu0 %928
        %930 = vrot.lane.b32.xlu0 %v911, 24
        %v931 = vpop.permute.xlu0 %930
        %932 = vrot.lane.b32.xlu0 %v910, 24
        %v933 = vpop.permute.xlu0 %932
        %934 = vrot.lane.b32.xlu0 %v909, 24
        %v935 = vpop.permute.xlu0 %934
        %936 = vrot.lane.b32.xlu0 %v908, 24
        %v937 = vpop.permute.xlu0 %936
        %vm946 = vcmask 261312
        %947 = vst.msk [vmem:[#allocation2] sm:$0xff] %vm946, %v923
        %948 = vst.msk [vmem:[#allocation2 + $0x10] sm:$0xff] %vm946, %v925
        %949 = vst.msk [vmem:[#allocation2 + $0x20] sm:$0xff] %vm946, %v927
        %950 = vst.msk [vmem:[#allocation2 + $0x30] sm:$0xff] %vm946, %v929
        %951 = vst.msk [vmem:[#allocation2 + $0x40] sm:$0xff] %vm946, %v931
        %952 = vst.msk [vmem:[#allocation2 + $0x50] sm:$0xff] %vm946, %v933
        %953 = vst.msk [vmem:[#allocation2 + $0x60] sm:$0xff] %vm946, %v935
        %954 = vst.msk [vmem:[#allocation2 + $0x70] sm:$0xff] %vm946, %v937
        %963 = vrot.lane.b32.xlu0 %v752, 32
        %v964 = vpop.permute.xlu0 %963
        %965 = vrot.lane.b32.xlu0 %v753, 32
        %v966 = vpop.permute.xlu0 %965
        %967 = vrot.lane.b32.xlu0 %v746, 32
        %v968 = vpop.permute.xlu0 %967
        %969 = vrot.lane.b32.xlu0 %v747, 32
        %v970 = vpop.permute.xlu0 %969
        %971 = vrot.lane.b32.xlu0 %v748, 32
        %v972 = vpop.permute.xlu0 %971
        %973 = vrot.lane.b32.xlu0 %v749, 32
        %v974 = vpop.permute.xlu0 %973
        %975 = vrot.lane.b32.xlu0 %v750, 32
        %v976 = vpop.permute.xlu0 %975
        %977 = vrot.lane.b32.xlu0 %v751, 32
        %v978 = vpop.permute.xlu0 %977
        %vm987 = vcmask 326912
        %988 = vst.msk [vmem:[#allocation2] sm:$0xff] %vm987, %v964
        %989 = vst.msk [vmem:[#allocation2 + $0x10] sm:$0xff] %vm987, %v966
        %990 = vst.msk [vmem:[#allocation2 + $0x20] sm:$0xff] %vm987, %v968
        %991 = vst.msk [vmem:[#allocation2 + $0x30] sm:$0xff] %vm987, %v970
        %992 = vst.msk [vmem:[#allocation2 + $0x40] sm:$0xff] %vm987, %v972
        %993 = vst.msk [vmem:[#allocation2 + $0x50] sm:$0xff] %vm987, %v974
        %994 = vst.msk [vmem:[#allocation2 + $0x60] sm:$0xff] %vm987, %v976
        %995 = vst.msk [vmem:[#allocation2 + $0x70] sm:$0xff] %vm987, %v978
        %v996 = vrot.slane %v746, 1
        %v997 = vrot.slane %v747, 1
        %v998 = vrot.slane %v748, 1
        %v999 = vrot.slane %v749, 1
        %v1000 = vrot.slane %v750, 1
        %v1001 = vrot.slane %v751, 1
        %v1002 = vrot.slane %v752, 1
        %v1003 = vrot.slane %v753, 1
        %vm1004 = vcmp.lt.s32.totalorder %v763, 7
        %v1005 = vsel %vm1004, %v1002, %v1003
        %v1006 = vsel %vm1004, %v1001, %v1002
        %v1007 = vsel %vm1004, %v1000, %v1001
        %v1008 = vsel %vm1004, %v999, %v1000
        %v1009 = vsel %vm1004, %v998, %v999
        %v1010 = vsel %vm1004, %v997, %v998
        %v1011 = vsel %vm1004, %v996, %v997
        %v1012 = vsel %vm1004, %v1003, %v996
        %1021 = vrot.lane.b32.xlu0 %v1005, 40
        %v1022 = vpop.permute.xlu0 %1021
        %1023 = vrot.lane.b32.xlu0 %v1012, 40
        %v1024 = vpop.permute.xlu0 %1023
        %1025 = vrot.lane.b32.xlu0 %v1011, 40
        %v1026 = vpop.permute.xlu0 %1025
        %1027 = vrot.lane.b32.xlu0 %v1010, 40
        %v1028 = vpop.permute.xlu0 %1027
        %1029 = vrot.lane.b32.xlu0 %v1009, 40
        %v1030 = vpop.permute.xlu0 %1029
        %1031 = vrot.lane.b32.xlu0 %v1008, 40
        %v1032 = vpop.permute.xlu0 %1031
        %1033 = vrot.lane.b32.xlu0 %v1007, 40
        %v1034 = vpop.permute.xlu0 %1033
        %1035 = vrot.lane.b32.xlu0 %v1006, 40
        %v1036 = vpop.permute.xlu0 %1035
        %vm1045 = vcmask 392512
        %1046 = vst.msk [vmem:[#allocation2] sm:$0xff] %vm1045, %v1022
        %1047 = vst.msk [vmem:[#allocation2 + $0x10] sm:$0xff] %vm1045, %v1024
        %1048 = vst.msk [vmem:[#allocation2 + $0x20] sm:$0xff] %vm1045, %v1026
        %1049 = vst.msk [vmem:[#allocation2 + $0x30] sm:$0xff] %vm1045, %v1028
        %1050 = vst.msk [vmem:[#allocation2 + $0x40] sm:$0xff] %vm1045, %v1030
        %1051 = vst.msk [vmem:[#allocation2 + $0x50] sm:$0xff] %vm1045, %v1032
        %1052 = vst.msk [vmem:[#allocation2 + $0x60] sm:$0xff] %vm1045, %v1034
        %1053 = vst.msk [vmem:[#allocation2 + $0x70] sm:$0xff] %vm1045, %v1036
        %1062 = vrot.lane.b32.xlu0 %v765, 48
        %v1063 = vpop.permute.xlu0 %1062
        %1064 = vrot.lane.b32.xlu0 %v772, 48
        %v1065 = vpop.permute.xlu0 %1064
        %1066 = vrot.lane.b32.xlu0 %v771, 48
        %v1067 = vpop.permute.xlu0 %1066
        %1068 = vrot.lane.b32.xlu0 %v770, 48
        %v1069 = vpop.permute.xlu0 %1068
        %1070 = vrot.lane.b32.xlu0 %v769, 48
        %v1071 = vpop.permute.xlu0 %1070
        %1072 = vrot.lane.b32.xlu0 %v768, 48
        %v1073 = vpop.permute.xlu0 %1072
        %1074 = vrot.lane.b32.xlu0 %v767, 48
        %v1075 = vpop.permute.xlu0 %1074
        %1076 = vrot.lane.b32.xlu0 %v766, 48
        %v1077 = vpop.permute.xlu0 %1076
        %vm1086 = vcmask 458112
        %1087 = vst.msk [vmem:[#allocation2] sm:$0xff] %vm1086, %v1063
        %1088 = vst.msk [vmem:[#allocation2 + $0x10] sm:$0xff] %vm1086, %v1065
        %1089 = vst.msk [vmem:[#allocation2 + $0x20] sm:$0xff] %vm1086, %v1067
        %1090 = vst.msk [vmem:[#allocation2 + $0x30] sm:$0xff] %vm1086, %v1069
        %1091 = vst.msk [vmem:[#allocation2 + $0x40] sm:$0xff] %vm1086, %v1071
        %1092 = vst.msk [vmem:[#allocation2 + $0x50] sm:$0xff] %vm1086, %v1073
        %1093 = vst.msk [vmem:[#allocation2 + $0x60] sm:$0xff] %vm1086, %v1075
        %1094 = vst.msk [vmem:[#allocation2 + $0x70] sm:$0xff] %vm1086, %v1077
        %1095 = vrot.lane.b32.xlu0 %v790, 56
        %v1096 = vpop.permute.xlu0 %1095
        %1097 = vrot.lane.b32.xlu0 %v797, 56
        %v1098 = vpop.permute.xlu0 %1097
        %1099 = vrot.lane.b32.xlu0 %v796, 56
        %v1100 = vpop.permute.xlu0 %1099
        %1101 = vrot.lane.b32.xlu0 %v795, 56
        %v1102 = vpop.permute.xlu0 %1101
        %1103 = vrot.lane.b32.xlu0 %v794, 56
        %v1104 = vpop.permute.xlu0 %1103
        %1105 = vrot.lane.b32.xlu0 %v793, 56
        %v1106 = vpop.permute.xlu0 %1105
        %1107 = vrot.lane.b32.xlu0 %v792, 56
        %v1108 = vpop.permute.xlu0 %1107
        %1109 = vrot.lane.b32.xlu0 %v791, 56
        %v1110 = vpop.permute.xlu0 %1109
        %vm1119 = vcmask 523712
        %1120 = vst.msk [vmem:[#allocation2] sm:$0xff] %vm1119, %v1096
        %1121 = vst.msk [vmem:[#allocation2 + $0x10] sm:$0xff] %vm1119, %v1098
        %1122 = vst.msk [vmem:[#allocation2 + $0x20] sm:$0xff] %vm1119, %v1100
        %1123 = vst.msk [vmem:[#allocation2 + $0x30] sm:$0xff] %vm1119, %v1102
        %1124 = vst.msk [vmem:[#allocation2 + $0x40] sm:$0xff] %vm1119, %v1104
        %1125 = vst.msk [vmem:[#allocation2 + $0x50] sm:$0xff] %vm1119, %v1106
        %1126 = vst.msk [vmem:[#allocation2 + $0x60] sm:$0xff] %vm1119, %v1108
        %1127 = vst.msk [vmem:[#allocation2 + $0x70] sm:$0xff] %vm1119, %v1110
        %1128 = vrot.lane.b32.xlu0 %v848, 64
        %v1129 = vpop.permute.xlu0 %1128
        %1130 = vrot.lane.b32.xlu0 %v855, 64
        %v1131 = vpop.permute.xlu0 %1130
        %1132 = vrot.lane.b32.xlu0 %v854, 64
        %v1133 = vpop.permute.xlu0 %1132
        %1134 = vrot.lane.b32.xlu0 %v853, 64
        %v1135 = vpop.permute.xlu0 %1134
        %1136 = vrot.lane.b32.xlu0 %v852, 64
        %v1137 = vpop.permute.xlu0 %1136
        %1138 = vrot.lane.b32.xlu0 %v851, 64
        %v1139 = vpop.permute.xlu0 %1138
        %1140 = vrot.lane.b32.xlu0 %v850, 64
        %v1141 = vpop.permute.xlu0 %1140
        %1142 = vrot.lane.b32.xlu0 %v849, 64
        %v1143 = vpop.permute.xlu0 %1142
        %vm1152 = vcmask 589312
        %1153 = vst.msk [vmem:[#allocation2] sm:$0xff] %vm1152, %v1129
        %1154 = vst.msk [vmem:[#allocation2 + $0x10] sm:$0xff] %vm1152, %v1131
        %1155 = vst.msk [vmem:[#allocation2 + $0x20] sm:$0xff] %vm1152, %v1133
        %1156 = vst.msk [vmem:[#allocation2 + $0x30] sm:$0xff] %vm1152, %v1135
        %1157 = vst.msk [vmem:[#allocation2 + $0x40] sm:$0xff] %vm1152, %v1137
        %1158 = vst.msk [vmem:[#allocation2 + $0x50] sm:$0xff] %vm1152, %v1139
        %1159 = vst.msk [vmem:[#allocation2 + $0x60] sm:$0xff] %vm1152, %v1141
        %1160 = vst.msk [vmem:[#allocation2 + $0x70] sm:$0xff] %vm1152, %v1143
        %1161 = vrot.lane.b32.xlu0 %v772, 72
        %v1162 = vpop.permute.xlu0 %1161
        %1163 = vrot.lane.b32.xlu0 %v771, 72
        %v1164 = vpop.permute.xlu0 %1163
        %1165 = vrot.lane.b32.xlu0 %v770, 72
        %v1166 = vpop.permute.xlu0 %1165
        %1167 = vrot.lane.b32.xlu0 %v769, 72
        %v1168 = vpop.permute.xlu0 %1167
        %1169 = vrot.lane.b32.xlu0 %v768, 72
        %v1170 = vpop.permute.xlu0 %1169
        %1171 = vrot.lane.b32.xlu0 %v767, 72
        %v1172 = vpop.permute.xlu0 %1171
        %1173 = vrot.lane.b32.xlu0 %v766, 72
        %v1174 = vpop.permute.xlu0 %1173
        %1175 = vrot.lane.b32.xlu0 %v765, 72
        %v1176 = vpop.permute.xlu0 %1175
        %vm1185 = vcmask 654912
        %1186 = vst.msk [vmem:[#allocation2] sm:$0xff] %vm1185, %v1162
        %1187 = vst.msk [vmem:[#allocation2 + $0x10] sm:$0xff] %vm1185, %v1164
        %1188 = vst.msk [vmem:[#allocation2 + $0x20] sm:$0xff] %vm1185, %v1166
        %1189 = vst.msk [vmem:[#allocation2 + $0x30] sm:$0xff] %vm1185, %v1168
        %1190 = vst.msk [vmem:[#allocation2 + $0x40] sm:$0xff] %vm1185, %v1170
        %1191 = vst.msk [vmem:[#allocation2 + $0x50] sm:$0xff] %vm1185, %v1172
        %1192 = vst.msk [vmem:[#allocation2 + $0x60] sm:$0xff] %vm1185, %v1174
        %1193 = vst.msk [vmem:[#allocation2 + $0x70] sm:$0xff] %vm1185, %v1176
        %1194 = vrot.lane.b32.xlu0 %v797, 80
        %v1195 = vpop.permute.xlu0 %1194
        %1196 = vrot.lane.b32.xlu0 %v796, 80
        %v1197 = vpop.permute.xlu0 %1196
        %1198 = vrot.lane.b32.xlu0 %v795, 80
        %v1199 = vpop.permute.xlu0 %1198
        %1200 = vrot.lane.b32.xlu0 %v794, 80
        %v1201 = vpop.permute.xlu0 %1200
        %1202 = vrot.lane.b32.xlu0 %v793, 80
        %v1203 = vpop.permute.xlu0 %1202
        %1204 = vrot.lane.b32.xlu0 %v792, 80
        %v1205 = vpop.permute.xlu0 %1204
        %1206 = vrot.lane.b32.xlu0 %v791, 80
        %v1207 = vpop.permute.xlu0 %1206
        %1208 = vrot.lane.b32.xlu0 %v790, 80
        %v1209 = vpop.permute.xlu0 %1208
        %vm1218 = vcmask 720512
        %1219 = vst.msk [vmem:[#allocation2] sm:$0xff] %vm1218, %v1195
        %1220 = vst.msk [vmem:[#allocation2 + $0x10] sm:$0xff] %vm1218, %v1197
        %1221 = vst.msk [vmem:[#allocation2 + $0x20] sm:$0xff] %vm1218, %v1199
        %1222 = vst.msk [vmem:[#allocation2 + $0x30] sm:$0xff] %vm1218, %v1201
        %1223 = vst.msk [vmem:[#allocation2 + $0x40] sm:$0xff] %vm1218, %v1203
        %1224 = vst.msk [vmem:[#allocation2 + $0x50] sm:$0xff] %vm1218, %v1205
        %1225 = vst.msk [vmem:[#allocation2 + $0x60] sm:$0xff] %vm1218, %v1207
        %1226 = vst.msk [vmem:[#allocation2 + $0x70] sm:$0xff] %vm1218, %v1209
        %1227 = vrot.lane.b32.xlu0 %v855, 88
        %v1228 = vpop.permute.xlu0 %1227
        %1229 = vrot.lane.b32.xlu0 %v854, 88
        %v1230 = vpop.permute.xlu0 %1229
        %1231 = vrot.lane.b32.xlu0 %v853, 88
        %v1232 = vpop.permute.xlu0 %1231
        %1233 = vrot.lane.b32.xlu0 %v852, 88
        %v1234 = vpop.permute.xlu0 %1233
        %1235 = vrot.lane.b32.xlu0 %v851, 88
        %v1236 = vpop.permute.xlu0 %1235
        %1237 = vrot.lane.b32.xlu0 %v850, 88
        %v1238 = vpop.permute.xlu0 %1237
        %1239 = vrot.lane.b32.xlu0 %v849, 88
        %v1240 = vpop.permute.xlu0 %1239
        %1241 = vrot.lane.b32.xlu0 %v848, 88
        %v1242 = vpop.permute.xlu0 %1241
        %vm1251 = vcmask 786112
        %1252 = vst.msk [vmem:[#allocation2] sm:$0xff] %vm1251, %v1228
        %1253 = vst.msk [vmem:[#allocation2 + $0x10] sm:$0xff] %vm1251, %v1230
        %1254 = vst.msk [vmem:[#allocation2 + $0x20] sm:$0xff] %vm1251, %v1232
        %1255 = vst.msk [vmem:[#allocation2 + $0x30] sm:$0xff] %vm1251, %v1234
        %1256 = vst.msk [vmem:[#allocation2 + $0x40] sm:$0xff] %vm1251, %v1236
        %1257 = vst.msk [vmem:[#allocation2 + $0x50] sm:$0xff] %vm1251, %v1238
        %1258 = vst.msk [vmem:[#allocation2 + $0x60] sm:$0xff] %vm1251, %v1240
        %1259 = vst.msk [vmem:[#allocation2 + $0x70] sm:$0xff] %vm1251, %v1242
        %1260 = vrot.lane.b32.xlu0 %v913, 96
        %v1261 = vpop.permute.xlu0 %1260
        %1262 = vrot.lane.b32.xlu0 %v912, 96
        %v1263 = vpop.permute.xlu0 %1262
        %1264 = vrot.lane.b32.xlu0 %v911, 96
        %v1265 = vpop.permute.xlu0 %1264
        %1266 = vrot.lane.b32.xlu0 %v910, 96
        %v1267 = vpop.permute.xlu0 %1266
        %1268 = vrot.lane.b32.xlu0 %v909, 96
        %v1269 = vpop.permute.xlu0 %1268
        %1270 = vrot.lane.b32.xlu0 %v908, 96
        %v1271 = vpop.permute.xlu0 %1270
        %1272 = vrot.lane.b32.xlu0 %v907, 96
        %v1273 = vpop.permute.xlu0 %1272
        %1274 = vrot.lane.b32.xlu0 %v906, 96
        %v1275 = vpop.permute.xlu0 %1274
        %vm1284 = vcmask 851712
        %1285 = vst.msk [vmem:[#allocation2] sm:$0xff] %vm1284, %v1261
        %1286 = vst.msk [vmem:[#allocation2 + $0x10] sm:$0xff] %vm1284, %v1263
        %1287 = vst.msk [vmem:[#allocation2 + $0x20] sm:$0xff] %vm1284, %v1265
        %1288 = vst.msk [vmem:[#allocation2 + $0x30] sm:$0xff] %vm1284, %v1267
        %1289 = vst.msk [vmem:[#allocation2 + $0x40] sm:$0xff] %vm1284, %v1269
        %1290 = vst.msk [vmem:[#allocation2 + $0x50] sm:$0xff] %vm1284, %v1271
        %1291 = vst.msk [vmem:[#allocation2 + $0x60] sm:$0xff] %vm1284, %v1273
        %1292 = vst.msk [vmem:[#allocation2 + $0x70] sm:$0xff] %vm1284, %v1275
        %1293 = vrot.lane.b32.xlu0 %v746, 104
        %v1294 = vpop.permute.xlu0 %1293
        %1295 = vrot.lane.b32.xlu0 %v747, 104
        %v1296 = vpop.permute.xlu0 %1295
        %1297 = vrot.lane.b32.xlu0 %v748, 104
        %v1298 = vpop.permute.xlu0 %1297
        %1299 = vrot.lane.b32.xlu0 %v749, 104
        %v1300 = vpop.permute.xlu0 %1299
        %1301 = vrot.lane.b32.xlu0 %v750, 104
        %v1302 = vpop.permute.xlu0 %1301
        %1303 = vrot.lane.b32.xlu0 %v751, 104
        %v1304 = vpop.permute.xlu0 %1303
        %1305 = vrot.lane.b32.xlu0 %v752, 104
        %v1306 = vpop.permute.xlu0 %1305
        %1307 = vrot.lane.b32.xlu0 %v753, 104
        %v1308 = vpop.permute.xlu0 %1307
        %vm1317 = vcmask 917312
        %1318 = vst.msk [vmem:[#allocation2] sm:$0xff] %vm1317, %v1294
        %1319 = vst.msk [vmem:[#allocation2 + $0x10] sm:$0xff] %vm1317, %v1296
        %1320 = vst.msk [vmem:[#allocation2 + $0x20] sm:$0xff] %vm1317, %v1298
        %1321 = vst.msk [vmem:[#allocation2 + $0x30] sm:$0xff] %vm1317, %v1300
        %1322 = vst.msk [vmem:[#allocation2 + $0x40] sm:$0xff] %vm1317, %v1302
        %1323 = vst.msk [vmem:[#allocation2 + $0x50] sm:$0xff] %vm1317, %v1304
        %1324 = vst.msk [vmem:[#allocation2 + $0x60] sm:$0xff] %vm1317, %v1306
        %1325 = vst.msk [vmem:[#allocation2 + $0x70] sm:$0xff] %vm1317, %v1308
        %1326 = vrot.lane.b32.xlu0 %v1011, 112
        %v1327 = vpop.permute.xlu0 %1326
        %1328 = vrot.lane.b32.xlu0 %v1010, 112
        %v1329 = vpop.permute.xlu0 %1328
        %1330 = vrot.lane.b32.xlu0 %v1009, 112
        %v1331 = vpop.permute.xlu0 %1330
        %1332 = vrot.lane.b32.xlu0 %v1008, 112
        %v1333 = vpop.permute.xlu0 %1332
        %1334 = vrot.lane.b32.xlu0 %v1007, 112
        %v1335 = vpop.permute.xlu0 %1334
        %1336 = vrot.lane.b32.xlu0 %v1006, 112
        %v1337 = vpop.permute.xlu0 %1336
        %1338 = vrot.lane.b32.xlu0 %v1005, 112
        %v1339 = vpop.permute.xlu0 %1338
        %1340 = vrot.lane.b32.xlu0 %v1012, 112
        %v1341 = vpop.permute.xlu0 %1340
        %vm1350 = vcmask 982912
        %1351 = vst.msk [vmem:[#allocation2] sm:$0xff] %vm1350, %v1327
        %1352 = vst.msk [vmem:[#allocation2 + $0x10] sm:$0xff] %vm1350, %v1329
        %1353 = vst.msk [vmem:[#allocation2 + $0x20] sm:$0xff] %vm1350, %v1331
        %1354 = vst.msk [vmem:[#allocation2 + $0x30] sm:$0xff] %vm1350, %v1333
        %1355 = vst.msk [vmem:[#allocation2 + $0x40] sm:$0xff] %vm1350, %v1335
        %1356 = vst.msk [vmem:[#allocation2 + $0x50] sm:$0xff] %vm1350, %v1337
        %1357 = vst.msk [vmem:[#allocation2 + $0x60] sm:$0xff] %vm1350, %v1339
        %1358 = vst.msk [vmem:[#allocation2 + $0x70] sm:$0xff] %vm1350, %v1341
        %1359 = vrot.lane.b32.xlu0 %v771, 120
        %v1360 = vpop.permute.xlu0 %1359
        %1361 = vrot.lane.b32.xlu0 %v770, 120
        %v1362 = vpop.permute.xlu0 %1361
        %1363 = vrot.lane.b32.xlu0 %v769, 120
        %v1364 = vpop.permute.xlu0 %1363
        %1365 = vrot.lane.b32.xlu0 %v768, 120
        %v1366 = vpop.permute.xlu0 %1365
        %1367 = vrot.lane.b32.xlu0 %v767, 120
        %v1368 = vpop.permute.xlu0 %1367
        %1369 = vrot.lane.b32.xlu0 %v766, 120
        %v1370 = vpop.permute.xlu0 %1369
        %1371 = vrot.lane.b32.xlu0 %v765, 120
        %v1372 = vpop.permute.xlu0 %1371
        %1373 = vrot.lane.b32.xlu0 %v772, 120
        %v1374 = vpop.permute.xlu0 %1373
        %vm1383 = vcmask 1048512
        %1384 = vst.msk [vmem:[#allocation2] sm:$0xff] %vm1383, %v1360
        %1385 = vst.msk [vmem:[#allocation2 + $0x10] sm:$0xff] %vm1383, %v1362
        %1386 = vst.msk [vmem:[#allocation2 + $0x20] sm:$0xff] %vm1383, %v1364
        %1387 = vst.msk [vmem:[#allocation2 + $0x30] sm:$0xff] %vm1383, %v1366
        %1388 = vst.msk [vmem:[#allocation2 + $0x40] sm:$0xff] %vm1383, %v1368
        %1389 = vst.msk [vmem:[#allocation2 + $0x50] sm:$0xff] %vm1383, %v1370
        %1390 = vst.msk [vmem:[#allocation2 + $0x60] sm:$0xff] %vm1383, %v1372
        %1391 = vst.msk [vmem:[#allocation2 + $0x70] sm:$0xff] %vm1383, %v1374
        %1392 = vst.msk [vmem:[#allocation2 + $0x8] sm:$0xff] %vm620, %v796
        %1393 = vst.msk [vmem:[#allocation2 + $0x18] sm:$0xff] %vm620, %v795
        %1394 = vst.msk [vmem:[#allocation2 + $0x28] sm:$0xff] %vm620, %v794
        %1395 = vst.msk [vmem:[#allocation2 + $0x38] sm:$0xff] %vm620, %v793
        %1396 = vst.msk [vmem:[#allocation2 + $0x48] sm:$0xff] %vm620, %v792
        %1397 = vst.msk [vmem:[#allocation2 + $0x58] sm:$0xff] %vm620, %v791
        %1398 = vst.msk [vmem:[#allocation2 + $0x68] sm:$0xff] %vm620, %v790
        %1399 = vst.msk [vmem:[#allocation2 + $0x78] sm:$0xff] %vm620, %v797
        %1400 = vrot.lane.b32.xlu0 %v854, 8
        %v1401 = vpop.permute.xlu0 %1400
        %1402 = vrot.lane.b32.xlu0 %v853, 8
        %v1403 = vpop.permute.xlu0 %1402
        %1404 = vrot.lane.b32.xlu0 %v852, 8
        %v1405 = vpop.permute.xlu0 %1404
        %1406 = vrot.lane.b32.xlu0 %v851, 8
        %v1407 = vpop.permute.xlu0 %1406
        %1408 = vrot.lane.b32.xlu0 %v850, 8
        %v1409 = vpop.permute.xlu0 %1408
        %1410 = vrot.lane.b32.xlu0 %v849, 8
        %v1411 = vpop.permute.xlu0 %1410
        %1412 = vrot.lane.b32.xlu0 %v848, 8
        %v1413 = vpop.permute.xlu0 %1412
        %1414 = vrot.lane.b32.xlu0 %v855, 8
        %v1415 = vpop.permute.xlu0 %1414
        %1424 = vst.msk [vmem:[#allocation2 + $0x8] sm:$0xff] %vm830, %v1401
        %1425 = vst.msk [vmem:[#allocation2 + $0x18] sm:$0xff] %vm830, %v1403
        %1426 = vst.msk [vmem:[#allocation2 + $0x28] sm:$0xff] %vm830, %v1405
        %1427 = vst.msk [vmem:[#allocation2 + $0x38] sm:$0xff] %vm830, %v1407
        %1428 = vst.msk [vmem:[#allocation2 + $0x48] sm:$0xff] %vm830, %v1409
        %1429 = vst.msk [vmem:[#allocation2 + $0x58] sm:$0xff] %vm830, %v1411
        %1430 = vst.msk [vmem:[#allocation2 + $0x68] sm:$0xff] %vm830, %v1413
        %1431 = vst.msk [vmem:[#allocation2 + $0x78] sm:$0xff] %vm830, %v1415
        %1432 = vrot.lane.b32.xlu0 %v770, 16
        %v1433 = vpop.permute.xlu0 %1432
        %1434 = vrot.lane.b32.xlu0 %v769, 16
        %v1435 = vpop.permute.xlu0 %1434
        %1436 = vrot.lane.b32.xlu0 %v768, 16
        %v1437 = vpop.permute.xlu0 %1436
        %1438 = vrot.lane.b32.xlu0 %v767, 16
        %v1439 = vpop.permute.xlu0 %1438
        %1440 = vrot.lane.b32.xlu0 %v766, 16
        %v1441 = vpop.permute.xlu0 %1440
        %1442 = vrot.lane.b32.xlu0 %v765, 16
        %v1443 = vpop.permute.xlu0 %1442
        %1444 = vrot.lane.b32.xlu0 %v772, 16
        %v1445 = vpop.permute.xlu0 %1444
        %1446 = vrot.lane.b32.xlu0 %v771, 16
        %v1447 = vpop.permute.xlu0 %1446
        %1456 = vst.msk [vmem:[#allocation2 + $0x8] sm:$0xff] %vm888, %v1433
        %1457 = vst.msk [vmem:[#allocation2 + $0x18] sm:$0xff] %vm888, %v1435
        %1458 = vst.msk [vmem:[#allocation2 + $0x28] sm:$0xff] %vm888, %v1437
        %1459 = vst.msk [vmem:[#allocation2 + $0x38] sm:$0xff] %vm888, %v1439
        %1460 = vst.msk [vmem:[#allocation2 + $0x48] sm:$0xff] %vm888, %v1441
        %1461 = vst.msk [vmem:[#allocation2 + $0x58] sm:$0xff] %vm888, %v1443
        %1462 = vst.msk [vmem:[#allocation2 + $0x68] sm:$0xff] %vm888, %v1445
        %1463 = vst.msk [vmem:[#allocation2 + $0x78] sm:$0xff] %vm888, %v1447
        %1464 = vrot.lane.b32.xlu0 %v795, 24
        %v1465 = vpop.permute.xlu0 %1464
        %1466 = vrot.lane.b32.xlu0 %v794, 24
        %v1467 = vpop.permute.xlu0 %1466
        %1468 = vrot.lane.b32.xlu0 %v793, 24
        %v1469 = vpop.permute.xlu0 %1468
        %1470 = vrot.lane.b32.xlu0 %v792, 24
        %v1471 = vpop.permute.xlu0 %1470
        %1472 = vrot.lane.b32.xlu0 %v791, 24
        %v1473 = vpop.permute.xlu0 %1472
        %1474 = vrot.lane.b32.xlu0 %v790, 24
        %v1475 = vpop.permute.xlu0 %1474
        %1476 = vrot.lane.b32.xlu0 %v797, 24
        %v1477 = vpop.permute.xlu0 %1476
        %1478 = vrot.lane.b32.xlu0 %v796, 24
        %v1479 = vpop.permute.xlu0 %1478
        %1488 = vst.msk [vmem:[#allocation2 + $0x8] sm:$0xff] %vm946, %v1465
        %1489 = vst.msk [vmem:[#allocation2 + $0x18] sm:$0xff] %vm946, %v1467
        %1490 = vst.msk [vmem:[#allocation2 + $0x28] sm:$0xff] %vm946, %v1469
        %1491 = vst.msk [vmem:[#allocation2 + $0x38] sm:$0xff] %vm946, %v1471
        %1492 = vst.msk [vmem:[#allocation2 + $0x48] sm:$0xff] %vm946, %v1473
        %1493 = vst.msk [vmem:[#allocation2 + $0x58] sm:$0xff] %vm946, %v1475
        %1494 = vst.msk [vmem:[#allocation2 + $0x68] sm:$0xff] %vm946, %v1477
        %1495 = vst.msk [vmem:[#allocation2 + $0x78] sm:$0xff] %vm946, %v1479
        %1496 = vrot.lane.b32.xlu0 %v853, 32
        %v1497 = vpop.permute.xlu0 %1496
        %1498 = vrot.lane.b32.xlu0 %v852, 32
        %v1499 = vpop.permute.xlu0 %1498
        %1500 = vrot.lane.b32.xlu0 %v851, 32
        %v1501 = vpop.permute.xlu0 %1500
        %1502 = vrot.lane.b32.xlu0 %v850, 32
        %v1503 = vpop.permute.xlu0 %1502
        %1504 = vrot.lane.b32.xlu0 %v849, 32
        %v1505 = vpop.permute.xlu0 %1504
        %1506 = vrot.lane.b32.xlu0 %v848, 32
        %v1507 = vpop.permute.xlu0 %1506
        %1508 = vrot.lane.b32.xlu0 %v855, 32
        %v1509 = vpop.permute.xlu0 %1508
        %1510 = vrot.lane.b32.xlu0 %v854, 32
        %v1511 = vpop.permute.xlu0 %1510
        %1520 = vst.msk [vmem:[#allocation2 + $0x8] sm:$0xff] %vm987, %v1497
        %1521 = vst.msk [vmem:[#allocation2 + $0x18] sm:$0xff] %vm987, %v1499
        %1522 = vst.msk [vmem:[#allocation2 + $0x28] sm:$0xff] %vm987, %v1501
        %1523 = vst.msk [vmem:[#allocation2 + $0x38] sm:$0xff] %vm987, %v1503
        %1524 = vst.msk [vmem:[#allocation2 + $0x48] sm:$0xff] %vm987, %v1505
        %1525 = vst.msk [vmem:[#allocation2 + $0x58] sm:$0xff] %vm987, %v1507
        %1526 = vst.msk [vmem:[#allocation2 + $0x68] sm:$0xff] %vm987, %v1509
        %1527 = vst.msk [vmem:[#allocation2 + $0x78] sm:$0xff] %vm987, %v1511
        %1528 = vrot.lane.b32.xlu0 %v911, 40
        %v1529 = vpop.permute.xlu0 %1528
        %1530 = vrot.lane.b32.xlu0 %v910, 40
        %v1531 = vpop.permute.xlu0 %1530
        %1532 = vrot.lane.b32.xlu0 %v909, 40
        %v1533 = vpop.permute.xlu0 %1532
        %1534 = vrot.lane.b32.xlu0 %v908, 40
        %v1535 = vpop.permute.xlu0 %1534
        %1536 = vrot.lane.b32.xlu0 %v907, 40
        %v1537 = vpop.permute.xlu0 %1536
        %1538 = vrot.lane.b32.xlu0 %v906, 40
        %v1539 = vpop.permute.xlu0 %1538
        %1540 = vrot.lane.b32.xlu0 %v913, 40
        %v1541 = vpop.permute.xlu0 %1540
        %1542 = vrot.lane.b32.xlu0 %v912, 40
        %v1543 = vpop.permute.xlu0 %1542
        %1552 = vst.msk [vmem:[#allocation2 + $0x8] sm:$0xff] %vm1045, %v1529
        %1553 = vst.msk [vmem:[#allocation2 + $0x18] sm:$0xff] %vm1045, %v1531
        %1554 = vst.msk [vmem:[#allocation2 + $0x28] sm:$0xff] %vm1045, %v1533
        %1555 = vst.msk [vmem:[#allocation2 + $0x38] sm:$0xff] %vm1045, %v1535
        %1556 = vst.msk [vmem:[#allocation2 + $0x48] sm:$0xff] %vm1045, %v1537
        %1557 = vst.msk [vmem:[#allocation2 + $0x58] sm:$0xff] %vm1045, %v1539
        %1558 = vst.msk [vmem:[#allocation2 + $0x68] sm:$0xff] %vm1045, %v1541
        %1559 = vst.msk [vmem:[#allocation2 + $0x78] sm:$0xff] %vm1045, %v1543
        %1560 = vrot.lane.b32.xlu0 %v748, 48
        %v1561 = vpop.permute.xlu0 %1560
        %1562 = vrot.lane.b32.xlu0 %v749, 48
        %v1563 = vpop.permute.xlu0 %1562
        %1564 = vrot.lane.b32.xlu0 %v750, 48
        %v1565 = vpop.permute.xlu0 %1564
        %1566 = vrot.lane.b32.xlu0 %v751, 48
        %v1567 = vpop.permute.xlu0 %1566
        %1568 = vrot.lane.b32.xlu0 %v752, 48
        %v1569 = vpop.permute.xlu0 %1568
        %1570 = vrot.lane.b32.xlu0 %v753, 48
        %v1571 = vpop.permute.xlu0 %1570
        %1572 = vrot.lane.b32.xlu0 %v746, 48
        %v1573 = vpop.permute.xlu0 %1572
        %1574 = vrot.lane.b32.xlu0 %v747, 48
        %v1575 = vpop.permute.xlu0 %1574
        %1584 = vst.msk [vmem:[#allocation2 + $0x8] sm:$0xff] %vm1086, %v1561
        %1585 = vst.msk [vmem:[#allocation2 + $0x18] sm:$0xff] %vm1086, %v1563
        %1586 = vst.msk [vmem:[#allocation2 + $0x28] sm:$0xff] %vm1086, %v1565
        %1587 = vst.msk [vmem:[#allocation2 + $0x38] sm:$0xff] %vm1086, %v1567
        %1588 = vst.msk [vmem:[#allocation2 + $0x48] sm:$0xff] %vm1086, %v1569
        %1589 = vst.msk [vmem:[#allocation2 + $0x58] sm:$0xff] %vm1086, %v1571
        %1590 = vst.msk [vmem:[#allocation2 + $0x68] sm:$0xff] %vm1086, %v1573
        %1591 = vst.msk [vmem:[#allocation2 + $0x78] sm:$0xff] %vm1086, %v1575
        %1592 = vrot.lane.b32.xlu0 %v1009, 56
        %v1593 = vpop.permute.xlu0 %1592
        %1594 = vrot.lane.b32.xlu0 %v1008, 56
        %v1595 = vpop.permute.xlu0 %1594
        %1596 = vrot.lane.b32.xlu0 %v1007, 56
        %v1597 = vpop.permute.xlu0 %1596
        %1598 = vrot.lane.b32.xlu0 %v1006, 56
        %v1599 = vpop.permute.xlu0 %1598
        %1600 = vrot.lane.b32.xlu0 %v1005, 56
        %v1601 = vpop.permute.xlu0 %1600
        %1602 = vrot.lane.b32.xlu0 %v1012, 56
        %v1603 = vpop.permute.xlu0 %1602
        %1604 = vrot.lane.b32.xlu0 %v1011, 56
        %v1605 = vpop.permute.xlu0 %1604
        %1606 = vrot.lane.b32.xlu0 %v1010, 56
        %v1607 = vpop.permute.xlu0 %1606
        %1616 = vst.msk [vmem:[#allocation2 + $0x8] sm:$0xff] %vm1119, %v1593
        %1617 = vst.msk [vmem:[#allocation2 + $0x18] sm:$0xff] %vm1119, %v1595
        %1618 = vst.msk [vmem:[#allocation2 + $0x28] sm:$0xff] %vm1119, %v1597
        %1619 = vst.msk [vmem:[#allocation2 + $0x38] sm:$0xff] %vm1119, %v1599
        %1620 = vst.msk [vmem:[#allocation2 + $0x48] sm:$0xff] %vm1119, %v1601
        %1621 = vst.msk [vmem:[#allocation2 + $0x58] sm:$0xff] %vm1119, %v1603
        %1622 = vst.msk [vmem:[#allocation2 + $0x68] sm:$0xff] %vm1119, %v1605
        %1623 = vst.msk [vmem:[#allocation2 + $0x78] sm:$0xff] %vm1119, %v1607
        %1624 = vrot.lane.b32.xlu0 %v769, 64
        %v1625 = vpop.permute.xlu0 %1624
        %1626 = vrot.lane.b32.xlu0 %v768, 64
        %v1627 = vpop.permute.xlu0 %1626
        %1628 = vrot.lane.b32.xlu0 %v767, 64
        %v1629 = vpop.permute.xlu0 %1628
        %1630 = vrot.lane.b32.xlu0 %v766, 64
        %v1631 = vpop.permute.xlu0 %1630
        %1632 = vrot.lane.b32.xlu0 %v765, 64
        %v1633 = vpop.permute.xlu0 %1632
        %1634 = vrot.lane.b32.xlu0 %v772, 64
        %v1635 = vpop.permute.xlu0 %1634
        %1636 = vrot.lane.b32.xlu0 %v771, 64
        %v1637 = vpop.permute.xlu0 %1636
        %1638 = vrot.lane.b32.xlu0 %v770, 64
        %v1639 = vpop.permute.xlu0 %1638
        %1648 = vst.msk [vmem:[#allocation2 + $0x8] sm:$0xff] %vm1152, %v1625
        %1649 = vst.msk [vmem:[#allocation2 + $0x18] sm:$0xff] %vm1152, %v1627
        %1650 = vst.msk [vmem:[#allocation2 + $0x28] sm:$0xff] %vm1152, %v1629
        %1651 = vst.msk [vmem:[#allocation2 + $0x38] sm:$0xff] %vm1152, %v1631
        %1652 = vst.msk [vmem:[#allocation2 + $0x48] sm:$0xff] %vm1152, %v1633
        %1653 = vst.msk [vmem:[#allocation2 + $0x58] sm:$0xff] %vm1152, %v1635
        %1654 = vst.msk [vmem:[#allocation2 + $0x68] sm:$0xff] %vm1152, %v1637
        %1655 = vst.msk [vmem:[#allocation2 + $0x78] sm:$0xff] %vm1152, %v1639
        %1656 = vrot.lane.b32.xlu0 %v794, 72
        %v1657 = vpop.permute.xlu0 %1656
        %1658 = vrot.lane.b32.xlu0 %v793, 72
        %v1659 = vpop.permute.xlu0 %1658
        %1660 = vrot.lane.b32.xlu0 %v792, 72
        %v1661 = vpop.permute.xlu0 %1660
        %1662 = vrot.lane.b32.xlu0 %v791, 72
        %v1663 = vpop.permute.xlu0 %1662
        %1664 = vrot.lane.b32.xlu0 %v790, 72
        %v1665 = vpop.permute.xlu0 %1664
        %1666 = vrot.lane.b32.xlu0 %v797, 72
        %v1667 = vpop.permute.xlu0 %1666
        %1668 = vrot.lane.b32.xlu0 %v796, 72
        %v1669 = vpop.permute.xlu0 %1668
        %1670 = vrot.lane.b32.xlu0 %v795, 72
        %v1671 = vpop.permute.xlu0 %1670
        %1680 = vst.msk [vmem:[#allocation2 + $0x8] sm:$0xff] %vm1185, %v1657
        %1681 = vst.msk [vmem:[#allocation2 + $0x18] sm:$0xff] %vm1185, %v1659
        %1682 = vst.msk [vmem:[#allocation2 + $0x28] sm:$0xff] %vm1185, %v1661
        %1683 = vst.msk [vmem:[#allocation2 + $0x38] sm:$0xff] %vm1185, %v1663
        %1684 = vst.msk [vmem:[#allocation2 + $0x48] sm:$0xff] %vm1185, %v1665
        %1685 = vst.msk [vmem:[#allocation2 + $0x58] sm:$0xff] %vm1185, %v1667
        %1686 = vst.msk [vmem:[#allocation2 + $0x68] sm:$0xff] %vm1185, %v1669
        %1687 = vst.msk [vmem:[#allocation2 + $0x78] sm:$0xff] %vm1185, %v1671
        %1688 = vrot.lane.b32.xlu0 %v852, 80
        %v1689 = vpop.permute.xlu0 %1688
        %1690 = vrot.lane.b32.xlu0 %v851, 80
        %v1691 = vpop.permute.xlu0 %1690
        %1692 = vrot.lane.b32.xlu0 %v850, 80
        %v1693 = vpop.permute.xlu0 %1692
        %1694 = vrot.lane.b32.xlu0 %v849, 80
        %v1695 = vpop.permute.xlu0 %1694
        %1696 = vrot.lane.b32.xlu0 %v848, 80
        %v1697 = vpop.permute.xlu0 %1696
        %1698 = vrot.lane.b32.xlu0 %v855, 80
        %v1699 = vpop.permute.xlu0 %1698
        %1700 = vrot.lane.b32.xlu0 %v854, 80
        %v1701 = vpop.permute.xlu0 %1700
        %1702 = vrot.lane.b32.xlu0 %v853, 80
        %v1703 = vpop.permute.xlu0 %1702
        %1712 = vst.msk [vmem:[#allocation2 + $0x8] sm:$0xff] %vm1218, %v1689
        %1713 = vst.msk [vmem:[#allocation2 + $0x18] sm:$0xff] %vm1218, %v1691
        %1714 = vst.msk [vmem:[#allocation2 + $0x28] sm:$0xff] %vm1218, %v1693
        %1715 = vst.msk [vmem:[#allocation2 + $0x38] sm:$0xff] %vm1218, %v1695
        %1716 = vst.msk [vmem:[#allocation2 + $0x48] sm:$0xff] %vm1218, %v1697
        %1717 = vst.msk [vmem:[#allocation2 + $0x58] sm:$0xff] %vm1218, %v1699
        %1718 = vst.msk [vmem:[#allocation2 + $0x68] sm:$0xff] %vm1218, %v1701
        %1719 = vst.msk [vmem:[#allocation2 + $0x78] sm:$0xff] %vm1218, %v1703
        %v1720 = vld [vmem:[#allocation2] sm:$0xff]
        %v1721 = vld [vmem:[#allocation2 + $0x8] sm:$0xff]
        %v1722 = vld [vmem:[#allocation2 + $0x10] sm:$0xff]
        %v1723 = vld [vmem:[#allocation2 + $0x18] sm:$0xff]
        %v1724 = vld [vmem:[#allocation2 + $0x20] sm:$0xff]
        %v1725 = vld [vmem:[#allocation2 + $0x28] sm:$0xff]
        %v1726 = vld [vmem:[#allocation2 + $0x30] sm:$0xff]
        %v1727 = vld [vmem:[#allocation2 + $0x38] sm:$0xff]
        %v1728 = vld [vmem:[#allocation2 + $0x40] sm:$0xff]
        %v1729 = vld [vmem:[#allocation2 + $0x48] sm:$0xff]
        %v1730 = vld [vmem:[#allocation2 + $0x50] sm:$0xff]
        %v1731 = vld [vmem:[#allocation2 + $0x58] sm:$0xff]
        %v1732 = vld [vmem:[#allocation2 + $0x60] sm:$0xff]
        %v1733 = vld [vmem:[#allocation2 + $0x68] sm:$0xff]
        %v1734 = vld [vmem:[#allocation2 + $0x70] sm:$0xff]
        %v1735 = vld [vmem:[#allocation2 + $0x78] sm:$0xff]
        %v1736 = vmul.f32 %v1720, %v520
        %v1737 = vmul.f32 %v1721, %v521
        %v1738 = vmul.f32 %v1722, %v522
        %v1739 = vmul.f32 %v1723, %v523
        %v1740 = vmul.f32 %v1724, %v524
        %v1741 = vmul.f32 %v1725, %v525
        %v1742 = vmul.f32 %v1726, %v526
        %v1743 = vmul.f32 %v1727, %v527
        %v1744 = vmul.f32 %v1728, %v528
        %v1745 = vmul.f32 %v1729, %v529
        %v1746 = vmul.f32 %v1730, %v530
        %v1747 = vmul.f32 %v1731, %v531
        %v1748 = vmul.f32 %v1732, %v532
        %v1749 = vmul.f32 %v1733, %v533
        %v1750 = vmul.f32 %v1734, %v534
        %v1751 = vmul.f32 %v1735, %v535
        %v1752 = vld [vmem:[%s6] sm:$0xff]
        %v1753 = vld [vmem:[%s6 + $0x8] sm:$0xff]
        %v1754 = vld [vmem:[%s6 + $0x10] sm:$0xff]
        %v1755 = vld [vmem:[%s6 + $0x18] sm:$0xff]
        %v1756 = vld [vmem:[%s6 + $0x20] sm:$0xff]
        %v1757 = vld [vmem:[%s6 + $0x28] sm:$0xff]
        %v1758 = vld [vmem:[%s6 + $0x30] sm:$0xff]
        %v1759 = vld [vmem:[%s6 + $0x38] sm:$0xff]
        %v1760 = vld [vmem:[%s6 + $0x40] sm:$0xff]
        %v1761 = vld [vmem:[%s6 + $0x48] sm:$0xff]
        %v1762 = vld [vmem:[%s6 + $0x50] sm:$0xff]
        %v1763 = vld [vmem:[%s6 + $0x58] sm:$0xff]
        %v1764 = vld [vmem:[%s6 + $0x60] sm:$0xff]
        %v1765 = vld [vmem:[%s6 + $0x68] sm:$0xff]
        %v1766 = vld [vmem:[%s6 + $0x70] sm:$0xff]
        %v1767 = vld [vmem:[%s6 + $0x78] sm:$0xff]
        %v1768 = vld [vmem:[%s6 + $0x80] sm:$0xff]
        %v1769 = vld [vmem:[%s6 + $0x88] sm:$0xff]
        %v1770 = vld [vmem:[%s6 + $0x90] sm:$0xff]
        %v1771 = vld [vmem:[%s6 + $0x98] sm:$0xff]
        %v1772 = vld [vmem:[%s6 + $0xa0] sm:$0xff]
        %v1773 = vld [vmem:[%s6 + $0xa8] sm:$0xff]
        %v1774 = vld [vmem:[%s6 + $0xb0] sm:$0xff]
        %v1775 = vld [vmem:[%s6 + $0xb8] sm:$0xff]
        %v1776 = vld [vmem:[%s6 + $0xc0] sm:$0xff]
        %v1777 = vld [vmem:[%s6 + $0xc8] sm:$0xff]
        %v1778 = vld [vmem:[%s6 + $0xd0] sm:$0xff]
        %v1779 = vld [vmem:[%s7] sm:$0x1]
        %v1781 = vperm.slane %v1779, 0
        %vm1783 = vcmask 719872
        %v1785 = vsel %vm1783, %v1737, 0
        %v1788 = vsel %vm1783, %v1739, 0
        %v1791 = vsel %vm1783, %v1741, 0
        %v1794 = vsel %vm1783, %v1743, 0
        %v1797 = vsel %vm1783, %v1745, 0
        %v1800 = vsel %vm1783, %v1747, 0
        %v1803 = vsel %vm1783, %v1749, 0
        %v1806 = vsel %vm1783, %v1751, 0
        %1808 = vmatpush.msra.mxu0 %v1767
        %1809 = vmatpush.msra.mxu0 %v1766
        %1810 = vmatpush.msra.mxu0 %v1765
        %1811 = vmatpush.msra.mxu0 %v1764
        %1812 = vmatpush.msra.mxu0 %v1763
        %1813 = vmatpush.msra.mxu0 %v1762
        %1814 = vmatpush.msra.mxu0 %v1761
        %1815 = vmatpush.msra.mxu0 %v1760
        %1816 = vmatpush.msra.mxu0 %v1759
        %1817 = vmatpush.msra.mxu0 %v1758
        %1818 = vmatpush.msra.mxu0 %v1757
        %1819 = vmatpush.msra.mxu0 %v1756
        %1820 = vmatpush.msra.mxu0 %v1755
        %1821 = vmatpush.msra.mxu0 %v1754
        %1822 = vmatpush.msra.mxu0 %v1753
        %1823 = vmatpush.msra.mxu0 %v1752
        %1824 = vmatmul.f32.gmra.mxu0 %v1736
        %v1825 = vpop.f32.mrf.mxu0
        %v1826 = vadd.f32 %v1781, %v1825
        %1827 = vmatmul.f32.gmra.mxu0 %v1738
        %v1828 = vpop.f32.mrf.mxu0
        %v1829 = vadd.f32 %v1781, %v1828
        %1830 = vmatmul.f32.gmra.mxu0 %v1740
        %v1831 = vpop.f32.mrf.mxu0
        %v1832 = vadd.f32 %v1781, %v1831
        %1833 = vmatmul.f32.gmra.mxu0 %v1742
        %v1834 = vpop.f32.mrf.mxu0
        %v1835 = vadd.f32 %v1781, %v1834
        %1836 = vmatmul.f32.gmra.mxu0 %v1744
        %v1837 = vpop.f32.mrf.mxu0
        %v1838 = vadd.f32 %v1781, %v1837
        %1839 = vmatmul.f32.gmra.mxu0 %v1746
        %v1840 = vpop.f32.mrf.mxu0
        %v1841 = vadd.f32 %v1781, %v1840
        %1842 = vmatmul.f32.gmra.mxu0 %v1748
        %v1843 = vpop.f32.mrf.mxu0
        %v1844 = vadd.f32 %v1781, %v1843
        %1845 = vmatmul.f32.gmra.mxu0 %v1750
        %v1846 = vpop.f32.mrf.mxu0
        %v1847 = vadd.f32 %v1781, %v1846
        %1848 = vdwg.mxu0
        %1849 = vmatpush.msra.mxu0 0.0
        %1850 = vmatpush.msra.mxu0 0.0
        %1851 = vmatpush.msra.mxu0 0.0
        %1852 = vmatpush.msra.mxu0 0.0
        %1853 = vmatpush.msra.mxu0 0.0
        %1854 = vmatpush.msra.mxu0 %v1778
        %1855 = vmatpush.msra.mxu0 %v1777
        %1856 = vmatpush.msra.mxu0 %v1776
        %1857 = vmatpush.msra.mxu0 %v1775
        %1858 = vmatpush.msra.mxu0 %v1774
        %1859 = vmatpush.msra.mxu0 %v1773
        %1860 = vmatpush.msra.mxu0 %v1772
        %1861 = vmatpush.msra.mxu0 %v1771
        %1862 = vmatpush.msra.mxu0 %v1770
        %1863 = vmatpush.msra.mxu0 %v1769
        %1864 = vmatpush.msra.mxu0 %v1768
        %1865 = vmatmul.f32.gmra.mxu0 %v1785
        %v1866 = vpop.f32.mrf.mxu0
        %v1867 = vadd.f32 %v1826, %v1866
        %1868 = vmatmul.f32.gmra.mxu0 %v1788
        %v1869 = vpop.f32.mrf.mxu0
        %v1870 = vadd.f32 %v1829, %v1869
        %1871 = vmatmul.f32.gmra.mxu0 %v1791
        %v1872 = vpop.f32.mrf.mxu0
        %v1873 = vadd.f32 %v1832, %v1872
        %1874 = vmatmul.f32.gmra.mxu0 %v1794
        %v1875 = vpop.f32.mrf.mxu0
        %v1876 = vadd.f32 %v1835, %v1875
        %1877 = vmatmul.f32.gmra.mxu0 %v1797
        %v1878 = vpop.f32.mrf.mxu0
        %v1879 = vadd.f32 %v1838, %v1878
        %1880 = vmatmul.f32.gmra.mxu0 %v1800
        %v1881 = vpop.f32.mrf.mxu0
        %v1882 = vadd.f32 %v1841, %v1881
        %1883 = vmatmul.f32.gmra.mxu0 %v1803
        %v1884 = vpop.f32.mrf.mxu0
        %v1885 = vadd.f32 %v1844, %v1884
        %1886 = vmatmul.f32.gmra.mxu0 %v1806
        %v1887 = vpop.f32.mrf.mxu0
        %v1888 = vadd.f32 %v1847, %v1887
        %1889 = vdwg.mxu0
        %v1890 = vld [vmem:[%s8] sm:$0x1]
        %v1891 = vld [vmem:[%s9] sm:$0x1]
        %v1892 = vsel %vm620, %v1867, 0.0
        %1893 = vadd.xlane.f32.xlu0 %v1892
        %v1894 = vpop.xlane.xlu0 %1893
        %v1895 = vsel %vm620, %v1870, 0.0
        %1896 = vadd.xlane.f32.xlu0 %v1895
        %v1897 = vpop.xlane.xlu0 %1896
        %v1898 = vsel %vm620, %v1873, 0.0
        %1899 = vadd.xlane.f32.xlu0 %v1898
        %v1900 = vpop.xlane.xlu0 %1899
        %v1901 = vsel %vm620, %v1876, 0.0
        %1902 = vadd.xlane.f32.xlu0 %v1901
        %v1903 = vpop.xlane.xlu0 %1902
        %v1904 = vsel %vm620, %v1879, 0.0
        %1905 = vadd.xlane.f32.xlu0 %v1904
        %v1906 = vpop.xlane.xlu0 %1905
        %v1907 = vsel %vm620, %v1882, 0.0
        %1908 = vadd.xlane.f32.xlu0 %v1907
        %v1909 = vpop.xlane.xlu0 %1908
        %v1910 = vsel %vm620, %v1885, 0.0
        %1911 = vadd.xlane.f32.xlu0 %v1910
        %v1912 = vpop.xlane.xlu0 %1911
        %v1913 = vsel %vm620, %v1888, 0.0
        %1914 = vadd.xlane.f32.xlu0 %v1913
        %v1915 = vpop.xlane.xlu0 %1914
        %v1916 = vadd.f32 %v1894, %v1897
        %v1917 = vadd.f32 %v1916, %v1900
        %v1918 = vadd.f32 %v1917, %v1903
        %v1919 = vadd.f32 %v1918, %v1906
        %v1920 = vadd.f32 %v1919, %v1909
        %v1921 = vadd.f32 %v1920, %v1912
        %v1922 = vadd.f32 %v1921, %v1915
        %v1923 = vrot.slane %v1922, 4
        %v1924 = vadd.f32 %v1922, %v1923
        %v1925 = vrot.slane %v1924, 2
        %v1926 = vadd.f32 %v1924, %v1925
        %v1927 = vrot.slane %v1926, 1
        %v1928 = vadd.f32 %v1926, %v1927
        %v1929 = vmul.f32 %v1928, 0.001953125
        %v1930 = vsub.f32 %v1867, %v1929
        %v1931 = vsub.f32 %v1870, %v1929
        %v1932 = vsub.f32 %v1873, %v1929
        %v1933 = vsub.f32 %v1876, %v1929
        %v1934 = vsub.f32 %v1879, %v1929
        %v1935 = vsub.f32 %v1882, %v1929
        %v1936 = vsub.f32 %v1885, %v1929
        %v1937 = vsub.f32 %v1888, %v1929
        %v1938 = vmul.f32 %v1930, %v1930
        %v1939 = vmul.f32 %v1931, %v1931
        %v1940 = vmul.f32 %v1932, %v1932
        %v1941 = vmul.f32 %v1933, %v1933
        %v1942 = vmul.f32 %v1934, %v1934
        %v1943 = vmul.f32 %v1935, %v1935
        %v1944 = vmul.f32 %v1936, %v1936
        %v1945 = vmul.f32 %v1937, %v1937
        %v1946 = vsel %vm620, %v1938, 0.0
        %1947 = vadd.xlane.f32.xlu0 %v1946
        %v1948 = vpop.xlane.xlu0 %1947
        %v1949 = vsel %vm620, %v1939, 0.0
        %1950 = vadd.xlane.f32.xlu0 %v1949
        %v1951 = vpop.xlane.xlu0 %1950
        %v1952 = vsel %vm620, %v1940, 0.0
        %1953 = vadd.xlane.f32.xlu0 %v1952
        %v1954 = vpop.xlane.xlu0 %1953
        %v1955 = vsel %vm620, %v1941, 0.0
        %1956 = vadd.xlane.f32.xlu0 %v1955
        %v1957 = vpop.xlane.xlu0 %1956
        %v1958 = vsel %vm620, %v1942, 0.0
        %1959 = vadd.xlane.f32.xlu0 %v1958
        %v1960 = vpop.xlane.xlu0 %1959
        %v1961 = vsel %vm620, %v1943, 0.0
        %1962 = vadd.xlane.f32.xlu0 %v1961
        %v1963 = vpop.xlane.xlu0 %1962
        %v1964 = vsel %vm620, %v1944, 0.0
        %1965 = vadd.xlane.f32.xlu0 %v1964
        %v1966 = vpop.xlane.xlu0 %1965
        %v1967 = vsel %vm620, %v1945, 0.0
        %1968 = vadd.xlane.f32.xlu0 %v1967
        %v1969 = vpop.xlane.xlu0 %1968
        %v1970 = vadd.f32 %v1948, %v1951
        %v1971 = vadd.f32 %v1970, %v1954
        %v1972 = vadd.f32 %v1971, %v1957
        %v1973 = vadd.f32 %v1972, %v1960
        %v1974 = vadd.f32 %v1973, %v1963
        %v1975 = vadd.f32 %v1974, %v1966
        %v1976 = vadd.f32 %v1975, %v1969
        %v1977 = vrot.slane %v1976, 4
        %v1978 = vadd.f32 %v1976, %v1977
        %v1979 = vrot.slane %v1978, 2
        %v1980 = vadd.f32 %v1978, %v1979
        %v1981 = vrot.slane %v1980, 1
        %v1982 = vadd.f32 %v1980, %v1981
        %v1983 = vmul.f32 %v1982, 0.001953125
        %v1984 = vadd.f32 %v1983, 1e-05
        %v1985 = vrsqrt.pop %v1984
        %v1986 = vmul.f32 %v1985, %v1984
        %v1987 = vmul.f32 %v1986, %v1985
        %v1988 = vmul.f32 0.5, %v1987
        %v1989 = vsub.f32 1.5, %v1988
        %v1990 = vmul.f32 %v1985, %v1989
        %vm1991 = vweird.f32 %v1984
        %vm1992 = vweird.f32 %v1985
        %vm1993 = vmor %vm1991, %vm1992
        %v1994 = vsel %vm1993, %v1985, %v1990
        %v1995 = vmul.f32 %v1930, %v1994
        %v1996 = vmul.f32 %v1931, %v1994
        %v1997 = vmul.f32 %v1932, %v1994
        %v1998 = vmul.f32 %v1933, %v1994
        %v1999 = vmul.f32 %v1934, %v1994
        %v2000 = vmul.f32 %v1935, %v1994
        %v2001 = vmul.f32 %v1936, %v1994
        %v2002 = vmul.f32 %v1937, %v1994
        %v2004 = vperm.slane %v1890, 0
        %v2006 = vmul.f32 %v1995, %v2004
        %v2007 = vmul.f32 %v1996, %v2004
        %v2008 = vmul.f32 %v1997, %v2004
        %v2009 = vmul.f32 %v1998, %v2004
        %v2010 = vmul.f32 %v1999, %v2004
        %v2011 = vmul.f32 %v2000, %v2004
        %v2012 = vmul.f32 %v2001, %v2004
        %v2013 = vmul.f32 %v2002, %v2004
        %v2015 = vperm.slane %v1891, 0
        %v2017 = vadd.f32 %v2006, %v2015
        %v2018 = vadd.f32 %v2007, %v2015
        %v2019 = vadd.f32 %v2008, %v2015
        %v2020 = vadd.f32 %v2009, %v2015
        %v2021 = vadd.f32 %v2010, %v2015
        %v2022 = vadd.f32 %v2011, %v2015
        %v2023 = vadd.f32 %v2012, %v2015
        %v2024 = vadd.f32 %v2013, %v2015
        %v2025 = vmul.f32 %v2017, 0.70710677
        %v2026 = vmul.f32 %v2018, 0.70710677
        %v2027 = vmul.f32 %v2019, 0.70710677
        %v2028 = vmul.f32 %v2020, 0.70710677
        %v2029 = vmul.f32 %v2021, 0.70710677
        %v2030 = vmul.f32 %v2022, 0.70710677
        %v2031 = vmul.f32 %v2023, 0.70710677
        %v2032 = vmul.f32 %v2024, 0.70710677
        %v2033 = vand.u32 2147483647, %v2025
        %v2034 = vand.u32 2147483647, %v2026
        %v2035 = vand.u32 2147483647, %v2027
        %v2036 = vand.u32 2147483647, %v2028
        %v2037 = vand.u32 2147483647, %v2029
        %v2038 = vand.u32 2147483647, %v2030
        %v2039 = vand.u32 2147483647, %v2031
        %v2040 = vand.u32 2147483647, %v2032
        %v2041 = vmul.f32 %v2033, 0.3275911
        %v2042 = vmul.f32 %v2034, 0.3275911
        %v2043 = vmul.f32 %v2035, 0.3275911
        %v2044 = vmul.f32 %v2036, 0.3275911
        %v2045 = vmul.f32 %v2037, 0.3275911
        %v2046 = vmul.f32 %v2038, 0.3275911
        %v2047 = vmul.f32 %v2039, 0.3275911
        %v2048 = vmul.f32 %v2040, 0.3275911
        %v2049 = vadd.f32 %v2041, 1.0
        %v2050 = vadd.f32 %v2042, 1.0
        %v2051 = vadd.f32 %v2043, 1.0
        %v2052 = vadd.f32 %v2044, 1.0
        %v2053 = vadd.f32 %v2045, 1.0
        %v2054 = vadd.f32 %v2046, 1.0
        %v2055 = vadd.f32 %v2047, 1.0
        %v2056 = vadd.f32 %v2048, 1.0
        %v2057 = vrcp.pop %v2049
        %v2058 = vmul.f32 %v2049, %v2057
        %v2059 = vsub.f32 1.0, %v2058
        %v2060 = vmul.f32 %v2057, %v2059
        %v2061 = vadd.f32 %v2057, %v2060
        %vm2062 = vweird.f32 %v2049
        %vm2063 = vweird.f32 %v2057
        %vm2064 = vmor %vm2062, %vm2063
        %v2065 = vsel %vm2064, %v2057, %v2061
        %v2066 = vand.u32 2147483647, %v2049
        %vm2067 = vcmp.eq.f32.partialorder %v2066, 8.507059e+37
        %v2068 = vand.u32 %v2049, 2147483648
        %v2069 = vor.u32 1.1754944e-38, %v2068
        %v2070 = vsel %vm2067, %v2069, %v2065
        %v2071 = vmul.f32 1.0, %v2070
        %v2072 = vrcp.pop %v2050
        %v2073 = vmul.f32 %v2050, %v2072
        %v2074 = vsub.f32 1.0, %v2073
        %v2075 = vmul.f32 %v2072, %v2074
        %v2076 = vadd.f32 %v2072, %v2075
        %vm2077 = vweird.f32 %v2050
        %vm2078 = vweird.f32 %v2072
        %vm2079 = vmor %vm2077, %vm2078
        %v2080 = vsel %vm2079, %v2072, %v2076
        %v2081 = vand.u32 2147483647, %v2050
        %vm2082 = vcmp.eq.f32.partialorder %v2081, 8.507059e+37
        %v2083 = vand.u32 %v2050, 2147483648
        %v2084 = vor.u32 1.1754944e-38, %v2083
        %v2085 = vsel %vm2082, %v2084, %v2080
        %v2086 = vmul.f32 1.0, %v2085
        %v2087 = vrcp.pop %v2051
        %v2088 = vmul.f32 %v2051, %v2087
        %v2089 = vsub.f32 1.0, %v2088
        %v2090 = vmul.f32 %v2087, %v2089
        %v2091 = vadd.f32 %v2087, %v2090
        %vm2092 = vweird.f32 %v2051
        %vm2093 = vweird.f32 %v2087
        %vm2094 = vmor %vm2092, %vm2093
        %v2095 = vsel %vm2094, %v2087, %v2091
        %v2096 = vand.u32 2147483647, %v2051
        %vm2097 = vcmp.eq.f32.partialorder %v2096, 8.507059e+37
        %v2098 = vand.u32 %v2051, 2147483648
        %v2099 = vor.u32 1.1754944e-38, %v2098
        %v2100 = vsel %vm2097, %v2099, %v2095
        %v2101 = vmul.f32 1.0, %v2100
        %v2102 = vrcp.pop %v2052
        %v2103 = vmul.f32 %v2052, %v2102
        %v2104 = vsub.f32 1.0, %v2103
        %v2105 = vmul.f32 %v2102, %v2104
        %v2106 = vadd.f32 %v2102, %v2105
        %vm2107 = vweird.f32 %v2052
        %vm2108 = vweird.f32 %v2102
        %vm2109 = vmor %vm2107, %vm2108
        %v2110 = vsel %vm2109, %v2102, %v2106
        %v2111 = vand.u32 2147483647, %v2052
        %vm2112 = vcmp.eq.f32.partialorder %v2111, 8.507059e+37
        %v2113 = vand.u32 %v2052, 2147483648
        %v2114 = vor.u32 1.1754944e-38, %v2113
        %v2115 = vsel %vm2112, %v2114, %v2110
        %v2116 = vmul.f32 1.0, %v2115
        %v2117 = vrcp.pop %v2053
        %v2118 = vmul.f32 %v2053, %v2117
        %v2119 = vsub.f32 1.0, %v2118
        %v2120 = vmul.f32 %v2117, %v2119
        %v2121 = vadd.f32 %v2117, %v2120
        %vm2122 = vweird.f32 %v2053
        %vm2123 = vweird.f32 %v2117
        %vm2124 = vmor %vm2122, %vm2123
        %v2125 = vsel %vm2124, %v2117, %v2121
        %v2126 = vand.u32 2147483647, %v2053
        %vm2127 = vcmp.eq.f32.partialorder %v2126, 8.507059e+37
        %v2128 = vand.u32 %v2053, 2147483648
        %v2129 = vor.u32 1.1754944e-38, %v2128
        %v2130 = vsel %vm2127, %v2129, %v2125
        %v2131 = vmul.f32 1.0, %v2130
        %v2132 = vrcp.pop %v2054
        %v2133 = vmul.f32 %v2054, %v2132
        %v2134 = vsub.f32 1.0, %v2133
        %v2135 = vmul.f32 %v2132, %v2134
        %v2136 = vadd.f32 %v2132, %v2135
        %vm2137 = vweird.f32 %v2054
        %vm2138 = vweird.f32 %v2132
        %vm2139 = vmor %vm2137, %vm2138
        %v2140 = vsel %vm2139, %v2132, %v2136
        %v2141 = vand.u32 2147483647, %v2054
        %vm2142 = vcmp.eq.f32.partialorder %v2141, 8.507059e+37
        %v2143 = vand.u32 %v2054, 2147483648
        %v2144 = vor.u32 1.1754944e-38, %v2143
        %v2145 = vsel %vm2142, %v2144, %v2140
        %v2146 = vmul.f32 1.0, %v2145
        %v2147 = vrcp.pop %v2055
        %v2148 = vmul.f32 %v2055, %v2147
        %v2149 = vsub.f32 1.0, %v2148
        %v2150 = vmul.f32 %v2147, %v2149
        %v2151 = vadd.f32 %v2147, %v2150
        %vm2152 = vweird.f32 %v2055
        %vm2153 = vweird.f32 %v2147
        %vm2154 = vmor %vm2152, %vm2153
        %v2155 = vsel %vm2154, %v2147, %v2151
        %v2156 = vand.u32 2147483647, %v2055
        %vm2157 = vcmp.eq.f32.partialorder %v2156, 8.507059e+37
        %v2158 = vand.u32 %v2055, 2147483648
        %v2159 = vor.u32 1.1754944e-38, %v2158
        %v2160 = vsel %vm2157, %v2159, %v2155
        %v2161 = vmul.f32 1.0, %v2160
        %v2162 = vrcp.pop %v2056
        %v2163 = vmul.f32 %v2056, %v2162
        %v2164 = vsub.f32 1.0, %v2163
        %v2165 = vmul.f32 %v2162, %v2164
        %v2166 = vadd.f32 %v2162, %v2165
        %vm2167 = vweird.f32 %v2056
        %vm2168 = vweird.f32 %v2162
        %vm2169 = vmor %vm2167, %vm2168
        %v2170 = vsel %vm2169, %v2162, %v2166
        %v2171 = vand.u32 2147483647, %v2056
        %vm2172 = vcmp.eq.f32.partialorder %v2171, 8.507059e+37
        %v2173 = vand.u32 %v2056, 2147483648
        %v2174 = vor.u32 1.1754944e-38, %v2173
        %v2175 = vsel %vm2172, %v2174, %v2170
        %v2176 = vmul.f32 1.0, %v2175
        %v2177 = vmul.f32 %v2071, 1.0614054
        %v2178 = vmul.f32 %v2086, 1.0614054
        %v2179 = vmul.f32 %v2101, 1.0614054
        %v2180 = vmul.f32 %v2116, 1.0614054
        %v2181 = vmul.f32 %v2131, 1.0614054
        %v2182 = vmul.f32 %v2146, 1.0614054
        %v2183 = vmul.f32 %v2161, 1.0614054
        %v2184 = vmul.f32 %v2176, 1.0614054
        %v2185 = vadd.f32 %v2177, -1.4531521
        %v2186 = vadd.f32 %v2178, -1.4531521
        %v2187 = vadd.f32 %v2179, -1.4531521
        %v2188 = vadd.f32 %v2180, -1.4531521
        %v2189 = vadd.f32 %v2181, -1.4531521
        %v2190 = vadd.f32 %v2182, -1.4531521
        %v2191 = vadd.f32 %v2183, -1.4531521
        %v2192 = vadd.f32 %v2184, -1.4531521
        %v2193 = vmul.f32 %v2071, %v2185
        %v2194 = vmul.f32 %v2086, %v2186
        %v2195 = vmul.f32 %v2101, %v2187
        %v2196 = vmul.f32 %v2116, %v2188
        %v2197 = vmul.f32 %v2131, %v2189
        %v2198 = vmul.f32 %v2146, %v2190
        %v2199 = vmul.f32 %v2161, %v2191
        %v2200 = vmul.f32 %v2176, %v2192
        %v2201 = vadd.f32 %v2193, 1.4214138
        %v2202 = vadd.f32 %v2194, 1.4214138
        %v2203 = vadd.f32 %v2195, 1.4214138
        %v2204 = vadd.f32 %v2196, 1.4214138
        %v2205 = vadd.f32 %v2197, 1.4214138
        %v2206 = vadd.f32 %v2198, 1.4214138
        %v2207 = vadd.f32 %v2199, 1.4214138
        %v2208 = vadd.f32 %v2200, 1.4214138
        %v2209 = vmul.f32 %v2071, %v2201
        %v2210 = vmul.f32 %v2086, %v2202
        %v2211 = vmul.f32 %v2101, %v2203
        %v2212 = vmul.f32 %v2116, %v2204
        %v2213 = vmul.f32 %v2131, %v2205
        %v2214 = vmul.f32 %v2146, %v2206
        %v2215 = vmul.f32 %v2161, %v2207
        %v2216 = vmul.f32 %v2176, %v2208
        %v2217 = vadd.f32 %v2209, -0.28449672
        %v2218 = vadd.f32 %v2210, -0.28449672
        %v2219 = vadd.f32 %v2211, -0.28449672
        %v2220 = vadd.f32 %v2212, -0.28449672
        %v2221 = vadd.f32 %v2213, -0.28449672
        %v2222 = vadd.f32 %v2214, -0.28449672
        %v2223 = vadd.f32 %v2215, -0.28449672
        %v2224 = vadd.f32 %v2216, -0.28449672
        %v2225 = vmul.f32 %v2071, %v2217
        %v2226 = vmul.f32 %v2086, %v2218
        %v2227 = vmul.f32 %v2101, %v2219
        %v2228 = vmul.f32 %v2116, %v2220
        %v2229 = vmul.f32 %v2131, %v2221
        %v2230 = vmul.f32 %v2146, %v2222
        %v2231 = vmul.f32 %v2161, %v2223
        %v2232 = vmul.f32 %v2176, %v2224
        %v2233 = vadd.f32 %v2225, 0.2548296
        %v2234 = vadd.f32 %v2226, 0.2548296
        %v2235 = vadd.f32 %v2227, 0.2548296
        %v2236 = vadd.f32 %v2228, 0.2548296
        %v2237 = vadd.f32 %v2229, 0.2548296
        %v2238 = vadd.f32 %v2230, 0.2548296
        %v2239 = vadd.f32 %v2231, 0.2548296
        %v2240 = vadd.f32 %v2232, 0.2548296
        %v2241 = vmul.f32 %v2071, %v2233
        %v2242 = vmul.f32 %v2086, %v2234
        %v2243 = vmul.f32 %v2101, %v2235
        %v2244 = vmul.f32 %v2116, %v2236
        %v2245 = vmul.f32 %v2131, %v2237
        %v2246 = vmul.f32 %v2146, %v2238
        %v2247 = vmul.f32 %v2161, %v2239
        %v2248 = vmul.f32 %v2176, %v2240
        %v2249 = vsub.f32 0.0, %v2033
        %v2250 = vsub.f32 0.0, %v2034
        %v2251 = vsub.f32 0.0, %v2035
        %v2252 = vsub.f32 0.0, %v2036
        %v2253 = vsub.f32 0.0, %v2037
        %v2254 = vsub.f32 0.0, %v2038
        %v2255 = vsub.f32 0.0, %v2039
        %v2256 = vsub.f32 0.0, %v2040
        %v2257 = vmul.f32 %v2249, %v2033
        %v2258 = vmul.f32 %v2250, %v2034
        %v2259 = vmul.f32 %v2251, %v2035
        %v2260 = vmul.f32 %v2252, %v2036
        %v2261 = vmul.f32 %v2253, %v2037
        %v2262 = vmul.f32 %v2254, %v2038
        %v2263 = vmul.f32 %v2255, %v2039
        %v2264 = vmul.f32 %v2256, %v2040
        %v2265 = vmul.f32 %v2257, 1.442695
        %v2266 = vpow.pop %v2265
        %v2267 = vmul.f32 %v2258, 1.442695
        %v2268 = vpow.pop %v2267
        %v2269 = vmul.f32 %v2259, 1.442695
        %v2270 = vpow.pop %v2269
        %v2271 = vmul.f32 %v2260, 1.442695
        %v2272 = vpow.pop %v2271
        %v2273 = vmul.f32 %v2261, 1.442695
        %v2274 = vpow.pop %v2273
        %v2275 = vmul.f32 %v2262, 1.442695
        %v2276 = vpow.pop %v2275
        %v2277 = vmul.f32 %v2263, 1.442695
        %v2278 = vpow.pop %v2277
        %v2279 = vmul.f32 %v2264, 1.442695
        %v2280 = vpow.pop %v2279
        %v2281 = vmul.f32 %v2241, %v2266
        %v2282 = vmul.f32 %v2242, %v2268
        %v2283 = vmul.f32 %v2243, %v2270
        %v2284 = vmul.f32 %v2244, %v2272
        %v2285 = vmul.f32 %v2245, %v2274
        %v2286 = vmul.f32 %v2246, %v2276
        %v2287 = vmul.f32 %v2247, %v2278
        %v2288 = vmul.f32 %v2248, %v2280
        %v2289 = vsub.f32 1.0, %v2281
        %v2290 = vsub.f32 1.0, %v2282
        %v2291 = vsub.f32 1.0, %v2283
        %v2292 = vsub.f32 1.0, %v2284
        %v2293 = vsub.f32 1.0, %v2285
        %v2294 = vsub.f32 1.0, %v2286
        %v2295 = vsub.f32 1.0, %v2287
        %v2296 = vsub.f32 1.0, %v2288
        %vm2297 = vcmp.ge.f32.partialorder %v2025, 0.0
        %vm2298 = vcmp.ge.f32.partialorder %v2026, 0.0
        %vm2299 = vcmp.ge.f32.partialorder %v2027, 0.0
        %vm2300 = vcmp.ge.f32.partialorder %v2028, 0.0
        %vm2301 = vcmp.ge.f32.partialorder %v2029, 0.0
        %vm2302 = vcmp.ge.f32.partialorder %v2030, 0.0
        %vm2303 = vcmp.ge.f32.partialorder %v2031, 0.0
        %vm2304 = vcmp.ge.f32.partialorder %v2032, 0.0
        %v2305 = vsub.f32 0.0, %v2289
        %v2306 = vsub.f32 0.0, %v2290
        %v2307 = vsub.f32 0.0, %v2291
        %v2308 = vsub.f32 0.0, %v2292
        %v2309 = vsub.f32 0.0, %v2293
        %v2310 = vsub.f32 0.0, %v2294
        %v2311 = vsub.f32 0.0, %v2295
        %v2312 = vsub.f32 0.0, %v2296
        %v2313 = vsel %vm2297, %v2289, %v2305
        %v2314 = vsel %vm2298, %v2290, %v2306
        %v2315 = vsel %vm2299, %v2291, %v2307
        %v2316 = vsel %vm2300, %v2292, %v2308
        %v2317 = vsel %vm2301, %v2293, %v2309
        %v2318 = vsel %vm2302, %v2294, %v2310
        %v2319 = vsel %vm2303, %v2295, %v2311
        %v2320 = vsel %vm2304, %v2296, %v2312
        %v2321 = vmul.f32 %v2017, 0.5
        %v2322 = vmul.f32 %v2018, 0.5
        %v2323 = vmul.f32 %v2019, 0.5
        %v2324 = vmul.f32 %v2020, 0.5
        %v2325 = vmul.f32 %v2021, 0.5
        %v2326 = vmul.f32 %v2022, 0.5
        %v2327 = vmul.f32 %v2023, 0.5
        %v2328 = vmul.f32 %v2024, 0.5
        %v2329 = vadd.f32 %v2313, 1.0
        %v2330 = vadd.f32 %v2314, 1.0
        %v2331 = vadd.f32 %v2315, 1.0
        %v2332 = vadd.f32 %v2316, 1.0
        %v2333 = vadd.f32 %v2317, 1.0
        %v2334 = vadd.f32 %v2318, 1.0
        %v2335 = vadd.f32 %v2319, 1.0
        %v2336 = vadd.f32 %v2320, 1.0
        %v2337 = vmul.f32 %v2321, %v2329
        %v2338 = vmul.f32 %v2322, %v2330
        %v2339 = vmul.f32 %v2323, %v2331
        %v2340 = vmul.f32 %v2324, %v2332
        %v2341 = vmul.f32 %v2325, %v2333
        %v2342 = vmul.f32 %v2326, %v2334
        %v2343 = vmul.f32 %v2327, %v2335
        %v2344 = vmul.f32 %v2328, %v2336
        %v2345 = vld [vmem:[%s10] sm:$0xff]
        %v2346 = vld [vmem:[%s11] sm:$0x1]
        %v2348 = vperm.slane %v2346, 0
        %v2351 = vsel %vm620, %v2337, 0
        %v2354 = vsel %vm620, %v2338, 0
        %v2357 = vsel %vm620, %v2339, 0
        %v2360 = vsel %vm620, %v2340, 0
        %v2363 = vsel %vm620, %v2341, 0
        %v2366 = vsel %vm620, %v2342, 0
        %v2369 = vsel %vm620, %v2343, 0
        %v2372 = vsel %vm620, %v2344, 0
        %2374 = vmatpush.msra.mxu0 0.0
        %2375 = vmatpush.msra.mxu0 0.0
        %2376 = vmatpush.msra.mxu0 0.0
        %2377 = vmatpush.msra.mxu0 0.0
        %2378 = vmatpush.msra.mxu0 0.0
        %2379 = vmatpush.msra.mxu0 0.0
        %2380 = vmatpush.msra.mxu0 0.0
        %2381 = vmatpush.msra.mxu0 0.0
        %2382 = vmatpush.msra.mxu0 0.0
        %2383 = vmatpush.msra.mxu0 0.0
        %2384 = vmatpush.msra.mxu0 0.0
        %2385 = vmatpush.msra.mxu0 0.0
        %2386 = vmatpush.msra.mxu0 0.0
        %2387 = vmatpush.msra.mxu0 0.0
        %2388 = vmatpush.msra.mxu0 0.0
        %2389 = vmatpush.msra.mxu0 %v2345
        %2390 = vmatmul.f32.gmra.mxu0 %v2351
        %v2391 = vpop.f32.mrf.mxu0
        %v2392 = vadd.f32 %v2348, %v2391
        %2393 = vmatmul.f32.gmra.mxu0 %v2354
        %v2394 = vpop.f32.mrf.mxu0
        %v2395 = vadd.f32 %v2348, %v2394
        %2396 = vmatmul.f32.gmra.mxu0 %v2357
        %v2397 = vpop.f32.mrf.mxu0
        %v2398 = vadd.f32 %v2348, %v2397
        %2399 = vmatmul.f32.gmra.mxu0 %v2360
        %v2400 = vpop.f32.mrf.mxu0
        %v2401 = vadd.f32 %v2348, %v2400
        %2402 = vmatmul.f32.gmra.mxu0 %v2363
        %v2403 = vpop.f32.mrf.mxu0
        %v2404 = vadd.f32 %v2348, %v2403
        %2405 = vmatmul.f32.gmra.mxu0 %v2366
        %v2406 = vpop.f32.mrf.mxu0
        %v2407 = vadd.f32 %v2348, %v2406
        %2408 = vmatmul.f32.gmra.mxu0 %v2369
        %v2409 = vpop.f32.mrf.mxu0
        %v2410 = vadd.f32 %v2348, %v2409
        %2411 = vmatmul.f32.gmra.mxu0 %v2372
        %v2412 = vpop.f32.mrf.mxu0
        %v2413 = vadd.f32 %v2348, %v2412
        %2414 = vdwg.mxu0
        %v2415 = vld [vmem:[%s12] sm:$0x1]
        %v2416 = vld [vmem:[%s13] sm:$0x1]
        %v2417 = vsel %vm552, %v2392, 0.0
        %2418 = vadd.xlane.f32.xlu0 %v2417
        %v2419 = vpop.xlane.xlu0 %2418
        %v2420 = vsel %vm552, %v2395, 0.0
        %2421 = vadd.xlane.f32.xlu0 %v2420
        %v2422 = vpop.xlane.xlu0 %2421
        %v2423 = vsel %vm552, %v2398, 0.0
        %2424 = vadd.xlane.f32.xlu0 %v2423
        %v2425 = vpop.xlane.xlu0 %2424
        %v2426 = vsel %vm552, %v2401, 0.0
        %2427 = vadd.xlane.f32.xlu0 %v2426
        %v2428 = vpop.xlane.xlu0 %2427
        %v2429 = vsel %vm552, %v2404, 0.0
        %2430 = vadd.xlane.f32.xlu0 %v2429
        %v2431 = vpop.xlane.xlu0 %2430
        %v2432 = vsel %vm552, %v2407, 0.0
        %2433 = vadd.xlane.f32.xlu0 %v2432
        %v2434 = vpop.xlane.xlu0 %2433
        %v2435 = vsel %vm552, %v2410, 0.0
        %2436 = vadd.xlane.f32.xlu0 %v2435
        %v2437 = vpop.xlane.xlu0 %2436
        %v2438 = vsel %vm552, %v2413, 0.0
        %2439 = vadd.xlane.f32.xlu0 %v2438
        %v2440 = vpop.xlane.xlu0 %2439
        %v2441 = vadd.f32 %v2419, %v2422
        %v2442 = vadd.f32 %v2441, %v2425
        %v2443 = vadd.f32 %v2442, %v2428
        %v2444 = vadd.f32 %v2443, %v2431
        %v2445 = vadd.f32 %v2444, %v2434
        %v2446 = vadd.f32 %v2445, %v2437
        %v2447 = vadd.f32 %v2446, %v2440
        %v2448 = vrot.slane %v2447, 4
        %v2449 = vadd.f32 %v2447, %v2448
        %v2450 = vrot.slane %v2449, 2
        %v2451 = vadd.f32 %v2449, %v2450
        %v2452 = vrot.slane %v2451, 1
        %v2453 = vadd.f32 %v2451, %v2452
        %v2454 = vmul.f32 %v2453, 0.00048828125
        %v2455 = vsub.f32 %v2392, %v2454
        %v2456 = vsub.f32 %v2395, %v2454
        %v2457 = vsub.f32 %v2398, %v2454
        %v2458 = vsub.f32 %v2401, %v2454
        %v2459 = vsub.f32 %v2404, %v2454
        %v2460 = vsub.f32 %v2407, %v2454
        %v2461 = vsub.f32 %v2410, %v2454
        %v2462 = vsub.f32 %v2413, %v2454
        %v2463 = vmul.f32 %v2455, %v2455
        %v2464 = vmul.f32 %v2456, %v2456
        %v2465 = vmul.f32 %v2457, %v2457
        %v2466 = vmul.f32 %v2458, %v2458
        %v2467 = vmul.f32 %v2459, %v2459
        %v2468 = vmul.f32 %v2460, %v2460
        %v2469 = vmul.f32 %v2461, %v2461
        %v2470 = vmul.f32 %v2462, %v2462
        %v2471 = vsel %vm552, %v2463, 0.0
        %2472 = vadd.xlane.f32.xlu0 %v2471
        %v2473 = vpop.xlane.xlu0 %2472
        %v2474 = vsel %vm552, %v2464, 0.0
        %2475 = vadd.xlane.f32.xlu0 %v2474
        %v2476 = vpop.xlane.xlu0 %2475
        %v2477 = vsel %vm552, %v2465, 0.0
        %2478 = vadd.xlane.f32.xlu0 %v2477
        %v2479 = vpop.xlane.xlu0 %2478
        %v2480 = vsel %vm552, %v2466, 0.0
        %2481 = vadd.xlane.f32.xlu0 %v2480
        %v2482 = vpop.xlane.xlu0 %2481
        %v2483 = vsel %vm552, %v2467, 0.0
        %2484 = vadd.xlane.f32.xlu0 %v2483
        %v2485 = vpop.xlane.xlu0 %2484
        %v2486 = vsel %vm552, %v2468, 0.0
        %2487 = vadd.xlane.f32.xlu0 %v2486
        %v2488 = vpop.xlane.xlu0 %2487
        %v2489 = vsel %vm552, %v2469, 0.0
        %2490 = vadd.xlane.f32.xlu0 %v2489
        %v2491 = vpop.xlane.xlu0 %2490
        %v2492 = vsel %vm552, %v2470, 0.0
        %2493 = vadd.xlane.f32.xlu0 %v2492
        %v2494 = vpop.xlane.xlu0 %2493
        %v2495 = vadd.f32 %v2473, %v2476
        %v2496 = vadd.f32 %v2495, %v2479
        %v2497 = vadd.f32 %v2496, %v2482
        %v2498 = vadd.f32 %v2497, %v2485
        %v2499 = vadd.f32 %v2498, %v2488
        %v2500 = vadd.f32 %v2499, %v2491
        %v2501 = vadd.f32 %v2500, %v2494
        %v2502 = vrot.slane %v2501, 4
        %v2503 = vadd.f32 %v2501, %v2502
        %v2504 = vrot.slane %v2503, 2
        %v2505 = vadd.f32 %v2503, %v2504
        %v2506 = vrot.slane %v2505, 1
        %v2507 = vadd.f32 %v2505, %v2506
        %v2508 = vmul.f32 %v2507, 0.00048828125
        %v2509 = vadd.f32 %v2508, 1e-05
        %v2510 = vrsqrt.pop %v2509
        %v2511 = vmul.f32 %v2510, %v2509
        %v2512 = vmul.f32 %v2511, %v2510
        %v2513 = vmul.f32 0.5, %v2512
        %v2514 = vsub.f32 1.5, %v2513
        %v2515 = vmul.f32 %v2510, %v2514
        %vm2516 = vweird.f32 %v2509
        %vm2517 = vweird.f32 %v2510
        %vm2518 = vmor %vm2516, %vm2517
        %v2519 = vsel %vm2518, %v2510, %v2515
        %v2520 = vmul.f32 %v2455, %v2519
        %v2521 = vmul.f32 %v2456, %v2519
        %v2522 = vmul.f32 %v2457, %v2519
        %v2523 = vmul.f32 %v2458, %v2519
        %v2524 = vmul.f32 %v2459, %v2519
        %v2525 = vmul.f32 %v2460, %v2519
        %v2526 = vmul.f32 %v2461, %v2519
        %v2527 = vmul.f32 %v2462, %v2519
        %v2529 = vperm.slane %v2415, 0
        %v2531 = vmul.f32 %v2520, %v2529
        %v2532 = vmul.f32 %v2521, %v2529
        %v2533 = vmul.f32 %v2522, %v2529
        %v2534 = vmul.f32 %v2523, %v2529
        %v2535 = vmul.f32 %v2524, %v2529
        %v2536 = vmul.f32 %v2525, %v2529
        %v2537 = vmul.f32 %v2526, %v2529
        %v2538 = vmul.f32 %v2527, %v2529
        %v2540 = vperm.slane %v2416, 0
        %v2542 = vadd.f32 %v2531, %v2540
        %v2543 = vadd.f32 %v2532, %v2540
        %v2544 = vadd.f32 %v2533, %v2540
        %v2545 = vadd.f32 %v2534, %v2540
        %v2546 = vadd.f32 %v2535, %v2540
        %v2547 = vadd.f32 %v2536, %v2540
        %v2548 = vadd.f32 %v2537, %v2540
        %v2549 = vadd.f32 %v2538, %v2540
        %v2550 = vadd.f32 %v2542, %v536
        %v2551 = vadd.f32 %v2543, %v537
        %v2552 = vadd.f32 %v2544, %v538
        %v2553 = vadd.f32 %v2545, %v539
        %v2554 = vadd.f32 %v2546, %v540
        %v2555 = vadd.f32 %v2547, %v541
        %v2556 = vadd.f32 %v2548, %v542
        %v2557 = vadd.f32 %v2549, %v543
        %v2558 = vmul.f32 %v2550, 0.70710677
        %v2559 = vmul.f32 %v2551, 0.70710677
        %v2560 = vmul.f32 %v2552, 0.70710677
        %v2561 = vmul.f32 %v2553, 0.70710677
        %v2562 = vmul.f32 %v2554, 0.70710677
        %v2563 = vmul.f32 %v2555, 0.70710677
        %v2564 = vmul.f32 %v2556, 0.70710677
        %v2565 = vmul.f32 %v2557, 0.70710677
        %v2566 = vand.u32 2147483647, %v2558
        %v2567 = vand.u32 2147483647, %v2559
        %v2568 = vand.u32 2147483647, %v2560
        %v2569 = vand.u32 2147483647, %v2561
        %v2570 = vand.u32 2147483647, %v2562
        %v2571 = vand.u32 2147483647, %v2563
        %v2572 = vand.u32 2147483647, %v2564
        %v2573 = vand.u32 2147483647, %v2565
        %v2574 = vmul.f32 %v2566, 0.3275911
        %v2575 = vmul.f32 %v2567, 0.3275911
        %v2576 = vmul.f32 %v2568, 0.3275911
        %v2577 = vmul.f32 %v2569, 0.3275911
        %v2578 = vmul.f32 %v2570, 0.3275911
        %v2579 = vmul.f32 %v2571, 0.3275911
        %v2580 = vmul.f32 %v2572, 0.3275911
        %v2581 = vmul.f32 %v2573, 0.3275911
        %v2582 = vadd.f32 %v2574, 1.0
        %v2583 = vadd.f32 %v2575, 1.0
        %v2584 = vadd.f32 %v2576, 1.0
        %v2585 = vadd.f32 %v2577, 1.0
        %v2586 = vadd.f32 %v2578, 1.0
        %v2587 = vadd.f32 %v2579, 1.0
        %v2588 = vadd.f32 %v2580, 1.0
        %v2589 = vadd.f32 %v2581, 1.0
        %v2590 = vrcp.pop %v2582
        %v2591 = vmul.f32 %v2582, %v2590
        %v2592 = vsub.f32 1.0, %v2591
        %v2593 = vmul.f32 %v2590, %v2592
        %v2594 = vadd.f32 %v2590, %v2593
        %vm2595 = vweird.f32 %v2582
        %vm2596 = vweird.f32 %v2590
        %vm2597 = vmor %vm2595, %vm2596
        %v2598 = vsel %vm2597, %v2590, %v2594
        %v2599 = vand.u32 2147483647, %v2582
        %vm2600 = vcmp.eq.f32.partialorder %v2599, 8.507059e+37
        %v2601 = vand.u32 %v2582, 2147483648
        %v2602 = vor.u32 1.1754944e-38, %v2601
        %v2603 = vsel %vm2600, %v2602, %v2598
        %v2604 = vmul.f32 1.0, %v2603
        %v2605 = vrcp.pop %v2583
        %v2606 = vmul.f32 %v2583, %v2605
        %v2607 = vsub.f32 1.0, %v2606
        %v2608 = vmul.f32 %v2605, %v2607
        %v2609 = vadd.f32 %v2605, %v2608
        %vm2610 = vweird.f32 %v2583
        %vm2611 = vweird.f32 %v2605
        %vm2612 = vmor %vm2610, %vm2611
        %v2613 = vsel %vm2612, %v2605, %v2609
        %v2614 = vand.u32 2147483647, %v2583
        %vm2615 = vcmp.eq.f32.partialorder %v2614, 8.507059e+37
        %v2616 = vand.u32 %v2583, 2147483648
        %v2617 = vor.u32 1.1754944e-38, %v2616
        %v2618 = vsel %vm2615, %v2617, %v2613
        %v2619 = vmul.f32 1.0, %v2618
        %v2620 = vrcp.pop %v2584
        %v2621 = vmul.f32 %v2584, %v2620
        %v2622 = vsub.f32 1.0, %v2621
        %v2623 = vmul.f32 %v2620, %v2622
        %v2624 = vadd.f32 %v2620, %v2623
        %vm2625 = vweird.f32 %v2584
        %vm2626 = vweird.f32 %v2620
        %vm2627 = vmor %vm2625, %vm2626
        %v2628 = vsel %vm2627, %v2620, %v2624
        %v2629 = vand.u32 2147483647, %v2584
        %vm2630 = vcmp.eq.f32.partialorder %v2629, 8.507059e+37
        %v2631 = vand.u32 %v2584, 2147483648
        %v2632 = vor.u32 1.1754944e-38, %v2631
        %v2633 = vsel %vm2630, %v2632, %v2628
        %v2634 = vmul.f32 1.0, %v2633
        %v2635 = vrcp.pop %v2585
        %v2636 = vmul.f32 %v2585, %v2635
        %v2637 = vsub.f32 1.0, %v2636
        %v2638 = vmul.f32 %v2635, %v2637
        %v2639 = vadd.f32 %v2635, %v2638
        %vm2640 = vweird.f32 %v2585
        %vm2641 = vweird.f32 %v2635
        %vm2642 = vmor %vm2640, %vm2641
        %v2643 = vsel %vm2642, %v2635, %v2639
        %v2644 = vand.u32 2147483647, %v2585
        %vm2645 = vcmp.eq.f32.partialorder %v2644, 8.507059e+37
        %v2646 = vand.u32 %v2585, 2147483648
        %v2647 = vor.u32 1.1754944e-38, %v2646
        %v2648 = vsel %vm2645, %v2647, %v2643
        %v2649 = vmul.f32 1.0, %v2648
        %v2650 = vrcp.pop %v2586
        %v2651 = vmul.f32 %v2586, %v2650
        %v2652 = vsub.f32 1.0, %v2651
        %v2653 = vmul.f32 %v2650, %v2652
        %v2654 = vadd.f32 %v2650, %v2653
        %vm2655 = vweird.f32 %v2586
        %vm2656 = vweird.f32 %v2650
        %vm2657 = vmor %vm2655, %vm2656
        %v2658 = vsel %vm2657, %v2650, %v2654
        %v2659 = vand.u32 2147483647, %v2586
        %vm2660 = vcmp.eq.f32.partialorder %v2659, 8.507059e+37
        %v2661 = vand.u32 %v2586, 2147483648
        %v2662 = vor.u32 1.1754944e-38, %v2661
        %v2663 = vsel %vm2660, %v2662, %v2658
        %v2664 = vmul.f32 1.0, %v2663
        %v2665 = vrcp.pop %v2587
        %v2666 = vmul.f32 %v2587, %v2665
        %v2667 = vsub.f32 1.0, %v2666
        %v2668 = vmul.f32 %v2665, %v2667
        %v2669 = vadd.f32 %v2665, %v2668
        %vm2670 = vweird.f32 %v2587
        %vm2671 = vweird.f32 %v2665
        %vm2672 = vmor %vm2670, %vm2671
        %v2673 = vsel %vm2672, %v2665, %v2669
        %v2674 = vand.u32 2147483647, %v2587
        %vm2675 = vcmp.eq.f32.partialorder %v2674, 8.507059e+37
        %v2676 = vand.u32 %v2587, 2147483648
        %v2677 = vor.u32 1.1754944e-38, %v2676
        %v2678 = vsel %vm2675, %v2677, %v2673
        %v2679 = vmul.f32 1.0, %v2678
        %v2680 = vrcp.pop %v2588
        %v2681 = vmul.f32 %v2588, %v2680
        %v2682 = vsub.f32 1.0, %v2681
        %v2683 = vmul.f32 %v2680, %v2682
        %v2684 = vadd.f32 %v2680, %v2683
        %vm2685 = vweird.f32 %v2588
        %vm2686 = vweird.f32 %v2680
        %vm2687 = vmor %vm2685, %vm2686
        %v2688 = vsel %vm2687, %v2680, %v2684
        %v2689 = vand.u32 2147483647, %v2588
        %vm2690 = vcmp.eq.f32.partialorder %v2689, 8.507059e+37
        %v2691 = vand.u32 %v2588, 2147483648
        %v2692 = vor.u32 1.1754944e-38, %v2691
        %v2693 = vsel %vm2690, %v2692, %v2688
        %v2694 = vmul.f32 1.0, %v2693
        %v2695 = vrcp.pop %v2589
        %v2696 = vmul.f32 %v2589, %v2695
        %v2697 = vsub.f32 1.0, %v2696
        %v2698 = vmul.f32 %v2695, %v2697
        %v2699 = vadd.f32 %v2695, %v2698
        %vm2700 = vweird.f32 %v2589
        %vm2701 = vweird.f32 %v2695
        %vm2702 = vmor %vm2700, %vm2701
        %v2703 = vsel %vm2702, %v2695, %v2699
        %v2704 = vand.u32 2147483647, %v2589
        %vm2705 = vcmp.eq.f32.partialorder %v2704, 8.507059e+37
        %v2706 = vand.u32 %v2589, 2147483648
        %v2707 = vor.u32 1.1754944e-38, %v2706
        %v2708 = vsel %vm2705, %v2707, %v2703
        %v2709 = vmul.f32 1.0, %v2708
        %v2710 = vmul.f32 %v2604, 1.0614054
        %v2711 = vmul.f32 %v2619, 1.0614054
        %v2712 = vmul.f32 %v2634, 1.0614054
        %v2713 = vmul.f32 %v2649, 1.0614054
        %v2714 = vmul.f32 %v2664, 1.0614054
        %v2715 = vmul.f32 %v2679, 1.0614054
        %v2716 = vmul.f32 %v2694, 1.0614054
        %v2717 = vmul.f32 %v2709, 1.0614054
        %v2718 = vadd.f32 %v2710, -1.4531521
        %v2719 = vadd.f32 %v2711, -1.4531521
        %v2720 = vadd.f32 %v2712, -1.4531521
        %v2721 = vadd.f32 %v2713, -1.4531521
        %v2722 = vadd.f32 %v2714, -1.4531521
        %v2723 = vadd.f32 %v2715, -1.4531521
        %v2724 = vadd.f32 %v2716, -1.4531521
        %v2725 = vadd.f32 %v2717, -1.4531521
        %v2726 = vmul.f32 %v2604, %v2718
        %v2727 = vmul.f32 %v2619, %v2719
        %v2728 = vmul.f32 %v2634, %v2720
        %v2729 = vmul.f32 %v2649, %v2721
        %v2730 = vmul.f32 %v2664, %v2722
        %v2731 = vmul.f32 %v2679, %v2723
        %v2732 = vmul.f32 %v2694, %v2724
        %v2733 = vmul.f32 %v2709, %v2725
        %v2734 = vadd.f32 %v2726, 1.4214138
        %v2735 = vadd.f32 %v2727, 1.4214138
        %v2736 = vadd.f32 %v2728, 1.4214138
        %v2737 = vadd.f32 %v2729, 1.4214138
        %v2738 = vadd.f32 %v2730, 1.4214138
        %v2739 = vadd.f32 %v2731, 1.4214138
        %v2740 = vadd.f32 %v2732, 1.4214138
        %v2741 = vadd.f32 %v2733, 1.4214138
        %v2742 = vmul.f32 %v2604, %v2734
        %v2743 = vmul.f32 %v2619, %v2735
        %v2744 = vmul.f32 %v2634, %v2736
        %v2745 = vmul.f32 %v2649, %v2737
        %v2746 = vmul.f32 %v2664, %v2738
        %v2747 = vmul.f32 %v2679, %v2739
        %v2748 = vmul.f32 %v2694, %v2740
        %v2749 = vmul.f32 %v2709, %v2741
        %v2750 = vadd.f32 %v2742, -0.28449672
        %v2751 = vadd.f32 %v2743, -0.28449672
        %v2752 = vadd.f32 %v2744, -0.28449672
        %v2753 = vadd.f32 %v2745, -0.28449672
        %v2754 = vadd.f32 %v2746, -0.28449672
        %v2755 = vadd.f32 %v2747, -0.28449672
        %v2756 = vadd.f32 %v2748, -0.28449672
        %v2757 = vadd.f32 %v2749, -0.28449672
        %v2758 = vmul.f32 %v2604, %v2750
        %v2759 = vmul.f32 %v2619, %v2751
        %v2760 = vmul.f32 %v2634, %v2752
        %v2761 = vmul.f32 %v2649, %v2753
        %v2762 = vmul.f32 %v2664, %v2754
        %v2763 = vmul.f32 %v2679, %v2755
        %v2764 = vmul.f32 %v2694, %v2756
        %v2765 = vmul.f32 %v2709, %v2757
        %v2766 = vadd.f32 %v2758, 0.2548296
        %v2767 = vadd.f32 %v2759, 0.2548296
        %v2768 = vadd.f32 %v2760, 0.2548296
        %v2769 = vadd.f32 %v2761, 0.2548296
        %v2770 = vadd.f32 %v2762, 0.2548296
        %v2771 = vadd.f32 %v2763, 0.2548296
        %v2772 = vadd.f32 %v2764, 0.2548296
        %v2773 = vadd.f32 %v2765, 0.2548296
        %v2774 = vmul.f32 %v2604, %v2766
        %v2775 = vmul.f32 %v2619, %v2767
        %v2776 = vmul.f32 %v2634, %v2768
        %v2777 = vmul.f32 %v2649, %v2769
        %v2778 = vmul.f32 %v2664, %v2770
        %v2779 = vmul.f32 %v2679, %v2771
        %v2780 = vmul.f32 %v2694, %v2772
        %v2781 = vmul.f32 %v2709, %v2773
        %v2782 = vsub.f32 0.0, %v2566
        %v2783 = vsub.f32 0.0, %v2567
        %v2784 = vsub.f32 0.0, %v2568
        %v2785 = vsub.f32 0.0, %v2569
        %v2786 = vsub.f32 0.0, %v2570
        %v2787 = vsub.f32 0.0, %v2571
        %v2788 = vsub.f32 0.0, %v2572
        %v2789 = vsub.f32 0.0, %v2573
        %v2790 = vmul.f32 %v2782, %v2566
        %v2791 = vmul.f32 %v2783, %v2567
        %v2792 = vmul.f32 %v2784, %v2568
        %v2793 = vmul.f32 %v2785, %v2569
        %v2794 = vmul.f32 %v2786, %v2570
        %v2795 = vmul.f32 %v2787, %v2571
        %v2796 = vmul.f32 %v2788, %v2572
        %v2797 = vmul.f32 %v2789, %v2573
        %v2798 = vmul.f32 %v2790, 1.442695
        %v2799 = vpow.pop %v2798
        %v2800 = vmul.f32 %v2791, 1.442695
        %v2801 = vpow.pop %v2800
        %v2802 = vmul.f32 %v2792, 1.442695
        %v2803 = vpow.pop %v2802
        %v2804 = vmul.f32 %v2793, 1.442695
        %v2805 = vpow.pop %v2804
        %v2806 = vmul.f32 %v2794, 1.442695
        %v2807 = vpow.pop %v2806
        %v2808 = vmul.f32 %v2795, 1.442695
        %v2809 = vpow.pop %v2808
        %v2810 = vmul.f32 %v2796, 1.442695
        %v2811 = vpow.pop %v2810
        %v2812 = vmul.f32 %v2797, 1.442695
        %v2813 = vpow.pop %v2812
        %v2814 = vmul.f32 %v2774, %v2799
        %v2815 = vmul.f32 %v2775, %v2801
        %v2816 = vmul.f32 %v2776, %v2803
        %v2817 = vmul.f32 %v2777, %v2805
        %v2818 = vmul.f32 %v2778, %v2807
        %v2819 = vmul.f32 %v2779, %v2809
        %v2820 = vmul.f32 %v2780, %v2811
        %v2821 = vmul.f32 %v2781, %v2813
        %v2822 = vsub.f32 1.0, %v2814
        %v2823 = vsub.f32 1.0, %v2815
        %v2824 = vsub.f32 1.0, %v2816
        %v2825 = vsub.f32 1.0, %v2817
        %v2826 = vsub.f32 1.0, %v2818
        %v2827 = vsub.f32 1.0, %v2819
        %v2828 = vsub.f32 1.0, %v2820
        %v2829 = vsub.f32 1.0, %v2821
        %vm2830 = vcmp.ge.f32.partialorder %v2558, 0.0
        %vm2831 = vcmp.ge.f32.partialorder %v2559, 0.0
        %vm2832 = vcmp.ge.f32.partialorder %v2560, 0.0
        %vm2833 = vcmp.ge.f32.partialorder %v2561, 0.0
        %vm2834 = vcmp.ge.f32.partialorder %v2562, 0.0
        %vm2835 = vcmp.ge.f32.partialorder %v2563, 0.0
        %vm2836 = vcmp.ge.f32.partialorder %v2564, 0.0
        %vm2837 = vcmp.ge.f32.partialorder %v2565, 0.0
        %v2838 = vsub.f32 0.0, %v2822
        %v2839 = vsub.f32 0.0, %v2823
        %v2840 = vsub.f32 0.0, %v2824
        %v2841 = vsub.f32 0.0, %v2825
        %v2842 = vsub.f32 0.0, %v2826
        %v2843 = vsub.f32 0.0, %v2827
        %v2844 = vsub.f32 0.0, %v2828
        %v2845 = vsub.f32 0.0, %v2829
        %v2846 = vsel %vm2830, %v2822, %v2838
        %v2847 = vsel %vm2831, %v2823, %v2839
        %v2848 = vsel %vm2832, %v2824, %v2840
        %v2849 = vsel %vm2833, %v2825, %v2841
        %v2850 = vsel %vm2834, %v2826, %v2842
        %v2851 = vsel %vm2835, %v2827, %v2843
        %v2852 = vsel %vm2836, %v2828, %v2844
        %v2853 = vsel %vm2837, %v2829, %v2845
        %v2854 = vmul.f32 %v2550, 0.5
        %v2855 = vmul.f32 %v2551, 0.5
        %v2856 = vmul.f32 %v2552, 0.5
        %v2857 = vmul.f32 %v2553, 0.5
        %v2858 = vmul.f32 %v2554, 0.5
        %v2859 = vmul.f32 %v2555, 0.5
        %v2860 = vmul.f32 %v2556, 0.5
        %v2861 = vmul.f32 %v2557, 0.5
        %v2862 = vadd.f32 %v2846, 1.0
        %v2863 = vadd.f32 %v2847, 1.0
        %v2864 = vadd.f32 %v2848, 1.0
        %v2865 = vadd.f32 %v2849, 1.0
        %v2866 = vadd.f32 %v2850, 1.0
        %v2867 = vadd.f32 %v2851, 1.0
        %v2868 = vadd.f32 %v2852, 1.0
        %v2869 = vadd.f32 %v2853, 1.0
        %v2870 = vmul.f32 %v2854, %v2862
        %v2871 = vmul.f32 %v2855, %v2863
        %v2872 = vmul.f32 %v2856, %v2864
        %v2873 = vmul.f32 %v2857, %v2865
        %v2874 = vmul.f32 %v2858, %v2866
        %v2875 = vmul.f32 %v2859, %v2867
        %v2876 = vmul.f32 %v2860, %v2868
        %v2877 = vmul.f32 %v2861, %v2869
        %s2878 = scalar_lea.vmem %s2, 32
        %v2879 = vld [vmem:[%s2878] sm:$0xff]
        %v2880 = vld [vmem:[%s2878 + $0x8] sm:$0xff]
        %v2881 = vld [vmem:[%s2878 + $0x10] sm:$0xff]
        %v2882 = vld [vmem:[%s2878 + $0x18] sm:$0xff]
        %s2883 = scalar_lea.vmem %s3, 1
        %v2884 = vld [vmem:[%s2883] sm:$0x1]
        %v2886 = vperm.slane %v2884, 0
        %v2889 = vsel %vm552, %v2870, 0
        %v2892 = vsel %vm552, %v2871, 0
        %v2895 = vsel %vm552, %v2872, 0
        %v2898 = vsel %vm552, %v2873, 0
        %v2901 = vsel %vm552, %v2874, 0
        %v2904 = vsel %vm552, %v2875, 0
        %v2907 = vsel %vm552, %v2876, 0
        %v2910 = vsel %vm552, %v2877, 0
        %2912 = vmatpush.msra.mxu0 0.0
        %2913 = vmatpush.msra.mxu0 0.0
        %2914 = vmatpush.msra.mxu0 0.0
        %2915 = vmatpush.msra.mxu0 0.0
        %2916 = vmatpush.msra.mxu0 0.0
        %2917 = vmatpush.msra.mxu0 0.0
        %2918 = vmatpush.msra.mxu0 0.0
        %2919 = vmatpush.msra.mxu0 0.0
        %2920 = vmatpush.msra.mxu0 0.0
        %2921 = vmatpush.msra.mxu0 0.0
        %2922 = vmatpush.msra.mxu0 0.0
        %2923 = vmatpush.msra.mxu0 0.0
        %2924 = vmatpush.msra.mxu0 %v2882
        %2925 = vmatpush.msra.mxu0 %v2881
        %2926 = vmatpush.msra.mxu0 %v2880
        %2927 = vmatpush.msra.mxu0 %v2879
        %2928 = vmatmul.f32.gmra.mxu0 %v2889
        %v2929 = vpop.f32.mrf.mxu0
        %v2930 = vadd.f32 %v2886, %v2929
        %2931 = vmatmul.f32.gmra.mxu0 %v2892
        %v2932 = vpop.f32.mrf.mxu0
        %v2933 = vadd.f32 %v2886, %v2932
        %2934 = vmatmul.f32.gmra.mxu0 %v2895
        %v2935 = vpop.f32.mrf.mxu0
        %v2936 = vadd.f32 %v2886, %v2935
        %2937 = vmatmul.f32.gmra.mxu0 %v2898
        %v2938 = vpop.f32.mrf.mxu0
        %v2939 = vadd.f32 %v2886, %v2938
        %2940 = vmatmul.f32.gmra.mxu0 %v2901
        %v2941 = vpop.f32.mrf.mxu0
        %v2942 = vadd.f32 %v2886, %v2941
        %2943 = vmatmul.f32.gmra.mxu0 %v2904
        %v2944 = vpop.f32.mrf.mxu0
        %v2945 = vadd.f32 %v2886, %v2944
        %2946 = vmatmul.f32.gmra.mxu0 %v2907
        %v2947 = vpop.f32.mrf.mxu0
        %v2948 = vadd.f32 %v2886, %v2947
        %2949 = vmatmul.f32.gmra.mxu0 %v2910
        %v2950 = vpop.f32.mrf.mxu0
        %v2951 = vadd.f32 %v2886, %v2950
        %2952 = vdwg.mxu0
        %s2953 = scalar_lea.vmem %s4, 1
        %v2954 = vld [vmem:[%s2953] sm:$0x1]
        %s2955 = scalar_lea.vmem %s5, 1
        %v2956 = vld [vmem:[%s2955] sm:$0x1]
        %v2957 = vsel %vm620, %v2930, 0.0
        %2958 = vadd.xlane.f32.xlu0 %v2957
        %v2959 = vpop.xlane.xlu0 %2958
        %v2960 = vsel %vm620, %v2933, 0.0
        %2961 = vadd.xlane.f32.xlu0 %v2960
        %v2962 = vpop.xlane.xlu0 %2961
        %v2963 = vsel %vm620, %v2936, 0.0
        %2964 = vadd.xlane.f32.xlu0 %v2963
        %v2965 = vpop.xlane.xlu0 %2964
        %v2966 = vsel %vm620, %v2939, 0.0
        %2967 = vadd.xlane.f32.xlu0 %v2966
        %v2968 = vpop.xlane.xlu0 %2967
        %v2969 = vsel %vm620, %v2942, 0.0
        %2970 = vadd.xlane.f32.xlu0 %v2969
        %v2971 = vpop.xlane.xlu0 %2970
        %v2972 = vsel %vm620, %v2945, 0.0
        %2973 = vadd.xlane.f32.xlu0 %v2972
        %v2974 = vpop.xlane.xlu0 %2973
        %v2975 = vsel %vm620, %v2948, 0.0
        %2976 = vadd.xlane.f32.xlu0 %v2975
        %v2977 = vpop.xlane.xlu0 %2976
        %v2978 = vsel %vm620, %v2951, 0.0
        %2979 = vadd.xlane.f32.xlu0 %v2978
        %v2980 = vpop.xlane.xlu0 %2979
        %v2981 = vadd.f32 %v2959, %v2962
        %v2982 = vadd.f32 %v2981, %v2965
        %v2983 = vadd.f32 %v2982, %v2968
        %v2984 = vadd.f32 %v2983, %v2971
        %v2985 = vadd.f32 %v2984, %v2974
        %v2986 = vadd.f32 %v2985, %v2977
        %v2987 = vadd.f32 %v2986, %v2980
        %v2988 = vrot.slane %v2987, 4
        %v2989 = vadd.f32 %v2987, %v2988
        %v2990 = vrot.slane %v2989, 2
        %v2991 = vadd.f32 %v2989, %v2990
        %v2992 = vrot.slane %v2991, 1
        %v2993 = vadd.f32 %v2991, %v2992
        %v2994 = vmul.f32 %v2993, 0.001953125
        %v2995 = vsub.f32 %v2930, %v2994
        %v2996 = vsub.f32 %v2933, %v2994
        %v2997 = vsub.f32 %v2936, %v2994
        %v2998 = vsub.f32 %v2939, %v2994
        %v2999 = vsub.f32 %v2942, %v2994
        %v3000 = vsub.f32 %v2945, %v2994
        %v3001 = vsub.f32 %v2948, %v2994
        %v3002 = vsub.f32 %v2951, %v2994
        %v3003 = vmul.f32 %v2995, %v2995
        %v3004 = vmul.f32 %v2996, %v2996
        %v3005 = vmul.f32 %v2997, %v2997
        %v3006 = vmul.f32 %v2998, %v2998
        %v3007 = vmul.f32 %v2999, %v2999
        %v3008 = vmul.f32 %v3000, %v3000
        %v3009 = vmul.f32 %v3001, %v3001
        %v3010 = vmul.f32 %v3002, %v3002
        %v3011 = vsel %vm620, %v3003, 0.0
        %3012 = vadd.xlane.f32.xlu0 %v3011
        %v3013 = vpop.xlane.xlu0 %3012
        %v3014 = vsel %vm620, %v3004, 0.0
        %3015 = vadd.xlane.f32.xlu0 %v3014
        %v3016 = vpop.xlane.xlu0 %3015
        %v3017 = vsel %vm620, %v3005, 0.0
        %3018 = vadd.xlane.f32.xlu0 %v3017
        %v3019 = vpop.xlane.xlu0 %3018
        %v3020 = vsel %vm620, %v3006, 0.0
        %3021 = vadd.xlane.f32.xlu0 %v3020
        %v3022 = vpop.xlane.xlu0 %3021
        %v3023 = vsel %vm620, %v3007, 0.0
        %3024 = vadd.xlane.f32.xlu0 %v3023
        %v3025 = vpop.xlane.xlu0 %3024
        %v3026 = vsel %vm620, %v3008, 0.0
        %3027 = vadd.xlane.f32.xlu0 %v3026
        %v3028 = vpop.xlane.xlu0 %3027
        %v3029 = vsel %vm620, %v3009, 0.0
        %3030 = vadd.xlane.f32.xlu0 %v3029
        %v3031 = vpop.xlane.xlu0 %3030
        %v3032 = vsel %vm620, %v3010, 0.0
        %3033 = vadd.xlane.f32.xlu0 %v3032
        %v3034 = vpop.xlane.xlu0 %3033
        %v3035 = vadd.f32 %v3013, %v3016
        %v3036 = vadd.f32 %v3035, %v3019
        %v3037 = vadd.f32 %v3036, %v3022
        %v3038 = vadd.f32 %v3037, %v3025
        %v3039 = vadd.f32 %v3038, %v3028
        %v3040 = vadd.f32 %v3039, %v3031
        %v3041 = vadd.f32 %v3040, %v3034
        %v3042 = vrot.slane %v3041, 4
        %v3043 = vadd.f32 %v3041, %v3042
        %v3044 = vrot.slane %v3043, 2
        %v3045 = vadd.f32 %v3043, %v3044
        %v3046 = vrot.slane %v3045, 1
        %v3047 = vadd.f32 %v3045, %v3046
        %v3048 = vmul.f32 %v3047, 0.001953125
        %v3049 = vadd.f32 %v3048, 1e-05
        %v3050 = vrsqrt.pop %v3049
        %v3051 = vmul.f32 %v3050, %v3049
        %v3052 = vmul.f32 %v3051, %v3050
        %v3053 = vmul.f32 0.5, %v3052
        %v3054 = vsub.f32 1.5, %v3053
        %v3055 = vmul.f32 %v3050, %v3054
        %vm3056 = vweird.f32 %v3049
        %vm3057 = vweird.f32 %v3050
        %vm3058 = vmor %vm3056, %vm3057
        %v3059 = vsel %vm3058, %v3050, %v3055
        %v3060 = vmul.f32 %v2995, %v3059
        %v3061 = vmul.f32 %v2996, %v3059
        %v3062 = vmul.f32 %v2997, %v3059
        %v3063 = vmul.f32 %v2998, %v3059
        %v3064 = vmul.f32 %v2999, %v3059
        %v3065 = vmul.f32 %v3000, %v3059
        %v3066 = vmul.f32 %v3001, %v3059
        %v3067 = vmul.f32 %v3002, %v3059
        %v3069 = vperm.slane %v2954, 0
        %v3071 = vmul.f32 %v3060, %v3069
        %v3072 = vmul.f32 %v3061, %v3069
        %v3073 = vmul.f32 %v3062, %v3069
        %v3074 = vmul.f32 %v3063, %v3069
        %v3075 = vmul.f32 %v3064, %v3069
        %v3076 = vmul.f32 %v3065, %v3069
        %v3077 = vmul.f32 %v3066, %v3069
        %v3078 = vmul.f32 %v3067, %v3069
        %v3080 = vperm.slane %v2956, 0
        %v3082 = vadd.f32 %v3071, %v3080
        %v3083 = vadd.f32 %v3072, %v3080
        %v3084 = vadd.f32 %v3073, %v3080
        %v3085 = vadd.f32 %v3074, %v3080
        %v3086 = vadd.f32 %v3075, %v3080
        %v3087 = vadd.f32 %v3076, %v3080
        %v3088 = vadd.f32 %v3077, %v3080
        %v3089 = vadd.f32 %v3078, %v3080
        %v3090 = vrot.slane %v3082, 3
        %v3091 = vrot.slane %v3083, 3
        %v3092 = vrot.slane %v3084, 3
        %v3093 = vrot.slane %v3085, 3
        %v3094 = vrot.slane %v3086, 3
        %v3095 = vrot.slane %v3087, 3
        %v3096 = vrot.slane %v3088, 3
        %v3097 = vrot.slane %v3089, 3
        %v3098 = vsel %vm764, %v3096, %v3097
        %v3099 = vsel %vm764, %v3095, %v3096
        %v3100 = vsel %vm764, %v3094, %v3095
        %v3101 = vsel %vm764, %v3093, %v3094
        %v3102 = vsel %vm764, %v3092, %v3093
        %v3103 = vsel %vm764, %v3091, %v3092
        %v3104 = vsel %vm764, %v3090, %v3091
        %v3105 = vsel %vm764, %v3097, %v3090
        %3106 = vst.msk [vmem:[#allocation2] sm:$0xff] %vm620, %v3099
        %3107 = vst.msk [vmem:[#allocation2 + $0x10] sm:$0xff] %vm620, %v3098
        %3108 = vst.msk [vmem:[#allocation2 + $0x20] sm:$0xff] %vm620, %v3105
        %3109 = vst.msk [vmem:[#allocation2 + $0x30] sm:$0xff] %vm620, %v3104
        %3110 = vst.msk [vmem:[#allocation2 + $0x40] sm:$0xff] %vm620, %v3103
        %3111 = vst.msk [vmem:[#allocation2 + $0x50] sm:$0xff] %vm620, %v3102
        %3112 = vst.msk [vmem:[#allocation2 + $0x60] sm:$0xff] %vm620, %v3101
        %3113 = vst.msk [vmem:[#allocation2 + $0x70] sm:$0xff] %vm620, %v3100
        %v3114 = vrot.slane %v3082, 4
        %v3115 = vrot.slane %v3083, 4
        %v3116 = vrot.slane %v3084, 4
        %v3117 = vrot.slane %v3085, 4
        %v3118 = vrot.slane %v3086, 4
        %v3119 = vrot.slane %v3087, 4
        %v3120 = vrot.slane %v3088, 4
        %v3121 = vrot.slane %v3089, 4
        %v3122 = vsel %vm789, %v3120, %v3121
        %v3123 = vsel %vm789, %v3119, %v3120
        %v3124 = vsel %vm789, %v3118, %v3119
        %v3125 = vsel %vm789, %v3117, %v3118
        %v3126 = vsel %vm789, %v3116, %v3117
        %v3127 = vsel %vm789, %v3115, %v3116
        %v3128 = vsel %vm789, %v3114, %v3115
        %v3129 = vsel %vm789, %v3121, %v3114
        %3138 = vrot.lane.b32.xlu0 %v3123, 8
        %v3139 = vpop.permute.xlu0 %3138
        %3140 = vrot.lane.b32.xlu0 %v3122, 8
        %v3141 = vpop.permute.xlu0 %3140
        %3142 = vrot.lane.b32.xlu0 %v3129, 8
        %v3143 = vpop.permute.xlu0 %3142
        %3144 = vrot.lane.b32.xlu0 %v3128, 8
        %v3145 = vpop.permute.xlu0 %3144
        %3146 = vrot.lane.b32.xlu0 %v3127, 8
        %v3147 = vpop.permute.xlu0 %3146
        %3148 = vrot.lane.b32.xlu0 %v3126, 8
        %v3149 = vpop.permute.xlu0 %3148
        %3150 = vrot.lane.b32.xlu0 %v3125, 8
        %v3151 = vpop.permute.xlu0 %3150
        %3152 = vrot.lane.b32.xlu0 %v3124, 8
        %v3153 = vpop.permute.xlu0 %3152
        %3162 = vst.msk [vmem:[#allocation2] sm:$0xff] %vm830, %v3139
        %3163 = vst.msk [vmem:[#allocation2 + $0x10] sm:$0xff] %vm830, %v3141
        %3164 = vst.msk [vmem:[#allocation2 + $0x20] sm:$0xff] %vm830, %v3143
        %3165 = vst.msk [vmem:[#allocation2 + $0x30] sm:$0xff] %vm830, %v3145
        %3166 = vst.msk [vmem:[#allocation2 + $0x40] sm:$0xff] %vm830, %v3147
        %3167 = vst.msk [vmem:[#allocation2 + $0x50] sm:$0xff] %vm830, %v3149
        %3168 = vst.msk [vmem:[#allocation2 + $0x60] sm:$0xff] %vm830, %v3151
        %3169 = vst.msk [vmem:[#allocation2 + $0x70] sm:$0xff] %vm830, %v3153
        %v3170 = vrot.slane %v3082, 5
        %v3171 = vrot.slane %v3083, 5
        %v3172 = vrot.slane %v3084, 5
        %v3173 = vrot.slane %v3085, 5
        %v3174 = vrot.slane %v3086, 5
        %v3175 = vrot.slane %v3087, 5
        %v3176 = vrot.slane %v3088, 5
        %v3177 = vrot.slane %v3089, 5
        %v3178 = vsel %vm847, %v3176, %v3177
        %v3179 = vsel %vm847, %v3175, %v3176
        %v3180 = vsel %vm847, %v3174, %v3175
        %v3181 = vsel %vm847, %v3173, %v3174
        %v3182 = vsel %vm847, %v3172, %v3173
        %v3183 = vsel %vm847, %v3171, %v3172
        %v3184 = vsel %vm847, %v3170, %v3171
        %v3185 = vsel %vm847, %v3177, %v3170
        %3194 = vrot.lane.b32.xlu0 %v3179, 16
        %v3195 = vpop.permute.xlu0 %3194
        %3196 = vrot.lane.b32.xlu0 %v3178, 16
        %v3197 = vpop.permute.xlu0 %3196
        %3198 = vrot.lane.b32.xlu0 %v3185, 16
        %v3199 = vpop.permute.xlu0 %3198
        %3200 = vrot.lane.b32.xlu0 %v3184, 16
        %v3201 = vpop.permute.xlu0 %3200
        %3202 = vrot.lane.b32.xlu0 %v3183, 16
        %v3203 = vpop.permute.xlu0 %3202
        %3204 = vrot.lane.b32.xlu0 %v3182, 16
        %v3205 = vpop.permute.xlu0 %3204
        %3206 = vrot.lane.b32.xlu0 %v3181, 16
        %v3207 = vpop.permute.xlu0 %3206
        %3208 = vrot.lane.b32.xlu0 %v3180, 16
        %v3209 = vpop.permute.xlu0 %3208
        %3218 = vst.msk [vmem:[#allocation2] sm:$0xff] %vm888, %v3195
        %3219 = vst.msk [vmem:[#allocation2 + $0x10] sm:$0xff] %vm888, %v3197
        %3220 = vst.msk [vmem:[#allocation2 + $0x20] sm:$0xff] %vm888, %v3199
        %3221 = vst.msk [vmem:[#allocation2 + $0x30] sm:$0xff] %vm888, %v3201
        %3222 = vst.msk [vmem:[#allocation2 + $0x40] sm:$0xff] %vm888, %v3203
        %3223 = vst.msk [vmem:[#allocation2 + $0x50] sm:$0xff] %vm888, %v3205
        %3224 = vst.msk [vmem:[#allocation2 + $0x60] sm:$0xff] %vm888, %v3207
        %3225 = vst.msk [vmem:[#allocation2 + $0x70] sm:$0xff] %vm888, %v3209
        %v3226 = vrot.slane %v3082, 7
        %v3227 = vrot.slane %v3083, 7
        %v3228 = vrot.slane %v3084, 7
        %v3229 = vrot.slane %v3085, 7
        %v3230 = vrot.slane %v3086, 7
        %v3231 = vrot.slane %v3087, 7
        %v3232 = vrot.slane %v3088, 7
        %v3233 = vrot.slane %v3089, 7
        %v3234 = vsel %vm905, %v3232, %v3233
        %v3235 = vsel %vm905, %v3231, %v3232
        %v3236 = vsel %vm905, %v3230, %v3231
        %v3237 = vsel %vm905, %v3229, %v3230
        %v3238 = vsel %vm905, %v3228, %v3229
        %v3239 = vsel %vm905, %v3227, %v3228
        %v3240 = vsel %vm905, %v3226, %v3227
        %v3241 = vsel %vm905, %v3233, %v3226
        %3250 = vrot.lane.b32.xlu0 %v3235, 24
        %v3251 = vpop.permute.xlu0 %3250
        %3252 = vrot.lane.b32.xlu0 %v3234, 24
        %v3253 = vpop.permute.xlu0 %3252
        %3254 = vrot.lane.b32.xlu0 %v3241, 24
        %v3255 = vpop.permute.xlu0 %3254
        %3256 = vrot.lane.b32.xlu0 %v3240, 24
        %v3257 = vpop.permute.xlu0 %3256
        %3258 = vrot.lane.b32.xlu0 %v3239, 24
        %v3259 = vpop.permute.xlu0 %3258
        %3260 = vrot.lane.b32.xlu0 %v3238, 24
        %v3261 = vpop.permute.xlu0 %3260
        %3262 = vrot.lane.b32.xlu0 %v3237, 24
        %v3263 = vpop.permute.xlu0 %3262
        %3264 = vrot.lane.b32.xlu0 %v3236, 24
        %v3265 = vpop.permute.xlu0 %3264
        %3274 = vst.msk [vmem:[#allocation2] sm:$0xff] %vm946, %v3251
        %3275 = vst.msk [vmem:[#allocation2 + $0x10] sm:$0xff] %vm946, %v3253
        %3276 = vst.msk [vmem:[#allocation2 + $0x20] sm:$0xff] %vm946, %v3255
        %3277 = vst.msk [vmem:[#allocation2 + $0x30] sm:$0xff] %vm946, %v3257
        %3278 = vst.msk [vmem:[#allocation2 + $0x40] sm:$0xff] %vm946, %v3259
        %3279 = vst.msk [vmem:[#allocation2 + $0x50] sm:$0xff] %vm946, %v3261
        %3280 = vst.msk [vmem:[#allocation2 + $0x60] sm:$0xff] %vm946, %v3263
        %3281 = vst.msk [vmem:[#allocation2 + $0x70] sm:$0xff] %vm946, %v3265
        %3290 = vrot.lane.b32.xlu0 %v3088, 32
        %v3291 = vpop.permute.xlu0 %3290
        %3292 = vrot.lane.b32.xlu0 %v3089, 32
        %v3293 = vpop.permute.xlu0 %3292
        %3294 = vrot.lane.b32.xlu0 %v3082, 32
        %v3295 = vpop.permute.xlu0 %3294
        %3296 = vrot.lane.b32.xlu0 %v3083, 32
        %v3297 = vpop.permute.xlu0 %3296
        %3298 = vrot.lane.b32.xlu0 %v3084, 32
        %v3299 = vpop.permute.xlu0 %3298
        %3300 = vrot.lane.b32.xlu0 %v3085, 32
        %v3301 = vpop.permute.xlu0 %3300
        %3302 = vrot.lane.b32.xlu0 %v3086, 32
        %v3303 = vpop.permute.xlu0 %3302
        %3304 = vrot.lane.b32.xlu0 %v3087, 32
        %v3305 = vpop.permute.xlu0 %3304
        %3314 = vst.msk [vmem:[#allocation2] sm:$0xff] %vm987, %v3291
        %3315 = vst.msk [vmem:[#allocation2 + $0x10] sm:$0xff] %vm987, %v3293
        %3316 = vst.msk [vmem:[#allocation2 + $0x20] sm:$0xff] %vm987, %v3295
        %3317 = vst.msk [vmem:[#allocation2 + $0x30] sm:$0xff] %vm987, %v3297
        %3318 = vst.msk [vmem:[#allocation2 + $0x40] sm:$0xff] %vm987, %v3299
        %3319 = vst.msk [vmem:[#allocation2 + $0x50] sm:$0xff] %vm987, %v3301
        %3320 = vst.msk [vmem:[#allocation2 + $0x60] sm:$0xff] %vm987, %v3303
        %3321 = vst.msk [vmem:[#allocation2 + $0x70] sm:$0xff] %vm987, %v3305
        %v3322 = vrot.slane %v3082, 1
        %v3323 = vrot.slane %v3083, 1
        %v3324 = vrot.slane %v3084, 1
        %v3325 = vrot.slane %v3085, 1
        %v3326 = vrot.slane %v3086, 1
        %v3327 = vrot.slane %v3087, 1
        %v3328 = vrot.slane %v3088, 1
        %v3329 = vrot.slane %v3089, 1
        %v3330 = vsel %vm1004, %v3328, %v3329
        %v3331 = vsel %vm1004, %v3327, %v3328
        %v3332 = vsel %vm1004, %v3326, %v3327
        %v3333 = vsel %vm1004, %v3325, %v3326
        %v3334 = vsel %vm1004, %v3324, %v3325
        %v3335 = vsel %vm1004, %v3323, %v3324
        %v3336 = vsel %vm1004, %v3322, %v3323
        %v3337 = vsel %vm1004, %v3329, %v3322
        %3346 = vrot.lane.b32.xlu0 %v3330, 40
        %v3347 = vpop.permute.xlu0 %3346
        %3348 = vrot.lane.b32.xlu0 %v3337, 40
        %v3349 = vpop.permute.xlu0 %3348
        %3350 = vrot.lane.b32.xlu0 %v3336, 40
        %v3351 = vpop.permute.xlu0 %3350
        %3352 = vrot.lane.b32.xlu0 %v3335, 40
        %v3353 = vpop.permute.xlu0 %3352
        %3354 = vrot.lane.b32.xlu0 %v3334, 40
        %v3355 = vpop.permute.xlu0 %3354
        %3356 = vrot.lane.b32.xlu0 %v3333, 40
        %v3357 = vpop.permute.xlu0 %3356
        %3358 = vrot.lane.b32.xlu0 %v3332, 40
        %v3359 = vpop.permute.xlu0 %3358
        %3360 = vrot.lane.b32.xlu0 %v3331, 40
        %v3361 = vpop.permute.xlu0 %3360
        %3370 = vst.msk [vmem:[#allocation2] sm:$0xff] %vm1045, %v3347
        %3371 = vst.msk [vmem:[#allocation2 + $0x10] sm:$0xff] %vm1045, %v3349
        %3372 = vst.msk [vmem:[#allocation2 + $0x20] sm:$0xff] %vm1045, %v3351
        %3373 = vst.msk [vmem:[#allocation2 + $0x30] sm:$0xff] %vm1045, %v3353
        %3374 = vst.msk [vmem:[#allocation2 + $0x40] sm:$0xff] %vm1045, %v3355
        %3375 = vst.msk [vmem:[#allocation2 + $0x50] sm:$0xff] %vm1045, %v3357
        %3376 = vst.msk [vmem:[#allocation2 + $0x60] sm:$0xff] %vm1045, %v3359
        %3377 = vst.msk [vmem:[#allocation2 + $0x70] sm:$0xff] %vm1045, %v3361
        %3386 = vrot.lane.b32.xlu0 %v3098, 48
        %v3387 = vpop.permute.xlu0 %3386
        %3388 = vrot.lane.b32.xlu0 %v3105, 48
        %v3389 = vpop.permute.xlu0 %3388
        %3390 = vrot.lane.b32.xlu0 %v3104, 48
        %v3391 = vpop.permute.xlu0 %3390
        %3392 = vrot.lane.b32.xlu0 %v3103, 48
        %v3393 = vpop.permute.xlu0 %3392
        %3394 = vrot.lane.b32.xlu0 %v3102, 48
        %v3395 = vpop.permute.xlu0 %3394
        %3396 = vrot.lane.b32.xlu0 %v3101, 48
        %v3397 = vpop.permute.xlu0 %3396
        %3398 = vrot.lane.b32.xlu0 %v3100, 48
        %v3399 = vpop.permute.xlu0 %3398
        %3400 = vrot.lane.b32.xlu0 %v3099, 48
        %v3401 = vpop.permute.xlu0 %3400
        %3410 = vst.msk [vmem:[#allocation2] sm:$0xff] %vm1086, %v3387
        %3411 = vst.msk [vmem:[#allocation2 + $0x10] sm:$0xff] %vm1086, %v3389
        %3412 = vst.msk [vmem:[#allocation2 + $0x20] sm:$0xff] %vm1086, %v3391
        %3413 = vst.msk [vmem:[#allocation2 + $0x30] sm:$0xff] %vm1086, %v3393
        %3414 = vst.msk [vmem:[#allocation2 + $0x40] sm:$0xff] %vm1086, %v3395
        %3415 = vst.msk [vmem:[#allocation2 + $0x50] sm:$0xff] %vm1086, %v3397
        %3416 = vst.msk [vmem:[#allocation2 + $0x60] sm:$0xff] %vm1086, %v3399
        %3417 = vst.msk [vmem:[#allocation2 + $0x70] sm:$0xff] %vm1086, %v3401
        %3418 = vrot.lane.b32.xlu0 %v3122, 56
        %v3419 = vpop.permute.xlu0 %3418
        %3420 = vrot.lane.b32.xlu0 %v3129, 56
        %v3421 = vpop.permute.xlu0 %3420
        %3422 = vrot.lane.b32.xlu0 %v3128, 56
        %v3423 = vpop.permute.xlu0 %3422
        %3424 = vrot.lane.b32.xlu0 %v3127, 56
        %v3425 = vpop.permute.xlu0 %3424
        %3426 = vrot.lane.b32.xlu0 %v3126, 56
        %v3427 = vpop.permute.xlu0 %3426
        %3428 = vrot.lane.b32.xlu0 %v3125, 56
        %v3429 = vpop.permute.xlu0 %3428
        %3430 = vrot.lane.b32.xlu0 %v3124, 56
        %v3431 = vpop.permute.xlu0 %3430
        %3432 = vrot.lane.b32.xlu0 %v3123, 56
        %v3433 = vpop.permute.xlu0 %3432
        %3442 = vst.msk [vmem:[#allocation2] sm:$0xff] %vm1119, %v3419
        %3443 = vst.msk [vmem:[#allocation2 + $0x10] sm:$0xff] %vm1119, %v3421
        %3444 = vst.msk [vmem:[#allocation2 + $0x20] sm:$0xff] %vm1119, %v3423
        %3445 = vst.msk [vmem:[#allocation2 + $0x30] sm:$0xff] %vm1119, %v3425
        %3446 = vst.msk [vmem:[#allocation2 + $0x40] sm:$0xff] %vm1119, %v3427
        %3447 = vst.msk [vmem:[#allocation2 + $0x50] sm:$0xff] %vm1119, %v3429
        %3448 = vst.msk [vmem:[#allocation2 + $0x60] sm:$0xff] %vm1119, %v3431
        %3449 = vst.msk [vmem:[#allocation2 + $0x70] sm:$0xff] %vm1119, %v3433
        %3450 = vrot.lane.b32.xlu0 %v3178, 64
        %v3451 = vpop.permute.xlu0 %3450
        %3452 = vrot.lane.b32.xlu0 %v3185, 64
        %v3453 = vpop.permute.xlu0 %3452
        %3454 = vrot.lane.b32.xlu0 %v3184, 64
        %v3455 = vpop.permute.xlu0 %3454
        %3456 = vrot.lane.b32.xlu0 %v3183, 64
        %v3457 = vpop.permute.xlu0 %3456
        %3458 = vrot.lane.b32.xlu0 %v3182, 64
        %v3459 = vpop.permute.xlu0 %3458
        %3460 = vrot.lane.b32.xlu0 %v3181, 64
        %v3461 = vpop.permute.xlu0 %3460
        %3462 = vrot.lane.b32.xlu0 %v3180, 64
        %v3463 = vpop.permute.xlu0 %3462
        %3464 = vrot.lane.b32.xlu0 %v3179, 64
        %v3465 = vpop.permute.xlu0 %3464
        %3474 = vst.msk [vmem:[#allocation2] sm:$0xff] %vm1152, %v3451
        %3475 = vst.msk [vmem:[#allocation2 + $0x10] sm:$0xff] %vm1152, %v3453
        %3476 = vst.msk [vmem:[#allocation2 + $0x20] sm:$0xff] %vm1152, %v3455
        %3477 = vst.msk [vmem:[#allocation2 + $0x30] sm:$0xff] %vm1152, %v3457
        %3478 = vst.msk [vmem:[#allocation2 + $0x40] sm:$0xff] %vm1152, %v3459
        %3479 = vst.msk [vmem:[#allocation2 + $0x50] sm:$0xff] %vm1152, %v3461
        %3480 = vst.msk [vmem:[#allocation2 + $0x60] sm:$0xff] %vm1152, %v3463
        %3481 = vst.msk [vmem:[#allocation2 + $0x70] sm:$0xff] %vm1152, %v3465
        %3482 = vrot.lane.b32.xlu0 %v3105, 72
        %v3483 = vpop.permute.xlu0 %3482
        %3484 = vrot.lane.b32.xlu0 %v3104, 72
        %v3485 = vpop.permute.xlu0 %3484
        %3486 = vrot.lane.b32.xlu0 %v3103, 72
        %v3487 = vpop.permute.xlu0 %3486
        %3488 = vrot.lane.b32.xlu0 %v3102, 72
        %v3489 = vpop.permute.xlu0 %3488
        %3490 = vrot.lane.b32.xlu0 %v3101, 72
        %v3491 = vpop.permute.xlu0 %3490
        %3492 = vrot.lane.b32.xlu0 %v3100, 72
        %v3493 = vpop.permute.xlu0 %3492
        %3494 = vrot.lane.b32.xlu0 %v3099, 72
        %v3495 = vpop.permute.xlu0 %3494
        %3496 = vrot.lane.b32.xlu0 %v3098, 72
        %v3497 = vpop.permute.xlu0 %3496
        %3506 = vst.msk [vmem:[#allocation2] sm:$0xff] %vm1185, %v3483
        %3507 = vst.msk [vmem:[#allocation2 + $0x10] sm:$0xff] %vm1185, %v3485
        %3508 = vst.msk [vmem:[#allocation2 + $0x20] sm:$0xff] %vm1185, %v3487
        %3509 = vst.msk [vmem:[#allocation2 + $0x30] sm:$0xff] %vm1185, %v3489
        %3510 = vst.msk [vmem:[#allocation2 + $0x40] sm:$0xff] %vm1185, %v3491
        %3511 = vst.msk [vmem:[#allocation2 + $0x50] sm:$0xff] %vm1185, %v3493
        %3512 = vst.msk [vmem:[#allocation2 + $0x60] sm:$0xff] %vm1185, %v3495
        %3513 = vst.msk [vmem:[#allocation2 + $0x70] sm:$0xff] %vm1185, %v3497
        %3514 = vrot.lane.b32.xlu0 %v3129, 80
        %v3515 = vpop.permute.xlu0 %3514
        %3516 = vrot.lane.b32.xlu0 %v3128, 80
        %v3517 = vpop.permute.xlu0 %3516
        %3518 = vrot.lane.b32.xlu0 %v3127, 80
        %v3519 = vpop.permute.xlu0 %3518
        %3520 = vrot.lane.b32.xlu0 %v3126, 80
        %v3521 = vpop.permute.xlu0 %3520
        %3522 = vrot.lane.b32.xlu0 %v3125, 80
        %v3523 = vpop.permute.xlu0 %3522
        %3524 = vrot.lane.b32.xlu0 %v3124, 80
        %v3525 = vpop.permute.xlu0 %3524
        %3526 = vrot.lane.b32.xlu0 %v3123, 80
        %v3527 = vpop.permute.xlu0 %3526
        %3528 = vrot.lane.b32.xlu0 %v3122, 80
        %v3529 = vpop.permute.xlu0 %3528
        %3538 = vst.msk [vmem:[#allocation2] sm:$0xff] %vm1218, %v3515
        %3539 = vst.msk [vmem:[#allocation2 + $0x10] sm:$0xff] %vm1218, %v3517
        %3540 = vst.msk [vmem:[#allocation2 + $0x20] sm:$0xff] %vm1218, %v3519
        %3541 = vst.msk [vmem:[#allocation2 + $0x30] sm:$0xff] %vm1218, %v3521
        %3542 = vst.msk [vmem:[#allocation2 + $0x40] sm:$0xff] %vm1218, %v3523
        %3543 = vst.msk [vmem:[#allocation2 + $0x50] sm:$0xff] %vm1218, %v3525
        %3544 = vst.msk [vmem:[#allocation2 + $0x60] sm:$0xff] %vm1218, %v3527
        %3545 = vst.msk [vmem:[#allocation2 + $0x70] sm:$0xff] %vm1218, %v3529
        %3546 = vrot.lane.b32.xlu0 %v3185, 88
        %v3547 = vpop.permute.xlu0 %3546
        %3548 = vrot.lane.b32.xlu0 %v3184, 88
        %v3549 = vpop.permute.xlu0 %3548
        %3550 = vrot.lane.b32.xlu0 %v3183, 88
        %v3551 = vpop.permute.xlu0 %3550
        %3552 = vrot.lane.b32.xlu0 %v3182, 88
        %v3553 = vpop.permute.xlu0 %3552
        %3554 = vrot.lane.b32.xlu0 %v3181, 88
        %v3555 = vpop.permute.xlu0 %3554
        %3556 = vrot.lane.b32.xlu0 %v3180, 88
        %v3557 = vpop.permute.xlu0 %3556
        %3558 = vrot.lane.b32.xlu0 %v3179, 88
        %v3559 = vpop.permute.xlu0 %3558
        %3560 = vrot.lane.b32.xlu0 %v3178, 88
        %v3561 = vpop.permute.xlu0 %3560
        %3570 = vst.msk [vmem:[#allocation2] sm:$0xff] %vm1251, %v3547
        %3571 = vst.msk [vmem:[#allocation2 + $0x10] sm:$0xff] %vm1251, %v3549
        %3572 = vst.msk [vmem:[#allocation2 + $0x20] sm:$0xff] %vm1251, %v3551
        %3573 = vst.msk [vmem:[#allocation2 + $0x30] sm:$0xff] %vm1251, %v3553
        %3574 = vst.msk [vmem:[#allocation2 + $0x40] sm:$0xff] %vm1251, %v3555
        %3575 = vst.msk [vmem:[#allocation2 + $0x50] sm:$0xff] %vm1251, %v3557
        %3576 = vst.msk [vmem:[#allocation2 + $0x60] sm:$0xff] %vm1251, %v3559
        %3577 = vst.msk [vmem:[#allocation2 + $0x70] sm:$0xff] %vm1251, %v3561
        %3578 = vrot.lane.b32.xlu0 %v3241, 96
        %v3579 = vpop.permute.xlu0 %3578
        %3580 = vrot.lane.b32.xlu0 %v3240, 96
        %v3581 = vpop.permute.xlu0 %3580
        %3582 = vrot.lane.b32.xlu0 %v3239, 96
        %v3583 = vpop.permute.xlu0 %3582
        %3584 = vrot.lane.b32.xlu0 %v3238, 96
        %v3585 = vpop.permute.xlu0 %3584
        %3586 = vrot.lane.b32.xlu0 %v3237, 96
        %v3587 = vpop.permute.xlu0 %3586
        %3588 = vrot.lane.b32.xlu0 %v3236, 96
        %v3589 = vpop.permute.xlu0 %3588
        %3590 = vrot.lane.b32.xlu0 %v3235, 96
        %v3591 = vpop.permute.xlu0 %3590
        %3592 = vrot.lane.b32.xlu0 %v3234, 96
        %v3593 = vpop.permute.xlu0 %3592
        %3602 = vst.msk [vmem:[#allocation2] sm:$0xff] %vm1284, %v3579
        %3603 = vst.msk [vmem:[#allocation2 + $0x10] sm:$0xff] %vm1284, %v3581
        %3604 = vst.msk [vmem:[#allocation2 + $0x20] sm:$0xff] %vm1284, %v3583
        %3605 = vst.msk [vmem:[#allocation2 + $0x30] sm:$0xff] %vm1284, %v3585
        %3606 = vst.msk [vmem:[#allocation2 + $0x40] sm:$0xff] %vm1284, %v3587
        %3607 = vst.msk [vmem:[#allocation2 + $0x50] sm:$0xff] %vm1284, %v3589
        %3608 = vst.msk [vmem:[#allocation2 + $0x60] sm:$0xff] %vm1284, %v3591
        %3609 = vst.msk [vmem:[#allocation2 + $0x70] sm:$0xff] %vm1284, %v3593
        %3610 = vrot.lane.b32.xlu0 %v3082, 104
        %v3611 = vpop.permute.xlu0 %3610
        %3612 = vrot.lane.b32.xlu0 %v3083, 104
        %v3613 = vpop.permute.xlu0 %3612
        %3614 = vrot.lane.b32.xlu0 %v3084, 104
        %v3615 = vpop.permute.xlu0 %3614
        %3616 = vrot.lane.b32.xlu0 %v3085, 104
        %v3617 = vpop.permute.xlu0 %3616
        %3618 = vrot.lane.b32.xlu0 %v3086, 104
        %v3619 = vpop.permute.xlu0 %3618
        %3620 = vrot.lane.b32.xlu0 %v3087, 104
        %v3621 = vpop.permute.xlu0 %3620
        %3622 = vrot.lane.b32.xlu0 %v3088, 104
        %v3623 = vpop.permute.xlu0 %3622
        %3624 = vrot.lane.b32.xlu0 %v3089, 104
        %v3625 = vpop.permute.xlu0 %3624
        %3634 = vst.msk [vmem:[#allocation2] sm:$0xff] %vm1317, %v3611
        %3635 = vst.msk [vmem:[#allocation2 + $0x10] sm:$0xff] %vm1317, %v3613
        %3636 = vst.msk [vmem:[#allocation2 + $0x20] sm:$0xff] %vm1317, %v3615
        %3637 = vst.msk [vmem:[#allocation2 + $0x30] sm:$0xff] %vm1317, %v3617
        %3638 = vst.msk [vmem:[#allocation2 + $0x40] sm:$0xff] %vm1317, %v3619
        %3639 = vst.msk [vmem:[#allocation2 + $0x50] sm:$0xff] %vm1317, %v3621
        %3640 = vst.msk [vmem:[#allocation2 + $0x60] sm:$0xff] %vm1317, %v3623
        %3641 = vst.msk [vmem:[#allocation2 + $0x70] sm:$0xff] %vm1317, %v3625
        %3642 = vrot.lane.b32.xlu0 %v3336, 112
        %v3643 = vpop.permute.xlu0 %3642
        %3644 = vrot.lane.b32.xlu0 %v3335, 112
        %v3645 = vpop.permute.xlu0 %3644
        %3646 = vrot.lane.b32.xlu0 %v3334, 112
        %v3647 = vpop.permute.xlu0 %3646
        %3648 = vrot.lane.b32.xlu0 %v3333, 112
        %v3649 = vpop.permute.xlu0 %3648
        %3650 = vrot.lane.b32.xlu0 %v3332, 112
        %v3651 = vpop.permute.xlu0 %3650
        %3652 = vrot.lane.b32.xlu0 %v3331, 112
        %v3653 = vpop.permute.xlu0 %3652
        %3654 = vrot.lane.b32.xlu0 %v3330, 112
        %v3655 = vpop.permute.xlu0 %3654
        %3656 = vrot.lane.b32.xlu0 %v3337, 112
        %v3657 = vpop.permute.xlu0 %3656
        %3666 = vst.msk [vmem:[#allocation2] sm:$0xff] %vm1350, %v3643
        %3667 = vst.msk [vmem:[#allocation2 + $0x10] sm:$0xff] %vm1350, %v3645
        %3668 = vst.msk [vmem:[#allocation2 + $0x20] sm:$0xff] %vm1350, %v3647
        %3669 = vst.msk [vmem:[#allocation2 + $0x30] sm:$0xff] %vm1350, %v3649
        %3670 = vst.msk [vmem:[#allocation2 + $0x40] sm:$0xff] %vm1350, %v3651
        %3671 = vst.msk [vmem:[#allocation2 + $0x50] sm:$0xff] %vm1350, %v3653
        %3672 = vst.msk [vmem:[#allocation2 + $0x60] sm:$0xff] %vm1350, %v3655
        %3673 = vst.msk [vmem:[#allocation2 + $0x70] sm:$0xff] %vm1350, %v3657
        %3674 = vrot.lane.b32.xlu0 %v3104, 120
        %v3675 = vpop.permute.xlu0 %3674
        %3676 = vrot.lane.b32.xlu0 %v3103, 120
        %v3677 = vpop.permute.xlu0 %3676
        %3678 = vrot.lane.b32.xlu0 %v3102, 120
        %v3679 = vpop.permute.xlu0 %3678
        %3680 = vrot.lane.b32.xlu0 %v3101, 120
        %v3681 = vpop.permute.xlu0 %3680
        %3682 = vrot.lane.b32.xlu0 %v3100, 120
        %v3683 = vpop.permute.xlu0 %3682
        %3684 = vrot.lane.b32.xlu0 %v3099, 120
        %v3685 = vpop.permute.xlu0 %3684
        %3686 = vrot.lane.b32.xlu0 %v3098, 120
        %v3687 = vpop.permute.xlu0 %3686
        %3688 = vrot.lane.b32.xlu0 %v3105, 120
        %v3689 = vpop.permute.xlu0 %3688
        %3698 = vst.msk [vmem:[#allocation2] sm:$0xff] %vm1383, %v3675
        %3699 = vst.msk [vmem:[#allocation2 + $0x10] sm:$0xff] %vm1383, %v3677
        %3700 = vst.msk [vmem:[#allocation2 + $0x20] sm:$0xff] %vm1383, %v3679
        %3701 = vst.msk [vmem:[#allocation2 + $0x30] sm:$0xff] %vm1383, %v3681
        %3702 = vst.msk [vmem:[#allocation2 + $0x40] sm:$0xff] %vm1383, %v3683
        %3703 = vst.msk [vmem:[#allocation2 + $0x50] sm:$0xff] %vm1383, %v3685
        %3704 = vst.msk [vmem:[#allocation2 + $0x60] sm:$0xff] %vm1383, %v3687
        %3705 = vst.msk [vmem:[#allocation2 + $0x70] sm:$0xff] %vm1383, %v3689
        %3706 = vst.msk [vmem:[#allocation2 + $0x8] sm:$0xff] %vm620, %v3128
        %3707 = vst.msk [vmem:[#allocation2 + $0x18] sm:$0xff] %vm620, %v3127
        %3708 = vst.msk [vmem:[#allocation2 + $0x28] sm:$0xff] %vm620, %v3126
        %3709 = vst.msk [vmem:[#allocation2 + $0x38] sm:$0xff] %vm620, %v3125
        %3710 = vst.msk [vmem:[#allocation2 + $0x48] sm:$0xff] %vm620, %v3124
        %3711 = vst.msk [vmem:[#allocation2 + $0x58] sm:$0xff] %vm620, %v3123
        %3712 = vst.msk [vmem:[#allocation2 + $0x68] sm:$0xff] %vm620, %v3122
        %3713 = vst.msk [vmem:[#allocation2 + $0x78] sm:$0xff] %vm620, %v3129
        %3714 = vrot.lane.b32.xlu0 %v3184, 8
        %v3715 = vpop.permute.xlu0 %3714
        %3716 = vrot.lane.b32.xlu0 %v3183, 8
        %v3717 = vpop.permute.xlu0 %3716
        %3718 = vrot.lane.b32.xlu0 %v3182, 8
        %v3719 = vpop.permute.xlu0 %3718
        %3720 = vrot.lane.b32.xlu0 %v3181, 8
        %v3721 = vpop.permute.xlu0 %3720
        %3722 = vrot.lane.b32.xlu0 %v3180, 8
        %v3723 = vpop.permute.xlu0 %3722
        %3724 = vrot.lane.b32.xlu0 %v3179, 8
        %v3725 = vpop.permute.xlu0 %3724
        %3726 = vrot.lane.b32.xlu0 %v3178, 8
        %v3727 = vpop.permute.xlu0 %3726
        %3728 = vrot.lane.b32.xlu0 %v3185, 8
        %v3729 = vpop.permute.xlu0 %3728
        %3738 = vst.msk [vmem:[#allocation2 + $0x8] sm:$0xff] %vm830, %v3715
        %3739 = vst.msk [vmem:[#allocation2 + $0x18] sm:$0xff] %vm830, %v3717
        %3740 = vst.msk [vmem:[#allocation2 + $0x28] sm:$0xff] %vm830, %v3719
        %3741 = vst.msk [vmem:[#allocation2 + $0x38] sm:$0xff] %vm830, %v3721
        %3742 = vst.msk [vmem:[#allocation2 + $0x48] sm:$0xff] %vm830, %v3723
        %3743 = vst.msk [vmem:[#allocation2 + $0x58] sm:$0xff] %vm830, %v3725
        %3744 = vst.msk [vmem:[#allocation2 + $0x68] sm:$0xff] %vm830, %v3727
        %3745 = vst.msk [vmem:[#allocation2 + $0x78] sm:$0xff] %vm830, %v3729
        %3746 = vrot.lane.b32.xlu0 %v3103, 16
        %v3747 = vpop.permute.xlu0 %3746
        %3748 = vrot.lane.b32.xlu0 %v3102, 16
        %v3749 = vpop.permute.xlu0 %3748
        %3750 = vrot.lane.b32.xlu0 %v3101, 16
        %v3751 = vpop.permute.xlu0 %3750
        %3752 = vrot.lane.b32.xlu0 %v3100, 16
        %v3753 = vpop.permute.xlu0 %3752
        %3754 = vrot.lane.b32.xlu0 %v3099, 16
        %v3755 = vpop.permute.xlu0 %3754
        %3756 = vrot.lane.b32.xlu0 %v3098, 16
        %v3757 = vpop.permute.xlu0 %3756
        %3758 = vrot.lane.b32.xlu0 %v3105, 16
        %v3759 = vpop.permute.xlu0 %3758
        %3760 = vrot.lane.b32.xlu0 %v3104, 16
        %v3761 = vpop.permute.xlu0 %3760
        %3770 = vst.msk [vmem:[#allocation2 + $0x8] sm:$0xff] %vm888, %v3747
        %3771 = vst.msk [vmem:[#allocation2 + $0x18] sm:$0xff] %vm888, %v3749
        %3772 = vst.msk [vmem:[#allocation2 + $0x28] sm:$0xff] %vm888, %v3751
        %3773 = vst.msk [vmem:[#allocation2 + $0x38] sm:$0xff] %vm888, %v3753
        %3774 = vst.msk [vmem:[#allocation2 + $0x48] sm:$0xff] %vm888, %v3755
        %3775 = vst.msk [vmem:[#allocation2 + $0x58] sm:$0xff] %vm888, %v3757
        %3776 = vst.msk [vmem:[#allocation2 + $0x68] sm:$0xff] %vm888, %v3759
        %3777 = vst.msk [vmem:[#allocation2 + $0x78] sm:$0xff] %vm888, %v3761
        %3778 = vrot.lane.b32.xlu0 %v3127, 24
        %v3779 = vpop.permute.xlu0 %3778
        %3780 = vrot.lane.b32.xlu0 %v3126, 24
        %v3781 = vpop.permute.xlu0 %3780
        %3782 = vrot.lane.b32.xlu0 %v3125, 24
        %v3783 = vpop.permute.xlu0 %3782
        %3784 = vrot.lane.b32.xlu0 %v3124, 24
        %v3785 = vpop.permute.xlu0 %3784
        %3786 = vrot.lane.b32.xlu0 %v3123, 24
        %v3787 = vpop.permute.xlu0 %3786
        %3788 = vrot.lane.b32.xlu0 %v3122, 24
        %v3789 = vpop.permute.xlu0 %3788
        %3790 = vrot.lane.b32.xlu0 %v3129, 24
        %v3791 = vpop.permute.xlu0 %3790
        %3792 = vrot.lane.b32.xlu0 %v3128, 24
        %v3793 = vpop.permute.xlu0 %3792
        %3802 = vst.msk [vmem:[#allocation2 + $0x8] sm:$0xff] %vm946, %v3779
        %3803 = vst.msk [vmem:[#allocation2 + $0x18] sm:$0xff] %vm946, %v3781
        %3804 = vst.msk [vmem:[#allocation2 + $0x28] sm:$0xff] %vm946, %v3783
        %3805 = vst.msk [vmem:[#allocation2 + $0x38] sm:$0xff] %vm946, %v3785
        %3806 = vst.msk [vmem:[#allocation2 + $0x48] sm:$0xff] %vm946, %v3787
        %3807 = vst.msk [vmem:[#allocation2 + $0x58] sm:$0xff] %vm946, %v3789
        %3808 = vst.msk [vmem:[#allocation2 + $0x68] sm:$0xff] %vm946, %v3791
        %3809 = vst.msk [vmem:[#allocation2 + $0x78] sm:$0xff] %vm946, %v3793
        %3810 = vrot.lane.b32.xlu0 %v3183, 32
        %v3811 = vpop.permute.xlu0 %3810
        %3812 = vrot.lane.b32.xlu0 %v3182, 32
        %v3813 = vpop.permute.xlu0 %3812
        %3814 = vrot.lane.b32.xlu0 %v3181, 32
        %v3815 = vpop.permute.xlu0 %3814
        %3816 = vrot.lane.b32.xlu0 %v3180, 32
        %v3817 = vpop.permute.xlu0 %3816
        %3818 = vrot.lane.b32.xlu0 %v3179, 32
        %v3819 = vpop.permute.xlu0 %3818
        %3820 = vrot.lane.b32.xlu0 %v3178, 32
        %v3821 = vpop.permute.xlu0 %3820
        %3822 = vrot.lane.b32.xlu0 %v3185, 32
        %v3823 = vpop.permute.xlu0 %3822
        %3824 = vrot.lane.b32.xlu0 %v3184, 32
        %v3825 = vpop.permute.xlu0 %3824
        %3834 = vst.msk [vmem:[#allocation2 + $0x8] sm:$0xff] %vm987, %v3811
        %3835 = vst.msk [vmem:[#allocation2 + $0x18] sm:$0xff] %vm987, %v3813
        %3836 = vst.msk [vmem:[#allocation2 + $0x28] sm:$0xff] %vm987, %v3815
        %3837 = vst.msk [vmem:[#allocation2 + $0x38] sm:$0xff] %vm987, %v3817
        %3838 = vst.msk [vmem:[#allocation2 + $0x48] sm:$0xff] %vm987, %v3819
        %3839 = vst.msk [vmem:[#allocation2 + $0x58] sm:$0xff] %vm987, %v3821
        %3840 = vst.msk [vmem:[#allocation2 + $0x68] sm:$0xff] %vm987, %v3823
        %3841 = vst.msk [vmem:[#allocation2 + $0x78] sm:$0xff] %vm987, %v3825
        %3842 = vrot.lane.b32.xlu0 %v3239, 40
        %v3843 = vpop.permute.xlu0 %3842
        %3844 = vrot.lane.b32.xlu0 %v3238, 40
        %v3845 = vpop.permute.xlu0 %3844
        %3846 = vrot.lane.b32.xlu0 %v3237, 40
        %v3847 = vpop.permute.xlu0 %3846
        %3848 = vrot.lane.b32.xlu0 %v3236, 40
        %v3849 = vpop.permute.xlu0 %3848
        %3850 = vrot.lane.b32.xlu0 %v3235, 40
        %v3851 = vpop.permute.xlu0 %3850
        %3852 = vrot.lane.b32.xlu0 %v3234, 40
        %v3853 = vpop.permute.xlu0 %3852
        %3854 = vrot.lane.b32.xlu0 %v3241, 40
        %v3855 = vpop.permute.xlu0 %3854
        %3856 = vrot.lane.b32.xlu0 %v3240, 40
        %v3857 = vpop.permute.xlu0 %3856
        %3866 = vst.msk [vmem:[#allocation2 + $0x8] sm:$0xff] %vm1045, %v3843
        %3867 = vst.msk [vmem:[#allocation2 + $0x18] sm:$0xff] %vm1045, %v3845
        %3868 = vst.msk [vmem:[#allocation2 + $0x28] sm:$0xff] %vm1045, %v3847
        %3869 = vst.msk [vmem:[#allocation2 + $0x38] sm:$0xff] %vm1045, %v3849
        %3870 = vst.msk [vmem:[#allocation2 + $0x48] sm:$0xff] %vm1045, %v3851
        %3871 = vst.msk [vmem:[#allocation2 + $0x58] sm:$0xff] %vm1045, %v3853
        %3872 = vst.msk [vmem:[#allocation2 + $0x68] sm:$0xff] %vm1045, %v3855
        %3873 = vst.msk [vmem:[#allocation2 + $0x78] sm:$0xff] %vm1045, %v3857
        %3874 = vrot.lane.b32.xlu0 %v3084, 48
        %v3875 = vpop.permute.xlu0 %3874
        %3876 = vrot.lane.b32.xlu0 %v3085, 48
        %v3877 = vpop.permute.xlu0 %3876
        %3878 = vrot.lane.b32.xlu0 %v3086, 48
        %v3879 = vpop.permute.xlu0 %3878
        %3880 = vrot.lane.b32.xlu0 %v3087, 48
        %v3881 = vpop.permute.xlu0 %3880
        %3882 = vrot.lane.b32.xlu0 %v3088, 48
        %v3883 = vpop.permute.xlu0 %3882
        %3884 = vrot.lane.b32.xlu0 %v3089, 48
        %v3885 = vpop.permute.xlu0 %3884
        %3886 = vrot.lane.b32.xlu0 %v3082, 48
        %v3887 = vpop.permute.xlu0 %3886
        %3888 = vrot.lane.b32.xlu0 %v3083, 48
        %v3889 = vpop.permute.xlu0 %3888
        %3898 = vst.msk [vmem:[#allocation2 + $0x8] sm:$0xff] %vm1086, %v3875
        %3899 = vst.msk [vmem:[#allocation2 + $0x18] sm:$0xff] %vm1086, %v3877
        %3900 = vst.msk [vmem:[#allocation2 + $0x28] sm:$0xff] %vm1086, %v3879
        %3901 = vst.msk [vmem:[#allocation2 + $0x38] sm:$0xff] %vm1086, %v3881
        %3902 = vst.msk [vmem:[#allocation2 + $0x48] sm:$0xff] %vm1086, %v3883
        %3903 = vst.msk [vmem:[#allocation2 + $0x58] sm:$0xff] %vm1086, %v3885
        %3904 = vst.msk [vmem:[#allocation2 + $0x68] sm:$0xff] %vm1086, %v3887
        %3905 = vst.msk [vmem:[#allocation2 + $0x78] sm:$0xff] %vm1086, %v3889
        %3906 = vrot.lane.b32.xlu0 %v3334, 56
        %v3907 = vpop.permute.xlu0 %3906
        %3908 = vrot.lane.b32.xlu0 %v3333, 56
        %v3909 = vpop.permute.xlu0 %3908
        %3910 = vrot.lane.b32.xlu0 %v3332, 56
        %v3911 = vpop.permute.xlu0 %3910
        %3912 = vrot.lane.b32.xlu0 %v3331, 56
        %v3913 = vpop.permute.xlu0 %3912
        %3914 = vrot.lane.b32.xlu0 %v3330, 56
        %v3915 = vpop.permute.xlu0 %3914
        %3916 = vrot.lane.b32.xlu0 %v3337, 56
        %v3917 = vpop.permute.xlu0 %3916
        %3918 = vrot.lane.b32.xlu0 %v3336, 56
        %v3919 = vpop.permute.xlu0 %3918
        %3920 = vrot.lane.b32.xlu0 %v3335, 56
        %v3921 = vpop.permute.xlu0 %3920
        %3930 = vst.msk [vmem:[#allocation2 + $0x8] sm:$0xff] %vm1119, %v3907
        %3931 = vst.msk [vmem:[#allocation2 + $0x18] sm:$0xff] %vm1119, %v3909
        %3932 = vst.msk [vmem:[#allocation2 + $0x28] sm:$0xff] %vm1119, %v3911
        %3933 = vst.msk [vmem:[#allocation2 + $0x38] sm:$0xff] %vm1119, %v3913
        %3934 = vst.msk [vmem:[#allocation2 + $0x48] sm:$0xff] %vm1119, %v3915
        %3935 = vst.msk [vmem:[#allocation2 + $0x58] sm:$0xff] %vm1119, %v3917
        %3936 = vst.msk [vmem:[#allocation2 + $0x68] sm:$0xff] %vm1119, %v3919
        %3937 = vst.msk [vmem:[#allocation2 + $0x78] sm:$0xff] %vm1119, %v3921
        %3938 = vrot.lane.b32.xlu0 %v3102, 64
        %v3939 = vpop.permute.xlu0 %3938
        %3940 = vrot.lane.b32.xlu0 %v3101, 64
        %v3941 = vpop.permute.xlu0 %3940
        %3942 = vrot.lane.b32.xlu0 %v3100, 64
        %v3943 = vpop.permute.xlu0 %3942
        %3944 = vrot.lane.b32.xlu0 %v3099, 64
        %v3945 = vpop.permute.xlu0 %3944
        %3946 = vrot.lane.b32.xlu0 %v3098, 64
        %v3947 = vpop.permute.xlu0 %3946
        %3948 = vrot.lane.b32.xlu0 %v3105, 64
        %v3949 = vpop.permute.xlu0 %3948
        %3950 = vrot.lane.b32.xlu0 %v3104, 64
        %v3951 = vpop.permute.xlu0 %3950
        %3952 = vrot.lane.b32.xlu0 %v3103, 64
        %v3953 = vpop.permute.xlu0 %3952
        %3962 = vst.msk [vmem:[#allocation2 + $0x8] sm:$0xff] %vm1152, %v3939
        %3963 = vst.msk [vmem:[#allocation2 + $0x18] sm:$0xff] %vm1152, %v3941
        %3964 = vst.msk [vmem:[#allocation2 + $0x28] sm:$0xff] %vm1152, %v3943
        %3965 = vst.msk [vmem:[#allocation2 + $0x38] sm:$0xff] %vm1152, %v3945
        %3966 = vst.msk [vmem:[#allocation2 + $0x48] sm:$0xff] %vm1152, %v3947
        %3967 = vst.msk [vmem:[#allocation2 + $0x58] sm:$0xff] %vm1152, %v3949
        %3968 = vst.msk [vmem:[#allocation2 + $0x68] sm:$0xff] %vm1152, %v3951
        %3969 = vst.msk [vmem:[#allocation2 + $0x78] sm:$0xff] %vm1152, %v3953
        %3970 = vrot.lane.b32.xlu0 %v3126, 72
        %v3971 = vpop.permute.xlu0 %3970
        %3972 = vrot.lane.b32.xlu0 %v3125, 72
        %v3973 = vpop.permute.xlu0 %3972
        %3974 = vrot.lane.b32.xlu0 %v3124, 72
        %v3975 = vpop.permute.xlu0 %3974
        %3976 = vrot.lane.b32.xlu0 %v3123, 72
        %v3977 = vpop.permute.xlu0 %3976
        %3978 = vrot.lane.b32.xlu0 %v3122, 72
        %v3979 = vpop.permute.xlu0 %3978
        %3980 = vrot.lane.b32.xlu0 %v3129, 72
        %v3981 = vpop.permute.xlu0 %3980
        %3982 = vrot.lane.b32.xlu0 %v3128, 72
        %v3983 = vpop.permute.xlu0 %3982
        %3984 = vrot.lane.b32.xlu0 %v3127, 72
        %v3985 = vpop.permute.xlu0 %3984
        %3994 = vst.msk [vmem:[#allocation2 + $0x8] sm:$0xff] %vm1185, %v3971
        %3995 = vst.msk [vmem:[#allocation2 + $0x18] sm:$0xff] %vm1185, %v3973
        %3996 = vst.msk [vmem:[#allocation2 + $0x28] sm:$0xff] %vm1185, %v3975
        %3997 = vst.msk [vmem:[#allocation2 + $0x38] sm:$0xff] %vm1185, %v3977
        %3998 = vst.msk [vmem:[#allocation2 + $0x48] sm:$0xff] %vm1185, %v3979
        %3999 = vst.msk [vmem:[#allocation2 + $0x58] sm:$0xff] %vm1185, %v3981
        %4000 = vst.msk [vmem:[#allocation2 + $0x68] sm:$0xff] %vm1185, %v3983
        %4001 = vst.msk [vmem:[#allocation2 + $0x78] sm:$0xff] %vm1185, %v3985
        %4002 = vrot.lane.b32.xlu0 %v3182, 80
        %v4003 = vpop.permute.xlu0 %4002
        %4004 = vrot.lane.b32.xlu0 %v3181, 80
        %v4005 = vpop.permute.xlu0 %4004
        %4006 = vrot.lane.b32.xlu0 %v3180, 80
        %v4007 = vpop.permute.xlu0 %4006
        %4008 = vrot.lane.b32.xlu0 %v3179, 80
        %v4009 = vpop.permute.xlu0 %4008
        %4010 = vrot.lane.b32.xlu0 %v3178, 80
        %v4011 = vpop.permute.xlu0 %4010
        %4012 = vrot.lane.b32.xlu0 %v3185, 80
        %v4013 = vpop.permute.xlu0 %4012
        %4014 = vrot.lane.b32.xlu0 %v3184, 80
        %v4015 = vpop.permute.xlu0 %4014
        %4016 = vrot.lane.b32.xlu0 %v3183, 80
        %v4017 = vpop.permute.xlu0 %4016
        %4026 = vst.msk [vmem:[#allocation2 + $0x8] sm:$0xff] %vm1218, %v4003
        %4027 = vst.msk [vmem:[#allocation2 + $0x18] sm:$0xff] %vm1218, %v4005
        %4028 = vst.msk [vmem:[#allocation2 + $0x28] sm:$0xff] %vm1218, %v4007
        %4029 = vst.msk [vmem:[#allocation2 + $0x38] sm:$0xff] %vm1218, %v4009
        %4030 = vst.msk [vmem:[#allocation2 + $0x48] sm:$0xff] %vm1218, %v4011
        %4031 = vst.msk [vmem:[#allocation2 + $0x58] sm:$0xff] %vm1218, %v4013
        %4032 = vst.msk [vmem:[#allocation2 + $0x68] sm:$0xff] %vm1218, %v4015
        %4033 = vst.msk [vmem:[#allocation2 + $0x78] sm:$0xff] %vm1218, %v4017
        %v4034 = vld [vmem:[#allocation2] sm:$0xff]
        %v4035 = vld [vmem:[#allocation2 + $0x8] sm:$0xff]
        %v4036 = vld [vmem:[#allocation2 + $0x10] sm:$0xff]
        %v4037 = vld [vmem:[#allocation2 + $0x18] sm:$0xff]
        %v4038 = vld [vmem:[#allocation2 + $0x20] sm:$0xff]
        %v4039 = vld [vmem:[#allocation2 + $0x28] sm:$0xff]
        %v4040 = vld [vmem:[#allocation2 + $0x30] sm:$0xff]
        %v4041 = vld [vmem:[#allocation2 + $0x38] sm:$0xff]
        %v4042 = vld [vmem:[#allocation2 + $0x40] sm:$0xff]
        %v4043 = vld [vmem:[#allocation2 + $0x48] sm:$0xff]
        %v4044 = vld [vmem:[#allocation2 + $0x50] sm:$0xff]
        %v4045 = vld [vmem:[#allocation2 + $0x58] sm:$0xff]
        %v4046 = vld [vmem:[#allocation2 + $0x60] sm:$0xff]
        %v4047 = vld [vmem:[#allocation2 + $0x68] sm:$0xff]
        %v4048 = vld [vmem:[#allocation2 + $0x70] sm:$0xff]
        %v4049 = vld [vmem:[#allocation2 + $0x78] sm:$0xff]
        %v4050 = vmul.f32 %v4034, %v520
        %v4051 = vmul.f32 %v4035, %v521
        %v4052 = vmul.f32 %v4036, %v522
        %v4053 = vmul.f32 %v4037, %v523
        %v4054 = vmul.f32 %v4038, %v524
        %v4055 = vmul.f32 %v4039, %v525
        %v4056 = vmul.f32 %v4040, %v526
        %v4057 = vmul.f32 %v4041, %v527
        %v4058 = vmul.f32 %v4042, %v528
        %v4059 = vmul.f32 %v4043, %v529
        %v4060 = vmul.f32 %v4044, %v530
        %v4061 = vmul.f32 %v4045, %v531
        %v4062 = vmul.f32 %v4046, %v532
        %v4063 = vmul.f32 %v4047, %v533
        %v4064 = vmul.f32 %v4048, %v534
        %v4065 = vmul.f32 %v4049, %v535
        %s4066 = scalar_lea.vmem %s6, 216
        %v4067 = vld [vmem:[%s4066] sm:$0xff]
        %v4068 = vld [vmem:[%s4066 + $0x8] sm:$0xff]
        %v4069 = vld [vmem:[%s4066 + $0x10] sm:$0xff]
        %v4070 = vld [vmem:[%s4066 + $0x18] sm:$0xff]
        %v4071 = vld [vmem:[%s4066 + $0x20] sm:$0xff]
        %v4072 = vld [vmem:[%s4066 + $0x28] sm:$0xff]
        %v4073 = vld [vmem:[%s4066 + $0x30] sm:$0xff]
        %v4074 = vld [vmem:[%s4066 + $0x38] sm:$0xff]
        %v4075 = vld [vmem:[%s4066 + $0x40] sm:$0xff]
        %v4076 = vld [vmem:[%s4066 + $0x48] sm:$0xff]
        %v4077 = vld [vmem:[%s4066 + $0x50] sm:$0xff]
        %v4078 = vld [vmem:[%s4066 + $0x58] sm:$0xff]
        %v4079 = vld [vmem:[%s4066 + $0x60] sm:$0xff]
        %v4080 = vld [vmem:[%s4066 + $0x68] sm:$0xff]
        %v4081 = vld [vmem:[%s4066 + $0x70] sm:$0xff]
        %v4082 = vld [vmem:[%s4066 + $0x78] sm:$0xff]
        %v4083 = vld [vmem:[%s4066 + $0x80] sm:$0xff]
        %v4084 = vld [vmem:[%s4066 + $0x88] sm:$0xff]
        %v4085 = vld [vmem:[%s4066 + $0x90] sm:$0xff]
        %v4086 = vld [vmem:[%s4066 + $0x98] sm:$0xff]
        %v4087 = vld [vmem:[%s4066 + $0xa0] sm:$0xff]
        %v4088 = vld [vmem:[%s4066 + $0xa8] sm:$0xff]
        %v4089 = vld [vmem:[%s4066 + $0xb0] sm:$0xff]
        %v4090 = vld [vmem:[%s4066 + $0xb8] sm:$0xff]
        %v4091 = vld [vmem:[%s4066 + $0xc0] sm:$0xff]
        %v4092 = vld [vmem:[%s4066 + $0xc8] sm:$0xff]
        %v4093 = vld [vmem:[%s4066 + $0xd0] sm:$0xff]
        %s4094 = scalar_lea.vmem %s7, 1
        %v4095 = vld [vmem:[%s4094] sm:$0x1]
        %v4097 = vperm.slane %v4095, 0
        %v4100 = vsel %vm1783, %v4051, 0
        %v4103 = vsel %vm1783, %v4053, 0
        %v4106 = vsel %vm1783, %v4055, 0
        %v4109 = vsel %vm1783, %v4057, 0
        %v4112 = vsel %vm1783, %v4059, 0
        %v4115 = vsel %vm1783, %v4061, 0
        %v4118 = vsel %vm1783, %v4063, 0
        %v4121 = vsel %vm1783, %v4065, 0
        %4123 = vmatpush.msra.mxu0 %v4082
        %4124 = vmatpush.msra.mxu0 %v4081
        %4125 = vmatpush.msra.mxu0 %v4080
        %4126 = vmatpush.msra.mxu0 %v4079
        %4127 = vmatpush.msra.mxu0 %v4078
        %4128 = vmatpush.msra.mxu0 %v4077
        %4129 = vmatpush.msra.mxu0 %v4076
        %4130 = vmatpush.msra.mxu0 %v4075
        %4131 = vmatpush.msra.mxu0 %v4074
        %4132 = vmatpush.msra.mxu0 %v4073
        %4133 = vmatpush.msra.mxu0 %v4072
        %4134 = vmatpush.msra.mxu0 %v4071
        %4135 = vmatpush.msra.mxu0 %v4070
        %4136 = vmatpush.msra.mxu0 %v4069
        %4137 = vmatpush.msra.mxu0 %v4068
        %4138 = vmatpush.msra.mxu0 %v4067
        %4139 = vmatmul.f32.gmra.mxu0 %v4050
        %v4140 = vpop.f32.mrf.mxu0
        %v4141 = vadd.f32 %v4097, %v4140
        %4142 = vmatmul.f32.gmra.mxu0 %v4052
        %v4143 = vpop.f32.mrf.mxu0
        %v4144 = vadd.f32 %v4097, %v4143
        %4145 = vmatmul.f32.gmra.mxu0 %v4054
        %v4146 = vpop.f32.mrf.mxu0
        %v4147 = vadd.f32 %v4097, %v4146
        %4148 = vmatmul.f32.gmra.mxu0 %v4056
        %v4149 = vpop.f32.mrf.mxu0
        %v4150 = vadd.f32 %v4097, %v4149
        %4151 = vmatmul.f32.gmra.mxu0 %v4058
        %v4152 = vpop.f32.mrf.mxu0
        %v4153 = vadd.f32 %v4097, %v4152
        %4154 = vmatmul.f32.gmra.mxu0 %v4060
        %v4155 = vpop.f32.mrf.mxu0
        %v4156 = vadd.f32 %v4097, %v4155
        %4157 = vmatmul.f32.gmra.mxu0 %v4062
        %v4158 = vpop.f32.mrf.mxu0
        %v4159 = vadd.f32 %v4097, %v4158
        %4160 = vmatmul.f32.gmra.mxu0 %v4064
        %v4161 = vpop.f32.mrf.mxu0
        %v4162 = vadd.f32 %v4097, %v4161
        %4163 = vdwg.mxu0
        %4164 = vmatpush.msra.mxu0 0.0
        %4165 = vmatpush.msra.mxu0 0.0
        %4166 = vmatpush.msra.mxu0 0.0
        %4167 = vmatpush.msra.mxu0 0.0
        %4168 = vmatpush.msra.mxu0 0.0
        %4169 = vmatpush.msra.mxu0 %v4093
        %4170 = vmatpush.msra.mxu0 %v4092
        %4171 = vmatpush.msra.mxu0 %v4091
        %4172 = vmatpush.msra.mxu0 %v4090
        %4173 = vmatpush.msra.mxu0 %v4089
        %4174 = vmatpush.msra.mxu0 %v4088
        %4175 = vmatpush.msra.mxu0 %v4087
        %4176 = vmatpush.msra.mxu0 %v4086
        %4177 = vmatpush.msra.mxu0 %v4085
        %4178 = vmatpush.msra.mxu0 %v4084
        %4179 = vmatpush.msra.mxu0 %v4083
        %4180 = vmatmul.f32.gmra.mxu0 %v4100
        %v4181 = vpop.f32.mrf.mxu0
        %v4182 = vadd.f32 %v4141, %v4181
        %4183 = vmatmul.f32.gmra.mxu0 %v4103
        %v4184 = vpop.f32.mrf.mxu0
        %v4185 = vadd.f32 %v4144, %v4184
        %4186 = vmatmul.f32.gmra.mxu0 %v4106
        %v4187 = vpop.f32.mrf.mxu0
        %v4188 = vadd.f32 %v4147, %v4187
        %4189 = vmatmul.f32.gmra.mxu0 %v4109
        %v4190 = vpop.f32.mrf.mxu0
        %v4191 = vadd.f32 %v4150, %v4190
        %4192 = vmatmul.f32.gmra.mxu0 %v4112
        %v4193 = vpop.f32.mrf.mxu0
        %v4194 = vadd.f32 %v4153, %v4193
        %4195 = vmatmul.f32.gmra.mxu0 %v4115
        %v4196 = vpop.f32.mrf.mxu0
        %v4197 = vadd.f32 %v4156, %v4196
        %4198 = vmatmul.f32.gmra.mxu0 %v4118
        %v4199 = vpop.f32.mrf.mxu0
        %v4200 = vadd.f32 %v4159, %v4199
        %4201 = vmatmul.f32.gmra.mxu0 %v4121
        %v4202 = vpop.f32.mrf.mxu0
        %v4203 = vadd.f32 %v4162, %v4202
        %4204 = vdwg.mxu0
        %s4205 = scalar_lea.vmem %s8, 1
        %v4206 = vld [vmem:[%s4205] sm:$0x1]
        %s4207 = scalar_lea.vmem %s9, 1
        %v4208 = vld [vmem:[%s4207] sm:$0x1]
        %v4209 = vsel %vm620, %v4182, 0.0
        %4210 = vadd.xlane.f32.xlu0 %v4209
        %v4211 = vpop.xlane.xlu0 %4210
        %v4212 = vsel %vm620, %v4185, 0.0
        %4213 = vadd.xlane.f32.xlu0 %v4212
        %v4214 = vpop.xlane.xlu0 %4213
        %v4215 = vsel %vm620, %v4188, 0.0
        %4216 = vadd.xlane.f32.xlu0 %v4215
        %v4217 = vpop.xlane.xlu0 %4216
        %v4218 = vsel %vm620, %v4191, 0.0
        %4219 = vadd.xlane.f32.xlu0 %v4218
        %v4220 = vpop.xlane.xlu0 %4219
        %v4221 = vsel %vm620, %v4194, 0.0
        %4222 = vadd.xlane.f32.xlu0 %v4221
        %v4223 = vpop.xlane.xlu0 %4222
        %v4224 = vsel %vm620, %v4197, 0.0
        %4225 = vadd.xlane.f32.xlu0 %v4224
        %v4226 = vpop.xlane.xlu0 %4225
        %v4227 = vsel %vm620, %v4200, 0.0
        %4228 = vadd.xlane.f32.xlu0 %v4227
        %v4229 = vpop.xlane.xlu0 %4228
        %v4230 = vsel %vm620, %v4203, 0.0
        %4231 = vadd.xlane.f32.xlu0 %v4230
        %v4232 = vpop.xlane.xlu0 %4231
        %v4233 = vadd.f32 %v4211, %v4214
        %v4234 = vadd.f32 %v4233, %v4217
        %v4235 = vadd.f32 %v4234, %v4220
        %v4236 = vadd.f32 %v4235, %v4223
        %v4237 = vadd.f32 %v4236, %v4226
        %v4238 = vadd.f32 %v4237, %v4229
        %v4239 = vadd.f32 %v4238, %v4232
        %v4240 = vrot.slane %v4239, 4
        %v4241 = vadd.f32 %v4239, %v4240
        %v4242 = vrot.slane %v4241, 2
        %v4243 = vadd.f32 %v4241, %v4242
        %v4244 = vrot.slane %v4243, 1
        %v4245 = vadd.f32 %v4243, %v4244
        %v4246 = vmul.f32 %v4245, 0.001953125
        %v4247 = vsub.f32 %v4182, %v4246
        %v4248 = vsub.f32 %v4185, %v4246
        %v4249 = vsub.f32 %v4188, %v4246
        %v4250 = vsub.f32 %v4191, %v4246
        %v4251 = vsub.f32 %v4194, %v4246
        %v4252 = vsub.f32 %v4197, %v4246
        %v4253 = vsub.f32 %v4200, %v4246
        %v4254 = vsub.f32 %v4203, %v4246
        %v4255 = vmul.f32 %v4247, %v4247
        %v4256 = vmul.f32 %v4248, %v4248
        %v4257 = vmul.f32 %v4249, %v4249
        %v4258 = vmul.f32 %v4250, %v4250
        %v4259 = vmul.f32 %v4251, %v4251
        %v4260 = vmul.f32 %v4252, %v4252
        %v4261 = vmul.f32 %v4253, %v4253
        %v4262 = vmul.f32 %v4254, %v4254
        %v4263 = vsel %vm620, %v4255, 0.0
        %4264 = vadd.xlane.f32.xlu0 %v4263
        %v4265 = vpop.xlane.xlu0 %4264
        %v4266 = vsel %vm620, %v4256, 0.0
        %4267 = vadd.xlane.f32.xlu0 %v4266
        %v4268 = vpop.xlane.xlu0 %4267
        %v4269 = vsel %vm620, %v4257, 0.0
        %4270 = vadd.xlane.f32.xlu0 %v4269
        %v4271 = vpop.xlane.xlu0 %4270
        %v4272 = vsel %vm620, %v4258, 0.0
        %4273 = vadd.xlane.f32.xlu0 %v4272
        %v4274 = vpop.xlane.xlu0 %4273
        %v4275 = vsel %vm620, %v4259, 0.0
        %4276 = vadd.xlane.f32.xlu0 %v4275
        %v4277 = vpop.xlane.xlu0 %4276
        %v4278 = vsel %vm620, %v4260, 0.0
        %4279 = vadd.xlane.f32.xlu0 %v4278
        %v4280 = vpop.xlane.xlu0 %4279
        %v4281 = vsel %vm620, %v4261, 0.0
        %4282 = vadd.xlane.f32.xlu0 %v4281
        %v4283 = vpop.xlane.xlu0 %4282
        %v4284 = vsel %vm620, %v4262, 0.0
        %4285 = vadd.xlane.f32.xlu0 %v4284
        %v4286 = vpop.xlane.xlu0 %4285
        %v4287 = vadd.f32 %v4265, %v4268
        %v4288 = vadd.f32 %v4287, %v4271
        %v4289 = vadd.f32 %v4288, %v4274
        %v4290 = vadd.f32 %v4289, %v4277
        %v4291 = vadd.f32 %v4290, %v4280
        %v4292 = vadd.f32 %v4291, %v4283
        %v4293 = vadd.f32 %v4292, %v4286
        %v4294 = vrot.slane %v4293, 4
        %v4295 = vadd.f32 %v4293, %v4294
        %v4296 = vrot.slane %v4295, 2
        %v4297 = vadd.f32 %v4295, %v4296
        %v4298 = vrot.slane %v4297, 1
        %v4299 = vadd.f32 %v4297, %v4298
        %v4300 = vmul.f32 %v4299, 0.001953125
        %v4301 = vadd.f32 %v4300, 1e-05
        %v4302 = vrsqrt.pop %v4301
        %v4303 = vmul.f32 %v4302, %v4301
        %v4304 = vmul.f32 %v4303, %v4302
        %v4305 = vmul.f32 0.5, %v4304
        %v4306 = vsub.f32 1.5, %v4305
        %v4307 = vmul.f32 %v4302, %v4306
        %vm4308 = vweird.f32 %v4301
        %vm4309 = vweird.f32 %v4302
        %vm4310 = vmor %vm4308, %vm4309
        %v4311 = vsel %vm4310, %v4302, %v4307
        %v4312 = vmul.f32 %v4247, %v4311
        %v4313 = vmul.f32 %v4248, %v4311
        %v4314 = vmul.f32 %v4249, %v4311
        %v4315 = vmul.f32 %v4250, %v4311
        %v4316 = vmul.f32 %v4251, %v4311
        %v4317 = vmul.f32 %v4252, %v4311
        %v4318 = vmul.f32 %v4253, %v4311
        %v4319 = vmul.f32 %v4254, %v4311
        %v4321 = vperm.slane %v4206, 0
        %v4323 = vmul.f32 %v4312, %v4321
        %v4324 = vmul.f32 %v4313, %v4321
        %v4325 = vmul.f32 %v4314, %v4321
        %v4326 = vmul.f32 %v4315, %v4321
        %v4327 = vmul.f32 %v4316, %v4321
        %v4328 = vmul.f32 %v4317, %v4321
        %v4329 = vmul.f32 %v4318, %v4321
        %v4330 = vmul.f32 %v4319, %v4321
        %v4332 = vperm.slane %v4208, 0
        %v4334 = vadd.f32 %v4323, %v4332
        %v4335 = vadd.f32 %v4324, %v4332
        %v4336 = vadd.f32 %v4325, %v4332
        %v4337 = vadd.f32 %v4326, %v4332
        %v4338 = vadd.f32 %v4327, %v4332
        %v4339 = vadd.f32 %v4328, %v4332
        %v4340 = vadd.f32 %v4329, %v4332
        %v4341 = vadd.f32 %v4330, %v4332
        %v4342 = vmul.f32 %v4334, 0.70710677
        %v4343 = vmul.f32 %v4335, 0.70710677
        %v4344 = vmul.f32 %v4336, 0.70710677
        %v4345 = vmul.f32 %v4337, 0.70710677
        %v4346 = vmul.f32 %v4338, 0.70710677
        %v4347 = vmul.f32 %v4339, 0.70710677
        %v4348 = vmul.f32 %v4340, 0.70710677
        %v4349 = vmul.f32 %v4341, 0.70710677
        %v4350 = vand.u32 2147483647, %v4342
        %v4351 = vand.u32 2147483647, %v4343
        %v4352 = vand.u32 2147483647, %v4344
        %v4353 = vand.u32 2147483647, %v4345
        %v4354 = vand.u32 2147483647, %v4346
        %v4355 = vand.u32 2147483647, %v4347
        %v4356 = vand.u32 2147483647, %v4348
        %v4357 = vand.u32 2147483647, %v4349
        %v4358 = vmul.f32 %v4350, 0.3275911
        %v4359 = vmul.f32 %v4351, 0.3275911
        %v4360 = vmul.f32 %v4352, 0.3275911
        %v4361 = vmul.f32 %v4353, 0.3275911
        %v4362 = vmul.f32 %v4354, 0.3275911
        %v4363 = vmul.f32 %v4355, 0.3275911
        %v4364 = vmul.f32 %v4356, 0.3275911
        %v4365 = vmul.f32 %v4357, 0.3275911
        %v4366 = vadd.f32 %v4358, 1.0
        %v4367 = vadd.f32 %v4359, 1.0
        %v4368 = vadd.f32 %v4360, 1.0
        %v4369 = vadd.f32 %v4361, 1.0
        %v4370 = vadd.f32 %v4362, 1.0
        %v4371 = vadd.f32 %v4363, 1.0
        %v4372 = vadd.f32 %v4364, 1.0
        %v4373 = vadd.f32 %v4365, 1.0
        %v4374 = vrcp.pop %v4366
        %v4375 = vmul.f32 %v4366, %v4374
        %v4376 = vsub.f32 1.0, %v4375
        %v4377 = vmul.f32 %v4374, %v4376
        %v4378 = vadd.f32 %v4374, %v4377
        %vm4379 = vweird.f32 %v4366
        %vm4380 = vweird.f32 %v4374
        %vm4381 = vmor %vm4379, %vm4380
        %v4382 = vsel %vm4381, %v4374, %v4378
        %v4383 = vand.u32 2147483647, %v4366
        %vm4384 = vcmp.eq.f32.partialorder %v4383, 8.507059e+37
        %v4385 = vand.u32 %v4366, 2147483648
        %v4386 = vor.u32 1.1754944e-38, %v4385
        %v4387 = vsel %vm4384, %v4386, %v4382
        %v4388 = vmul.f32 1.0, %v4387
        %v4389 = vrcp.pop %v4367
        %v4390 = vmul.f32 %v4367, %v4389
        %v4391 = vsub.f32 1.0, %v4390
        %v4392 = vmul.f32 %v4389, %v4391
        %v4393 = vadd.f32 %v4389, %v4392
        %vm4394 = vweird.f32 %v4367
        %vm4395 = vweird.f32 %v4389
        %vm4396 = vmor %vm4394, %vm4395
        %v4397 = vsel %vm4396, %v4389, %v4393
        %v4398 = vand.u32 2147483647, %v4367
        %vm4399 = vcmp.eq.f32.partialorder %v4398, 8.507059e+37
        %v4400 = vand.u32 %v4367, 2147483648
        %v4401 = vor.u32 1.1754944e-38, %v4400
        %v4402 = vsel %vm4399, %v4401, %v4397
        %v4403 = vmul.f32 1.0, %v4402
        %v4404 = vrcp.pop %v4368
        %v4405 = vmul.f32 %v4368, %v4404
        %v4406 = vsub.f32 1.0, %v4405
        %v4407 = vmul.f32 %v4404, %v4406
        %v4408 = vadd.f32 %v4404, %v4407
        %vm4409 = vweird.f32 %v4368
        %vm4410 = vweird.f32 %v4404
        %vm4411 = vmor %vm4409, %vm4410
        %v4412 = vsel %vm4411, %v4404, %v4408
        %v4413 = vand.u32 2147483647, %v4368
        %vm4414 = vcmp.eq.f32.partialorder %v4413, 8.507059e+37
        %v4415 = vand.u32 %v4368, 2147483648
        %v4416 = vor.u32 1.1754944e-38, %v4415
        %v4417 = vsel %vm4414, %v4416, %v4412
        %v4418 = vmul.f32 1.0, %v4417
        %v4419 = vrcp.pop %v4369
        %v4420 = vmul.f32 %v4369, %v4419
        %v4421 = vsub.f32 1.0, %v4420
        %v4422 = vmul.f32 %v4419, %v4421
        %v4423 = vadd.f32 %v4419, %v4422
        %vm4424 = vweird.f32 %v4369
        %vm4425 = vweird.f32 %v4419
        %vm4426 = vmor %vm4424, %vm4425
        %v4427 = vsel %vm4426, %v4419, %v4423
        %v4428 = vand.u32 2147483647, %v4369
        %vm4429 = vcmp.eq.f32.partialorder %v4428, 8.507059e+37
        %v4430 = vand.u32 %v4369, 2147483648
        %v4431 = vor.u32 1.1754944e-38, %v4430
        %v4432 = vsel %vm4429, %v4431, %v4427
        %v4433 = vmul.f32 1.0, %v4432
        %v4434 = vrcp.pop %v4370
        %v4435 = vmul.f32 %v4370, %v4434
        %v4436 = vsub.f32 1.0, %v4435
        %v4437 = vmul.f32 %v4434, %v4436
        %v4438 = vadd.f32 %v4434, %v4437
        %vm4439 = vweird.f32 %v4370
        %vm4440 = vweird.f32 %v4434
        %vm4441 = vmor %vm4439, %vm4440
        %v4442 = vsel %vm4441, %v4434, %v4438
        %v4443 = vand.u32 2147483647, %v4370
        %vm4444 = vcmp.eq.f32.partialorder %v4443, 8.507059e+37
        %v4445 = vand.u32 %v4370, 2147483648
        %v4446 = vor.u32 1.1754944e-38, %v4445
        %v4447 = vsel %vm4444, %v4446, %v4442
        %v4448 = vmul.f32 1.0, %v4447
        %v4449 = vrcp.pop %v4371
        %v4450 = vmul.f32 %v4371, %v4449
        %v4451 = vsub.f32 1.0, %v4450
        %v4452 = vmul.f32 %v4449, %v4451
        %v4453 = vadd.f32 %v4449, %v4452
        %vm4454 = vweird.f32 %v4371
        %vm4455 = vweird.f32 %v4449
        %vm4456 = vmor %vm4454, %vm4455
        %v4457 = vsel %vm4456, %v4449, %v4453
        %v4458 = vand.u32 2147483647, %v4371
        %vm4459 = vcmp.eq.f32.partialorder %v4458, 8.507059e+37
        %v4460 = vand.u32 %v4371, 2147483648
        %v4461 = vor.u32 1.1754944e-38, %v4460
        %v4462 = vsel %vm4459, %v4461, %v4457
        %v4463 = vmul.f32 1.0, %v4462
        %v4464 = vrcp.pop %v4372
        %v4465 = vmul.f32 %v4372, %v4464
        %v4466 = vsub.f32 1.0, %v4465
        %v4467 = vmul.f32 %v4464, %v4466
        %v4468 = vadd.f32 %v4464, %v4467
        %vm4469 = vweird.f32 %v4372
        %vm4470 = vweird.f32 %v4464
        %vm4471 = vmor %vm4469, %vm4470
        %v4472 = vsel %vm4471, %v4464, %v4468
        %v4473 = vand.u32 2147483647, %v4372
        %vm4474 = vcmp.eq.f32.partialorder %v4473, 8.507059e+37
        %v4475 = vand.u32 %v4372, 2147483648
        %v4476 = vor.u32 1.1754944e-38, %v4475
        %v4477 = vsel %vm4474, %v4476, %v4472
        %v4478 = vmul.f32 1.0, %v4477
        %v4479 = vrcp.pop %v4373
        %v4480 = vmul.f32 %v4373, %v4479
        %v4481 = vsub.f32 1.0, %v4480
        %v4482 = vmul.f32 %v4479, %v4481
        %v4483 = vadd.f32 %v4479, %v4482
        %vm4484 = vweird.f32 %v4373
        %vm4485 = vweird.f32 %v4479
        %vm4486 = vmor %vm4484, %vm4485
        %v4487 = vsel %vm4486, %v4479, %v4483
        %v4488 = vand.u32 2147483647, %v4373
        %vm4489 = vcmp.eq.f32.partialorder %v4488, 8.507059e+37
        %v4490 = vand.u32 %v4373, 2147483648
        %v4491 = vor.u32 1.1754944e-38, %v4490
        %v4492 = vsel %vm4489, %v4491, %v4487
        %v4493 = vmul.f32 1.0, %v4492
        %v4494 = vmul.f32 %v4388, 1.0614054
        %v4495 = vmul.f32 %v4403, 1.0614054
        %v4496 = vmul.f32 %v4418, 1.0614054
        %v4497 = vmul.f32 %v4433, 1.0614054
        %v4498 = vmul.f32 %v4448, 1.0614054
        %v4499 = vmul.f32 %v4463, 1.0614054
        %v4500 = vmul.f32 %v4478, 1.0614054
        %v4501 = vmul.f32 %v4493, 1.0614054
        %v4502 = vadd.f32 %v4494, -1.4531521
        %v4503 = vadd.f32 %v4495, -1.4531521
        %v4504 = vadd.f32 %v4496, -1.4531521
        %v4505 = vadd.f32 %v4497, -1.4531521
        %v4506 = vadd.f32 %v4498, -1.4531521
        %v4507 = vadd.f32 %v4499, -1.4531521
        %v4508 = vadd.f32 %v4500, -1.4531521
        %v4509 = vadd.f32 %v4501, -1.4531521
        %v4510 = vmul.f32 %v4388, %v4502
        %v4511 = vmul.f32 %v4403, %v4503
        %v4512 = vmul.f32 %v4418, %v4504
        %v4513 = vmul.f32 %v4433, %v4505
        %v4514 = vmul.f32 %v4448, %v4506
        %v4515 = vmul.f32 %v4463, %v4507
        %v4516 = vmul.f32 %v4478, %v4508
        %v4517 = vmul.f32 %v4493, %v4509
        %v4518 = vadd.f32 %v4510, 1.4214138
        %v4519 = vadd.f32 %v4511, 1.4214138
        %v4520 = vadd.f32 %v4512, 1.4214138
        %v4521 = vadd.f32 %v4513, 1.4214138
        %v4522 = vadd.f32 %v4514, 1.4214138
        %v4523 = vadd.f32 %v4515, 1.4214138
        %v4524 = vadd.f32 %v4516, 1.4214138
        %v4525 = vadd.f32 %v4517, 1.4214138
        %v4526 = vmul.f32 %v4388, %v4518
        %v4527 = vmul.f32 %v4403, %v4519
        %v4528 = vmul.f32 %v4418, %v4520
        %v4529 = vmul.f32 %v4433, %v4521
        %v4530 = vmul.f32 %v4448, %v4522
        %v4531 = vmul.f32 %v4463, %v4523
        %v4532 = vmul.f32 %v4478, %v4524
        %v4533 = vmul.f32 %v4493, %v4525
        %v4534 = vadd.f32 %v4526, -0.28449672
        %v4535 = vadd.f32 %v4527, -0.28449672
        %v4536 = vadd.f32 %v4528, -0.28449672
        %v4537 = vadd.f32 %v4529, -0.28449672
        %v4538 = vadd.f32 %v4530, -0.28449672
        %v4539 = vadd.f32 %v4531, -0.28449672
        %v4540 = vadd.f32 %v4532, -0.28449672
        %v4541 = vadd.f32 %v4533, -0.28449672
        %v4542 = vmul.f32 %v4388, %v4534
        %v4543 = vmul.f32 %v4403, %v4535
        %v4544 = vmul.f32 %v4418, %v4536
        %v4545 = vmul.f32 %v4433, %v4537
        %v4546 = vmul.f32 %v4448, %v4538
        %v4547 = vmul.f32 %v4463, %v4539
        %v4548 = vmul.f32 %v4478, %v4540
        %v4549 = vmul.f32 %v4493, %v4541
        %v4550 = vadd.f32 %v4542, 0.2548296
        %v4551 = vadd.f32 %v4543, 0.2548296
        %v4552 = vadd.f32 %v4544, 0.2548296
        %v4553 = vadd.f32 %v4545, 0.2548296
        %v4554 = vadd.f32 %v4546, 0.2548296
        %v4555 = vadd.f32 %v4547, 0.2548296
        %v4556 = vadd.f32 %v4548, 0.2548296
        %v4557 = vadd.f32 %v4549, 0.2548296
        %v4558 = vmul.f32 %v4388, %v4550
        %v4559 = vmul.f32 %v4403, %v4551
        %v4560 = vmul.f32 %v4418, %v4552
        %v4561 = vmul.f32 %v4433, %v4553
        %v4562 = vmul.f32 %v4448, %v4554
        %v4563 = vmul.f32 %v4463, %v4555
        %v4564 = vmul.f32 %v4478, %v4556
        %v4565 = vmul.f32 %v4493, %v4557
        %v4566 = vsub.f32 0.0, %v4350
        %v4567 = vsub.f32 0.0, %v4351
        %v4568 = vsub.f32 0.0, %v4352
        %v4569 = vsub.f32 0.0, %v4353
        %v4570 = vsub.f32 0.0, %v4354
        %v4571 = vsub.f32 0.0, %v4355
        %v4572 = vsub.f32 0.0, %v4356
        %v4573 = vsub.f32 0.0, %v4357
        %v4574 = vmul.f32 %v4566, %v4350
        %v4575 = vmul.f32 %v4567, %v4351
        %v4576 = vmul.f32 %v4568, %v4352
        %v4577 = vmul.f32 %v4569, %v4353
        %v4578 = vmul.f32 %v4570, %v4354
        %v4579 = vmul.f32 %v4571, %v4355
        %v4580 = vmul.f32 %v4572, %v4356
        %v4581 = vmul.f32 %v4573, %v4357
        %v4582 = vmul.f32 %v4574, 1.442695
        %v4583 = vpow.pop %v4582
        %v4584 = vmul.f32 %v4575, 1.442695
        %v4585 = vpow.pop %v4584
        %v4586 = vmul.f32 %v4576, 1.442695
        %v4587 = vpow.pop %v4586
        %v4588 = vmul.f32 %v4577, 1.442695
        %v4589 = vpow.pop %v4588
        %v4590 = vmul.f32 %v4578, 1.442695
        %v4591 = vpow.pop %v4590
        %v4592 = vmul.f32 %v4579, 1.442695
        %v4593 = vpow.pop %v4592
        %v4594 = vmul.f32 %v4580, 1.442695
        %v4595 = vpow.pop %v4594
        %v4596 = vmul.f32 %v4581, 1.442695
        %v4597 = vpow.pop %v4596
        %v4598 = vmul.f32 %v4558, %v4583
        %v4599 = vmul.f32 %v4559, %v4585
        %v4600 = vmul.f32 %v4560, %v4587
        %v4601 = vmul.f32 %v4561, %v4589
        %v4602 = vmul.f32 %v4562, %v4591
        %v4603 = vmul.f32 %v4563, %v4593
        %v4604 = vmul.f32 %v4564, %v4595
        %v4605 = vmul.f32 %v4565, %v4597
        %v4606 = vsub.f32 1.0, %v4598
        %v4607 = vsub.f32 1.0, %v4599
        %v4608 = vsub.f32 1.0, %v4600
        %v4609 = vsub.f32 1.0, %v4601
        %v4610 = vsub.f32 1.0, %v4602
        %v4611 = vsub.f32 1.0, %v4603
        %v4612 = vsub.f32 1.0, %v4604
        %v4613 = vsub.f32 1.0, %v4605
        %vm4614 = vcmp.ge.f32.partialorder %v4342, 0.0
        %vm4615 = vcmp.ge.f32.partialorder %v4343, 0.0
        %vm4616 = vcmp.ge.f32.partialorder %v4344, 0.0
        %vm4617 = vcmp.ge.f32.partialorder %v4345, 0.0
        %vm4618 = vcmp.ge.f32.partialorder %v4346, 0.0
        %vm4619 = vcmp.ge.f32.partialorder %v4347, 0.0
        %vm4620 = vcmp.ge.f32.partialorder %v4348, 0.0
        %vm4621 = vcmp.ge.f32.partialorder %v4349, 0.0
        %v4622 = vsub.f32 0.0, %v4606
        %v4623 = vsub.f32 0.0, %v4607
        %v4624 = vsub.f32 0.0, %v4608
        %v4625 = vsub.f32 0.0, %v4609
        %v4626 = vsub.f32 0.0, %v4610
        %v4627 = vsub.f32 0.0, %v4611
        %v4628 = vsub.f32 0.0, %v4612
        %v4629 = vsub.f32 0.0, %v4613
        %v4630 = vsel %vm4614, %v4606, %v4622
        %v4631 = vsel %vm4615, %v4607, %v4623
        %v4632 = vsel %vm4616, %v4608, %v4624
        %v4633 = vsel %vm4617, %v4609, %v4625
        %v4634 = vsel %vm4618, %v4610, %v4626
        %v4635 = vsel %vm4619, %v4611, %v4627
        %v4636 = vsel %vm4620, %v4612, %v4628
        %v4637 = vsel %vm4621, %v4613, %v4629
        %v4638 = vmul.f32 %v4334, 0.5
        %v4639 = vmul.f32 %v4335, 0.5
        %v4640 = vmul.f32 %v4336, 0.5
        %v4641 = vmul.f32 %v4337, 0.5
        %v4642 = vmul.f32 %v4338, 0.5
        %v4643 = vmul.f32 %v4339, 0.5
        %v4644 = vmul.f32 %v4340, 0.5
        %v4645 = vmul.f32 %v4341, 0.5
        %v4646 = vadd.f32 %v4630, 1.0
        %v4647 = vadd.f32 %v4631, 1.0
        %v4648 = vadd.f32 %v4632, 1.0
        %v4649 = vadd.f32 %v4633, 1.0
        %v4650 = vadd.f32 %v4634, 1.0
        %v4651 = vadd.f32 %v4635, 1.0
        %v4652 = vadd.f32 %v4636, 1.0
        %v4653 = vadd.f32 %v4637, 1.0
        %v4654 = vmul.f32 %v4638, %v4646
        %v4655 = vmul.f32 %v4639, %v4647
        %v4656 = vmul.f32 %v4640, %v4648
        %v4657 = vmul.f32 %v4641, %v4649
        %v4658 = vmul.f32 %v4642, %v4650
        %v4659 = vmul.f32 %v4643, %v4651
        %v4660 = vmul.f32 %v4644, %v4652
        %v4661 = vmul.f32 %v4645, %v4653
        %s4662 = scalar_lea.vmem %s10, 8
        %v4663 = vld [vmem:[%s4662] sm:$0xff]
        %s4664 = scalar_lea.vmem %s11, 1
        %v4665 = vld [vmem:[%s4664] sm:$0x1]
        %v4667 = vperm.slane %v4665, 0
        %v4670 = vsel %vm620, %v4654, 0
        %v4673 = vsel %vm620, %v4655, 0
        %v4676 = vsel %vm620, %v4656, 0
        %v4679 = vsel %vm620, %v4657, 0
        %v4682 = vsel %vm620, %v4658, 0
        %v4685 = vsel %vm620, %v4659, 0
        %v4688 = vsel %vm620, %v4660, 0
        %v4691 = vsel %vm620, %v4661, 0
        %4693 = vmatpush.msra.mxu0 0.0
        %4694 = vmatpush.msra.mxu0 0.0
        %4695 = vmatpush.msra.mxu0 0.0
        %4696 = vmatpush.msra.mxu0 0.0
        %4697 = vmatpush.msra.mxu0 0.0
        %4698 = vmatpush.msra.mxu0 0.0
        %4699 = vmatpush.msra.mxu0 0.0
        %4700 = vmatpush.msra.mxu0 0.0
        %4701 = vmatpush.msra.mxu0 0.0
        %4702 = vmatpush.msra.mxu0 0.0
        %4703 = vmatpush.msra.mxu0 0.0
        %4704 = vmatpush.msra.mxu0 0.0
        %4705 = vmatpush.msra.mxu0 0.0
        %4706 = vmatpush.msra.mxu0 0.0
        %4707 = vmatpush.msra.mxu0 0.0
        %4708 = vmatpush.msra.mxu0 %v4663
        %4709 = vmatmul.f32.gmra.mxu0 %v4670
        %v4710 = vpop.f32.mrf.mxu0
        %v4711 = vadd.f32 %v4667, %v4710
        %4712 = vmatmul.f32.gmra.mxu0 %v4673
        %v4713 = vpop.f32.mrf.mxu0
        %v4714 = vadd.f32 %v4667, %v4713
        %4715 = vmatmul.f32.gmra.mxu0 %v4676
        %v4716 = vpop.f32.mrf.mxu0
        %v4717 = vadd.f32 %v4667, %v4716
        %4718 = vmatmul.f32.gmra.mxu0 %v4679
        %v4719 = vpop.f32.mrf.mxu0
        %v4720 = vadd.f32 %v4667, %v4719
        %4721 = vmatmul.f32.gmra.mxu0 %v4682
        %v4722 = vpop.f32.mrf.mxu0
        %v4723 = vadd.f32 %v4667, %v4722
        %4724 = vmatmul.f32.gmra.mxu0 %v4685
        %v4725 = vpop.f32.mrf.mxu0
        %v4726 = vadd.f32 %v4667, %v4725
        %4727 = vmatmul.f32.gmra.mxu0 %v4688
        %v4728 = vpop.f32.mrf.mxu0
        %v4729 = vadd.f32 %v4667, %v4728
        %4730 = vmatmul.f32.gmra.mxu0 %v4691
        %v4731 = vpop.f32.mrf.mxu0
        %v4732 = vadd.f32 %v4667, %v4731
        %4733 = vdwg.mxu0
        %s4734 = scalar_lea.vmem %s12, 1
        %v4735 = vld [vmem:[%s4734] sm:$0x1]
        %s4736 = scalar_lea.vmem %s13, 1
        %v4737 = vld [vmem:[%s4736] sm:$0x1]
        %v4738 = vsel %vm552, %v4711, 0.0
        %4739 = vadd.xlane.f32.xlu0 %v4738
        %v4740 = vpop.xlane.xlu0 %4739
        %v4741 = vsel %vm552, %v4714, 0.0
        %4742 = vadd.xlane.f32.xlu0 %v4741
        %v4743 = vpop.xlane.xlu0 %4742
        %v4744 = vsel %vm552, %v4717, 0.0
        %4745 = vadd.xlane.f32.xlu0 %v4744
        %v4746 = vpop.xlane.xlu0 %4745
        %v4747 = vsel %vm552, %v4720, 0.0
        %4748 = vadd.xlane.f32.xlu0 %v4747
        %v4749 = vpop.xlane.xlu0 %4748
        %v4750 = vsel %vm552, %v4723, 0.0
        %4751 = vadd.xlane.f32.xlu0 %v4750
        %v4752 = vpop.xlane.xlu0 %4751
        %v4753 = vsel %vm552, %v4726, 0.0
        %4754 = vadd.xlane.f32.xlu0 %v4753
        %v4755 = vpop.xlane.xlu0 %4754
        %v4756 = vsel %vm552, %v4729, 0.0
        %4757 = vadd.xlane.f32.xlu0 %v4756
        %v4758 = vpop.xlane.xlu0 %4757
        %v4759 = vsel %vm552, %v4732, 0.0
        %4760 = vadd.xlane.f32.xlu0 %v4759
        %v4761 = vpop.xlane.xlu0 %4760
        %v4762 = vadd.f32 %v4740, %v4743
        %v4763 = vadd.f32 %v4762, %v4746
        %v4764 = vadd.f32 %v4763, %v4749
        %v4765 = vadd.f32 %v4764, %v4752
        %v4766 = vadd.f32 %v4765, %v4755
        %v4767 = vadd.f32 %v4766, %v4758
        %v4768 = vadd.f32 %v4767, %v4761
        %v4769 = vrot.slane %v4768, 4
        %v4770 = vadd.f32 %v4768, %v4769
        %v4771 = vrot.slane %v4770, 2
        %v4772 = vadd.f32 %v4770, %v4771
        %v4773 = vrot.slane %v4772, 1
        %v4774 = vadd.f32 %v4772, %v4773
        %v4775 = vmul.f32 %v4774, 0.00048828125
        %v4776 = vsub.f32 %v4711, %v4775
        %v4777 = vsub.f32 %v4714, %v4775
        %v4778 = vsub.f32 %v4717, %v4775
        %v4779 = vsub.f32 %v4720, %v4775
        %v4780 = vsub.f32 %v4723, %v4775
        %v4781 = vsub.f32 %v4726, %v4775
        %v4782 = vsub.f32 %v4729, %v4775
        %v4783 = vsub.f32 %v4732, %v4775
        %v4784 = vmul.f32 %v4776, %v4776
        %v4785 = vmul.f32 %v4777, %v4777
        %v4786 = vmul.f32 %v4778, %v4778
        %v4787 = vmul.f32 %v4779, %v4779
        %v4788 = vmul.f32 %v4780, %v4780
        %v4789 = vmul.f32 %v4781, %v4781
        %v4790 = vmul.f32 %v4782, %v4782
        %v4791 = vmul.f32 %v4783, %v4783
        %v4792 = vsel %vm552, %v4784, 0.0
        %4793 = vadd.xlane.f32.xlu0 %v4792
        %v4794 = vpop.xlane.xlu0 %4793
        %v4795 = vsel %vm552, %v4785, 0.0
        %4796 = vadd.xlane.f32.xlu0 %v4795
        %v4797 = vpop.xlane.xlu0 %4796
        %v4798 = vsel %vm552, %v4786, 0.0
        %4799 = vadd.xlane.f32.xlu0 %v4798
        %v4800 = vpop.xlane.xlu0 %4799
        %v4801 = vsel %vm552, %v4787, 0.0
        %4802 = vadd.xlane.f32.xlu0 %v4801
        %v4803 = vpop.xlane.xlu0 %4802
        %v4804 = vsel %vm552, %v4788, 0.0
        %4805 = vadd.xlane.f32.xlu0 %v4804
        %v4806 = vpop.xlane.xlu0 %4805
        %v4807 = vsel %vm552, %v4789, 0.0
        %4808 = vadd.xlane.f32.xlu0 %v4807
        %v4809 = vpop.xlane.xlu0 %4808
        %v4810 = vsel %vm552, %v4790, 0.0
        %4811 = vadd.xlane.f32.xlu0 %v4810
        %v4812 = vpop.xlane.xlu0 %4811
        %v4813 = vsel %vm552, %v4791, 0.0
        %4814 = vadd.xlane.f32.xlu0 %v4813
        %v4815 = vpop.xlane.xlu0 %4814
        %v4816 = vadd.f32 %v4794, %v4797
        %v4817 = vadd.f32 %v4816, %v4800
        %v4818 = vadd.f32 %v4817, %v4803
        %v4819 = vadd.f32 %v4818, %v4806
        %v4820 = vadd.f32 %v4819, %v4809
        %v4821 = vadd.f32 %v4820, %v4812
        %v4822 = vadd.f32 %v4821, %v4815
        %v4823 = vrot.slane %v4822, 4
        %v4824 = vadd.f32 %v4822, %v4823
        %v4825 = vrot.slane %v4824, 2
        %v4826 = vadd.f32 %v4824, %v4825
        %v4827 = vrot.slane %v4826, 1
        %v4828 = vadd.f32 %v4826, %v4827
        %v4829 = vmul.f32 %v4828, 0.00048828125
        %v4830 = vadd.f32 %v4829, 1e-05
        %v4831 = vrsqrt.pop %v4830
        %v4832 = vmul.f32 %v4831, %v4830
        %v4833 = vmul.f32 %v4832, %v4831
        %v4834 = vmul.f32 0.5, %v4833
        %v4835 = vsub.f32 1.5, %v4834
        %v4836 = vmul.f32 %v4831, %v4835
        %vm4837 = vweird.f32 %v4830
        %vm4838 = vweird.f32 %v4831
        %vm4839 = vmor %vm4837, %vm4838
        %v4840 = vsel %vm4839, %v4831, %v4836
        %v4841 = vmul.f32 %v4776, %v4840
        %v4842 = vmul.f32 %v4777, %v4840
        %v4843 = vmul.f32 %v4778, %v4840
        %v4844 = vmul.f32 %v4779, %v4840
        %v4845 = vmul.f32 %v4780, %v4840
        %v4846 = vmul.f32 %v4781, %v4840
        %v4847 = vmul.f32 %v4782, %v4840
        %v4848 = vmul.f32 %v4783, %v4840
        %v4850 = vperm.slane %v4735, 0
        %v4852 = vmul.f32 %v4841, %v4850
        %v4853 = vmul.f32 %v4842, %v4850
        %v4854 = vmul.f32 %v4843, %v4850
        %v4855 = vmul.f32 %v4844, %v4850
        %v4856 = vmul.f32 %v4845, %v4850
        %v4857 = vmul.f32 %v4846, %v4850
        %v4858 = vmul.f32 %v4847, %v4850
        %v4859 = vmul.f32 %v4848, %v4850
        %v4861 = vperm.slane %v4737, 0
        %v4863 = vadd.f32 %v4852, %v4861
        %v4864 = vadd.f32 %v4853, %v4861
        %v4865 = vadd.f32 %v4854, %v4861
        %v4866 = vadd.f32 %v4855, %v4861
        %v4867 = vadd.f32 %v4856, %v4861
        %v4868 = vadd.f32 %v4857, %v4861
        %v4869 = vadd.f32 %v4858, %v4861
        %v4870 = vadd.f32 %v4859, %v4861
        %v4871 = vadd.f32 %v4863, %v2870
        %v4872 = vadd.f32 %v4864, %v2871
        %v4873 = vadd.f32 %v4865, %v2872
        %v4874 = vadd.f32 %v4866, %v2873
        %v4875 = vadd.f32 %v4867, %v2874
        %v4876 = vadd.f32 %v4868, %v2875
        %v4877 = vadd.f32 %v4869, %v2876
        %v4878 = vadd.f32 %v4870, %v2877
        %v4879 = vmul.f32 %v4871, 0.70710677
        %v4880 = vmul.f32 %v4872, 0.70710677
        %v4881 = vmul.f32 %v4873, 0.70710677
        %v4882 = vmul.f32 %v4874, 0.70710677
        %v4883 = vmul.f32 %v4875, 0.70710677
        %v4884 = vmul.f32 %v4876, 0.70710677
        %v4885 = vmul.f32 %v4877, 0.70710677
        %v4886 = vmul.f32 %v4878, 0.70710677
        %v4887 = vand.u32 2147483647, %v4879
        %v4888 = vand.u32 2147483647, %v4880
        %v4889 = vand.u32 2147483647, %v4881
        %v4890 = vand.u32 2147483647, %v4882
        %v4891 = vand.u32 2147483647, %v4883
        %v4892 = vand.u32 2147483647, %v4884
        %v4893 = vand.u32 2147483647, %v4885
        %v4894 = vand.u32 2147483647, %v4886
        %v4895 = vmul.f32 %v4887, 0.3275911
        %v4896 = vmul.f32 %v4888, 0.3275911
        %v4897 = vmul.f32 %v4889, 0.3275911
        %v4898 = vmul.f32 %v4890, 0.3275911
        %v4899 = vmul.f32 %v4891, 0.3275911
        %v4900 = vmul.f32 %v4892, 0.3275911
        %v4901 = vmul.f32 %v4893, 0.3275911
        %v4902 = vmul.f32 %v4894, 0.3275911
        %v4903 = vadd.f32 %v4895, 1.0
        %v4904 = vadd.f32 %v4896, 1.0
        %v4905 = vadd.f32 %v4897, 1.0
        %v4906 = vadd.f32 %v4898, 1.0
        %v4907 = vadd.f32 %v4899, 1.0
        %v4908 = vadd.f32 %v4900, 1.0
        %v4909 = vadd.f32 %v4901, 1.0
        %v4910 = vadd.f32 %v4902, 1.0
        %v4911 = vrcp.pop %v4903
        %v4912 = vmul.f32 %v4903, %v4911
        %v4913 = vsub.f32 1.0, %v4912
        %v4914 = vmul.f32 %v4911, %v4913
        %v4915 = vadd.f32 %v4911, %v4914
        %vm4916 = vweird.f32 %v4903
        %vm4917 = vweird.f32 %v4911
        %vm4918 = vmor %vm4916, %vm4917
        %v4919 = vsel %vm4918, %v4911, %v4915
        %v4920 = vand.u32 2147483647, %v4903
        %vm4921 = vcmp.eq.f32.partialorder %v4920, 8.507059e+37
        %v4922 = vand.u32 %v4903, 2147483648
        %v4923 = vor.u32 1.1754944e-38, %v4922
        %v4924 = vsel %vm4921, %v4923, %v4919
        %v4925 = vmul.f32 1.0, %v4924
        %v4926 = vrcp.pop %v4904
        %v4927 = vmul.f32 %v4904, %v4926
        %v4928 = vsub.f32 1.0, %v4927
        %v4929 = vmul.f32 %v4926, %v4928
        %v4930 = vadd.f32 %v4926, %v4929
        %vm4931 = vweird.f32 %v4904
        %vm4932 = vweird.f32 %v4926
        %vm4933 = vmor %vm4931, %vm4932
        %v4934 = vsel %vm4933, %v4926, %v4930
        %v4935 = vand.u32 2147483647, %v4904
        %vm4936 = vcmp.eq.f32.partialorder %v4935, 8.507059e+37
        %v4937 = vand.u32 %v4904, 2147483648
        %v4938 = vor.u32 1.1754944e-38, %v4937
        %v4939 = vsel %vm4936, %v4938, %v4934
        %v4940 = vmul.f32 1.0, %v4939
        %v4941 = vrcp.pop %v4905
        %v4942 = vmul.f32 %v4905, %v4941
        %v4943 = vsub.f32 1.0, %v4942
        %v4944 = vmul.f32 %v4941, %v4943
        %v4945 = vadd.f32 %v4941, %v4944
        %vm4946 = vweird.f32 %v4905
        %vm4947 = vweird.f32 %v4941
        %vm4948 = vmor %vm4946, %vm4947
        %v4949 = vsel %vm4948, %v4941, %v4945
        %v4950 = vand.u32 2147483647, %v4905
        %vm4951 = vcmp.eq.f32.partialorder %v4950, 8.507059e+37
        %v4952 = vand.u32 %v4905, 2147483648
        %v4953 = vor.u32 1.1754944e-38, %v4952
        %v4954 = vsel %vm4951, %v4953, %v4949
        %v4955 = vmul.f32 1.0, %v4954
        %v4956 = vrcp.pop %v4906
        %v4957 = vmul.f32 %v4906, %v4956
        %v4958 = vsub.f32 1.0, %v4957
        %v4959 = vmul.f32 %v4956, %v4958
        %v4960 = vadd.f32 %v4956, %v4959
        %vm4961 = vweird.f32 %v4906
        %vm4962 = vweird.f32 %v4956
        %vm4963 = vmor %vm4961, %vm4962
        %v4964 = vsel %vm4963, %v4956, %v4960
        %v4965 = vand.u32 2147483647, %v4906
        %vm4966 = vcmp.eq.f32.partialorder %v4965, 8.507059e+37
        %v4967 = vand.u32 %v4906, 2147483648
        %v4968 = vor.u32 1.1754944e-38, %v4967
        %v4969 = vsel %vm4966, %v4968, %v4964
        %v4970 = vmul.f32 1.0, %v4969
        %v4971 = vrcp.pop %v4907
        %v4972 = vmul.f32 %v4907, %v4971
        %v4973 = vsub.f32 1.0, %v4972
        %v4974 = vmul.f32 %v4971, %v4973
        %v4975 = vadd.f32 %v4971, %v4974
        %vm4976 = vweird.f32 %v4907
        %vm4977 = vweird.f32 %v4971
        %vm4978 = vmor %vm4976, %vm4977
        %v4979 = vsel %vm4978, %v4971, %v4975
        %v4980 = vand.u32 2147483647, %v4907
        %vm4981 = vcmp.eq.f32.partialorder %v4980, 8.507059e+37
        %v4982 = vand.u32 %v4907, 2147483648
        %v4983 = vor.u32 1.1754944e-38, %v4982
        %v4984 = vsel %vm4981, %v4983, %v4979
        %v4985 = vmul.f32 1.0, %v4984
        %v4986 = vrcp.pop %v4908
        %v4987 = vmul.f32 %v4908, %v4986
        %v4988 = vsub.f32 1.0, %v4987
        %v4989 = vmul.f32 %v4986, %v4988
        %v4990 = vadd.f32 %v4986, %v4989
        %vm4991 = vweird.f32 %v4908
        %vm4992 = vweird.f32 %v4986
        %vm4993 = vmor %vm4991, %vm4992
        %v4994 = vsel %vm4993, %v4986, %v4990
        %v4995 = vand.u32 2147483647, %v4908
        %vm4996 = vcmp.eq.f32.partialorder %v4995, 8.507059e+37
        %v4997 = vand.u32 %v4908, 2147483648
        %v4998 = vor.u32 1.1754944e-38, %v4997
        %v4999 = vsel %vm4996, %v4998, %v4994
        %v5000 = vmul.f32 1.0, %v4999
        %v5001 = vrcp.pop %v4909
        %v5002 = vmul.f32 %v4909, %v5001
        %v5003 = vsub.f32 1.0, %v5002
        %v5004 = vmul.f32 %v5001, %v5003
        %v5005 = vadd.f32 %v5001, %v5004
        %vm5006 = vweird.f32 %v4909
        %vm5007 = vweird.f32 %v5001
        %vm5008 = vmor %vm5006, %vm5007
        %v5009 = vsel %vm5008, %v5001, %v5005
        %v5010 = vand.u32 2147483647, %v4909
        %vm5011 = vcmp.eq.f32.partialorder %v5010, 8.507059e+37
        %v5012 = vand.u32 %v4909, 2147483648
        %v5013 = vor.u32 1.1754944e-38, %v5012
        %v5014 = vsel %vm5011, %v5013, %v5009
        %v5015 = vmul.f32 1.0, %v5014
        %v5016 = vrcp.pop %v4910
        %v5017 = vmul.f32 %v4910, %v5016
        %v5018 = vsub.f32 1.0, %v5017
        %v5019 = vmul.f32 %v5016, %v5018
        %v5020 = vadd.f32 %v5016, %v5019
        %vm5021 = vweird.f32 %v4910
        %vm5022 = vweird.f32 %v5016
        %vm5023 = vmor %vm5021, %vm5022
        %v5024 = vsel %vm5023, %v5016, %v5020
        %v5025 = vand.u32 2147483647, %v4910
        %vm5026 = vcmp.eq.f32.partialorder %v5025, 8.507059e+37
        %v5027 = vand.u32 %v4910, 2147483648
        %v5028 = vor.u32 1.1754944e-38, %v5027
        %v5029 = vsel %vm5026, %v5028, %v5024
        %v5030 = vmul.f32 1.0, %v5029
        %v5031 = vmul.f32 %v4925, 1.0614054
        %v5032 = vmul.f32 %v4940, 1.0614054
        %v5033 = vmul.f32 %v4955, 1.0614054
        %v5034 = vmul.f32 %v4970, 1.0614054
        %v5035 = vmul.f32 %v4985, 1.0614054
        %v5036 = vmul.f32 %v5000, 1.0614054
        %v5037 = vmul.f32 %v5015, 1.0614054
        %v5038 = vmul.f32 %v5030, 1.0614054
        %v5039 = vadd.f32 %v5031, -1.4531521
        %v5040 = vadd.f32 %v5032, -1.4531521
        %v5041 = vadd.f32 %v5033, -1.4531521
        %v5042 = vadd.f32 %v5034, -1.4531521
        %v5043 = vadd.f32 %v5035, -1.4531521
        %v5044 = vadd.f32 %v5036, -1.4531521
        %v5045 = vadd.f32 %v5037, -1.4531521
        %v5046 = vadd.f32 %v5038, -1.4531521
        %v5047 = vmul.f32 %v4925, %v5039
        %v5048 = vmul.f32 %v4940, %v5040
        %v5049 = vmul.f32 %v4955, %v5041
        %v5050 = vmul.f32 %v4970, %v5042
        %v5051 = vmul.f32 %v4985, %v5043
        %v5052 = vmul.f32 %v5000, %v5044
        %v5053 = vmul.f32 %v5015, %v5045
        %v5054 = vmul.f32 %v5030, %v5046
        %v5055 = vadd.f32 %v5047, 1.4214138
        %v5056 = vadd.f32 %v5048, 1.4214138
        %v5057 = vadd.f32 %v5049, 1.4214138
        %v5058 = vadd.f32 %v5050, 1.4214138
        %v5059 = vadd.f32 %v5051, 1.4214138
        %v5060 = vadd.f32 %v5052, 1.4214138
        %v5061 = vadd.f32 %v5053, 1.4214138
        %v5062 = vadd.f32 %v5054, 1.4214138
        %v5063 = vmul.f32 %v4925, %v5055
        %v5064 = vmul.f32 %v4940, %v5056
        %v5065 = vmul.f32 %v4955, %v5057
        %v5066 = vmul.f32 %v4970, %v5058
        %v5067 = vmul.f32 %v4985, %v5059
        %v5068 = vmul.f32 %v5000, %v5060
        %v5069 = vmul.f32 %v5015, %v5061
        %v5070 = vmul.f32 %v5030, %v5062
        %v5071 = vadd.f32 %v5063, -0.28449672
        %v5072 = vadd.f32 %v5064, -0.28449672
        %v5073 = vadd.f32 %v5065, -0.28449672
        %v5074 = vadd.f32 %v5066, -0.28449672
        %v5075 = vadd.f32 %v5067, -0.28449672
        %v5076 = vadd.f32 %v5068, -0.28449672
        %v5077 = vadd.f32 %v5069, -0.28449672
        %v5078 = vadd.f32 %v5070, -0.28449672
        %v5079 = vmul.f32 %v4925, %v5071
        %v5080 = vmul.f32 %v4940, %v5072
        %v5081 = vmul.f32 %v4955, %v5073
        %v5082 = vmul.f32 %v4970, %v5074
        %v5083 = vmul.f32 %v4985, %v5075
        %v5084 = vmul.f32 %v5000, %v5076
        %v5085 = vmul.f32 %v5015, %v5077
        %v5086 = vmul.f32 %v5030, %v5078
        %v5087 = vadd.f32 %v5079, 0.2548296
        %v5088 = vadd.f32 %v5080, 0.2548296
        %v5089 = vadd.f32 %v5081, 0.2548296
        %v5090 = vadd.f32 %v5082, 0.2548296
        %v5091 = vadd.f32 %v5083, 0.2548296
        %v5092 = vadd.f32 %v5084, 0.2548296
        %v5093 = vadd.f32 %v5085, 0.2548296
        %v5094 = vadd.f32 %v5086, 0.2548296
        %v5095 = vmul.f32 %v4925, %v5087
        %v5096 = vmul.f32 %v4940, %v5088
        %v5097 = vmul.f32 %v4955, %v5089
        %v5098 = vmul.f32 %v4970, %v5090
        %v5099 = vmul.f32 %v4985, %v5091
        %v5100 = vmul.f32 %v5000, %v5092
        %v5101 = vmul.f32 %v5015, %v5093
        %v5102 = vmul.f32 %v5030, %v5094
        %v5103 = vsub.f32 0.0, %v4887
        %v5104 = vsub.f32 0.0, %v4888
        %v5105 = vsub.f32 0.0, %v4889
        %v5106 = vsub.f32 0.0, %v4890
        %v5107 = vsub.f32 0.0, %v4891
        %v5108 = vsub.f32 0.0, %v4892
        %v5109 = vsub.f32 0.0, %v4893
        %v5110 = vsub.f32 0.0, %v4894
        %v5111 = vmul.f32 %v5103, %v4887
        %v5112 = vmul.f32 %v5104, %v4888
        %v5113 = vmul.f32 %v5105, %v4889
        %v5114 = vmul.f32 %v5106, %v4890
        %v5115 = vmul.f32 %v5107, %v4891
        %v5116 = vmul.f32 %v5108, %v4892
        %v5117 = vmul.f32 %v5109, %v4893
        %v5118 = vmul.f32 %v5110, %v4894
        %v5119 = vmul.f32 %v5111, 1.442695
        %v5120 = vpow.pop %v5119
        %v5121 = vmul.f32 %v5112, 1.442695
        %v5122 = vpow.pop %v5121
        %v5123 = vmul.f32 %v5113, 1.442695
        %v5124 = vpow.pop %v5123
        %v5125 = vmul.f32 %v5114, 1.442695
        %v5126 = vpow.pop %v5125
        %v5127 = vmul.f32 %v5115, 1.442695
        %v5128 = vpow.pop %v5127
        %v5129 = vmul.f32 %v5116, 1.442695
        %v5130 = vpow.pop %v5129
        %v5131 = vmul.f32 %v5117, 1.442695
        %v5132 = vpow.pop %v5131
        %v5133 = vmul.f32 %v5118, 1.442695
        %v5134 = vpow.pop %v5133
        %v5135 = vmul.f32 %v5095, %v5120
        %v5136 = vmul.f32 %v5096, %v5122
        %v5137 = vmul.f32 %v5097, %v5124
        %v5138 = vmul.f32 %v5098, %v5126
        %v5139 = vmul.f32 %v5099, %v5128
        %v5140 = vmul.f32 %v5100, %v5130
        %v5141 = vmul.f32 %v5101, %v5132
        %v5142 = vmul.f32 %v5102, %v5134
        %v5143 = vsub.f32 1.0, %v5135
        %v5144 = vsub.f32 1.0, %v5136
        %v5145 = vsub.f32 1.0, %v5137
        %v5146 = vsub.f32 1.0, %v5138
        %v5147 = vsub.f32 1.0, %v5139
        %v5148 = vsub.f32 1.0, %v5140
        %v5149 = vsub.f32 1.0, %v5141
        %v5150 = vsub.f32 1.0, %v5142
        %vm5151 = vcmp.ge.f32.partialorder %v4879, 0.0
        %vm5152 = vcmp.ge.f32.partialorder %v4880, 0.0
        %vm5153 = vcmp.ge.f32.partialorder %v4881, 0.0
        %vm5154 = vcmp.ge.f32.partialorder %v4882, 0.0
        %vm5155 = vcmp.ge.f32.partialorder %v4883, 0.0
        %vm5156 = vcmp.ge.f32.partialorder %v4884, 0.0
        %vm5157 = vcmp.ge.f32.partialorder %v4885, 0.0
        %vm5158 = vcmp.ge.f32.partialorder %v4886, 0.0
        %v5159 = vsub.f32 0.0, %v5143
        %v5160 = vsub.f32 0.0, %v5144
        %v5161 = vsub.f32 0.0, %v5145
        %v5162 = vsub.f32 0.0, %v5146
        %v5163 = vsub.f32 0.0, %v5147
        %v5164 = vsub.f32 0.0, %v5148
        %v5165 = vsub.f32 0.0, %v5149
        %v5166 = vsub.f32 0.0, %v5150
        %v5167 = vsel %vm5151, %v5143, %v5159
        %v5168 = vsel %vm5152, %v5144, %v5160
        %v5169 = vsel %vm5153, %v5145, %v5161
        %v5170 = vsel %vm5154, %v5146, %v5162
        %v5171 = vsel %vm5155, %v5147, %v5163
        %v5172 = vsel %vm5156, %v5148, %v5164
        %v5173 = vsel %vm5157, %v5149, %v5165
        %v5174 = vsel %vm5158, %v5150, %v5166
        %v5175 = vmul.f32 %v4871, 0.5
        %v5176 = vmul.f32 %v4872, 0.5
        %v5177 = vmul.f32 %v4873, 0.5
        %v5178 = vmul.f32 %v4874, 0.5
        %v5179 = vmul.f32 %v4875, 0.5
        %v5180 = vmul.f32 %v4876, 0.5
        %v5181 = vmul.f32 %v4877, 0.5
        %v5182 = vmul.f32 %v4878, 0.5
        %v5183 = vadd.f32 %v5167, 1.0
        %v5184 = vadd.f32 %v5168, 1.0
        %v5185 = vadd.f32 %v5169, 1.0
        %v5186 = vadd.f32 %v5170, 1.0
        %v5187 = vadd.f32 %v5171, 1.0
        %v5188 = vadd.f32 %v5172, 1.0
        %v5189 = vadd.f32 %v5173, 1.0
        %v5190 = vadd.f32 %v5174, 1.0
        %v5191 = vmul.f32 %v5175, %v5183
        %v5192 = vmul.f32 %v5176, %v5184
        %v5193 = vmul.f32 %v5177, %v5185
        %v5194 = vmul.f32 %v5178, %v5186
        %v5195 = vmul.f32 %v5179, %v5187
        %v5196 = vmul.f32 %v5180, %v5188
        %v5197 = vmul.f32 %v5181, %v5189
        %v5198 = vmul.f32 %v5182, %v5190
        %v5199 = vld [vmem:[%s14] sm:$0xff]
        %v5200 = vld [vmem:[%s14 + $0x8] sm:$0xff]
        %v5201 = vld [vmem:[%s14 + $0x10] sm:$0xff]
        %v5202 = vld [vmem:[%s14 + $0x18] sm:$0xff]
        %v5203 = vld [vmem:[%s15] sm:$0x1]
        %v5205 = vperm.slane %v5203, 0
        %v5208 = vsel %vm552, %v5191, 0
        %v5211 = vsel %vm552, %v5192, 0
        %v5214 = vsel %vm552, %v5193, 0
        %v5217 = vsel %vm552, %v5194, 0
        %v5220 = vsel %vm552, %v5195, 0
        %v5223 = vsel %vm552, %v5196, 0
        %v5226 = vsel %vm552, %v5197, 0
        %v5229 = vsel %vm552, %v5198, 0
        %5231 = vmatpush.msra.mxu0 0.0
        %5232 = vmatpush.msra.mxu0 0.0
        %5233 = vmatpush.msra.mxu0 0.0
        %5234 = vmatpush.msra.mxu0 0.0
        %5235 = vmatpush.msra.mxu0 0.0
        %5236 = vmatpush.msra.mxu0 0.0
        %5237 = vmatpush.msra.mxu0 0.0
        %5238 = vmatpush.msra.mxu0 0.0
        %5239 = vmatpush.msra.mxu0 0.0
        %5240 = vmatpush.msra.mxu0 0.0
        %5241 = vmatpush.msra.mxu0 0.0
        %5242 = vmatpush.msra.mxu0 0.0
        %5243 = vmatpush.msra.mxu0 %v5202
        %5244 = vmatpush.msra.mxu0 %v5201
        %5245 = vmatpush.msra.mxu0 %v5200
        %5246 = vmatpush.msra.mxu0 %v5199
        %5247 = vmatmul.f32.gmra.mxu0 %v5208
        %v5248 = vpop.f32.mrf.mxu0
        %v5249 = vadd.f32 %v5205, %v5248
        %5250 = vmatmul.f32.gmra.mxu0 %v5211
        %v5251 = vpop.f32.mrf.mxu0
        %v5252 = vadd.f32 %v5205, %v5251
        %5253 = vmatmul.f32.gmra.mxu0 %v5214
        %v5254 = vpop.f32.mrf.mxu0
        %v5255 = vadd.f32 %v5205, %v5254
        %5256 = vmatmul.f32.gmra.mxu0 %v5217
        %v5257 = vpop.f32.mrf.mxu0
        %v5258 = vadd.f32 %v5205, %v5257
        %5259 = vmatmul.f32.gmra.mxu0 %v5220
        %v5260 = vpop.f32.mrf.mxu0
        %v5261 = vadd.f32 %v5205, %v5260
        %5262 = vmatmul.f32.gmra.mxu0 %v5223
        %v5263 = vpop.f32.mrf.mxu0
        %v5264 = vadd.f32 %v5205, %v5263
        %5265 = vmatmul.f32.gmra.mxu0 %v5226
        %v5266 = vpop.f32.mrf.mxu0
        %v5267 = vadd.f32 %v5205, %v5266
        %5268 = vmatmul.f32.gmra.mxu0 %v5229
        %v5269 = vpop.f32.mrf.mxu0
        %v5270 = vadd.f32 %v5205, %v5269
        %5271 = vdwg.mxu0
        %vm5272 = vcmask 130048
        %5273 = vst.msk [vmem:[%s514] sm:$0xff] %vm5272, %v5249
        %5274 = vst.msk [vmem:[%s514 + $0x8] sm:$0xff] %vm5272, %v5252
        %5275 = vst.msk [vmem:[%s514 + $0x10] sm:$0xff] %vm5272, %v5255
        %5276 = vst.msk [vmem:[%s514 + $0x18] sm:$0xff] %vm5272, %v5258
        %5277 = vst.msk [vmem:[%s514 + $0x20] sm:$0xff] %vm5272, %v5261
        %5278 = vst.msk [vmem:[%s514 + $0x28] sm:$0xff] %vm5272, %v5264
        %5279 = vst.msk [vmem:[%s514 + $0x30] sm:$0xff] %vm5272, %v5267
        %5280 = vst.msk [vmem:[%s514 + $0x38] sm:$0xff] %vm5272, %v5270
        %s5281 = sand.u32 %s379, 1
        %s5282 = scalar_lea.sflag [#allocation4], %s5281
        %s5283 = sand.u32 %s379, 1
        %s5284 = smul.addr %s5283, 64
        %s5285 = scalar_lea.vmem [#allocation3], %s5284
        // Predicated region
        $region85: #{residual_layer.1} parent=83 // pred_check
          %p5286 = pneg %p389
        $region86: #{residual_layer.1} parent=83 // pred_check_branch
          %5288 = sbr.rel (%p5286) target = $region88
        $region87: #{residual_layer.1} parent=83 // pred_region
          %5290 = vsyncadd %s5282, 0
          %s5291 = smul.addr %s30, 8
          %s5292 = smul.addr %s5291, 8
          %s5293 = scalar_lea.hbm %s16, %s5292
          %s5294 = sshll.u32 %s5285, 4
          %s5295 = int_to_ptr.vmem [resolvable:$true] %s5294
          %s5296 = sshll.u32 %s5293, 4
          %s5297 = int_to_ptr.hbm [resolvable:$true] %s5296
          %5302 = dma.vmem_to_hbm [thread:$0]  %s5295, 1024, %s5297, %s5282, 128, 128, 8
        $region88: #{residual_layer.1} parent=83 // pred_fallthru
          _
      $region84: #{residual_layer.1} parent=5 // pred_fallthru
        _
      %p5303 = scmp.le.s32.totalorder 2, %s25
      // Predicated region
      $region89: #{residual_layer.1} parent=5 // pred_check
        %p5304 = pneg %p5303
      $region90: #{residual_layer.1} parent=5 // pred_check_branch
        %5306 = sbr.rel (%p5304) target = $region92
      $region91: #{residual_layer.1} parent=5 // pred_region
        %s5307 = ssub.s32 %s25, 2
        // Predicated region
        $region93: #{residual_layer.1} parent=91 // pred_check
          %p5308 = pneg %p395
        $region94: #{residual_layer.1} parent=91 // pred_check_branch
          %5310 = sbr.rel (%p5308) target = $region96
        $region95: #{residual_layer.1} parent=91 // pred_region
          %s5311 = sand.u32 %s380, 1
          %s5312 = scalar_lea.sflag [#allocation4], %s5311
          %s5313 = sand.u32 %s380, 1
          %s5314 = smul.addr %s5313, 64
          %s5315 = scalar_lea.vmem [#allocation3], %s5314
          %5317 = dma.done %s5312, 1024
        $region96: #{residual_layer.1} parent=91 // pred_fallthru
          _
      $region92: #{residual_layer.1} parent=5 // pred_fallthru
        _
    $region6: #{residual_layer.1} parent=1 // loop_footer
      %s29 = sadd.s32 1, %s25
    $region7: #{residual_layer.1} parent=1 // loop_footer_branch
      %24 = sbr.rel target = $region3
    $region8: #{residual_layer.1} parent=1 // loop_exit
      _
    %5318 = vsyncpa [#allocation4], 1
    %s5319 = scalar_lea.sflag [#allocation4], 1
    %5320 = vsyncpa %s5319, 1

</llo_original>
